<compile_context>
chip_gen: v7x
topology: tpu7x:2x2x1
jax: 0.10.0
libtpu: 0.0.40
codegen_flags: <defaults>
</compile_context>

<pallas_src>
import functools
import math

import jax
import jax.numpy as jnp
from jax.experimental import pallas as pl
from jax.experimental.pallas import tpu as pltpu

LN_EPS = 1e-5
_VMEM_LIMIT = 32 * 1024 * 1024  # safe on v5e/v6e (128 MiB) and v7x (64 MiB)


def _cp(sem):
    return pltpu.CompilerParams(dimension_semantics=sem, vmem_limit_bytes=_VMEM_LIMIT)


def _pick_row_tile(m, cap=256):
    """Largest row tile <= cap that divides m (and is a multiple of 8), else m."""
    if m <= cap:
        return m
    for bm in range(cap, 7, -1):
        if m % bm == 0 and bm % 8 == 0:
            return bm
    return m


# --------------------------------------------------------------------------------------
# Pallas kernels
# --------------------------------------------------------------------------------------

def _mlp2_kernel(x_ref, w1_ref, b1_ref, w2_ref, b2_ref, o_ref):
    h = jnp.dot(x_ref[...].astype(jnp.bfloat16), w1_ref[...].astype(jnp.bfloat16),
                preferred_element_type=jnp.float32) + b1_ref[...]
    h = jnp.maximum(h, 0.0)
    o_ref[...] = jnp.dot(h.astype(jnp.bfloat16), w2_ref[...].astype(jnp.bfloat16),
                         preferred_element_type=jnp.float32) + b2_ref[...]


def mlp2(x, p):
    """Two-layer MLP (Linear -> ReLU -> Linear), fused in one kernel, row-tiled."""
    M, K = x.shape
    H = p["w1"].shape[1]
    N = p["w2"].shape[1]
    bm = _pick_row_tile(M)
    return pl.pallas_call(
        _mlp2_kernel,
        out_shape=jax.ShapeDtypeStruct((M, N), jnp.float32),
        grid=(M // bm,),
        in_specs=[
            pl.BlockSpec((bm, K), lambda i: (i, 0)),
            pl.BlockSpec((K, H), lambda i: (0, 0)),
            pl.BlockSpec((1, H), lambda i: (0, 0)),
            pl.BlockSpec((H, N), lambda i: (0, 0)),
            pl.BlockSpec((1, N), lambda i: (0, 0)),
        ],
        out_specs=pl.BlockSpec((bm, N), lambda i: (i, 0)),
        compiler_params=_cp(("parallel",)),
    )(x, p["w1"], p["b1"].reshape(1, H), p["w2"], p["b2"].reshape(1, N))


def _ffn_ln_kernel(x_ref, w1_ref, b1_ref, w2_ref, b2_ref, g_ref, be_ref, o_ref):
    x = x_ref[...]
    h = jnp.dot(x.astype(jnp.bfloat16), w1_ref[...].astype(jnp.bfloat16),
                preferred_element_type=jnp.float32) + b1_ref[...]
    h = jnp.maximum(h, 0.0)
    y = jnp.dot(h.astype(jnp.bfloat16), w2_ref[...].astype(jnp.bfloat16),
                preferred_element_type=jnp.float32) + b2_ref[...]
    s = x + y
    mu = jnp.mean(s, axis=-1, keepdims=True)
    var = jnp.mean(jnp.square(s - mu), axis=-1, keepdims=True)
    o_ref[...] = (s - mu) * jax.lax.rsqrt(var + LN_EPS) * g_ref[...] + be_ref[...]


def ffn_block(x, w1, b1, w2, b2, gamma, beta):
    """LayerNorm(x + Linear2(relu(Linear1(x)))) fused in one kernel, row-tiled."""
    M, D = x.shape
    F = w1.shape[1]
    bm = _pick_row_tile(M)
    return pl.pallas_call(
        _ffn_ln_kernel,
        out_shape=jax.ShapeDtypeStruct((M, D), jnp.float32),
        grid=(M // bm,),
        in_specs=[
            pl.BlockSpec((bm, D), lambda i: (i, 0)),
            pl.BlockSpec((D, F), lambda i: (0, 0)),
            pl.BlockSpec((1, F), lambda i: (0, 0)),
            pl.BlockSpec((F, D), lambda i: (0, 0)),
            pl.BlockSpec((1, D), lambda i: (0, 0)),
            pl.BlockSpec((1, D), lambda i: (0, 0)),
            pl.BlockSpec((1, D), lambda i: (0, 0)),
        ],
        out_specs=pl.BlockSpec((bm, D), lambda i: (i, 0)),
        compiler_params=_cp(("parallel",)),
    )(x, w1, b1.reshape(1, F), w2, b2.reshape(1, D),
      gamma.reshape(1, D), beta.reshape(1, D))


def _self_attn_kernel(tgt_ref, rqp_ref, qs_w1_ref, qs_b1_ref, qs_w2_ref, qs_b2_ref,
                      wqk_ref, bqk_ref, wv_ref, bv_ref, wo_ref, bo_ref,
                      g_ref, be_ref, o_ref, qpos_ref, *, n_heads):
    x = tgt_ref[0]                                    # (Lq, D)
    D = x.shape[-1]
    dh = D // n_heads
    scale = 1.0 / math.sqrt(dh)

    # query_scale MLP: pos_scale = Linear(relu(Linear(x)))
    h1 = jnp.dot(x.astype(jnp.bfloat16), qs_w1_ref[...].astype(jnp.bfloat16),
                 preferred_element_type=jnp.float32) + qs_b1_ref[...]
    h1 = jnp.maximum(h1, 0.0)
    pos_scale = jnp.dot(h1.astype(jnp.bfloat16), qs_w2_ref[...].astype(jnp.bfloat16),
                        preferred_element_type=jnp.float32) + qs_b2_ref[...]
    qpos = pos_scale * rqp_ref[0]                     # query_pos for this layer
    qpos_ref[0] = qpos

    qk_in = x + qpos
    qk = jnp.dot(qk_in.astype(jnp.bfloat16), wqk_ref[...].astype(jnp.bfloat16),
                 preferred_element_type=jnp.float32) + bqk_ref[...]
    v = jnp.dot(x.astype(jnp.bfloat16), wv_ref[...].astype(jnp.bfloat16),
                preferred_element_type=jnp.float32) + bv_ref[...]
    q = qk[:, :D]
    k = qk[:, D:]

    heads = []
    for h in range(n_heads):                          # static unroll: all heads per step
        qh = q[:, h * dh:(h + 1) * dh].astype(jnp.bfloat16)
        kh = k[:, h * dh:(h + 1) * dh].astype(jnp.bfloat16)
        vh = v[:, h * dh:(h + 1) * dh].astype(jnp.bfloat16)
        s = jnp.dot(qh, kh.T, preferred_element_type=jnp.float32) * scale
        s = s - jnp.max(s, axis=-1, keepdims=True)
        p = jnp.exp(s)
        p = p * pl.reciprocal(jnp.sum(p, axis=-1, keepdims=True), approx=True)
        heads.append(jnp.dot(p.astype(jnp.bfloat16), vh,
                             preferred_element_type=jnp.float32))
    attn = jnp.concatenate(heads, axis=-1)            # (Lq, D) lane-dense

    y = jnp.dot(attn.astype(jnp.bfloat16), wo_ref[...].astype(jnp.bfloat16),
                preferred_element_type=jnp.float32) + bo_ref[...]
    s2 = x + y
    mu = jnp.mean(s2, axis=-1, keepdims=True)
    var = jnp.mean(jnp.square(s2 - mu), axis=-1, keepdims=True)
    o_ref[0] = (s2 - mu) * jax.lax.rsqrt(var + LN_EPS) * g_ref[...] + be_ref[...]


def self_attn_block(tgt, raw_qpos, qs, lyr, *, n_heads):
    """Fused: query_scale MLP + query_pos + QK/V proj + MHA + out-proj + add + LN2.

    Returns (tgt_after_norm2, query_pos)."""
    N, Lq, D = tgt.shape
    seq = pl.BlockSpec((1, Lq, D), lambda b: (b, 0, 0))
    rep = lambda shp: pl.BlockSpec(shp, lambda b: (0, 0))
    return pl.pallas_call(
        functools.partial(_self_attn_kernel, n_heads=n_heads),
        out_shape=(jax.ShapeDtypeStruct((N, Lq, D), jnp.float32),
                   jax.ShapeDtypeStruct((N, Lq, D), jnp.float32)),
        grid=(N,),
        in_specs=[seq, seq,
                  rep((D, D)), rep((1, D)), rep((D, D)), rep((1, D)),
                  rep((D, 2 * D)), rep((1, 2 * D)), rep((D, D)), rep((1, D)),
                  rep((D, D)), rep((1, D)), rep((1, D)), rep((1, D))],
        out_specs=(seq, seq),
        compiler_params=_cp(("parallel",)),
    )(tgt, raw_qpos,
      qs["w1"], qs["b1"].reshape(1, D), qs["w2"], qs["b2"].reshape(1, D),
      lyr["wqk"], lyr["bqk"].reshape(1, 2 * D), lyr["wv"], lyr["bv"].reshape(1, D),
      lyr["wo"], lyr["bo"].reshape(1, D),
      lyr["ln2_g"].reshape(1, D), lyr["ln2_b"].reshape(1, D))


def _deform_kernel(tgt_ref, qpos_ref, src_ref, keep_ref, wv_ref, bv_ref,
                   woa_ref, boa_ref, base_ref, scale_ref, tl_ref, start_ref,
                   wo_ref, bo_ref, g_ref, be_ref, o_ref, samp_ref,
                   *, n_heads, lp_pts, nhp):
    tgt = tgt_ref[0]                                   # (Lq, D)
    Lq, D = tgt.shape
    Len_in = src_ref.shape[1]
    dh = D // n_heads

    # value projection + padding mask (keep == 1.0 where valid)
    v = jnp.dot(src_ref[0].astype(jnp.bfloat16), wv_ref[...].astype(jnp.bfloat16),
                preferred_element_type=jnp.float32) + bv_ref[...]
    v_bf = (v * keep_ref[0]).astype(jnp.bfloat16)      # (Len_in, D)

    # fused offsets | attention-weights projection on (tgt + query_pos)
    query = (tgt + qpos_ref[0]).astype(jnp.bfloat16)
    off_aw = jnp.dot(query, woa_ref[...].astype(jnp.bfloat16),
                     preferred_element_type=jnp.float32) + boa_ref[...]
    offsets = off_aw[:, :nhp]                          # (Lq, nhp)
    aw_all = off_aw[:, nhp:]                           # (Lq, nhp) logits

    # normalized sampling locations and grid_sample(align_corners=False, zeros) math
    samp = base_ref[0] + offsets * scale_ref[0]        # (Lq, nhp)
    samp_ref[0] = samp
    tl_i = tl_ref[...]                                 # (1, nhp) int32
    tl_f = tl_i.astype(jnp.float32)
    start_i = start_ref[...]                           # (1, nhp) int32
    pix = samp * tl_f - 0.5
    fl = jnp.floor(pix)
    frac = pix - fl
    fl_i = fl.astype(jnp.int32)
    valid0 = (fl_i >= 0) & (fl_i < tl_i)
    valid1 = ((fl_i + 1) >= 0) & ((fl_i + 1) < tl_i)
    idx0_all = start_i + jnp.clip(fl_i, 0, tl_i - 1)
    idx1_all = start_i + jnp.clip(fl_i + 1, 0, tl_i - 1)
    f0_all = jnp.where(valid0, 1.0 - frac, 0.0)
    f1_all = jnp.where(valid1, frac, 0.0)

    t_iota = jax.lax.broadcasted_iota(jnp.int32, (Lq, Len_in), 1)

    heads = []
    for h in range(n_heads):                           # static unroll over deform heads
        sl = slice(h * lp_pts, (h + 1) * lp_pts)
        aw = aw_all[:, sl]                             # (Lq, LP) logits
        m = jnp.max(aw, axis=-1, keepdims=True)
        e = jnp.exp(aw - m)
        aw = e * pl.reciprocal(jnp.sum(e, axis=-1, keepdims=True), approx=True)
        w0 = aw * f0_all[:, sl]
        w1 = aw * f1_all[:, sl]
        idx0 = idx0_all[:, sl]
        idx1 = idx1_all[:, sl]

        # Bounded scatter: accumulate the (Lq, Len_in) sampling matrix point by point
        # in registers instead of materializing a (Lq, LP, Len_in) dense temporary.
        wmat = jnp.zeros((Lq, Len_in), jnp.float32)
        for p in range(lp_pts):
            wmat = (wmat
                    + jnp.where(t_iota == idx0[:, p:p + 1], w0[:, p:p + 1], 0.0)
                    + jnp.where(t_iota == idx1[:, p:p + 1], w1[:, p:p + 1], 0.0))
        heads.append(jnp.dot(wmat.astype(jnp.bfloat16), v_bf[:, h * dh:(h + 1) * dh],
                             preferred_element_type=jnp.float32))
    deform = jnp.concatenate(heads, axis=-1)            # (Lq, D) lane-dense

    y = jnp.dot(deform.astype(jnp.bfloat16), wo_ref[...].astype(jnp.bfloat16),
                preferred_element_type=jnp.float32) + bo_ref[...]
    s = tgt + y
    mu = jnp.mean(s, axis=-1, keepdims=True)
    var = jnp.mean(jnp.square(s - mu), axis=-1, keepdims=True)
    o_ref[0] = (s - mu) * jax.lax.rsqrt(var + LN_EPS) * g_ref[...] + be_ref[...]


def deform_block(tgt, qpos, src, keep, base, scale_vec, tl_vec, start_vec, lyr, *, n_heads):
    """Fused deformable cross-attention mega-block.

    value proj + offsets/attn-weight proj + sampling math + deform attention +
    out-proj + residual-add + LayerNorm.  Returns (tgt_after_norm1, sampling_locations)."""
    N, Lq, D = tgt.shape
    Len_in = src.shape[1]
    nhp = base.shape[2]
    lp_pts = nhp // n_heads
    seq = pl.BlockSpec((1, Lq, D), lambda b: (b, 0, 0))
    spec_src = pl.BlockSpec((1, Len_in, D), lambda b: (b, 0, 0))
    spec_keep = pl.BlockSpec((1, Len_in, 1), lambda b: (b, 0, 0))
    spec_nhp = pl.BlockSpec((1, Lq, nhp), lambda b: (b, 0, 0))
    rep = lambda shp: pl.BlockSpec(shp, lambda b: (0, 0))
    return pl.pallas_call(
        functools.partial(_deform_kernel, n_heads=n_heads, lp_pts=lp_pts, nhp=nhp),
        out_shape=(jax.ShapeDtypeStruct((N, Lq, D), jnp.float32),
                   jax.ShapeDtypeStruct((N, Lq, nhp), jnp.float32)),
        grid=(N,),
        in_specs=[seq, seq, spec_src, spec_keep,
                  rep((D, D)), rep((1, D)),
                  rep((D, 2 * nhp)), rep((1, 2 * nhp)),
                  spec_nhp, spec_nhp, rep((1, nhp)), rep((1, nhp)),
                  rep((D, D)), rep((1, D)), rep((1, D)), rep((1, D))],
        out_specs=(seq, spec_nhp),
        compiler_params=_cp(("parallel",)),
    )(tgt, qpos, src, keep,
      lyr["w_value"], lyr["b_value"].reshape(1, D),
      lyr["w_off_aw"], lyr["b_off_aw"].reshape(1, 2 * nhp),
      base, scale_vec, tl_vec, start_vec,
      lyr["w_out"], lyr["b_out"].reshape(1, D),
      lyr["ln1_g"].reshape(1, D), lyr["ln1_b"].reshape(1, D))


# --------------------------------------------------------------------------------------
# Decoder forward (matches DeformableTransformerDecoder.forward, eval mode)
# --------------------------------------------------------------------------------------

def get_proposal_pos_embed(proposals, d_model, temperature):
    """Sinusoidal (center, width) embedding: (N, Lq, 2) -> (N, Lq, 2*d_model)."""
    N, Lq, _ = proposals.shape
    scale = 2.0 * math.pi
    dim_i = jnp.arange(d_model, dtype=jnp.int32)
    dim_t = jnp.asarray(temperature, jnp.float32) ** (
        2.0 * (dim_i // 2).astype(jnp.float32) / d_model)
    proposals = proposals * scale
    pos_ct = proposals[:, :, 0:1] / dim_t
    pos_w = proposals[:, :, 1:2] / dim_t
    pos_ct = jnp.stack((jnp.sin(pos_ct[:, :, 0::2]), jnp.cos(pos_ct[:, :, 1::2])),
                       axis=3).reshape(N, Lq, d_model)
    pos_w = jnp.stack((jnp.sin(pos_w[:, :, 0::2]), jnp.cos(pos_w[:, :, 1::2])),
                      axis=3).reshape(N, Lq, d_model)
    return jnp.concatenate((pos_ct, pos_w), axis=2)


def decoder_forward(params, tgt, enc_output_segments, feature_durations, src,
                    temporal_lens, src_level_start_index, src_valid_ratios,
                    src_padding_mask=None, query_mask=None, attn_mask=None, *,
                    d_model, n_heads, n_deform_heads, n_levels, n_points,
                    temperature=10000.0):
    # TODO(synk): query_mask / attn_mask handling for self-attention not wired in
    # (decoder example passes None); dropout/droppath are identity (eval mode).
    N, Lq, D = tgt.shape
    Len_in = src.shape[1]
    Hd, L, P = n_deform_heads, n_levels, n_points
    nhp = Hd * L * P

    output = tgt
    segment_outputs = enc_output_segments                      # .detach() == identity
    reference_points = jnp.stack(
        [segment_outputs[..., 0], jnp.exp(segment_outputs[..., 1])], axis=-1)

    # segment_embed is None -> reference_points never change, so everything derived
    # from them (sinusoid, grid_head MLP, sampling base/scale vectors) is hoisted
    # out of the per-layer loop.  Identical results to recomputing each layer.
    ref_in = reference_points / feature_durations[:, None, None]                # (N,Lq,2)
    ref_in = ref_in[:, :, None, :] * src_valid_ratios[:, None, :, None]         # (N,Lq,L,2)

    grid_sine = get_proposal_pos_embed(reference_points, d_model, temperature)
    raw_qpos = mlp2(grid_sine.reshape(N * Lq, 2 * D), params["grid_head"]).reshape(N, Lq, D)

    tl_f = temporal_lens.astype(jnp.float32)
    if ref_in.shape[-1] == 2:
        ref_c = ref_in[..., 0]                                                   # (N,Lq,L)
        ref_w = ref_in[..., 1]
        base5 = jnp.broadcast_to(ref_c[:, :, None, :, None], (N, Lq, Hd, L, P))
        scale5 = jnp.broadcast_to((ref_w * (0.5 / P))[:, :, None, :, None],
                                  (N, Lq, Hd, L, P))
    else:
        ref1 = ref_in[..., 0]
        base5 = jnp.broadcast_to(ref1[:, :, None, :, None], (N, Lq, Hd, L, P))
        scale5 = jnp.broadcast_to((1.0 / tl_f)[None, None, None, :, None],
                                  (N, Lq, Hd, L, P))
    base = base5.reshape(N, Lq, nhp).astype(jnp.float32)
    scale_vec = scale5.reshape(N, Lq, nhp).astype(jnp.float32)
    tl_vec = jnp.broadcast_to(temporal_lens.astype(jnp.int32)[None, :, None],
                              (Hd, L, P)).reshape(1, nhp)
    start_vec = jnp.broadcast_to(src_level_start_index.astype(jnp.int32)[None, :, None],
                                 (Hd, L, P)).reshape(1, nhp)

    if src_padding_mask is None:
        keep = jnp.ones((N, Len_in, 1), jnp.float32)
    else:
        keep = 1.0 - src_padding_mask.astype(jnp.float32).reshape(N, Len_in, 1)

    samp = None
    for lyr in params["layers"]:
        # self attention + norm2 (query_scale MLP + query_pos fused in)
        output, qpos = self_attn_block(output, raw_qpos, params["query_scale"], lyr,
                                       n_heads=n_heads)
        # deformable cross attention + norm1 (value/offset projections + sampling fused in)
        output, samp = deform_block(output, qpos, src, keep, base, scale_vec,
                                    tl_vec, start_vec, lyr, n_heads=Hd)
        # FFN + norm3
        output = ffn_block(output.reshape(N * Lq, D), lyr["w1"], lyr["b1"],
                           lyr["w2"], lyr["b2"], lyr["ln3_g"], lyr["ln3_b"]
                           ).reshape(N, Lq, D)

    sampling_locations = samp.reshape(N, Lq, Hd, L, P)[..., None]
    # segment_embed is None and return_intermediate is False in the reference config.
    return output, segment_outputs, sampling_locations


# --------------------------------------------------------------------------------------
# Deterministic parameter init (shapes follow the module's __init__)
# --------------------------------------------------------------------------------------

def _init_mlp2_params(key, in_dim, hid_dim, out_dim):
    k1, k2 = jax.random.split(key)
    return dict(
        w1=0.05 * jax.random.normal(k1, (in_dim, hid_dim), jnp.float32),
        b1=jnp.zeros((hid_dim,), jnp.float32),
        w2=0.05 * jax.random.normal(k2, (hid_dim, out_dim), jnp.float32),
        b2=jnp.zeros((out_dim,), jnp.float32),
    )


def _init_layer_params(key, d_model, d_ffn, n_heads, n_deform_heads, n_levels, n_points):
    ks = jax.random.split(key, 10)
    nhp = n_deform_heads * n_levels * n_points

    def w(k, shape, s=0.05):
        return s * jax.random.normal(k, shape, jnp.float32)

    z = lambda n: jnp.zeros((n,), jnp.float32)
    one = lambda n: jnp.ones((n,), jnp.float32)
    return dict(
        # self-attention: fused q/k projection (input = tgt + query_pos), separate v
        wqk=w(ks[0], (d_model, 2 * d_model)), bqk=z(2 * d_model),
        wv=w(ks[1], (d_model, d_model)), bv=z(d_model),
        wo=w(ks[2], (d_model, d_model)), bo=z(d_model),
        ln2_g=one(d_model), ln2_b=z(d_model),
        # deformable cross-attention: fused offsets | attention-weights projection
        w_value=w(ks[3], (d_model, d_model)), b_value=z(d_model),
        w_off_aw=w(ks[4], (d_model, 2 * nhp)),
        b_off_aw=jnp.concatenate(
            [0.01 * jax.random.normal(ks[5], (nhp,), jnp.float32),
             jnp.zeros((nhp,), jnp.float32)]),
        w_out=w(ks[6], (d_model, d_model)), b_out=z(d_model),
        ln1_g=one(d_model), ln1_b=z(d_model),
        # FFN
        w1=w(ks[7], (d_model, d_ffn)), b1=z(d_ffn),
        w2=w(ks[8], (d_ffn, d_model)), b2=z(d_model),
        ln3_g=one(d_model), ln3_b=z(d_model),
    )


def init_decoder_params(key, num_layers, d_model, d_ffn,
                        n_heads, n_deform_heads, n_levels, n_points):
    ks = jax.random.split(key, num_layers + 2)
    layers = [
        _init_layer_params(ks[i], d_model, d_ffn, n_heads, n_deform_heads,
                           n_levels, n_points)
        for i in range(num_layers)
    ]
    return dict(
        layers=layers,
        grid_head=_init_mlp2_params(ks[-2], 2 * d_model, d_model, d_model),
        query_scale=_init_mlp2_params(ks[-1], d_model, d_model, d_model),
    )


# --------------------------------------------------------------------------------------

if __name__ == "__main__":
    key = jax.random.PRNGKey(0)
    N, Lq = 2, 8
    d_model, d_ffn = 32, 64
    n_heads, n_deform_heads, n_levels, n_points = 8, 2, 4, 4
    num_layers = 2

    temporal_lens = jnp.array([16, 8, 4, 2], dtype=jnp.int32)
    level_start_index = jnp.concatenate(
        [jnp.zeros((1,), jnp.int32), jnp.cumsum(temporal_lens)[:-1]])
    Len_in = int(temporal_lens.sum())

    k1, k2, k3, k4, k5, kp = jax.random.split(key, 6)
    tgt = jax.random.normal(k1, (N, Lq, d_model), dtype=jnp.float32)
    src = jax.random.normal(k2, (N, Len_in, d_model), dtype=jnp.float32)
    enc_output_segments = jnp.stack(
        [jax.random.uniform(k3, (N, Lq), minval=0.0, maxval=16.0),
         0.1 * jax.random.normal(k4, (N, Lq))], axis=-1)                 # (N, Lq, 2)
    feature_durations = jnp.full((N,), 16.0, dtype=jnp.float32)
    src_valid_ratios = jax.random.uniform(k5, (N, n_levels), minval=0.5, maxval=1.0)

    params = init_decoder_params(kp, num_layers, d_model, d_ffn,
                                 n_heads, n_deform_heads, n_levels, n_points)

    fwd = jax.jit(functools.partial(
        decoder_forward, d_model=d_model, n_heads=n_heads,
        n_deform_heads=n_deform_heads, n_levels=n_levels, n_points=n_points,
        temperature=10000.0))

    output, segment_outputs, sampling_locations = fwd(
        params, tgt, enc_output_segments, feature_durations, src,
        temporal_lens, level_start_index, src_valid_ratios)

    jax.block_until_ready(output)
    jax.block_until_ready(sampling_locations)

    assert output.shape == (N, Lq, d_model)
    assert segment_outputs.shape == (N, Lq, 2)
    assert sampling_locations.shape == (N, Lq, n_deform_heads, n_levels, n_points, 1)
    assert bool(jnp.all(jnp.isfinite(output)))
    assert bool(jnp.all(jnp.isfinite(sampling_locations)))
    print("KERNEL_OK")
</pallas_src>

<mosaic_0001>
module attributes {stable_mosaic.version = 11 : i64} {
  func.func @_self_attn_kernel(%arg0: i32, %arg1: memref<1x8x32xf32, #tpu.memory_space<vmem>>, %arg2: memref<1x8x32xf32, #tpu.memory_space<vmem>>, %arg3: memref<32x32xf32, #tpu.memory_space<vmem>>, %arg4: memref<1x32xf32, #tpu.memory_space<vmem>>, %arg5: memref<32x32xf32, #tpu.memory_space<vmem>>, %arg6: memref<1x32xf32, #tpu.memory_space<vmem>>, %arg7: memref<32x64xf32, #tpu.memory_space<vmem>>, %arg8: memref<1x64xf32, #tpu.memory_space<vmem>>, %arg9: memref<32x32xf32, #tpu.memory_space<vmem>>, %arg10: memref<1x32xf32, #tpu.memory_space<vmem>>, %arg11: memref<32x32xf32, #tpu.memory_space<vmem>>, %arg12: memref<1x32xf32, #tpu.memory_space<vmem>>, %arg13: memref<1x32xf32, #tpu.memory_space<vmem>>, %arg14: memref<1x32xf32, #tpu.memory_space<vmem>>, %arg15: memref<1x8x32xf32, #tpu.memory_space<vmem>>, %arg16: memref<1x8x32xf32, #tpu.memory_space<vmem>>) attributes {dimension_semantics = [#tpu.dimension_semantics<parallel>], iteration_bounds = array<i64: 2>, scalar_prefetch = 0 : i64, scratch_operands = 0 : i64, tpu.core_type = #tpu.core_type<tc>, window_params = [{transform_indices = @transform_0, window_bounds = array<i64: 1, 8, 32>}, {transform_indices = @transform_1, window_bounds = array<i64: 1, 8, 32>}, {pipeline_mode = #tpu.pipeline_mode<synchronous>, transform_indices = @transform_2, window_bounds = array<i64: 32, 32>}, {pipeline_mode = #tpu.pipeline_mode<synchronous>, transform_indices = @transform_3, window_bounds = array<i64: 1, 32>}, {pipeline_mode = #tpu.pipeline_mode<synchronous>, transform_indices = @transform_4, window_bounds = array<i64: 32, 32>}, {pipeline_mode = #tpu.pipeline_mode<synchronous>, transform_indices = @transform_5, window_bounds = array<i64: 1, 32>}, {pipeline_mode = #tpu.pipeline_mode<synchronous>, transform_indices = @transform_6, window_bounds = array<i64: 32, 64>}, {pipeline_mode = #tpu.pipeline_mode<synchronous>, transform_indices = @transform_7, window_bounds = array<i64: 1, 64>}, {pipeline_mode = #tpu.pipeline_mode<synchronous>, transform_indices = @transform_8, window_bounds = array<i64: 32, 32>}, {pipeline_mode = #tpu.pipeline_mode<synchronous>, transform_indices = @transform_9, window_bounds = array<i64: 1, 32>}, {pipeline_mode = #tpu.pipeline_mode<synchronous>, transform_indices = @transform_10, window_bounds = array<i64: 32, 32>}, {pipeline_mode = #tpu.pipeline_mode<synchronous>, transform_indices = @transform_11, window_bounds = array<i64: 1, 32>}, {pipeline_mode = #tpu.pipeline_mode<synchronous>, transform_indices = @transform_12, window_bounds = array<i64: 1, 32>}, {pipeline_mode = #tpu.pipeline_mode<synchronous>, transform_indices = @transform_13, window_bounds = array<i64: 1, 32>}, {transform_indices = @transform_14, window_bounds = array<i64: 1, 8, 32>}, {transform_indices = @transform_15, window_bounds = array<i64: 1, 8, 32>}]} {
    %c0 = arith.constant 0 : index
    %c0_0 = arith.constant 0 : index
    %c0_1 = arith.constant 0 : index
    %0 = vector.load %arg1[%c0, %c0_0, %c0_1] : memref<1x8x32xf32, #tpu.memory_space<vmem>>, vector<1x8x32xf32>
    %1 = vector.shape_cast %0 : vector<1x8x32xf32> to vector<8x32xf32>
    %2 = arith.truncf %1 : vector<8x32xf32> to vector<8x32xbf16>
    %c0_2 = arith.constant 0 : index
    %c0_3 = arith.constant 0 : index
    %3 = vector.load %arg3[%c0_2, %c0_3] : memref<32x32xf32, #tpu.memory_space<vmem>>, vector<32x32xf32>
    %4 = arith.truncf %3 : vector<32x32xf32> to vector<32x32xbf16>
    %cst = arith.constant dense<0.000000e+00> : vector<8x32xf32>
    %5 = tpu.matmul %2, %4, %cst {dimension_numbers = #tpu.dot_dimension_numbers<[1], [0], [0], [1], [0, 0, 1, 1], [], []>} : vector<8x32xbf16>, vector<32x32xbf16>, vector<8x32xf32> -> vector<8x32xf32>
    %c0_4 = arith.constant 0 : index
    %c0_5 = arith.constant 0 : index
    %6 = vector.load %arg4[%c0_4, %c0_5] : memref<1x32xf32, #tpu.memory_space<vmem>>, vector<1x32xf32>
    %7 = vector.broadcast %6 : vector<1x32xf32> to vector<8x32xf32>
    %8 = arith.addf %5, %7 : vector<8x32xf32>
    %cst_6 = arith.constant 0.000000e+00 : f32
    %9 = vector.broadcast %cst_6 : f32 to vector<8x32xf32>
    %10 = arith.maximumf %8, %9 : vector<8x32xf32>
    %11 = arith.truncf %10 : vector<8x32xf32> to vector<8x32xbf16>
    %c0_7 = arith.constant 0 : index
    %c0_8 = arith.constant 0 : index
    %12 = vector.load %arg5[%c0_7, %c0_8] : memref<32x32xf32, #tpu.memory_space<vmem>>, vector<32x32xf32>
    %13 = arith.truncf %12 : vector<32x32xf32> to vector<32x32xbf16>
    %cst_9 = arith.constant dense<0.000000e+00> : vector<8x32xf32>
    %14 = tpu.matmul %11, %13, %cst_9 {dimension_numbers = #tpu.dot_dimension_numbers<[1], [0], [0], [1], [0, 0, 1, 1], [], []>} : vector<8x32xbf16>, vector<32x32xbf16>, vector<8x32xf32> -> vector<8x32xf32>
    %c0_10 = arith.constant 0 : index
    %c0_11 = arith.constant 0 : index
    %15 = vector.load %arg6[%c0_10, %c0_11] : memref<1x32xf32, #tpu.memory_space<vmem>>, vector<1x32xf32>
    %16 = vector.broadcast %15 : vector<1x32xf32> to vector<8x32xf32>
    %17 = arith.addf %14, %16 : vector<8x32xf32>
    %c0_12 = arith.constant 0 : index
    %c0_13 = arith.constant 0 : index
    %c0_14 = arith.constant 0 : index
    %18 = vector.load %arg2[%c0_12, %c0_13, %c0_14] : memref<1x8x32xf32, #tpu.memory_space<vmem>>, vector<1x8x32xf32>
    %19 = vector.shape_cast %18 : vector<1x8x32xf32> to vector<8x32xf32>
    %20 = arith.mulf %17, %19 : vector<8x32xf32>
    %c0_15 = arith.constant 0 : index
    %c0_16 = arith.constant 0 : index
    %c0_17 = arith.constant 0 : index
    %21 = vector.load %arg16[%c0_15, %c0_16, %c0_17] : memref<1x8x32xf32, #tpu.memory_space<vmem>>, vector<1x8x32xf32>
    %22 = vector.shape_cast %21 : vector<1x8x32xf32> to vector<8x32xf32>
    %23 = vector.shape_cast %20 : vector<8x32xf32> to vector<1x8x32xf32>
    tpu.vector_store %arg16[%c0_15, %c0_16, %c0_17], %23 {strides = array<i32>} : memref<1x8x32xf32, #tpu.memory_space<vmem>>, vector<1x8x32xf32>,
    %24 = arith.addf %1, %20 : vector<8x32xf32>
    %25 = arith.truncf %24 : vector<8x32xf32> to vector<8x32xbf16>
    %c0_18 = arith.constant 0 : index
    %c0_19 = arith.constant 0 : index
    %26 = vector.load %arg7[%c0_18, %c0_19] : memref<32x64xf32, #tpu.memory_space<vmem>>, vector<32x64xf32>
    %27 = arith.truncf %26 : vector<32x64xf32> to vector<32x64xbf16>
    %cst_20 = arith.constant dense<0.000000e+00> : vector<8x64xf32>
    %28 = tpu.matmul %25, %27, %cst_20 {dimension_numbers = #tpu.dot_dimension_numbers<[1], [0], [0], [1], [0, 0, 1, 1], [], []>} : vector<8x32xbf16>, vector<32x64xbf16>, vector<8x64xf32> -> vector<8x64xf32>
    %c0_21 = arith.constant 0 : index
    %c0_22 = arith.constant 0 : index
    %29 = vector.load %arg8[%c0_21, %c0_22] : memref<1x64xf32, #tpu.memory_space<vmem>>, vector<1x64xf32>
    %30 = vector.broadcast %29 : vector<1x64xf32> to vector<8x64xf32>
    %31 = arith.addf %28, %30 : vector<8x64xf32>
    %32 = arith.truncf %1 : vector<8x32xf32> to vector<8x32xbf16>
    %c0_23 = arith.constant 0 : index
    %c0_24 = arith.constant 0 : index
    %33 = vector.load %arg9[%c0_23, %c0_24] : memref<32x32xf32, #tpu.memory_space<vmem>>, vector<32x32xf32>
    %34 = arith.truncf %33 : vector<32x32xf32> to vector<32x32xbf16>
    %cst_25 = arith.constant dense<0.000000e+00> : vector<8x32xf32>
    %35 = tpu.matmul %32, %34, %cst_25 {dimension_numbers = #tpu.dot_dimension_numbers<[1], [0], [0], [1], [0, 0, 1, 1], [], []>} : vector<8x32xbf16>, vector<32x32xbf16>, vector<8x32xf32> -> vector<8x32xf32>
    %c0_26 = arith.constant 0 : index
    %c0_27 = arith.constant 0 : index
    %36 = vector.load %arg10[%c0_26, %c0_27] : memref<1x32xf32, #tpu.memory_space<vmem>>, vector<1x32xf32>
    %37 = vector.broadcast %36 : vector<1x32xf32> to vector<8x32xf32>
    %38 = arith.addf %35, %37 : vector<8x32xf32>
    %39 = vector.extract_strided_slice %31 {offsets = [0, 0], sizes = [8, 32], strides = [1, 1]} : vector<8x64xf32> to vector<8x32xf32>
    %40 = vector.extract_strided_slice %31 {offsets = [0, 32], sizes = [8, 32], strides = [1, 1]} : vector<8x64xf32> to vector<8x32xf32>
    %41 = vector.extract_strided_slice %39 {offsets = [0, 0], sizes = [8, 4], strides = [1, 1]} : vector<8x32xf32> to vector<8x4xf32>
    %42 = arith.truncf %41 : vector<8x4xf32> to vector<8x4xbf16>
    %43 = vector.extract_strided_slice %40 {offsets = [0, 0], sizes = [8, 4], strides = [1, 1]} : vector<8x32xf32> to vector<8x4xf32>
    %44 = arith.truncf %43 : vector<8x4xf32> to vector<8x4xbf16>
    %45 = vector.extract_strided_slice %38 {offsets = [0, 0], sizes = [8, 4], strides = [1, 1]} : vector<8x32xf32> to vector<8x4xf32>
    %46 = arith.truncf %45 : vector<8x4xf32> to vector<8x4xbf16>
    %47 = tpu.transpose %44, [1, 0] : vector<8x4xbf16> -> vector<4x8xbf16>
    %cst_28 = arith.constant dense<0.000000e+00> : vector<8x8xf32>
    %48 = tpu.matmul %42, %47, %cst_28 {dimension_numbers = #tpu.dot_dimension_numbers<[1], [0], [0], [1], [0, 0, 1, 1], [], []>} : vector<8x4xbf16>, vector<4x8xbf16>, vector<8x8xf32> -> vector<8x8xf32>
    %cst_29 = arith.constant 5.000000e-01 : f32
    %49 = vector.broadcast %cst_29 : f32 to vector<8x8xf32>
    %50 = arith.mulf %48, %49 : vector<8x8xf32>
    %cst_30 = arith.constant dense<0xFF800000> : vector<8xf32>
    %51 = vector.multi_reduction <maximumf>, %50, %cst_30 [1] : vector<8x8xf32> to vector<8xf32>
    %52 = vector.shape_cast %51 : vector<8xf32> to vector<8x1xf32>
    %53 = vector.broadcast %52 : vector<8x1xf32> to vector<8x8xf32>
    %54 = arith.subf %50, %53 : vector<8x8xf32>
    %55 = math.exp %54 : vector<8x8xf32>
    %cst_31 = arith.constant dense<0.000000e+00> : vector<8xf32>
    %56 = vector.multi_reduction <add>, %55, %cst_31 [1] : vector<8x8xf32> to vector<8xf32>
    %57 = vector.shape_cast %56 : vector<8xf32> to vector<8x1xf32>
    %58 = tpu.reciprocal %57 {approx = true} : vector<8x1xf32> -> vector<8x1xf32>
    %59 = vector.broadcast %58 : vector<8x1xf32> to vector<8x8xf32>
    %60 = arith.mulf %55, %59 : vector<8x8xf32>
    %61 = arith.truncf %60 : vector<8x8xf32> to vector<8x8xbf16>
    %cst_32 = arith.constant dense<0.000000e+00> : vector<8x4xf32>
    %62 = tpu.matmul %61, %46, %cst_32 {dimension_numbers = #tpu.dot_dimension_numbers<[1], [0], [0], [1], [0, 0, 1, 1], [], []>} : vector<8x8xbf16>, vector<8x4xbf16>, vector<8x4xf32> -> vector<8x4xf32>
    %63 = vector.extract_strided_slice %39 {offsets = [0, 4], sizes = [8, 4], strides = [1, 1]} : vector<8x32xf32> to vector<8x4xf32>
    %64 = arith.truncf %63 : vector<8x4xf32> to vector<8x4xbf16>
    %65 = vector.extract_strided_slice %40 {offsets = [0, 4], sizes = [8, 4], strides = [1, 1]} : vector<8x32xf32> to vector<8x4xf32>
    %66 = arith.truncf %65 : vector<8x4xf32> to vector<8x4xbf16>
    %67 = vector.extract_strided_slice %38 {offsets = [0, 4], sizes = [8, 4], strides = [1, 1]} : vector<8x32xf32> to vector<8x4xf32>
    %68 = arith.truncf %67 : vector<8x4xf32> to vector<8x4xbf16>
    %69 = tpu.transpose %66, [1, 0] : vector<8x4xbf16> -> vector<4x8xbf16>
    %cst_33 = arith.constant dense<0.000000e+00> : vector<8x8xf32>
    %70 = tpu.matmul %64, %69, %cst_33 {dimension_numbers = #tpu.dot_dimension_numbers<[1], [0], [0], [1], [0, 0, 1, 1], [], []>} : vector<8x4xbf16>, vector<4x8xbf16>, vector<8x8xf32> -> vector<8x8xf32>
    %cst_34 = arith.constant 5.000000e-01 : f32
    %71 = vector.broadcast %cst_34 : f32 to vector<8x8xf32>
    %72 = arith.mulf %70, %71 : vector<8x8xf32>
    %cst_35 = arith.constant dense<0xFF800000> : vector<8xf32>
    %73 = vector.multi_reduction <maximumf>, %72, %cst_35 [1] : vector<8x8xf32> to vector<8xf32>
    %74 = vector.shape_cast %73 : vector<8xf32> to vector<8x1xf32>
    %75 = vector.broadcast %74 : vector<8x1xf32> to vector<8x8xf32>
    %76 = arith.subf %72, %75 : vector<8x8xf32>
    %77 = math.exp %76 : vector<8x8xf32>
    %cst_36 = arith.constant dense<0.000000e+00> : vector<8xf32>
    %78 = vector.multi_reduction <add>, %77, %cst_36 [1] : vector<8x8xf32> to vector<8xf32>
    %79 = vector.shape_cast %78 : vector<8xf32> to vector<8x1xf32>
    %80 = tpu.reciprocal %79 {approx = true} : vector<8x1xf32> -> vector<8x1xf32>
    %81 = vector.broadcast %80 : vector<8x1xf32> to vector<8x8xf32>
    %82 = arith.mulf %77, %81 : vector<8x8xf32>
    %83 = arith.truncf %82 : vector<8x8xf32> to vector<8x8xbf16>
    %cst_37 = arith.constant dense<0.000000e+00> : vector<8x4xf32>
    %84 = tpu.matmul %83, %68, %cst_37 {dimension_numbers = #tpu.dot_dimension_numbers<[1], [0], [0], [1], [0, 0, 1, 1], [], []>} : vector<8x8xbf16>, vector<8x4xbf16>, vector<8x4xf32> -> vector<8x4xf32>
    %85 = vector.extract_strided_slice %39 {offsets = [0, 8], sizes = [8, 4], strides = [1, 1]} : vector<8x32xf32> to vector<8x4xf32>
    %86 = arith.truncf %85 : vector<8x4xf32> to vector<8x4xbf16>
    %87 = vector.extract_strided_slice %40 {offsets = [0, 8], sizes = [8, 4], strides = [1, 1]} : vector<8x32xf32> to vector<8x4xf32>
    %88 = arith.truncf %87 : vector<8x4xf32> to vector<8x4xbf16>
    %89 = vector.extract_strided_slice %38 {offsets = [0, 8], sizes = [8, 4], strides = [1, 1]} : vector<8x32xf32> to vector<8x4xf32>
    %90 = arith.truncf %89 : vector<8x4xf32> to vector<8x4xbf16>
    %91 = tpu.transpose %88, [1, 0] : vector<8x4xbf16> -> vector<4x8xbf16>
    %cst_38 = arith.constant dense<0.000000e+00> : vector<8x8xf32>
    %92 = tpu.matmul %86, %91, %cst_38 {dimension_numbers = #tpu.dot_dimension_numbers<[1], [0], [0], [1], [0, 0, 1, 1], [], []>} : vector<8x4xbf16>, vector<4x8xbf16>, vector<8x8xf32> -> vector<8x8xf32>
    %cst_39 = arith.constant 5.000000e-01 : f32
    %93 = vector.broadcast %cst_39 : f32 to vector<8x8xf32>
    %94 = arith.mulf %92, %93 : vector<8x8xf32>
    %cst_40 = arith.constant dense<0xFF800000> : vector<8xf32>
    %95 = vector.multi_reduction <maximumf>, %94, %cst_40 [1] : vector<8x8xf32> to vector<8xf32>
    %96 = vector.shape_cast %95 : vector<8xf32> to vector<8x1xf32>
    %97 = vector.broadcast %96 : vector<8x1xf32> to vector<8x8xf32>
    %98 = arith.subf %94, %97 : vector<8x8xf32>
    %99 = math.exp %98 : vector<8x8xf32>
    %cst_41 = arith.constant dense<0.000000e+00> : vector<8xf32>
    %100 = vector.multi_reduction <add>, %99, %cst_41 [1] : vector<8x8xf32> to vector<8xf32>
    %101 = vector.shape_cast %100 : vector<8xf32> to vector<8x1xf32>
    %102 = tpu.reciprocal %101 {approx = true} : vector<8x1xf32> -> vector<8x1xf32>
    %103 = vector.broadcast %102 : vector<8x1xf32> to vector<8x8xf32>
    %104 = arith.mulf %99, %103 : vector<8x8xf32>
    %105 = arith.truncf %104 : vector<8x8xf32> to vector<8x8xbf16>
    %cst_42 = arith.constant dense<0.000000e+00> : vector<8x4xf32>
    %106 = tpu.matmul %105, %90, %cst_42 {dimension_numbers = #tpu.dot_dimension_numbers<[1], [0], [0], [1], [0, 0, 1, 1], [], []>} : vector<8x8xbf16>, vector<8x4xbf16>, vector<8x4xf32> -> vector<8x4xf32>
    %107 = vector.extract_strided_slice %39 {offsets = [0, 12], sizes = [8, 4], strides = [1, 1]} : vector<8x32xf32> to vector<8x4xf32>
    %108 = arith.truncf %107 : vector<8x4xf32> to vector<8x4xbf16>
    %109 = vector.extract_strided_slice %40 {offsets = [0, 12], sizes = [8, 4], strides = [1, 1]} : vector<8x32xf32> to vector<8x4xf32>
    %110 = arith.truncf %109 : vector<8x4xf32> to vector<8x4xbf16>
    %111 = vector.extract_strided_slice %38 {offsets = [0, 12], sizes = [8, 4], strides = [1, 1]} : vector<8x32xf32> to vector<8x4xf32>
    %112 = arith.truncf %111 : vector<8x4xf32> to vector<8x4xbf16>
    %113 = tpu.transpose %110, [1, 0] : vector<8x4xbf16> -> vector<4x8xbf16>
    %cst_43 = arith.constant dense<0.000000e+00> : vector<8x8xf32>
    %114 = tpu.matmul %108, %113, %cst_43 {dimension_numbers = #tpu.dot_dimension_numbers<[1], [0], [0], [1], [0, 0, 1, 1], [], []>} : vector<8x4xbf16>, vector<4x8xbf16>, vector<8x8xf32> -> vector<8x8xf32>
    %cst_44 = arith.constant 5.000000e-01 : f32
    %115 = vector.broadcast %cst_44 : f32 to vector<8x8xf32>
    %116 = arith.mulf %114, %115 : vector<8x8xf32>
    %cst_45 = arith.constant dense<0xFF800000> : vector<8xf32>
    %117 = vector.multi_reduction <maximumf>, %116, %cst_45 [1] : vector<8x8xf32> to vector<8xf32>
    %118 = vector.shape_cast %117 : vector<8xf32> to vector<8x1xf32>
    %119 = vector.broadcast %118 : vector<8x1xf32> to vector<8x8xf32>
    %120 = arith.subf %116, %119 : vector<8x8xf32>
    %121 = math.exp %120 : vector<8x8xf32>
    %cst_46 = arith.constant dense<0.000000e+00> : vector<8xf32>
    %122 = vector.multi_reduction <add>, %121, %cst_46 [1] : vector<8x8xf32> to vector<8xf32>
    %123 = vector.shape_cast %122 : vector<8xf32> to vector<8x1xf32>
    %124 = tpu.reciprocal %123 {approx = true} : vector<8x1xf32> -> vector<8x1xf32>
    %125 = vector.broadcast %124 : vector<8x1xf32> to vector<8x8xf32>
    %126 = arith.mulf %121, %125 : vector<8x8xf32>
    %127 = arith.truncf %126 : vector<8x8xf32> to vector<8x8xbf16>
    %cst_47 = arith.constant dense<0.000000e+00> : vector<8x4xf32>
    %128 = tpu.matmul %127, %112, %cst_47 {dimension_numbers = #tpu.dot_dimension_numbers<[1], [0], [0], [1], [0, 0, 1, 1], [], []>} : vector<8x8xbf16>, vector<8x4xbf16>, vector<8x4xf32> -> vector<8x4xf32>
    %129 = vector.extract_strided_slice %39 {offsets = [0, 16], sizes = [8, 4], strides = [1, 1]} : vector<8x32xf32> to vector<8x4xf32>
    %130 = arith.truncf %129 : vector<8x4xf32> to vector<8x4xbf16>
    %131 = vector.extract_strided_slice %40 {offsets = [0, 16], sizes = [8, 4], strides = [1, 1]} : vector<8x32xf32> to vector<8x4xf32>
    %132 = arith.truncf %131 : vector<8x4xf32> to vector<8x4xbf16>
    %133 = vector.extract_strided_slice %38 {offsets = [0, 16], sizes = [8, 4], strides = [1, 1]} : vector<8x32xf32> to vector<8x4xf32>
    %134 = arith.truncf %133 : vector<8x4xf32> to vector<8x4xbf16>
    %135 = tpu.transpose %132, [1, 0] : vector<8x4xbf16> -> vector<4x8xbf16>
    %cst_48 = arith.constant dense<0.000000e+00> : vector<8x8xf32>
    %136 = tpu.matmul %130, %135, %cst_48 {dimension_numbers = #tpu.dot_dimension_numbers<[1], [0], [0], [1], [0, 0, 1, 1], [], []>} : vector<8x4xbf16>, vector<4x8xbf16>, vector<8x8xf32> -> vector<8x8xf32>
    %cst_49 = arith.constant 5.000000e-01 : f32
    %137 = vector.broadcast %cst_49 : f32 to vector<8x8xf32>
    %138 = arith.mulf %136, %137 : vector<8x8xf32>
    %cst_50 = arith.constant dense<0xFF800000> : vector<8xf32>
    %139 = vector.multi_reduction <maximumf>, %138, %cst_50 [1] : vector<8x8xf32> to vector<8xf32>
    %140 = vector.shape_cast %139 : vector<8xf32> to vector<8x1xf32>
    %141 = vector.broadcast %140 : vector<8x1xf32> to vector<8x8xf32>
    %142 = arith.subf %138, %141 : vector<8x8xf32>
    %143 = math.exp %142 : vector<8x8xf32>
    %cst_51 = arith.constant dense<0.000000e+00> : vector<8xf32>
    %144 = vector.multi_reduction <add>, %143, %cst_51 [1] : vector<8x8xf32> to vector<8xf32>
    %145 = vector.shape_cast %144 : vector<8xf32> to vector<8x1xf32>
    %146 = tpu.reciprocal %145 {approx = true} : vector<8x1xf32> -> vector<8x1xf32>
    %147 = vector.broadcast %146 : vector<8x1xf32> to vector<8x8xf32>
    %148 = arith.mulf %143, %147 : vector<8x8xf32>
    %149 = arith.truncf %148 : vector<8x8xf32> to vector<8x8xbf16>
    %cst_52 = arith.constant dense<0.000000e+00> : vector<8x4xf32>
    %150 = tpu.matmul %149, %134, %cst_52 {dimension_numbers = #tpu.dot_dimension_numbers<[1], [0], [0], [1], [0, 0, 1, 1], [], []>} : vector<8x8xbf16>, vector<8x4xbf16>, vector<8x4xf32> -> vector<8x4xf32>
    %151 = vector.extract_strided_slice %39 {offsets = [0, 20], sizes = [8, 4], strides = [1, 1]} : vector<8x32xf32> to vector<8x4xf32>
    %152 = arith.truncf %151 : vector<8x4xf32> to vector<8x4xbf16>
    %153 = vector.extract_strided_slice %40 {offsets = [0, 20], sizes = [8, 4], strides = [1, 1]} : vector<8x32xf32> to vector<8x4xf32>
    %154 = arith.truncf %153 : vector<8x4xf32> to vector<8x4xbf16>
    %155 = vector.extract_strided_slice %38 {offsets = [0, 20], sizes = [8, 4], strides = [1, 1]} : vector<8x32xf32> to vector<8x4xf32>
    %156 = arith.truncf %155 : vector<8x4xf32> to vector<8x4xbf16>
    %157 = tpu.transpose %154, [1, 0] : vector<8x4xbf16> -> vector<4x8xbf16>
    %cst_53 = arith.constant dense<0.000000e+00> : vector<8x8xf32>
    %158 = tpu.matmul %152, %157, %cst_53 {dimension_numbers = #tpu.dot_dimension_numbers<[1], [0], [0], [1], [0, 0, 1, 1], [], []>} : vector<8x4xbf16>, vector<4x8xbf16>, vector<8x8xf32> -> vector<8x8xf32>
    %cst_54 = arith.constant 5.000000e-01 : f32
    %159 = vector.broadcast %cst_54 : f32 to vector<8x8xf32>
    %160 = arith.mulf %158, %159 : vector<8x8xf32>
    %cst_55 = arith.constant dense<0xFF800000> : vector<8xf32>
    %161 = vector.multi_reduction <maximumf>, %160, %cst_55 [1] : vector<8x8xf32> to vector<8xf32>
    %162 = vector.shape_cast %161 : vector<8xf32> to vector<8x1xf32>
    %163 = vector.broadcast %162 : vector<8x1xf32> to vector<8x8xf32>
    %164 = arith.subf %160, %163 : vector<8x8xf32>
    %165 = math.exp %164 : vector<8x8xf32>
    %cst_56 = arith.constant dense<0.000000e+00> : vector<8xf32>
    %166 = vector.multi_reduction <add>, %165, %cst_56 [1] : vector<8x8xf32> to vector<8xf32>
    %167 = vector.shape_cast %166 : vector<8xf32> to vector<8x1xf32>
    %168 = tpu.reciprocal %167 {approx = true} : vector<8x1xf32> -> vector<8x1xf32>
    %169 = vector.broadcast %168 : vector<8x1xf32> to vector<8x8xf32>
    %170 = arith.mulf %165, %169 : vector<8x8xf32>
    %171 = arith.truncf %170 : vector<8x8xf32> to vector<8x8xbf16>
    %cst_57 = arith.constant dense<0.000000e+00> : vector<8x4xf32>
    %172 = tpu.matmul %171, %156, %cst_57 {dimension_numbers = #tpu.dot_dimension_numbers<[1], [0], [0], [1], [0, 0, 1, 1], [], []>} : vector<8x8xbf16>, vector<8x4xbf16>, vector<8x4xf32> -> vector<8x4xf32>
    %173 = vector.extract_strided_slice %39 {offsets = [0, 24], sizes = [8, 4], strides = [1, 1]} : vector<8x32xf32> to vector<8x4xf32>
    %174 = arith.truncf %173 : vector<8x4xf32> to vector<8x4xbf16>
    %175 = vector.extract_strided_slice %40 {offsets = [0, 24], sizes = [8, 4], strides = [1, 1]} : vector<8x32xf32> to vector<8x4xf32>
    %176 = arith.truncf %175 : vector<8x4xf32> to vector<8x4xbf16>
    %177 = vector.extract_strided_slice %38 {offsets = [0, 24], sizes = [8, 4], strides = [1, 1]} : vector<8x32xf32> to vector<8x4xf32>
    %178 = arith.truncf %177 : vector<8x4xf32> to vector<8x4xbf16>
    %179 = tpu.transpose %176, [1, 0] : vector<8x4xbf16> -> vector<4x8xbf16>
    %cst_58 = arith.constant dense<0.000000e+00> : vector<8x8xf32>
    %180 = tpu.matmul %174, %179, %cst_58 {dimension_numbers = #tpu.dot_dimension_numbers<[1], [0], [0], [1], [0, 0, 1, 1], [], []>} : vector<8x4xbf16>, vector<4x8xbf16>, vector<8x8xf32> -> vector<8x8xf32>
    %cst_59 = arith.constant 5.000000e-01 : f32
    %181 = vector.broadcast %cst_59 : f32 to vector<8x8xf32>
    %182 = arith.mulf %180, %181 : vector<8x8xf32>
    %cst_60 = arith.constant dense<0xFF800000> : vector<8xf32>
    %183 = vector.multi_reduction <maximumf>, %182, %cst_60 [1] : vector<8x8xf32> to vector<8xf32>
    %184 = vector.shape_cast %183 : vector<8xf32> to vector<8x1xf32>
    %185 = vector.broadcast %184 : vector<8x1xf32> to vector<8x8xf32>
    %186 = arith.subf %182, %185 : vector<8x8xf32>
    %187 = math.exp %186 : vector<8x8xf32>
    %cst_61 = arith.constant dense<0.000000e+00> : vector<8xf32>
    %188 = vector.multi_reduction <add>, %187, %cst_61 [1] : vector<8x8xf32> to vector<8xf32>
    %189 = vector.shape_cast %188 : vector<8xf32> to vector<8x1xf32>
    %190 = tpu.reciprocal %189 {approx = true} : vector<8x1xf32> -> vector<8x1xf32>
    %191 = vector.broadcast %190 : vector<8x1xf32> to vector<8x8xf32>
    %192 = arith.mulf %187, %191 : vector<8x8xf32>
    %193 = arith.truncf %192 : vector<8x8xf32> to vector<8x8xbf16>
    %cst_62 = arith.constant dense<0.000000e+00> : vector<8x4xf32>
    %194 = tpu.matmul %193, %178, %cst_62 {dimension_numbers = #tpu.dot_dimension_numbers<[1], [0], [0], [1], [0, 0, 1, 1], [], []>} : vector<8x8xbf16>, vector<8x4xbf16>, vector<8x4xf32> -> vector<8x4xf32>
    %195 = vector.extract_strided_slice %39 {offsets = [0, 28], sizes = [8, 4], strides = [1, 1]} : vector<8x32xf32> to vector<8x4xf32>
    %196 = arith.truncf %195 : vector<8x4xf32> to vector<8x4xbf16>
    %197 = vector.extract_strided_slice %40 {offsets = [0, 28], sizes = [8, 4], strides = [1, 1]} : vector<8x32xf32> to vector<8x4xf32>
    %198 = arith.truncf %197 : vector<8x4xf32> to vector<8x4xbf16>
    %199 = vector.extract_strided_slice %38 {offsets = [0, 28], sizes = [8, 4], strides = [1, 1]} : vector<8x32xf32> to vector<8x4xf32>
    %200 = arith.truncf %199 : vector<8x4xf32> to vector<8x4xbf16>
    %201 = tpu.transpose %198, [1, 0] : vector<8x4xbf16> -> vector<4x8xbf16>
    %cst_63 = arith.constant dense<0.000000e+00> : vector<8x8xf32>
    %202 = tpu.matmul %196, %201, %cst_63 {dimension_numbers = #tpu.dot_dimension_numbers<[1], [0], [0], [1], [0, 0, 1, 1], [], []>} : vector<8x4xbf16>, vector<4x8xbf16>, vector<8x8xf32> -> vector<8x8xf32>
    %cst_64 = arith.constant 5.000000e-01 : f32
    %203 = vector.broadcast %cst_64 : f32 to vector<8x8xf32>
    %204 = arith.mulf %202, %203 : vector<8x8xf32>
    %cst_65 = arith.constant dense<0xFF800000> : vector<8xf32>
    %205 = vector.multi_reduction <maximumf>, %204, %cst_65 [1] : vector<8x8xf32> to vector<8xf32>
    %206 = vector.shape_cast %205 : vector<8xf32> to vector<8x1xf32>
    %207 = vector.broadcast %206 : vector<8x1xf32> to vector<8x8xf32>
    %208 = arith.subf %204, %207 : vector<8x8xf32>
    %209 = math.exp %208 : vector<8x8xf32>
    %cst_66 = arith.constant dense<0.000000e+00> : vector<8xf32>
    %210 = vector.multi_reduction <add>, %209, %cst_66 [1] : vector<8x8xf32> to vector<8xf32>
    %211 = vector.shape_cast %210 : vector<8xf32> to vector<8x1xf32>
    %212 = tpu.reciprocal %211 {approx = true} : vector<8x1xf32> -> vector<8x1xf32>
    %213 = vector.broadcast %212 : vector<8x1xf32> to vector<8x8xf32>
    %214 = arith.mulf %209, %213 : vector<8x8xf32>
    %215 = arith.truncf %214 : vector<8x8xf32> to vector<8x8xbf16>
    %cst_67 = arith.constant dense<0.000000e+00> : vector<8x4xf32>
    %216 = tpu.matmul %215, %200, %cst_67 {dimension_numbers = #tpu.dot_dimension_numbers<[1], [0], [0], [1], [0, 0, 1, 1], [], []>} : vector<8x8xbf16>, vector<8x4xbf16>, vector<8x4xf32> -> vector<8x4xf32>
    %217 = tpu.concatenate %62, %84, %106, %128, %150, %172, %194, %216 in 1 : vector<8x4xf32>, vector<8x4xf32>, vector<8x4xf32>, vector<8x4xf32>, vector<8x4xf32>, vector<8x4xf32>, vector<8x4xf32>, vector<8x4xf32> -> vector<8x32xf32>
    %218 = arith.truncf %217 : vector<8x32xf32> to vector<8x32xbf16>
    %c0_68 = arith.constant 0 : index
    %c0_69 = arith.constant 0 : index
    %219 = vector.load %arg11[%c0_68, %c0_69] : memref<32x32xf32, #tpu.memory_space<vmem>>, vector<32x32xf32>
    %220 = arith.truncf %219 : vector<32x32xf32> to vector<32x32xbf16>
    %cst_70 = arith.constant dense<0.000000e+00> : vector<8x32xf32>
    %221 = tpu.matmul %218, %220, %cst_70 {dimension_numbers = #tpu.dot_dimension_numbers<[1], [0], [0], [1], [0, 0, 1, 1], [], []>} : vector<8x32xbf16>, vector<32x32xbf16>, vector<8x32xf32> -> vector<8x32xf32>
    %c0_71 = arith.constant 0 : index
    %c0_72 = arith.constant 0 : index
    %222 = vector.load %arg12[%c0_71, %c0_72] : memref<1x32xf32, #tpu.memory_space<vmem>>, vector<1x32xf32>
    %223 = vector.broadcast %222 : vector<1x32xf32> to vector<8x32xf32>
    %224 = arith.addf %221, %223 : vector<8x32xf32>
    %225 = arith.addf %1, %224 : vector<8x32xf32>
    %cst_73 = arith.constant dense<0.000000e+00> : vector<8xf32>
    %226 = vector.multi_reduction <add>, %225, %cst_73 [1] : vector<8x32xf32> to vector<8xf32>
    %227 = vector.shape_cast %226 : vector<8xf32> to vector<8x1xf32>
    %cst_74 = arith.constant 3.200000e+01 : f32
    %228 = vector.broadcast %cst_74 : f32 to vector<8x1xf32>
    %229 = arith.divf %227, %228 : vector<8x1xf32>
    %230 = vector.broadcast %229 : vector<8x1xf32> to vector<8x32xf32>
    %231 = arith.subf %225, %230 : vector<8x32xf32>
    %232 = arith.mulf %231, %231 : vector<8x32xf32>
    %cst_75 = arith.constant dense<0.000000e+00> : vector<8xf32>
    %233 = vector.multi_reduction <add>, %232, %cst_75 [1] : vector<8x32xf32> to vector<8xf32>
    %234 = vector.shape_cast %233 : vector<8xf32> to vector<8x1xf32>
    %cst_76 = arith.constant 3.200000e+01 : f32
    %235 = vector.broadcast %cst_76 : f32 to vector<8x1xf32>
    %236 = arith.divf %234, %235 : vector<8x1xf32>
    %237 = vector.broadcast %229 : vector<8x1xf32> to vector<8x32xf32>
    %238 = arith.subf %225, %237 : vector<8x32xf32>
    %cst_77 = arith.constant 9.99999974E-6 : f32
    %239 = vector.broadcast %cst_77 : f32 to vector<8x1xf32>
    %240 = arith.addf %236, %239 : vector<8x1xf32>
    %241 = math.rsqrt %240 : vector<8x1xf32>
    %242 = vector.broadcast %241 : vector<8x1xf32> to vector<8x32xf32>
    %243 = arith.mulf %238, %242 : vector<8x32xf32>
    %c0_78 = arith.constant 0 : index
    %c0_79 = arith.constant 0 : index
    %244 = vector.load %arg13[%c0_78, %c0_79] : memref<1x32xf32, #tpu.memory_space<vmem>>, vector<1x32xf32>
    %245 = vector.broadcast %244 : vector<1x32xf32> to vector<8x32xf32>
    %246 = arith.mulf %243, %245 : vector<8x32xf32>
    %c0_80 = arith.constant 0 : index
    %c0_81 = arith.constant 0 : index
    %247 = vector.load %arg14[%c0_80, %c0_81] : memref<1x32xf32, #tpu.memory_space<vmem>>, vector<1x32xf32>
    %248 = vector.broadcast %247 : vector<1x32xf32> to vector<8x32xf32>
    %249 = arith.addf %246, %248 : vector<8x32xf32>
    %c0_82 = arith.constant 0 : index
    %c0_83 = arith.constant 0 : index
    %c0_84 = arith.constant 0 : index
    %250 = vector.load %arg15[%c0_82, %c0_83, %c0_84] : memref<1x8x32xf32, #tpu.memory_space<vmem>>, vector<1x8x32xf32>
    %251 = vector.shape_cast %250 : vector<1x8x32xf32> to vector<8x32xf32>
    %252 = vector.shape_cast %249 : vector<8x32xf32> to vector<1x8x32xf32>
    tpu.vector_store %arg15[%c0_82, %c0_83, %c0_84], %252 {strides = array<i32>} : memref<1x8x32xf32, #tpu.memory_space<vmem>>, vector<1x8x32xf32>,
    return
  }
  func.func @transform_0(%arg0: i32) -> (i32, i32, i32) {
    %c0_i32 = arith.constant 0 : i32
    %c0_i32_0 = arith.constant 0 : i32
    %c0_i32_1 = arith.constant 0 : i32
    return %arg0, %c0_i32, %c0_i32_0 : i32, i32, i32
  }
  func.func @transform_1(%arg0: i32) -> (i32, i32, i32) {
    %c0_i32 = arith.constant 0 : i32
    %c0_i32_0 = arith.constant 0 : i32
    %c0_i32_1 = arith.constant 0 : i32
    return %arg0, %c0_i32, %c0_i32_0 : i32, i32, i32
  }
  func.func @transform_2(%arg0: i32) -> (i32, i32) {
    %c0_i32 = arith.constant 0 : i32
    %c0_i32_0 = arith.constant 0 : i32
    %c0_i32_1 = arith.constant 0 : i32
    return %c0_i32, %c0_i32_0 : i32, i32
  }
  func.func @transform_3(%arg0: i32) -> (i32, i32) {
    %c0_i32 = arith.constant 0 : i32
    %c0_i32_0 = arith.constant 0 : i32
    %c0_i32_1 = arith.constant 0 : i32
    return %c0_i32, %c0_i32_0 : i32, i32
  }
  func.func @transform_4(%arg0: i32) -> (i32, i32) {
    %c0_i32 = arith.constant 0 : i32
    %c0_i32_0 = arith.constant 0 : i32
    %c0_i32_1 = arith.constant 0 : i32
    return %c0_i32, %c0_i32_0 : i32, i32
  }
  func.func @transform_5(%arg0: i32) -> (i32, i32) {
    %c0_i32 = arith.constant 0 : i32
    %c0_i32_0 = arith.constant 0 : i32
    %c0_i32_1 = arith.constant 0 : i32
    return %c0_i32, %c0_i32_0 : i32, i32
  }
  func.func @transform_6(%arg0: i32) -> (i32, i32) {
    %c0_i32 = arith.constant 0 : i32
    %c0_i32_0 = arith.constant 0 : i32
    %c0_i32_1 = arith.constant 0 : i32
    return %c0_i32, %c0_i32_0 : i32, i32
  }
  func.func @transform_7(%arg0: i32) -> (i32, i32) {
    %c0_i32 = arith.constant 0 : i32
    %c0_i32_0 = arith.constant 0 : i32
    %c0_i32_1 = arith.constant 0 : i32
    return %c0_i32, %c0_i32_0 : i32, i32
  }
  func.func @transform_8(%arg0: i32) -> (i32, i32) {
    %c0_i32 = arith.constant 0 : i32
    %c0_i32_0 = arith.constant 0 : i32
    %c0_i32_1 = arith.constant 0 : i32
    return %c0_i32, %c0_i32_0 : i32, i32
  }
  func.func @transform_9(%arg0: i32) -> (i32, i32) {
    %c0_i32 = arith.constant 0 : i32
    %c0_i32_0 = arith.constant 0 : i32
    %c0_i32_1 = arith.constant 0 : i32
    return %c0_i32, %c0_i32_0 : i32, i32
  }
  func.func @transform_10(%arg0: i32) -> (i32, i32) {
    %c0_i32 = arith.constant 0 : i32
    %c0_i32_0 = arith.constant 0 : i32
    %c0_i32_1 = arith.constant 0 : i32
    return %c0_i32, %c0_i32_0 : i32, i32
  }
  func.func @transform_11(%arg0: i32) -> (i32, i32) {
    %c0_i32 = arith.constant 0 : i32
    %c0_i32_0 = arith.constant 0 : i32
    %c0_i32_1 = arith.constant 0 : i32
    return %c0_i32, %c0_i32_0 : i32, i32
  }
  func.func @transform_12(%arg0: i32) -> (i32, i32) {
    %c0_i32 = arith.constant 0 : i32
    %c0_i32_0 = arith.constant 0 : i32
    %c0_i32_1 = arith.constant 0 : i32
    return %c0_i32, %c0_i32_0 : i32, i32
  }
  func.func @transform_13(%arg0: i32) -> (i32, i32) {
    %c0_i32 = arith.constant 0 : i32
    %c0_i32_0 = arith.constant 0 : i32
    %c0_i32_1 = arith.constant 0 : i32
    return %c0_i32, %c0_i32_0 : i32, i32
  }
  func.func @transform_14(%arg0: i32) -> (i32, i32, i32) {
    %c0_i32 = arith.constant 0 : i32
    %c0_i32_0 = arith.constant 0 : i32
    %c0_i32_1 = arith.constant 0 : i32
    return %arg0, %c0_i32, %c0_i32_0 : i32, i32, i32
  }
  func.func @transform_15(%arg0: i32) -> (i32, i32, i32) {
    %c0_i32 = arith.constant 0 : i32
    %c0_i32_0 = arith.constant 0 : i32
    %c0_i32_1 = arith.constant 0 : i32
    return %arg0, %c0_i32, %c0_i32_0 : i32, i32, i32
  }
}

module attributes {stable_mosaic.version = 11 : i64} {
  func.func @_mlp2_kernel(%arg0: i32, %arg1: memref<16x64xf32, #tpu.memory_space<vmem>>, %arg2: memref<64x32xf32, #tpu.memory_space<vmem>>, %arg3: memref<1x32xf32, #tpu.memory_space<vmem>>, %arg4: memref<32x32xf32, #tpu.memory_space<vmem>>, %arg5: memref<1x32xf32, #tpu.memory_space<vmem>>, %arg6: memref<16x32xf32, #tpu.memory_space<vmem>>) attributes {dimension_semantics = [#tpu.dimension_semantics<parallel>], iteration_bounds = array<i64: 1>, scalar_prefetch = 0 : i64, scratch_operands = 0 : i64, tpu.core_type = #tpu.core_type<tc>, window_params = [{transform_indices = @transform_0, window_bounds = array<i64: 16, 64>}, {pipeline_mode = #tpu.pipeline_mode<synchronous>, transform_indices = @transform_1, window_bounds = array<i64: 64, 32>}, {pipeline_mode = #tpu.pipeline_mode<synchronous>, transform_indices = @transform_2, window_bounds = array<i64: 1, 32>}, {pipeline_mode = #tpu.pipeline_mode<synchronous>, transform_indices = @transform_3, window_bounds = array<i64: 32, 32>}, {pipeline_mode = #tpu.pipeline_mode<synchronous>, transform_indices = @transform_4, window_bounds = array<i64: 1, 32>}, {transform_indices = @transform_5, window_bounds = array<i64: 16, 32>}]} {
    %c0 = arith.constant 0 : index
    %c0_0 = arith.constant 0 : index
    %0 = vector.load %arg1[%c0, %c0_0] : memref<16x64xf32, #tpu.memory_space<vmem>>, vector<16x64xf32>
    %1 = arith.truncf %0 : vector<16x64xf32> to vector<16x64xbf16>
    %c0_1 = arith.constant 0 : index
    %c0_2 = arith.constant 0 : index
    %2 = vector.load %arg2[%c0_1, %c0_2] : memref<64x32xf32, #tpu.memory_space<vmem>>, vector<64x32xf32>
    %3 = arith.truncf %2 : vector<64x32xf32> to vector<64x32xbf16>
    %cst = arith.constant dense<0.000000e+00> : vector<16x32xf32>
    %4 = tpu.matmul %1, %3, %cst {dimension_numbers = #tpu.dot_dimension_numbers<[1], [0], [0], [1], [0, 0, 1, 1], [], []>} : vector<16x64xbf16>, vector<64x32xbf16>, vector<16x32xf32> -> vector<16x32xf32>
    %c0_3 = arith.constant 0 : index
    %c0_4 = arith.constant 0 : index
    %5 = vector.load %arg3[%c0_3, %c0_4] : memref<1x32xf32, #tpu.memory_space<vmem>>, vector<1x32xf32>
    %6 = vector.broadcast %5 : vector<1x32xf32> to vector<16x32xf32>
    %7 = arith.addf %4, %6 : vector<16x32xf32>
    %cst_5 = arith.constant 0.000000e+00 : f32
    %8 = vector.broadcast %cst_5 : f32 to vector<16x32xf32>
    %9 = arith.maximumf %7, %8 : vector<16x32xf32>
    %10 = arith.truncf %9 : vector<16x32xf32> to vector<16x32xbf16>
    %c0_6 = arith.constant 0 : index
    %c0_7 = arith.constant 0 : index
    %11 = vector.load %arg4[%c0_6, %c0_7] : memref<32x32xf32, #tpu.memory_space<vmem>>, vector<32x32xf32>
    %12 = arith.truncf %11 : vector<32x32xf32> to vector<32x32xbf16>
    %cst_8 = arith.constant dense<0.000000e+00> : vector<16x32xf32>
    %13 = tpu.matmul %10, %12, %cst_8 {dimension_numbers = #tpu.dot_dimension_numbers<[1], [0], [0], [1], [0, 0, 1, 1], [], []>} : vector<16x32xbf16>, vector<32x32xbf16>, vector<16x32xf32> -> vector<16x32xf32>
    %c0_9 = arith.constant 0 : index
    %c0_10 = arith.constant 0 : index
    %14 = vector.load %arg5[%c0_9, %c0_10] : memref<1x32xf32, #tpu.memory_space<vmem>>, vector<1x32xf32>
    %15 = vector.broadcast %14 : vector<1x32xf32> to vector<16x32xf32>
    %16 = arith.addf %13, %15 : vector<16x32xf32>
    %c0_11 = arith.constant 0 : index
    %c0_12 = arith.constant 0 : index
    %17 = vector.load %arg6[%c0_11, %c0_12] : memref<16x32xf32, #tpu.memory_space<vmem>>, vector<16x32xf32>
    tpu.vector_store %arg6[%c0_11, %c0_12], %16 {strides = array<i32>} : memref<16x32xf32, #tpu.memory_space<vmem>>, vector<16x32xf32>,
    return
  }
  func.func @transform_0(%arg0: i32) -> (i32, i32) {
    %c0_i32 = arith.constant 0 : i32
    %c0_i32_0 = arith.constant 0 : i32
    return %arg0, %c0_i32 : i32, i32
  }
  func.func @transform_1(%arg0: i32) -> (i32, i32) {
    %c0_i32 = arith.constant 0 : i32
    %c0_i32_0 = arith.constant 0 : i32
    %c0_i32_1 = arith.constant 0 : i32
    return %c0_i32, %c0_i32_0 : i32, i32
  }
  func.func @transform_2(%arg0: i32) -> (i32, i32) {
    %c0_i32 = arith.constant 0 : i32
    %c0_i32_0 = arith.constant 0 : i32
    %c0_i32_1 = arith.constant 0 : i32
    return %c0_i32, %c0_i32_0 : i32, i32
  }
  func.func @transform_3(%arg0: i32) -> (i32, i32) {
    %c0_i32 = arith.constant 0 : i32
    %c0_i32_0 = arith.constant 0 : i32
    %c0_i32_1 = arith.constant 0 : i32
    return %c0_i32, %c0_i32_0 : i32, i32
  }
  func.func @transform_4(%arg0: i32) -> (i32, i32) {
    %c0_i32 = arith.constant 0 : i32
    %c0_i32_0 = arith.constant 0 : i32
    %c0_i32_1 = arith.constant 0 : i32
    return %c0_i32, %c0_i32_0 : i32, i32
  }
  func.func @transform_5(%arg0: i32) -> (i32, i32) {
    %c0_i32 = arith.constant 0 : i32
    %c0_i32_0 = arith.constant 0 : i32
    return %arg0, %c0_i32 : i32, i32
  }
}

module attributes {stable_mosaic.version = 11 : i64} {
  func.func @_ffn_ln_kernel(%arg0: i32, %arg1: memref<16x32xf32, #tpu.memory_space<vmem>>, %arg2: memref<32x64xf32, #tpu.memory_space<vmem>>, %arg3: memref<1x64xf32, #tpu.memory_space<vmem>>, %arg4: memref<64x32xf32, #tpu.memory_space<vmem>>, %arg5: memref<1x32xf32, #tpu.memory_space<vmem>>, %arg6: memref<1x32xf32, #tpu.memory_space<vmem>>, %arg7: memref<1x32xf32, #tpu.memory_space<vmem>>, %arg8: memref<16x32xf32, #tpu.memory_space<vmem>>) attributes {dimension_semantics = [#tpu.dimension_semantics<parallel>], iteration_bounds = array<i64: 1>, scalar_prefetch = 0 : i64, scratch_operands = 0 : i64, tpu.core_type = #tpu.core_type<tc>, window_params = [{transform_indices = @transform_0, window_bounds = array<i64: 16, 32>}, {pipeline_mode = #tpu.pipeline_mode<synchronous>, transform_indices = @transform_1, window_bounds = array<i64: 32, 64>}, {pipeline_mode = #tpu.pipeline_mode<synchronous>, transform_indices = @transform_2, window_bounds = array<i64: 1, 64>}, {pipeline_mode = #tpu.pipeline_mode<synchronous>, transform_indices = @transform_3, window_bounds = array<i64: 64, 32>}, {pipeline_mode = #tpu.pipeline_mode<synchronous>, transform_indices = @transform_4, window_bounds = array<i64: 1, 32>}, {pipeline_mode = #tpu.pipeline_mode<synchronous>, transform_indices = @transform_5, window_bounds = array<i64: 1, 32>}, {pipeline_mode = #tpu.pipeline_mode<synchronous>, transform_indices = @transform_6, window_bounds = array<i64: 1, 32>}, {transform_indices = @transform_7, window_bounds = array<i64: 16, 32>}]} {
    %c0 = arith.constant 0 : index
    %c0_0 = arith.constant 0 : index
    %0 = vector.load %arg1[%c0, %c0_0] : memref<16x32xf32, #tpu.memory_space<vmem>>, vector<16x32xf32>
    %1 = arith.truncf %0 : vector<16x32xf32> to vector<16x32xbf16>
    %c0_1 = arith.constant 0 : index
    %c0_2 = arith.constant 0 : index
    %2 = vector.load %arg2[%c0_1, %c0_2] : memref<32x64xf32, #tpu.memory_space<vmem>>, vector<32x64xf32>
    %3 = arith.truncf %2 : vector<32x64xf32> to vector<32x64xbf16>
    %cst = arith.constant dense<0.000000e+00> : vector<16x64xf32>
    %4 = tpu.matmul %1, %3, %cst {dimension_numbers = #tpu.dot_dimension_numbers<[1], [0], [0], [1], [0, 0, 1, 1], [], []>} : vector<16x32xbf16>, vector<32x64xbf16>, vector<16x64xf32> -> vector<16x64xf32>
    %c0_3 = arith.constant 0 : index
    %c0_4 = arith.constant 0 : index
    %5 = vector.load %arg3[%c0_3, %c0_4] : memref<1x64xf32, #tpu.memory_space<vmem>>, vector<1x64xf32>
    %6 = vector.broadcast %5 : vector<1x64xf32> to vector<16x64xf32>
    %7 = arith.addf %4, %6 : vector<16x64xf32>
    %cst_5 = arith.constant 0.000000e+00 : f32
    %8 = vector.broadcast %cst_5 : f32 to vector<16x64xf32>
    %9 = arith.maximumf %7, %8 : vector<16x64xf32>
    %10 = arith.truncf %9 : vector<16x64xf32> to vector<16x64xbf16>
    %c0_6 = arith.constant 0 : index
    %c0_7 = arith.constant 0 : index
    %11 = vector.load %arg4[%c0_6, %c0_7] : memref<64x32xf32, #tpu.memory_space<vmem>>, vector<64x32xf32>
    %12 = arith.truncf %11 : vector<64x32xf32> to vector<64x32xbf16>
    %cst_8 = arith.constant dense<0.000000e+00> : vector<16x32xf32>
    %13 = tpu.matmul %10, %12, %cst_8 {dimension_numbers = #tpu.dot_dimension_numbers<[1], [0], [0], [1], [0, 0, 1, 1], [], []>} : vector<16x64xbf16>, vector<64x32xbf16>, vector<16x32xf32> -> vector<16x32xf32>
    %c0_9 = arith.constant 0 : index
    %c0_10 = arith.constant 0 : index
    %14 = vector.load %arg5[%c0_9, %c0_10] : memref<1x32xf32, #tpu.memory_space<vmem>>, vector<1x32xf32>
    %15 = vector.broadcast %14 : vector<1x32xf32> to vector<16x32xf32>
    %16 = arith.addf %13, %15 : vector<16x32xf32>
    %17 = arith.addf %0, %16 : vector<16x32xf32>
    %cst_11 = arith.constant dense<0.000000e+00> : vector<16xf32>
    %18 = vector.multi_reduction <add>, %17, %cst_11 [1] : vector<16x32xf32> to vector<16xf32>
    %19 = vector.shape_cast %18 : vector<16xf32> to vector<16x1xf32>
    %cst_12 = arith.constant 3.200000e+01 : f32
    %20 = vector.broadcast %cst_12 : f32 to vector<16x1xf32>
    %21 = arith.divf %19, %20 : vector<16x1xf32>
    %22 = vector.broadcast %21 : vector<16x1xf32> to vector<16x32xf32>
    %23 = arith.subf %17, %22 : vector<16x32xf32>
    %24 = arith.mulf %23, %23 : vector<16x32xf32>
    %cst_13 = arith.constant dense<0.000000e+00> : vector<16xf32>
    %25 = vector.multi_reduction <add>, %24, %cst_13 [1] : vector<16x32xf32> to vector<16xf32>
    %26 = vector.shape_cast %25 : vector<16xf32> to vector<16x1xf32>
    %cst_14 = arith.constant 3.200000e+01 : f32
    %27 = vector.broadcast %cst_14 : f32 to vector<16x1xf32>
    %28 = arith.divf %26, %27 : vector<16x1xf32>
    %29 = vector.broadcast %21 : vector<16x1xf32> to vector<16x32xf32>
    %30 = arith.subf %17, %29 : vector<16x32xf32>
    %cst_15 = arith.constant 9.99999974E-6 : f32
    %31 = vector.broadcast %cst_15 : f32 to vector<16x1xf32>
    %32 = arith.addf %28, %31 : vector<16x1xf32>
    %33 = math.rsqrt %32 : vector<16x1xf32>
    %34 = vector.broadcast %33 : vector<16x1xf32> to vector<16x32xf32>
    %35 = arith.mulf %30, %34 : vector<16x32xf32>
    %c0_16 = arith.constant 0 : index
    %c0_17 = arith.constant 0 : index
    %36 = vector.load %arg6[%c0_16, %c0_17] : memref<1x32xf32, #tpu.memory_space<vmem>>, vector<1x32xf32>
    %37 = vector.broadcast %36 : vector<1x32xf32> to vector<16x32xf32>
    %38 = arith.mulf %35, %37 : vector<16x32xf32>
    %c0_18 = arith.constant 0 : index
    %c0_19 = arith.constant 0 : index
    %39 = vector.load %arg7[%c0_18, %c0_19] : memref<1x32xf32, #tpu.memory_space<vmem>>, vector<1x32xf32>
    %40 = vector.broadcast %39 : vector<1x32xf32> to vector<16x32xf32>
    %41 = arith.addf %38, %40 : vector<16x32xf32>
    %c0_20 = arith.constant 0 : index
    %c0_21 = arith.constant 0 : index
    %42 = vector.load %arg8[%c0_20, %c0_21] : memref<16x32xf32, #tpu.memory_space<vmem>>, vector<16x32xf32>
    tpu.vector_store %arg8[%c0_20, %c0_21], %41 {strides = array<i32>} : memref<16x32xf32, #tpu.memory_space<vmem>>, vector<16x32xf32>,
    return
  }
  func.func @transform_0(%arg0: i32) -> (i32, i32) {
    %c0_i32 = arith.constant 0 : i32
    %c0_i32_0 = arith.constant 0 : i32
    return %arg0, %c0_i32 : i32, i32
  }
  func.func @transform_1(%arg0: i32) -> (i32, i32) {
    %c0_i32 = arith.constant 0 : i32
    %c0_i32_0 = arith.constant 0 : i32
    %c0_i32_1 = arith.constant 0 : i32
    return %c0_i32, %c0_i32_0 : i32, i32
  }
  func.func @transform_2(%arg0: i32) -> (i32, i32) {
    %c0_i32 = arith.constant 0 : i32
    %c0_i32_0 = arith.constant 0 : i32
    %c0_i32_1 = arith.constant 0 : i32
    return %c0_i32, %c0_i32_0 : i32, i32
  }
  func.func @transform_3(%arg0: i32) -> (i32, i32) {
    %c0_i32 = arith.constant 0 : i32
    %c0_i32_0 = arith.constant 0 : i32
    %c0_i32_1 = arith.constant 0 : i32
    return %c0_i32, %c0_i32_0 : i32, i32
  }
  func.func @transform_4(%arg0: i32) -> (i32, i32) {
    %c0_i32 = arith.constant 0 : i32
    %c0_i32_0 = arith.constant 0 : i32
    %c0_i32_1 = arith.constant 0 : i32
    return %c0_i32, %c0_i32_0 : i32, i32
  }
  func.func @transform_5(%arg0: i32) -> (i32, i32) {
    %c0_i32 = arith.constant 0 : i32
    %c0_i32_0 = arith.constant 0 : i32
    %c0_i32_1 = arith.constant 0 : i32
    return %c0_i32, %c0_i32_0 : i32, i32
  }
  func.func @transform_6(%arg0: i32) -> (i32, i32) {
    %c0_i32 = arith.constant 0 : i32
    %c0_i32_0 = arith.constant 0 : i32
    %c0_i32_1 = arith.constant 0 : i32
    return %c0_i32, %c0_i32_0 : i32, i32
  }
  func.func @transform_7(%arg0: i32) -> (i32, i32) {
    %c0_i32 = arith.constant 0 : i32
    %c0_i32_0 = arith.constant 0 : i32
    return %arg0, %c0_i32 : i32, i32
  }
}

module attributes {stable_mosaic.version = 11 : i64} {
  func.func @_deform_kernel(%arg0: i32, %arg1: memref<1x8x32xf32, #tpu.memory_space<vmem>>, %arg2: memref<1x8x32xf32, #tpu.memory_space<vmem>>, %arg3: memref<1x30x32xf32, #tpu.memory_space<vmem>>, %arg4: memref<1x30x1xf32, #tpu.memory_space<vmem>>, %arg5: memref<32x32xf32, #tpu.memory_space<vmem>>, %arg6: memref<1x32xf32, #tpu.memory_space<vmem>>, %arg7: memref<32x64xf32, #tpu.memory_space<vmem>>, %arg8: memref<1x64xf32, #tpu.memory_space<vmem>>, %arg9: memref<1x8x32xf32, #tpu.memory_space<vmem>>, %arg10: memref<1x8x32xf32, #tpu.memory_space<vmem>>, %arg11: memref<1x32xi32, #tpu.memory_space<vmem>>, %arg12: memref<1x32xi32, #tpu.memory_space<vmem>>, %arg13: memref<32x32xf32, #tpu.memory_space<vmem>>, %arg14: memref<1x32xf32, #tpu.memory_space<vmem>>, %arg15: memref<1x32xf32, #tpu.memory_space<vmem>>, %arg16: memref<1x32xf32, #tpu.memory_space<vmem>>, %arg17: memref<1x8x32xf32, #tpu.memory_space<vmem>>, %arg18: memref<1x8x32xf32, #tpu.memory_space<vmem>>) attributes {dimension_semantics = [#tpu.dimension_semantics<parallel>], iteration_bounds = array<i64: 2>, scalar_prefetch = 0 : i64, scratch_operands = 0 : i64, tpu.core_type = #tpu.core_type<tc>, window_params = [{transform_indices = @transform_0, window_bounds = array<i64: 1, 8, 32>}, {transform_indices = @transform_1, window_bounds = array<i64: 1, 8, 32>}, {transform_indices = @transform_2, window_bounds = array<i64: 1, 30, 32>}, {transform_indices = @transform_3, window_bounds = array<i64: 1, 30, 1>}, {pipeline_mode = #tpu.pipeline_mode<synchronous>, transform_indices = @transform_4, window_bounds = array<i64: 32, 32>}, {pipeline_mode = #tpu.pipeline_mode<synchronous>, transform_indices = @transform_5, window_bounds = array<i64: 1, 32>}, {pipeline_mode = #tpu.pipeline_mode<synchronous>, transform_indices = @transform_6, window_bounds = array<i64: 32, 64>}, {pipeline_mode = #tpu.pipeline_mode<synchronous>, transform_indices = @transform_7, window_bounds = array<i64: 1, 64>}, {transform_indices = @transform_8, window_bounds = array<i64: 1, 8, 32>}, {transform_indices = @transform_9, window_bounds = array<i64: 1, 8, 32>}, {pipeline_mode = #tpu.pipeline_mode<synchronous>, transform_indices = @transform_10, window_bounds = array<i64: 1, 32>}, {pipeline_mode = #tpu.pipeline_mode<synchronous>, transform_indices = @transform_11, window_bounds = array<i64: 1, 32>}, {pipeline_mode = #tpu.pipeline_mode<synchronous>, transform_indices = @transform_12, window_bounds = array<i64: 32, 32>}, {pipeline_mode = #tpu.pipeline_mode<synchronous>, transform_indices = @transform_13, window_bounds = array<i64: 1, 32>}, {pipeline_mode = #tpu.pipeline_mode<synchronous>, transform_indices = @transform_14, window_bounds = array<i64: 1, 32>}, {pipeline_mode = #tpu.pipeline_mode<synchronous>, transform_indices = @transform_15, window_bounds = array<i64: 1, 32>}, {transform_indices = @transform_16, window_bounds = array<i64: 1, 8, 32>}, {transform_indices = @transform_17, window_bounds = array<i64: 1, 8, 32>}]} {
    %c0 = arith.constant 0 : index
    %c0_0 = arith.constant 0 : index
    %c0_1 = arith.constant 0 : index
    %0 = vector.load %arg1[%c0, %c0_0, %c0_1] : memref<1x8x32xf32, #tpu.memory_space<vmem>>, vector<1x8x32xf32>
    %1 = vector.shape_cast %0 : vector<1x8x32xf32> to vector<8x32xf32>
    %c0_2 = arith.constant 0 : index
    %c0_3 = arith.constant 0 : index
    %c0_4 = arith.constant 0 : index
    %2 = vector.load %arg3[%c0_2, %c0_3, %c0_4] : memref<1x30x32xf32, #tpu.memory_space<vmem>>, vector<1x30x32xf32>
    %3 = vector.shape_cast %2 : vector<1x30x32xf32> to vector<30x32xf32>
    %4 = arith.truncf %3 : vector<30x32xf32> to vector<30x32xbf16>
    %c0_5 = arith.constant 0 : index
    %c0_6 = arith.constant 0 : index
    %5 = vector.load %arg5[%c0_5, %c0_6] : memref<32x32xf32, #tpu.memory_space<vmem>>, vector<32x32xf32>
    %6 = arith.truncf %5 : vector<32x32xf32> to vector<32x32xbf16>
    %cst = arith.constant dense<0.000000e+00> : vector<30x32xf32>
    %7 = tpu.matmul %4, %6, %cst {dimension_numbers = #tpu.dot_dimension_numbers<[1], [0], [0], [1], [0, 0, 1, 1], [], []>} : vector<30x32xbf16>, vector<32x32xbf16>, vector<30x32xf32> -> vector<30x32xf32>
    %c0_7 = arith.constant 0 : index
    %c0_8 = arith.constant 0 : index
    %8 = vector.load %arg6[%c0_7, %c0_8] : memref<1x32xf32, #tpu.memory_space<vmem>>, vector<1x32xf32>
    %9 = vector.broadcast %8 : vector<1x32xf32> to vector<30x32xf32>
    %10 = arith.addf %7, %9 : vector<30x32xf32>
    %c0_9 = arith.constant 0 : index
    %c0_10 = arith.constant 0 : index
    %c0_11 = arith.constant 0 : index
    %11 = vector.load %arg4[%c0_9, %c0_10, %c0_11] : memref<1x30x1xf32, #tpu.memory_space<vmem>>, vector<1x30x1xf32>
    %12 = vector.shape_cast %11 : vector<1x30x1xf32> to vector<30x1xf32>
    %13 = vector.broadcast %12 : vector<30x1xf32> to vector<30x32xf32>
    %14 = arith.mulf %10, %13 : vector<30x32xf32>
    %15 = arith.truncf %14 : vector<30x32xf32> to vector<30x32xbf16>
    %c0_12 = arith.constant 0 : index
    %c0_13 = arith.constant 0 : index
    %c0_14 = arith.constant 0 : index
    %16 = vector.load %arg2[%c0_12, %c0_13, %c0_14] : memref<1x8x32xf32, #tpu.memory_space<vmem>>, vector<1x8x32xf32>
    %17 = vector.shape_cast %16 : vector<1x8x32xf32> to vector<8x32xf32>
    %18 = arith.addf %1, %17 : vector<8x32xf32>
    %19 = arith.truncf %18 : vector<8x32xf32> to vector<8x32xbf16>
    %c0_15 = arith.constant 0 : index
    %c0_16 = arith.constant 0 : index
    %20 = vector.load %arg7[%c0_15, %c0_16] : memref<32x64xf32, #tpu.memory_space<vmem>>, vector<32x64xf32>
    %21 = arith.truncf %20 : vector<32x64xf32> to vector<32x64xbf16>
    %cst_17 = arith.constant dense<0.000000e+00> : vector<8x64xf32>
    %22 = tpu.matmul %19, %21, %cst_17 {dimension_numbers = #tpu.dot_dimension_numbers<[1], [0], [0], [1], [0, 0, 1, 1], [], []>} : vector<8x32xbf16>, vector<32x64xbf16>, vector<8x64xf32> -> vector<8x64xf32>
    %c0_18 = arith.constant 0 : index
    %c0_19 = arith.constant 0 : index
    %23 = vector.load %arg8[%c0_18, %c0_19] : memref<1x64xf32, #tpu.memory_space<vmem>>, vector<1x64xf32>
    %24 = vector.broadcast %23 : vector<1x64xf32> to vector<8x64xf32>
    %25 = arith.addf %22, %24 : vector<8x64xf32>
    %26 = vector.extract_strided_slice %25 {offsets = [0, 0], sizes = [8, 32], strides = [1, 1]} : vector<8x64xf32> to vector<8x32xf32>
    %27 = vector.extract_strided_slice %25 {offsets = [0, 32], sizes = [8, 32], strides = [1, 1]} : vector<8x64xf32> to vector<8x32xf32>
    %c0_20 = arith.constant 0 : index
    %c0_21 = arith.constant 0 : index
    %c0_22 = arith.constant 0 : index
    %28 = vector.load %arg9[%c0_20, %c0_21, %c0_22] : memref<1x8x32xf32, #tpu.memory_space<vmem>>, vector<1x8x32xf32>
    %29 = vector.shape_cast %28 : vector<1x8x32xf32> to vector<8x32xf32>
    %c0_23 = arith.constant 0 : index
    %c0_24 = arith.constant 0 : index
    %c0_25 = arith.constant 0 : index
    %30 = vector.load %arg10[%c0_23, %c0_24, %c0_25] : memref<1x8x32xf32, #tpu.memory_space<vmem>>, vector<1x8x32xf32>
    %31 = vector.shape_cast %30 : vector<1x8x32xf32> to vector<8x32xf32>
    %32 = arith.mulf %26, %31 : vector<8x32xf32>
    %33 = arith.addf %29, %32 : vector<8x32xf32>
    %c0_26 = arith.constant 0 : index
    %c0_27 = arith.constant 0 : index
    %c0_28 = arith.constant 0 : index
    %34 = vector.load %arg18[%c0_26, %c0_27, %c0_28] : memref<1x8x32xf32, #tpu.memory_space<vmem>>, vector<1x8x32xf32>
    %35 = vector.shape_cast %34 : vector<1x8x32xf32> to vector<8x32xf32>
    %36 = vector.shape_cast %33 : vector<8x32xf32> to vector<1x8x32xf32>
    tpu.vector_store %arg18[%c0_26, %c0_27, %c0_28], %36 {strides = array<i32>} : memref<1x8x32xf32, #tpu.memory_space<vmem>>, vector<1x8x32xf32>,
    %c0_29 = arith.constant 0 : index
    %c0_30 = arith.constant 0 : index
    %37 = vector.load %arg11[%c0_29, %c0_30] : memref<1x32xi32, #tpu.memory_space<vmem>>, vector<1x32xi32>
    %38 = arith.sitofp %37 : vector<1x32xi32> to vector<1x32xf32>
    %c0_31 = arith.constant 0 : index
    %c0_32 = arith.constant 0 : index
    %39 = vector.load %arg12[%c0_31, %c0_32] : memref<1x32xi32, #tpu.memory_space<vmem>>, vector<1x32xi32>
    %40 = vector.broadcast %38 : vector<1x32xf32> to vector<8x32xf32>
    %41 = arith.mulf %33, %40 : vector<8x32xf32>
    %cst_33 = arith.constant 5.000000e-01 : f32
    %42 = vector.broadcast %cst_33 : f32 to vector<8x32xf32>
    %43 = arith.subf %41, %42 : vector<8x32xf32>
    %44 = math.floor %43 : vector<8x32xf32>
    %45 = arith.subf %43, %44 : vector<8x32xf32>
    %46 = arith.fptosi %44 : vector<8x32xf32> to vector<8x32xi32>
    %c0_i32 = arith.constant 0 : i32
    %47 = vector.broadcast %c0_i32 : i32 to vector<8x32xi32>
    %48 = arith.cmpi sge, %46, %47 : vector<8x32xi32>
    %49 = vector.broadcast %37 : vector<1x32xi32> to vector<8x32xi32>
    %50 = arith.cmpi slt, %46, %49 : vector<8x32xi32>
    %51 = arith.andi %48, %50 : vector<8x32xi1>
    %c1_i32 = arith.constant 1 : i32
    %52 = vector.broadcast %c1_i32 : i32 to vector<8x32xi32>
    %53 = arith.addi %46, %52 : vector<8x32xi32>
    %c0_i32_34 = arith.constant 0 : i32
    %54 = vector.broadcast %c0_i32_34 : i32 to vector<8x32xi32>
    %55 = arith.cmpi sge, %53, %54 : vector<8x32xi32>
    %c1_i32_35 = arith.constant 1 : i32
    %56 = vector.broadcast %c1_i32_35 : i32 to vector<8x32xi32>
    %57 = arith.addi %46, %56 : vector<8x32xi32>
    %58 = vector.broadcast %37 : vector<1x32xi32> to vector<8x32xi32>
    %59 = arith.cmpi slt, %57, %58 : vector<8x32xi32>
    %60 = arith.andi %55, %59 : vector<8x32xi1>
    %c1_i32_36 = arith.constant 1 : i32
    %61 = vector.broadcast %c1_i32_36 : i32 to vector<1x32xi32>
    %62 = arith.subi %37, %61 : vector<1x32xi32>
    %c0_i32_37 = arith.constant 0 : i32
    %63 = vector.broadcast %c0_i32_37 : i32 to vector<8x32xi32>
    %64 = arith.maxsi %63, %46 : vector<8x32xi32>
    %65 = vector.broadcast %62 : vector<1x32xi32> to vector<8x32xi32>
    %66 = arith.minsi %65, %64 : vector<8x32xi32>
    %67 = vector.broadcast %39 : vector<1x32xi32> to vector<8x32xi32>
    %68 = arith.addi %67, %66 : vector<8x32xi32>
    %c1_i32_38 = arith.constant 1 : i32
    %69 = vector.broadcast %c1_i32_38 : i32 to vector<8x32xi32>
    %70 = arith.addi %46, %69 : vector<8x32xi32>
    %c1_i32_39 = arith.constant 1 : i32
    %71 = vector.broadcast %c1_i32_39 : i32 to vector<1x32xi32>
    %72 = arith.subi %37, %71 : vector<1x32xi32>
    %c0_i32_40 = arith.constant 0 : i32
    %73 = vector.broadcast %c0_i32_40 : i32 to vector<8x32xi32>
    %74 = arith.maxsi %73, %70 : vector<8x32xi32>
    %75 = vector.broadcast %72 : vector<1x32xi32> to vector<8x32xi32>
    %76 = arith.minsi %75, %74 : vector<8x32xi32>
    %77 = vector.broadcast %39 : vector<1x32xi32> to vector<8x32xi32>
    %78 = arith.addi %77, %76 : vector<8x32xi32>
    %cst_41 = arith.constant 1.000000e+00 : f32
    %79 = vector.broadcast %cst_41 : f32 to vector<8x32xf32>
    %80 = arith.subf %79, %45 : vector<8x32xf32>
    %cst_42 = arith.constant 0.000000e+00 : f32
    %81 = vector.broadcast %cst_42 : f32 to vector<8x32xf32>
    %82 = arith.select %51, %80, %81 : vector<8x32xi1>, vector<8x32xf32>
    %cst_43 = arith.constant 0.000000e+00 : f32
    %83 = vector.broadcast %cst_43 : f32 to vector<8x32xf32>
    %84 = arith.select %60, %45, %83 : vector<8x32xi1>, vector<8x32xf32>
    %85 = tpu.iota {dimensions = array<i32: 1>} : vector<8x30xi32>
    %86 = vector.extract_strided_slice %27 {offsets = [0, 0], sizes = [8, 16], strides = [1, 1]} : vector<8x32xf32> to vector<8x16xf32>
    %cst_44 = arith.constant dense<0xFF800000> : vector<8xf32>
    %87 = vector.multi_reduction <maximumf>, %86, %cst_44 [1] : vector<8x16xf32> to vector<8xf32>
    %88 = vector.shape_cast %87 : vector<8xf32> to vector<8x1xf32>
    %89 = vector.broadcast %88 : vector<8x1xf32> to vector<8x16xf32>
    %90 = arith.subf %86, %89 : vector<8x16xf32>
    %91 = math.exp %90 : vector<8x16xf32>
    %cst_45 = arith.constant dense<0.000000e+00> : vector<8xf32>
    %92 = vector.multi_reduction <add>, %91, %cst_45 [1] : vector<8x16xf32> to vector<8xf32>
    %93 = vector.shape_cast %92 : vector<8xf32> to vector<8x1xf32>
    %94 = tpu.reciprocal %93 {approx = true} : vector<8x1xf32> -> vector<8x1xf32>
    %95 = vector.broadcast %94 : vector<8x1xf32> to vector<8x16xf32>
    %96 = arith.mulf %91, %95 : vector<8x16xf32>
    %97 = vector.extract_strided_slice %82 {offsets = [0, 0], sizes = [8, 16], strides = [1, 1]} : vector<8x32xf32> to vector<8x16xf32>
    %98 = arith.mulf %96, %97 : vector<8x16xf32>
    %99 = vector.extract_strided_slice %84 {offsets = [0, 0], sizes = [8, 16], strides = [1, 1]} : vector<8x32xf32> to vector<8x16xf32>
    %100 = arith.mulf %96, %99 : vector<8x16xf32>
    %101 = vector.extract_strided_slice %68 {offsets = [0, 0], sizes = [8, 16], strides = [1, 1]} : vector<8x32xi32> to vector<8x16xi32>
    %102 = vector.extract_strided_slice %78 {offsets = [0, 0], sizes = [8, 16], strides = [1, 1]} : vector<8x32xi32> to vector<8x16xi32>
    %cst_46 = arith.constant 0.000000e+00 : f32
    %103 = vector.broadcast %cst_46 : f32 to vector<8x30xf32>
    %104 = vector.extract_strided_slice %101 {offsets = [0, 0], sizes = [8, 1], strides = [1, 1]} : vector<8x16xi32> to vector<8x1xi32>
    %105 = vector.broadcast %104 : vector<8x1xi32> to vector<8x30xi32>
    %106 = arith.cmpi eq, %85, %105 : vector<8x30xi32>
    %107 = vector.extract_strided_slice %98 {offsets = [0, 0], sizes = [8, 1], strides = [1, 1]} : vector<8x16xf32> to vector<8x1xf32>
    %cst_47 = arith.constant 0.000000e+00 : f32
    %108 = vector.shape_cast %107 : vector<8x1xf32> to vector<8x1xf32>
    %109 = vector.broadcast %108 : vector<8x1xf32> to vector<8x30xf32>
    %110 = vector.broadcast %cst_47 : f32 to vector<8x30xf32>
    %111 = arith.select %106, %109, %110 : vector<8x30xi1>, vector<8x30xf32>
    %112 = arith.addf %103, %111 : vector<8x30xf32>
    %113 = vector.extract_strided_slice %102 {offsets = [0, 0], sizes = [8, 1], strides = [1, 1]} : vector<8x16xi32> to vector<8x1xi32>
    %114 = vector.broadcast %113 : vector<8x1xi32> to vector<8x30xi32>
    %115 = arith.cmpi eq, %85, %114 : vector<8x30xi32>
    %116 = vector.extract_strided_slice %100 {offsets = [0, 0], sizes = [8, 1], strides = [1, 1]} : vector<8x16xf32> to vector<8x1xf32>
    %cst_48 = arith.constant 0.000000e+00 : f32
    %117 = vector.shape_cast %116 : vector<8x1xf32> to vector<8x1xf32>
    %118 = vector.broadcast %117 : vector<8x1xf32> to vector<8x30xf32>
    %119 = vector.broadcast %cst_48 : f32 to vector<8x30xf32>
    %120 = arith.select %115, %118, %119 : vector<8x30xi1>, vector<8x30xf32>
    %121 = arith.addf %112, %120 : vector<8x30xf32>
    %122 = vector.extract_strided_slice %101 {offsets = [0, 1], sizes = [8, 1], strides = [1, 1]} : vector<8x16xi32> to vector<8x1xi32>
    %123 = vector.broadcast %122 : vector<8x1xi32> to vector<8x30xi32>
    %124 = arith.cmpi eq, %85, %123 : vector<8x30xi32>
    %125 = vector.extract_strided_slice %98 {offsets = [0, 1], sizes = [8, 1], strides = [1, 1]} : vector<8x16xf32> to vector<8x1xf32>
    %cst_49 = arith.constant 0.000000e+00 : f32
    %126 = vector.shape_cast %125 : vector<8x1xf32> to vector<8x1xf32>
    %127 = vector.broadcast %126 : vector<8x1xf32> to vector<8x30xf32>
    %128 = vector.broadcast %cst_49 : f32 to vector<8x30xf32>
    %129 = arith.select %124, %127, %128 : vector<8x30xi1>, vector<8x30xf32>
    %130 = arith.addf %121, %129 : vector<8x30xf32>
    %131 = vector.extract_strided_slice %102 {offsets = [0, 1], sizes = [8, 1], strides = [1, 1]} : vector<8x16xi32> to vector<8x1xi32>
    %132 = vector.broadcast %131 : vector<8x1xi32> to vector<8x30xi32>
    %133 = arith.cmpi eq, %85, %132 : vector<8x30xi32>
    %134 = vector.extract_strided_slice %100 {offsets = [0, 1], sizes = [8, 1], strides = [1, 1]} : vector<8x16xf32> to vector<8x1xf32>
    %cst_50 = arith.constant 0.000000e+00 : f32
    %135 = vector.shape_cast %134 : vector<8x1xf32> to vector<8x1xf32>
    %136 = vector.broadcast %135 : vector<8x1xf32> to vector<8x30xf32>
    %137 = vector.broadcast %cst_50 : f32 to vector<8x30xf32>
    %138 = arith.select %133, %136, %137 : vector<8x30xi1>, vector<8x30xf32>
    %139 = arith.addf %130, %138 : vector<8x30xf32>
    %140 = vector.extract_strided_slice %101 {offsets = [0, 2], sizes = [8, 1], strides = [1, 1]} : vector<8x16xi32> to vector<8x1xi32>
    %141 = vector.broadcast %140 : vector<8x1xi32> to vector<8x30xi32>
    %142 = arith.cmpi eq, %85, %141 : vector<8x30xi32>
    %143 = vector.extract_strided_slice %98 {offsets = [0, 2], sizes = [8, 1], strides = [1, 1]} : vector<8x16xf32> to vector<8x1xf32>
    %cst_51 = arith.constant 0.000000e+00 : f32
    %144 = vector.shape_cast %143 : vector<8x1xf32> to vector<8x1xf32>
    %145 = vector.broadcast %144 : vector<8x1xf32> to vector<8x30xf32>
    %146 = vector.broadcast %cst_51 : f32 to vector<8x30xf32>
    %147 = arith.select %142, %145, %146 : vector<8x30xi1>, vector<8x30xf32>
    %148 = arith.addf %139, %147 : vector<8x30xf32>
    %149 = vector.extract_strided_slice %102 {offsets = [0, 2], sizes = [8, 1], strides = [1, 1]} : vector<8x16xi32> to vector<8x1xi32>
    %150 = vector.broadcast %149 : vector<8x1xi32> to vector<8x30xi32>
    %151 = arith.cmpi eq, %85, %150 : vector<8x30xi32>
    %152 = vector.extract_strided_slice %100 {offsets = [0, 2], sizes = [8, 1], strides = [1, 1]} : vector<8x16xf32> to vector<8x1xf32>
    %cst_52 = arith.constant 0.000000e+00 : f32
    %153 = vector.shape_cast %152 : vector<8x1xf32> to vector<8x1xf32>
    %154 = vector.broadcast %153 : vector<8x1xf32> to vector<8x30xf32>
    %155 = vector.broadcast %cst_52 : f32 to vector<8x30xf32>
    %156 = arith.select %151, %154, %155 : vector<8x30xi1>, vector<8x30xf32>
    %157 = arith.addf %148, %156 : vector<8x30xf32>
    %158 = vector.extract_strided_slice %101 {offsets = [0, 3], sizes = [8, 1], strides = [1, 1]} : vector<8x16xi32> to vector<8x1xi32>
    %159 = vector.broadcast %158 : vector<8x1xi32> to vector<8x30xi32>
    %160 = arith.cmpi eq, %85, %159 : vector<8x30xi32>
    %161 = vector.extract_strided_slice %98 {offsets = [0, 3], sizes = [8, 1], strides = [1, 1]} : vector<8x16xf32> to vector<8x1xf32>
    %cst_53 = arith.constant 0.000000e+00 : f32
    %162 = vector.shape_cast %161 : vector<8x1xf32> to vector<8x1xf32>
    %163 = vector.broadcast %162 : vector<8x1xf32> to vector<8x30xf32>
    %164 = vector.broadcast %cst_53 : f32 to vector<8x30xf32>
    %165 = arith.select %160, %163, %164 : vector<8x30xi1>, vector<8x30xf32>
    %166 = arith.addf %157, %165 : vector<8x30xf32>
    %167 = vector.extract_strided_slice %102 {offsets = [0, 3], sizes = [8, 1], strides = [1, 1]} : vector<8x16xi32> to vector<8x1xi32>
    %168 = vector.broadcast %167 : vector<8x1xi32> to vector<8x30xi32>
    %169 = arith.cmpi eq, %85, %168 : vector<8x30xi32>
    %170 = vector.extract_strided_slice %100 {offsets = [0, 3], sizes = [8, 1], strides = [1, 1]} : vector<8x16xf32> to vector<8x1xf32>
    %cst_54 = arith.constant 0.000000e+00 : f32
    %171 = vector.shape_cast %170 : vector<8x1xf32> to vector<8x1xf32>
    %172 = vector.broadcast %171 : vector<8x1xf32> to vector<8x30xf32>
    %173 = vector.broadcast %cst_54 : f32 to vector<8x30xf32>
    %174 = arith.select %169, %172, %173 : vector<8x30xi1>, vector<8x30xf32>
    %175 = arith.addf %166, %174 : vector<8x30xf32>
    %176 = vector.extract_strided_slice %101 {offsets = [0, 4], sizes = [8, 1], strides = [1, 1]} : vector<8x16xi32> to vector<8x1xi32>
    %177 = vector.broadcast %176 : vector<8x1xi32> to vector<8x30xi32>
    %178 = arith.cmpi eq, %85, %177 : vector<8x30xi32>
    %179 = vector.extract_strided_slice %98 {offsets = [0, 4], sizes = [8, 1], strides = [1, 1]} : vector<8x16xf32> to vector<8x1xf32>
    %cst_55 = arith.constant 0.000000e+00 : f32
    %180 = vector.shape_cast %179 : vector<8x1xf32> to vector<8x1xf32>
    %181 = vector.broadcast %180 : vector<8x1xf32> to vector<8x30xf32>
    %182 = vector.broadcast %cst_55 : f32 to vector<8x30xf32>
    %183 = arith.select %178, %181, %182 : vector<8x30xi1>, vector<8x30xf32>
    %184 = arith.addf %175, %183 : vector<8x30xf32>
    %185 = vector.extract_strided_slice %102 {offsets = [0, 4], sizes = [8, 1], strides = [1, 1]} : vector<8x16xi32> to vector<8x1xi32>
    %186 = vector.broadcast %185 : vector<8x1xi32> to vector<8x30xi32>
    %187 = arith.cmpi eq, %85, %186 : vector<8x30xi32>
    %188 = vector.extract_strided_slice %100 {offsets = [0, 4], sizes = [8, 1], strides = [1, 1]} : vector<8x16xf32> to vector<8x1xf32>
    %cst_56 = arith.constant 0.000000e+00 : f32
    %189 = vector.shape_cast %188 : vector<8x1xf32> to vector<8x1xf32>
    %190 = vector.broadcast %189 : vector<8x1xf32> to vector<8x30xf32>
    %191 = vector.broadcast %cst_56 : f32 to vector<8x30xf32>
    %192 = arith.select %187, %190, %191 : vector<8x30xi1>, vector<8x30xf32>
    %193 = arith.addf %184, %192 : vector<8x30xf32>
    %194 = vector.extract_strided_slice %101 {offsets = [0, 5], sizes = [8, 1], strides = [1, 1]} : vector<8x16xi32> to vector<8x1xi32>
    %195 = vector.broadcast %194 : vector<8x1xi32> to vector<8x30xi32>
    %196 = arith.cmpi eq, %85, %195 : vector<8x30xi32>
    %197 = vector.extract_strided_slice %98 {offsets = [0, 5], sizes = [8, 1], strides = [1, 1]} : vector<8x16xf32> to vector<8x1xf32>
    %cst_57 = arith.constant 0.000000e+00 : f32
    %198 = vector.shape_cast %197 : vector<8x1xf32> to vector<8x1xf32>
    %199 = vector.broadcast %198 : vector<8x1xf32> to vector<8x30xf32>
    %200 = vector.broadcast %cst_57 : f32 to vector<8x30xf32>
    %201 = arith.select %196, %199, %200 : vector<8x30xi1>, vector<8x30xf32>
    %202 = arith.addf %193, %201 : vector<8x30xf32>
    %203 = vector.extract_strided_slice %102 {offsets = [0, 5], sizes = [8, 1], strides = [1, 1]} : vector<8x16xi32> to vector<8x1xi32>
    %204 = vector.broadcast %203 : vector<8x1xi32> to vector<8x30xi32>
    %205 = arith.cmpi eq, %85, %204 : vector<8x30xi32>
    %206 = vector.extract_strided_slice %100 {offsets = [0, 5], sizes = [8, 1], strides = [1, 1]} : vector<8x16xf32> to vector<8x1xf32>
    %cst_58 = arith.constant 0.000000e+00 : f32
    %207 = vector.shape_cast %206 : vector<8x1xf32> to vector<8x1xf32>
    %208 = vector.broadcast %207 : vector<8x1xf32> to vector<8x30xf32>
    %209 = vector.broadcast %cst_58 : f32 to vector<8x30xf32>
    %210 = arith.select %205, %208, %209 : vector<8x30xi1>, vector<8x30xf32>
    %211 = arith.addf %202, %210 : vector<8x30xf32>
    %212 = vector.extract_strided_slice %101 {offsets = [0, 6], sizes = [8, 1], strides = [1, 1]} : vector<8x16xi32> to vector<8x1xi32>
    %213 = vector.broadcast %212 : vector<8x1xi32> to vector<8x30xi32>
    %214 = arith.cmpi eq, %85, %213 : vector<8x30xi32>
    %215 = vector.extract_strided_slice %98 {offsets = [0, 6], sizes = [8, 1], strides = [1, 1]} : vector<8x16xf32> to vector<8x1xf32>
    %cst_59 = arith.constant 0.000000e+00 : f32
    %216 = vector.shape_cast %215 : vector<8x1xf32> to vector<8x1xf32>
    %217 = vector.broadcast %216 : vector<8x1xf32> to vector<8x30xf32>
    %218 = vector.broadcast %cst_59 : f32 to vector<8x30xf32>
    %219 = arith.select %214, %217, %218 : vector<8x30xi1>, vector<8x30xf32>
    %220 = arith.addf %211, %219 : vector<8x30xf32>
    %221 = vector.extract_strided_slice %102 {offsets = [0, 6], sizes = [8, 1], strides = [1, 1]} : vector<8x16xi32> to vector<8x1xi32>
    %222 = vector.broadcast %221 : vector<8x1xi32> to vector<8x30xi32>
    %223 = arith.cmpi eq, %85, %222 : vector<8x30xi32>
    %224 = vector.extract_strided_slice %100 {offsets = [0, 6], sizes = [8, 1], strides = [1, 1]} : vector<8x16xf32> to vector<8x1xf32>
    %cst_60 = arith.constant 0.000000e+00 : f32
    %225 = vector.shape_cast %224 : vector<8x1xf32> to vector<8x1xf32>
    %226 = vector.broadcast %225 : vector<8x1xf32> to vector<8x30xf32>
    %227 = vector.broadcast %cst_60 : f32 to vector<8x30xf32>
    %228 = arith.select %223, %226, %227 : vector<8x30xi1>, vector<8x30xf32>
    %229 = arith.addf %220, %228 : vector<8x30xf32>
    %230 = vector.extract_strided_slice %101 {offsets = [0, 7], sizes = [8, 1], strides = [1, 1]} : vector<8x16xi32> to vector<8x1xi32>
    %231 = vector.broadcast %230 : vector<8x1xi32> to vector<8x30xi32>
    %232 = arith.cmpi eq, %85, %231 : vector<8x30xi32>
    %233 = vector.extract_strided_slice %98 {offsets = [0, 7], sizes = [8, 1], strides = [1, 1]} : vector<8x16xf32> to vector<8x1xf32>
    %cst_61 = arith.constant 0.000000e+00 : f32
    %234 = vector.shape_cast %233 : vector<8x1xf32> to vector<8x1xf32>
    %235 = vector.broadcast %234 : vector<8x1xf32> to vector<8x30xf32>
    %236 = vector.broadcast %cst_61 : f32 to vector<8x30xf32>
    %237 = arith.select %232, %235, %236 : vector<8x30xi1>, vector<8x30xf32>
    %238 = arith.addf %229, %237 : vector<8x30xf32>
    %239 = vector.extract_strided_slice %102 {offsets = [0, 7], sizes = [8, 1], strides = [1, 1]} : vector<8x16xi32> to vector<8x1xi32>
    %240 = vector.broadcast %239 : vector<8x1xi32> to vector<8x30xi32>
    %241 = arith.cmpi eq, %85, %240 : vector<8x30xi32>
    %242 = vector.extract_strided_slice %100 {offsets = [0, 7], sizes = [8, 1], strides = [1, 1]} : vector<8x16xf32> to vector<8x1xf32>
    %cst_62 = arith.constant 0.000000e+00 : f32
    %243 = vector.shape_cast %242 : vector<8x1xf32> to vector<8x1xf32>
    %244 = vector.broadcast %243 : vector<8x1xf32> to vector<8x30xf32>
    %245 = vector.broadcast %cst_62 : f32 to vector<8x30xf32>
    %246 = arith.select %241, %244, %245 : vector<8x30xi1>, vector<8x30xf32>
    %247 = arith.addf %238, %246 : vector<8x30xf32>
    %248 = vector.extract_strided_slice %101 {offsets = [0, 8], sizes = [8, 1], strides = [1, 1]} : vector<8x16xi32> to vector<8x1xi32>
    %249 = vector.broadcast %248 : vector<8x1xi32> to vector<8x30xi32>
    %250 = arith.cmpi eq, %85, %249 : vector<8x30xi32>
    %251 = vector.extract_strided_slice %98 {offsets = [0, 8], sizes = [8, 1], strides = [1, 1]} : vector<8x16xf32> to vector<8x1xf32>
    %cst_63 = arith.constant 0.000000e+00 : f32
    %252 = vector.shape_cast %251 : vector<8x1xf32> to vector<8x1xf32>
    %253 = vector.broadcast %252 : vector<8x1xf32> to vector<8x30xf32>
    %254 = vector.broadcast %cst_63 : f32 to vector<8x30xf32>
    %255 = arith.select %250, %253, %254 : vector<8x30xi1>, vector<8x30xf32>
    %256 = arith.addf %247, %255 : vector<8x30xf32>
    %257 = vector.extract_strided_slice %102 {offsets = [0, 8], sizes = [8, 1], strides = [1, 1]} : vector<8x16xi32> to vector<8x1xi32>
    %258 = vector.broadcast %257 : vector<8x1xi32> to vector<8x30xi32>
    %259 = arith.cmpi eq, %85, %258 : vector<8x30xi32>
    %260 = vector.extract_strided_slice %100 {offsets = [0, 8], sizes = [8, 1], strides = [1, 1]} : vector<8x16xf32> to vector<8x1xf32>
    %cst_64 = arith.constant 0.000000e+00 : f32
    %261 = vector.shape_cast %260 : vector<8x1xf32> to vector<8x1xf32>
    %262 = vector.broadcast %261 : vector<8x1xf32> to vector<8x30xf32>
    %263 = vector.broadcast %cst_64 : f32 to vector<8x30xf32>
    %264 = arith.select %259, %262, %263 : vector<8x30xi1>, vector<8x30xf32>
    %265 = arith.addf %256, %264 : vector<8x30xf32>
    %266 = vector.extract_strided_slice %101 {offsets = [0, 9], sizes = [8, 1], strides = [1, 1]} : vector<8x16xi32> to vector<8x1xi32>
    %267 = vector.broadcast %266 : vector<8x1xi32> to vector<8x30xi32>
    %268 = arith.cmpi eq, %85, %267 : vector<8x30xi32>
    %269 = vector.extract_strided_slice %98 {offsets = [0, 9], sizes = [8, 1], strides = [1, 1]} : vector<8x16xf32> to vector<8x1xf32>
    %cst_65 = arith.constant 0.000000e+00 : f32
    %270 = vector.shape_cast %269 : vector<8x1xf32> to vector<8x1xf32>
    %271 = vector.broadcast %270 : vector<8x1xf32> to vector<8x30xf32>
    %272 = vector.broadcast %cst_65 : f32 to vector<8x30xf32>
    %273 = arith.select %268, %271, %272 : vector<8x30xi1>, vector<8x30xf32>
    %274 = arith.addf %265, %273 : vector<8x30xf32>
    %275 = vector.extract_strided_slice %102 {offsets = [0, 9], sizes = [8, 1], strides = [1, 1]} : vector<8x16xi32> to vector<8x1xi32>
    %276 = vector.broadcast %275 : vector<8x1xi32> to vector<8x30xi32>
    %277 = arith.cmpi eq, %85, %276 : vector<8x30xi32>
    %278 = vector.extract_strided_slice %100 {offsets = [0, 9], sizes = [8, 1], strides = [1, 1]} : vector<8x16xf32> to vector<8x1xf32>
    %cst_66 = arith.constant 0.000000e+00 : f32
    %279 = vector.shape_cast %278 : vector<8x1xf32> to vector<8x1xf32>
    %280 = vector.broadcast %279 : vector<8x1xf32> to vector<8x30xf32>
    %281 = vector.broadcast %cst_66 : f32 to vector<8x30xf32>
    %282 = arith.select %277, %280, %281 : vector<8x30xi1>, vector<8x30xf32>
    %283 = arith.addf %274, %282 : vector<8x30xf32>
    %284 = vector.extract_strided_slice %101 {offsets = [0, 10], sizes = [8, 1], strides = [1, 1]} : vector<8x16xi32> to vector<8x1xi32>
    %285 = vector.broadcast %284 : vector<8x1xi32> to vector<8x30xi32>
    %286 = arith.cmpi eq, %85, %285 : vector<8x30xi32>
    %287 = vector.extract_strided_slice %98 {offsets = [0, 10], sizes = [8, 1], strides = [1, 1]} : vector<8x16xf32> to vector<8x1xf32>
    %cst_67 = arith.constant 0.000000e+00 : f32
    %288 = vector.shape_cast %287 : vector<8x1xf32> to vector<8x1xf32>
    %289 = vector.broadcast %288 : vector<8x1xf32> to vector<8x30xf32>
    %290 = vector.broadcast %cst_67 : f32 to vector<8x30xf32>
    %291 = arith.select %286, %289, %290 : vector<8x30xi1>, vector<8x30xf32>
    %292 = arith.addf %283, %291 : vector<8x30xf32>
    %293 = vector.extract_strided_slice %102 {offsets = [0, 10], sizes = [8, 1], strides = [1, 1]} : vector<8x16xi32> to vector<8x1xi32>
    %294 = vector.broadcast %293 : vector<8x1xi32> to vector<8x30xi32>
    %295 = arith.cmpi eq, %85, %294 : vector<8x30xi32>
    %296 = vector.extract_strided_slice %100 {offsets = [0, 10], sizes = [8, 1], strides = [1, 1]} : vector<8x16xf32> to vector<8x1xf32>
    %cst_68 = arith.constant 0.000000e+00 : f32
    %297 = vector.shape_cast %296 : vector<8x1xf32> to vector<8x1xf32>
    %298 = vector.broadcast %297 : vector<8x1xf32> to vector<8x30xf32>
    %299 = vector.broadcast %cst_68 : f32 to vector<8x30xf32>
    %300 = arith.select %295, %298, %299 : vector<8x30xi1>, vector<8x30xf32>
    %301 = arith.addf %292, %300 : vector<8x30xf32>
    %302 = vector.extract_strided_slice %101 {offsets = [0, 11], sizes = [8, 1], strides = [1, 1]} : vector<8x16xi32> to vector<8x1xi32>
    %303 = vector.broadcast %302 : vector<8x1xi32> to vector<8x30xi32>
    %304 = arith.cmpi eq, %85, %303 : vector<8x30xi32>
    %305 = vector.extract_strided_slice %98 {offsets = [0, 11], sizes = [8, 1], strides = [1, 1]} : vector<8x16xf32> to vector<8x1xf32>
    %cst_69 = arith.constant 0.000000e+00 : f32
    %306 = vector.shape_cast %305 : vector<8x1xf32> to vector<8x1xf32>
    %307 = vector.broadcast %306 : vector<8x1xf32> to vector<8x30xf32>
    %308 = vector.broadcast %cst_69 : f32 to vector<8x30xf32>
    %309 = arith.select %304, %307, %308 : vector<8x30xi1>, vector<8x30xf32>
    %310 = arith.addf %301, %309 : vector<8x30xf32>
    %311 = vector.extract_strided_slice %102 {offsets = [0, 11], sizes = [8, 1], strides = [1, 1]} : vector<8x16xi32> to vector<8x1xi32>
    %312 = vector.broadcast %311 : vector<8x1xi32> to vector<8x30xi32>
    %313 = arith.cmpi eq, %85, %312 : vector<8x30xi32>
    %314 = vector.extract_strided_slice %100 {offsets = [0, 11], sizes = [8, 1], strides = [1, 1]} : vector<8x16xf32> to vector<8x1xf32>
    %cst_70 = arith.constant 0.000000e+00 : f32
    %315 = vector.shape_cast %314 : vector<8x1xf32> to vector<8x1xf32>
    %316 = vector.broadcast %315 : vector<8x1xf32> to vector<8x30xf32>
    %317 = vector.broadcast %cst_70 : f32 to vector<8x30xf32>
    %318 = arith.select %313, %316, %317 : vector<8x30xi1>, vector<8x30xf32>
    %319 = arith.addf %310, %318 : vector<8x30xf32>
    %320 = vector.extract_strided_slice %101 {offsets = [0, 12], sizes = [8, 1], strides = [1, 1]} : vector<8x16xi32> to vector<8x1xi32>
    %321 = vector.broadcast %320 : vector<8x1xi32> to vector<8x30xi32>
    %322 = arith.cmpi eq, %85, %321 : vector<8x30xi32>
    %323 = vector.extract_strided_slice %98 {offsets = [0, 12], sizes = [8, 1], strides = [1, 1]} : vector<8x16xf32> to vector<8x1xf32>
    %cst_71 = arith.constant 0.000000e+00 : f32
    %324 = vector.shape_cast %323 : vector<8x1xf32> to vector<8x1xf32>
    %325 = vector.broadcast %324 : vector<8x1xf32> to vector<8x30xf32>
    %326 = vector.broadcast %cst_71 : f32 to vector<8x30xf32>
    %327 = arith.select %322, %325, %326 : vector<8x30xi1>, vector<8x30xf32>
    %328 = arith.addf %319, %327 : vector<8x30xf32>
    %329 = vector.extract_strided_slice %102 {offsets = [0, 12], sizes = [8, 1], strides = [1, 1]} : vector<8x16xi32> to vector<8x1xi32>
    %330 = vector.broadcast %329 : vector<8x1xi32> to vector<8x30xi32>
    %331 = arith.cmpi eq, %85, %330 : vector<8x30xi32>
    %332 = vector.extract_strided_slice %100 {offsets = [0, 12], sizes = [8, 1], strides = [1, 1]} : vector<8x16xf32> to vector<8x1xf32>
    %cst_72 = arith.constant 0.000000e+00 : f32
    %333 = vector.shape_cast %332 : vector<8x1xf32> to vector<8x1xf32>
    %334 = vector.broadcast %333 : vector<8x1xf32> to vector<8x30xf32>
    %335 = vector.broadcast %cst_72 : f32 to vector<8x30xf32>
    %336 = arith.select %331, %334, %335 : vector<8x30xi1>, vector<8x30xf32>
    %337 = arith.addf %328, %336 : vector<8x30xf32>
    %338 = vector.extract_strided_slice %101 {offsets = [0, 13], sizes = [8, 1], strides = [1, 1]} : vector<8x16xi32> to vector<8x1xi32>
    %339 = vector.broadcast %338 : vector<8x1xi32> to vector<8x30xi32>
    %340 = arith.cmpi eq, %85, %339 : vector<8x30xi32>
    %341 = vector.extract_strided_slice %98 {offsets = [0, 13], sizes = [8, 1], strides = [1, 1]} : vector<8x16xf32> to vector<8x1xf32>
    %cst_73 = arith.constant 0.000000e+00 : f32
    %342 = vector.shape_cast %341 : vector<8x1xf32> to vector<8x1xf32>
    %343 = vector.broadcast %342 : vector<8x1xf32> to vector<8x30xf32>
    %344 = vector.broadcast %cst_73 : f32 to vector<8x30xf32>
    %345 = arith.select %340, %343, %344 : vector<8x30xi1>, vector<8x30xf32>
    %346 = arith.addf %337, %345 : vector<8x30xf32>
    %347 = vector.extract_strided_slice %102 {offsets = [0, 13], sizes = [8, 1], strides = [1, 1]} : vector<8x16xi32> to vector<8x1xi32>
    %348 = vector.broadcast %347 : vector<8x1xi32> to vector<8x30xi32>
    %349 = arith.cmpi eq, %85, %348 : vector<8x30xi32>
    %350 = vector.extract_strided_slice %100 {offsets = [0, 13], sizes = [8, 1], strides = [1, 1]} : vector<8x16xf32> to vector<8x1xf32>
    %cst_74 = arith.constant 0.000000e+00 : f32
    %351 = vector.shape_cast %350 : vector<8x1xf32> to vector<8x1xf32>
    %352 = vector.broadcast %351 : vector<8x1xf32> to vector<8x30xf32>
    %353 = vector.broadcast %cst_74 : f32 to vector<8x30xf32>
    %354 = arith.select %349, %352, %353 : vector<8x30xi1>, vector<8x30xf32>
    %355 = arith.addf %346, %354 : vector<8x30xf32>
    %356 = vector.extract_strided_slice %101 {offsets = [0, 14], sizes = [8, 1], strides = [1, 1]} : vector<8x16xi32> to vector<8x1xi32>
    %357 = vector.broadcast %356 : vector<8x1xi32> to vector<8x30xi32>
    %358 = arith.cmpi eq, %85, %357 : vector<8x30xi32>
    %359 = vector.extract_strided_slice %98 {offsets = [0, 14], sizes = [8, 1], strides = [1, 1]} : vector<8x16xf32> to vector<8x1xf32>
    %cst_75 = arith.constant 0.000000e+00 : f32
    %360 = vector.shape_cast %359 : vector<8x1xf32> to vector<8x1xf32>
    %361 = vector.broadcast %360 : vector<8x1xf32> to vector<8x30xf32>
    %362 = vector.broadcast %cst_75 : f32 to vector<8x30xf32>
    %363 = arith.select %358, %361, %362 : vector<8x30xi1>, vector<8x30xf32>
    %364 = arith.addf %355, %363 : vector<8x30xf32>
    %365 = vector.extract_strided_slice %102 {offsets = [0, 14], sizes = [8, 1], strides = [1, 1]} : vector<8x16xi32> to vector<8x1xi32>
    %366 = vector.broadcast %365 : vector<8x1xi32> to vector<8x30xi32>
    %367 = arith.cmpi eq, %85, %366 : vector<8x30xi32>
    %368 = vector.extract_strided_slice %100 {offsets = [0, 14], sizes = [8, 1], strides = [1, 1]} : vector<8x16xf32> to vector<8x1xf32>
    %cst_76 = arith.constant 0.000000e+00 : f32
    %369 = vector.shape_cast %368 : vector<8x1xf32> to vector<8x1xf32>
    %370 = vector.broadcast %369 : vector<8x1xf32> to vector<8x30xf32>
    %371 = vector.broadcast %cst_76 : f32 to vector<8x30xf32>
    %372 = arith.select %367, %370, %371 : vector<8x30xi1>, vector<8x30xf32>
    %373 = arith.addf %364, %372 : vector<8x30xf32>
    %374 = vector.extract_strided_slice %101 {offsets = [0, 15], sizes = [8, 1], strides = [1, 1]} : vector<8x16xi32> to vector<8x1xi32>
    %375 = vector.broadcast %374 : vector<8x1xi32> to vector<8x30xi32>
    %376 = arith.cmpi eq, %85, %375 : vector<8x30xi32>
    %377 = vector.extract_strided_slice %98 {offsets = [0, 15], sizes = [8, 1], strides = [1, 1]} : vector<8x16xf32> to vector<8x1xf32>
    %cst_77 = arith.constant 0.000000e+00 : f32
    %378 = vector.shape_cast %377 : vector<8x1xf32> to vector<8x1xf32>
    %379 = vector.broadcast %378 : vector<8x1xf32> to vector<8x30xf32>
    %380 = vector.broadcast %cst_77 : f32 to vector<8x30xf32>
    %381 = arith.select %376, %379, %380 : vector<8x30xi1>, vector<8x30xf32>
    %382 = arith.addf %373, %381 : vector<8x30xf32>
    %383 = vector.extract_strided_slice %102 {offsets = [0, 15], sizes = [8, 1], strides = [1, 1]} : vector<8x16xi32> to vector<8x1xi32>
    %384 = vector.broadcast %383 : vector<8x1xi32> to vector<8x30xi32>
    %385 = arith.cmpi eq, %85, %384 : vector<8x30xi32>
    %386 = vector.extract_strided_slice %100 {offsets = [0, 15], sizes = [8, 1], strides = [1, 1]} : vector<8x16xf32> to vector<8x1xf32>
    %cst_78 = arith.constant 0.000000e+00 : f32
    %387 = vector.shape_cast %386 : vector<8x1xf32> to vector<8x1xf32>
    %388 = vector.broadcast %387 : vector<8x1xf32> to vector<8x30xf32>
    %389 = vector.broadcast %cst_78 : f32 to vector<8x30xf32>
    %390 = arith.select %385, %388, %389 : vector<8x30xi1>, vector<8x30xf32>
    %391 = arith.addf %382, %390 : vector<8x30xf32>
    %392 = arith.truncf %391 : vector<8x30xf32> to vector<8x30xbf16>
    %393 = vector.extract_strided_slice %15 {offsets = [0, 0], sizes = [30, 16], strides = [1, 1]} : vector<30x32xbf16> to vector<30x16xbf16>
    %cst_79 = arith.constant dense<0.000000e+00> : vector<8x16xf32>
    %394 = tpu.matmul %392, %393, %cst_79 {dimension_numbers = #tpu.dot_dimension_numbers<[1], [0], [0], [1], [0, 0, 1, 1], [], []>} : vector<8x30xbf16>, vector<30x16xbf16>, vector<8x16xf32> -> vector<8x16xf32>
    %395 = vector.extract_strided_slice %27 {offsets = [0, 16], sizes = [8, 16], strides = [1, 1]} : vector<8x32xf32> to vector<8x16xf32>
    %cst_80 = arith.constant dense<0xFF800000> : vector<8xf32>
    %396 = vector.multi_reduction <maximumf>, %395, %cst_80 [1] : vector<8x16xf32> to vector<8xf32>
    %397 = vector.shape_cast %396 : vector<8xf32> to vector<8x1xf32>
    %398 = vector.broadcast %397 : vector<8x1xf32> to vector<8x16xf32>
    %399 = arith.subf %395, %398 : vector<8x16xf32>
    %400 = math.exp %399 : vector<8x16xf32>
    %cst_81 = arith.constant dense<0.000000e+00> : vector<8xf32>
    %401 = vector.multi_reduction <add>, %400, %cst_81 [1] : vector<8x16xf32> to vector<8xf32>
    %402 = vector.shape_cast %401 : vector<8xf32> to vector<8x1xf32>
    %403 = tpu.reciprocal %402 {approx = true} : vector<8x1xf32> -> vector<8x1xf32>
    %404 = vector.broadcast %403 : vector<8x1xf32> to vector<8x16xf32>
    %405 = arith.mulf %400, %404 : vector<8x16xf32>
    %406 = vector.extract_strided_slice %82 {offsets = [0, 16], sizes = [8, 16], strides = [1, 1]} : vector<8x32xf32> to vector<8x16xf32>
    %407 = arith.mulf %405, %406 : vector<8x16xf32>
    %408 = vector.extract_strided_slice %84 {offsets = [0, 16], sizes = [8, 16], strides = [1, 1]} : vector<8x32xf32> to vector<8x16xf32>
    %409 = arith.mulf %405, %408 : vector<8x16xf32>
    %410 = vector.extract_strided_slice %68 {offsets = [0, 16], sizes = [8, 16], strides = [1, 1]} : vector<8x32xi32> to vector<8x16xi32>
    %411 = vector.extract_strided_slice %78 {offsets = [0, 16], sizes = [8, 16], strides = [1, 1]} : vector<8x32xi32> to vector<8x16xi32>
    %cst_82 = arith.constant 0.000000e+00 : f32
    %412 = vector.broadcast %cst_82 : f32 to vector<8x30xf32>
    %413 = vector.extract_strided_slice %410 {offsets = [0, 0], sizes = [8, 1], strides = [1, 1]} : vector<8x16xi32> to vector<8x1xi32>
    %414 = vector.broadcast %413 : vector<8x1xi32> to vector<8x30xi32>
    %415 = arith.cmpi eq, %85, %414 : vector<8x30xi32>
    %416 = vector.extract_strided_slice %407 {offsets = [0, 0], sizes = [8, 1], strides = [1, 1]} : vector<8x16xf32> to vector<8x1xf32>
    %cst_83 = arith.constant 0.000000e+00 : f32
    %417 = vector.shape_cast %416 : vector<8x1xf32> to vector<8x1xf32>
    %418 = vector.broadcast %417 : vector<8x1xf32> to vector<8x30xf32>
    %419 = vector.broadcast %cst_83 : f32 to vector<8x30xf32>
    %420 = arith.select %415, %418, %419 : vector<8x30xi1>, vector<8x30xf32>
    %421 = arith.addf %412, %420 : vector<8x30xf32>
    %422 = vector.extract_strided_slice %411 {offsets = [0, 0], sizes = [8, 1], strides = [1, 1]} : vector<8x16xi32> to vector<8x1xi32>
    %423 = vector.broadcast %422 : vector<8x1xi32> to vector<8x30xi32>
    %424 = arith.cmpi eq, %85, %423 : vector<8x30xi32>
    %425 = vector.extract_strided_slice %409 {offsets = [0, 0], sizes = [8, 1], strides = [1, 1]} : vector<8x16xf32> to vector<8x1xf32>
    %cst_84 = arith.constant 0.000000e+00 : f32
    %426 = vector.shape_cast %425 : vector<8x1xf32> to vector<8x1xf32>
    %427 = vector.broadcast %426 : vector<8x1xf32> to vector<8x30xf32>
    %428 = vector.broadcast %cst_84 : f32 to vector<8x30xf32>
    %429 = arith.select %424, %427, %428 : vector<8x30xi1>, vector<8x30xf32>
    %430 = arith.addf %421, %429 : vector<8x30xf32>
    %431 = vector.extract_strided_slice %410 {offsets = [0, 1], sizes = [8, 1], strides = [1, 1]} : vector<8x16xi32> to vector<8x1xi32>
    %432 = vector.broadcast %431 : vector<8x1xi32> to vector<8x30xi32>
    %433 = arith.cmpi eq, %85, %432 : vector<8x30xi32>
    %434 = vector.extract_strided_slice %407 {offsets = [0, 1], sizes = [8, 1], strides = [1, 1]} : vector<8x16xf32> to vector<8x1xf32>
    %cst_85 = arith.constant 0.000000e+00 : f32
    %435 = vector.shape_cast %434 : vector<8x1xf32> to vector<8x1xf32>
    %436 = vector.broadcast %435 : vector<8x1xf32> to vector<8x30xf32>
    %437 = vector.broadcast %cst_85 : f32 to vector<8x30xf32>
    %438 = arith.select %433, %436, %437 : vector<8x30xi1>, vector<8x30xf32>
    %439 = arith.addf %430, %438 : vector<8x30xf32>
    %440 = vector.extract_strided_slice %411 {offsets = [0, 1], sizes = [8, 1], strides = [1, 1]} : vector<8x16xi32> to vector<8x1xi32>
    %441 = vector.broadcast %440 : vector<8x1xi32> to vector<8x30xi32>
    %442 = arith.cmpi eq, %85, %441 : vector<8x30xi32>
    %443 = vector.extract_strided_slice %409 {offsets = [0, 1], sizes = [8, 1], strides = [1, 1]} : vector<8x16xf32> to vector<8x1xf32>
    %cst_86 = arith.constant 0.000000e+00 : f32
    %444 = vector.shape_cast %443 : vector<8x1xf32> to vector<8x1xf32>
    %445 = vector.broadcast %444 : vector<8x1xf32> to vector<8x30xf32>
    %446 = vector.broadcast %cst_86 : f32 to vector<8x30xf32>
    %447 = arith.select %442, %445, %446 : vector<8x30xi1>, vector<8x30xf32>
    %448 = arith.addf %439, %447 : vector<8x30xf32>
    %449 = vector.extract_strided_slice %410 {offsets = [0, 2], sizes = [8, 1], strides = [1, 1]} : vector<8x16xi32> to vector<8x1xi32>
    %450 = vector.broadcast %449 : vector<8x1xi32> to vector<8x30xi32>
    %451 = arith.cmpi eq, %85, %450 : vector<8x30xi32>
    %452 = vector.extract_strided_slice %407 {offsets = [0, 2], sizes = [8, 1], strides = [1, 1]} : vector<8x16xf32> to vector<8x1xf32>
    %cst_87 = arith.constant 0.000000e+00 : f32
    %453 = vector.shape_cast %452 : vector<8x1xf32> to vector<8x1xf32>
    %454 = vector.broadcast %453 : vector<8x1xf32> to vector<8x30xf32>
    %455 = vector.broadcast %cst_87 : f32 to vector<8x30xf32>
    %456 = arith.select %451, %454, %455 : vector<8x30xi1>, vector<8x30xf32>
    %457 = arith.addf %448, %456 : vector<8x30xf32>
    %458 = vector.extract_strided_slice %411 {offsets = [0, 2], sizes = [8, 1], strides = [1, 1]} : vector<8x16xi32> to vector<8x1xi32>
    %459 = vector.broadcast %458 : vector<8x1xi32> to vector<8x30xi32>
    %460 = arith.cmpi eq, %85, %459 : vector<8x30xi32>
    %461 = vector.extract_strided_slice %409 {offsets = [0, 2], sizes = [8, 1], strides = [1, 1]} : vector<8x16xf32> to vector<8x1xf32>
    %cst_88 = arith.constant 0.000000e+00 : f32
    %462 = vector.shape_cast %461 : vector<8x1xf32> to vector<8x1xf32>
    %463 = vector.broadcast %462 : vector<8x1xf32> to vector<8x30xf32>
    %464 = vector.broadcast %cst_88 : f32 to vector<8x30xf32>
    %465 = arith.select %460, %463, %464 : vector<8x30xi1>, vector<8x30xf32>
    %466 = arith.addf %457, %465 : vector<8x30xf32>
    %467 = vector.extract_strided_slice %410 {offsets = [0, 3], sizes = [8, 1], strides = [1, 1]} : vector<8x16xi32> to vector<8x1xi32>
    %468 = vector.broadcast %467 : vector<8x1xi32> to vector<8x30xi32>
    %469 = arith.cmpi eq, %85, %468 : vector<8x30xi32>
    %470 = vector.extract_strided_slice %407 {offsets = [0, 3], sizes = [8, 1], strides = [1, 1]} : vector<8x16xf32> to vector<8x1xf32>
    %cst_89 = arith.constant 0.000000e+00 : f32
    %471 = vector.shape_cast %470 : vector<8x1xf32> to vector<8x1xf32>
    %472 = vector.broadcast %471 : vector<8x1xf32> to vector<8x30xf32>
    %473 = vector.broadcast %cst_89 : f32 to vector<8x30xf32>
    %474 = arith.select %469, %472, %473 : vector<8x30xi1>, vector<8x30xf32>
    %475 = arith.addf %466, %474 : vector<8x30xf32>
    %476 = vector.extract_strided_slice %411 {offsets = [0, 3], sizes = [8, 1], strides = [1, 1]} : vector<8x16xi32> to vector<8x1xi32>
    %477 = vector.broadcast %476 : vector<8x1xi32> to vector<8x30xi32>
    %478 = arith.cmpi eq, %85, %477 : vector<8x30xi32>
    %479 = vector.extract_strided_slice %409 {offsets = [0, 3], sizes = [8, 1], strides = [1, 1]} : vector<8x16xf32> to vector<8x1xf32>
    %cst_90 = arith.constant 0.000000e+00 : f32
    %480 = vector.shape_cast %479 : vector<8x1xf32> to vector<8x1xf32>
    %481 = vector.broadcast %480 : vector<8x1xf32> to vector<8x30xf32>
    %482 = vector.broadcast %cst_90 : f32 to vector<8x30xf32>
    %483 = arith.select %478, %481, %482 : vector<8x30xi1>, vector<8x30xf32>
    %484 = arith.addf %475, %483 : vector<8x30xf32>
    %485 = vector.extract_strided_slice %410 {offsets = [0, 4], sizes = [8, 1], strides = [1, 1]} : vector<8x16xi32> to vector<8x1xi32>
    %486 = vector.broadcast %485 : vector<8x1xi32> to vector<8x30xi32>
    %487 = arith.cmpi eq, %85, %486 : vector<8x30xi32>
    %488 = vector.extract_strided_slice %407 {offsets = [0, 4], sizes = [8, 1], strides = [1, 1]} : vector<8x16xf32> to vector<8x1xf32>
    %cst_91 = arith.constant 0.000000e+00 : f32
    %489 = vector.shape_cast %488 : vector<8x1xf32> to vector<8x1xf32>
    %490 = vector.broadcast %489 : vector<8x1xf32> to vector<8x30xf32>
    %491 = vector.broadcast %cst_91 : f32 to vector<8x30xf32>
    %492 = arith.select %487, %490, %491 : vector<8x30xi1>, vector<8x30xf32>
    %493 = arith.addf %484, %492 : vector<8x30xf32>
    %494 = vector.extract_strided_slice %411 {offsets = [0, 4], sizes = [8, 1], strides = [1, 1]} : vector<8x16xi32> to vector<8x1xi32>
    %495 = vector.broadcast %494 : vector<8x1xi32> to vector<8x30xi32>
    %496 = arith.cmpi eq, %85, %495 : vector<8x30xi32>
    %497 = vector.extract_strided_slice %409 {offsets = [0, 4], sizes = [8, 1], strides = [1, 1]} : vector<8x16xf32> to vector<8x1xf32>
    %cst_92 = arith.constant 0.000000e+00 : f32
    %498 = vector.shape_cast %497 : vector<8x1xf32> to vector<8x1xf32>
    %499 = vector.broadcast %498 : vector<8x1xf32> to vector<8x30xf32>
    %500 = vector.broadcast %cst_92 : f32 to vector<8x30xf32>
    %501 = arith.select %496, %499, %500 : vector<8x30xi1>, vector<8x30xf32>
    %502 = arith.addf %493, %501 : vector<8x30xf32>
    %503 = vector.extract_strided_slice %410 {offsets = [0, 5], sizes = [8, 1], strides = [1, 1]} : vector<8x16xi32> to vector<8x1xi32>
    %504 = vector.broadcast %503 : vector<8x1xi32> to vector<8x30xi32>
    %505 = arith.cmpi eq, %85, %504 : vector<8x30xi32>
    %506 = vector.extract_strided_slice %407 {offsets = [0, 5], sizes = [8, 1], strides = [1, 1]} : vector<8x16xf32> to vector<8x1xf32>
    %cst_93 = arith.constant 0.000000e+00 : f32
    %507 = vector.shape_cast %506 : vector<8x1xf32> to vector<8x1xf32>
    %508 = vector.broadcast %507 : vector<8x1xf32> to vector<8x30xf32>
    %509 = vector.broadcast %cst_93 : f32 to vector<8x30xf32>
    %510 = arith.select %505, %508, %509 : vector<8x30xi1>, vector<8x30xf32>
    %511 = arith.addf %502, %510 : vector<8x30xf32>
    %512 = vector.extract_strided_slice %411 {offsets = [0, 5], sizes = [8, 1], strides = [1, 1]} : vector<8x16xi32> to vector<8x1xi32>
    %513 = vector.broadcast %512 : vector<8x1xi32> to vector<8x30xi32>
    %514 = arith.cmpi eq, %85, %513 : vector<8x30xi32>
    %515 = vector.extract_strided_slice %409 {offsets = [0, 5], sizes = [8, 1], strides = [1, 1]} : vector<8x16xf32> to vector<8x1xf32>
    %cst_94 = arith.constant 0.000000e+00 : f32
    %516 = vector.shape_cast %515 : vector<8x1xf32> to vector<8x1xf32>
    %517 = vector.broadcast %516 : vector<8x1xf32> to vector<8x30xf32>
    %518 = vector.broadcast %cst_94 : f32 to vector<8x30xf32>
    %519 = arith.select %514, %517, %518 : vector<8x30xi1>, vector<8x30xf32>
    %520 = arith.addf %511, %519 : vector<8x30xf32>
    %521 = vector.extract_strided_slice %410 {offsets = [0, 6], sizes = [8, 1], strides = [1, 1]} : vector<8x16xi32> to vector<8x1xi32>
    %522 = vector.broadcast %521 : vector<8x1xi32> to vector<8x30xi32>
    %523 = arith.cmpi eq, %85, %522 : vector<8x30xi32>
    %524 = vector.extract_strided_slice %407 {offsets = [0, 6], sizes = [8, 1], strides = [1, 1]} : vector<8x16xf32> to vector<8x1xf32>
    %cst_95 = arith.constant 0.000000e+00 : f32
    %525 = vector.shape_cast %524 : vector<8x1xf32> to vector<8x1xf32>
    %526 = vector.broadcast %525 : vector<8x1xf32> to vector<8x30xf32>
    %527 = vector.broadcast %cst_95 : f32 to vector<8x30xf32>
    %528 = arith.select %523, %526, %527 : vector<8x30xi1>, vector<8x30xf32>
    %529 = arith.addf %520, %528 : vector<8x30xf32>
    %530 = vector.extract_strided_slice %411 {offsets = [0, 6], sizes = [8, 1], strides = [1, 1]} : vector<8x16xi32> to vector<8x1xi32>
    %531 = vector.broadcast %530 : vector<8x1xi32> to vector<8x30xi32>
    %532 = arith.cmpi eq, %85, %531 : vector<8x30xi32>
    %533 = vector.extract_strided_slice %409 {offsets = [0, 6], sizes = [8, 1], strides = [1, 1]} : vector<8x16xf32> to vector<8x1xf32>
    %cst_96 = arith.constant 0.000000e+00 : f32
    %534 = vector.shape_cast %533 : vector<8x1xf32> to vector<8x1xf32>
    %535 = vector.broadcast %534 : vector<8x1xf32> to vector<8x30xf32>
    %536 = vector.broadcast %cst_96 : f32 to vector<8x30xf32>
    %537 = arith.select %532, %535, %536 : vector<8x30xi1>, vector<8x30xf32>
    %538 = arith.addf %529, %537 : vector<8x30xf32>
    %539 = vector.extract_strided_slice %410 {offsets = [0, 7], sizes = [8, 1], strides = [1, 1]} : vector<8x16xi32> to vector<8x1xi32>
    %540 = vector.broadcast %539 : vector<8x1xi32> to vector<8x30xi32>
    %541 = arith.cmpi eq, %85, %540 : vector<8x30xi32>
    %542 = vector.extract_strided_slice %407 {offsets = [0, 7], sizes = [8, 1], strides = [1, 1]} : vector<8x16xf32> to vector<8x1xf32>
    %cst_97 = arith.constant 0.000000e+00 : f32
    %543 = vector.shape_cast %542 : vector<8x1xf32> to vector<8x1xf32>
    %544 = vector.broadcast %543 : vector<8x1xf32> to vector<8x30xf32>
    %545 = vector.broadcast %cst_97 : f32 to vector<8x30xf32>
    %546 = arith.select %541, %544, %545 : vector<8x30xi1>, vector<8x30xf32>
    %547 = arith.addf %538, %546 : vector<8x30xf32>
    %548 = vector.extract_strided_slice %411 {offsets = [0, 7], sizes = [8, 1], strides = [1, 1]} : vector<8x16xi32> to vector<8x1xi32>
    %549 = vector.broadcast %548 : vector<8x1xi32> to vector<8x30xi32>
    %550 = arith.cmpi eq, %85, %549 : vector<8x30xi32>
    %551 = vector.extract_strided_slice %409 {offsets = [0, 7], sizes = [8, 1], strides = [1, 1]} : vector<8x16xf32> to vector<8x1xf32>
    %cst_98 = arith.constant 0.000000e+00 : f32
    %552 = vector.shape_cast %551 : vector<8x1xf32> to vector<8x1xf32>
    %553 = vector.broadcast %552 : vector<8x1xf32> to vector<8x30xf32>
    %554 = vector.broadcast %cst_98 : f32 to vector<8x30xf32>
    %555 = arith.select %550, %553, %554 : vector<8x30xi1>, vector<8x30xf32>
    %556 = arith.addf %547, %555 : vector<8x30xf32>
    %557 = vector.extract_strided_slice %410 {offsets = [0, 8], sizes = [8, 1], strides = [1, 1]} : vector<8x16xi32> to vector<8x1xi32>
    %558 = vector.broadcast %557 : vector<8x1xi32> to vector<8x30xi32>
    %559 = arith.cmpi eq, %85, %558 : vector<8x30xi32>
    %560 = vector.extract_strided_slice %407 {offsets = [0, 8], sizes = [8, 1], strides = [1, 1]} : vector<8x16xf32> to vector<8x1xf32>
    %cst_99 = arith.constant 0.000000e+00 : f32
    %561 = vector.shape_cast %560 : vector<8x1xf32> to vector<8x1xf32>
    %562 = vector.broadcast %561 : vector<8x1xf32> to vector<8x30xf32>
    %563 = vector.broadcast %cst_99 : f32 to vector<8x30xf32>
    %564 = arith.select %559, %562, %563 : vector<8x30xi1>, vector<8x30xf32>
    %565 = arith.addf %556, %564 : vector<8x30xf32>
    %566 = vector.extract_strided_slice %411 {offsets = [0, 8], sizes = [8, 1], strides = [1, 1]} : vector<8x16xi32> to vector<8x1xi32>
    %567 = vector.broadcast %566 : vector<8x1xi32> to vector<8x30xi32>
    %568 = arith.cmpi eq, %85, %567 : vector<8x30xi32>
    %569 = vector.extract_strided_slice %409 {offsets = [0, 8], sizes = [8, 1], strides = [1, 1]} : vector<8x16xf32> to vector<8x1xf32>
    %cst_100 = arith.constant 0.000000e+00 : f32
    %570 = vector.shape_cast %569 : vector<8x1xf32> to vector<8x1xf32>
    %571 = vector.broadcast %570 : vector<8x1xf32> to vector<8x30xf32>
    %572 = vector.broadcast %cst_100 : f32 to vector<8x30xf32>
    %573 = arith.select %568, %571, %572 : vector<8x30xi1>, vector<8x30xf32>
    %574 = arith.addf %565, %573 : vector<8x30xf32>
    %575 = vector.extract_strided_slice %410 {offsets = [0, 9], sizes = [8, 1], strides = [1, 1]} : vector<8x16xi32> to vector<8x1xi32>
    %576 = vector.broadcast %575 : vector<8x1xi32> to vector<8x30xi32>
    %577 = arith.cmpi eq, %85, %576 : vector<8x30xi32>
    %578 = vector.extract_strided_slice %407 {offsets = [0, 9], sizes = [8, 1], strides = [1, 1]} : vector<8x16xf32> to vector<8x1xf32>
    %cst_101 = arith.constant 0.000000e+00 : f32
    %579 = vector.shape_cast %578 : vector<8x1xf32> to vector<8x1xf32>
    %580 = vector.broadcast %579 : vector<8x1xf32> to vector<8x30xf32>
    %581 = vector.broadcast %cst_101 : f32 to vector<8x30xf32>
    %582 = arith.select %577, %580, %581 : vector<8x30xi1>, vector<8x30xf32>
    %583 = arith.addf %574, %582 : vector<8x30xf32>
    %584 = vector.extract_strided_slice %411 {offsets = [0, 9], sizes = [8, 1], strides = [1, 1]} : vector<8x16xi32> to vector<8x1xi32>
    %585 = vector.broadcast %584 : vector<8x1xi32> to vector<8x30xi32>
    %586 = arith.cmpi eq, %85, %585 : vector<8x30xi32>
    %587 = vector.extract_strided_slice %409 {offsets = [0, 9], sizes = [8, 1], strides = [1, 1]} : vector<8x16xf32> to vector<8x1xf32>
    %cst_102 = arith.constant 0.000000e+00 : f32
    %588 = vector.shape_cast %587 : vector<8x1xf32> to vector<8x1xf32>
    %589 = vector.broadcast %588 : vector<8x1xf32> to vector<8x30xf32>
    %590 = vector.broadcast %cst_102 : f32 to vector<8x30xf32>
    %591 = arith.select %586, %589, %590 : vector<8x30xi1>, vector<8x30xf32>
    %592 = arith.addf %583, %591 : vector<8x30xf32>
    %593 = vector.extract_strided_slice %410 {offsets = [0, 10], sizes = [8, 1], strides = [1, 1]} : vector<8x16xi32> to vector<8x1xi32>
    %594 = vector.broadcast %593 : vector<8x1xi32> to vector<8x30xi32>
    %595 = arith.cmpi eq, %85, %594 : vector<8x30xi32>
    %596 = vector.extract_strided_slice %407 {offsets = [0, 10], sizes = [8, 1], strides = [1, 1]} : vector<8x16xf32> to vector<8x1xf32>
    %cst_103 = arith.constant 0.000000e+00 : f32
    %597 = vector.shape_cast %596 : vector<8x1xf32> to vector<8x1xf32>
    %598 = vector.broadcast %597 : vector<8x1xf32> to vector<8x30xf32>
    %599 = vector.broadcast %cst_103 : f32 to vector<8x30xf32>
    %600 = arith.select %595, %598, %599 : vector<8x30xi1>, vector<8x30xf32>
    %601 = arith.addf %592, %600 : vector<8x30xf32>
    %602 = vector.extract_strided_slice %411 {offsets = [0, 10], sizes = [8, 1], strides = [1, 1]} : vector<8x16xi32> to vector<8x1xi32>
    %603 = vector.broadcast %602 : vector<8x1xi32> to vector<8x30xi32>
    %604 = arith.cmpi eq, %85, %603 : vector<8x30xi32>
    %605 = vector.extract_strided_slice %409 {offsets = [0, 10], sizes = [8, 1], strides = [1, 1]} : vector<8x16xf32> to vector<8x1xf32>
    %cst_104 = arith.constant 0.000000e+00 : f32
    %606 = vector.shape_cast %605 : vector<8x1xf32> to vector<8x1xf32>
    %607 = vector.broadcast %606 : vector<8x1xf32> to vector<8x30xf32>
    %608 = vector.broadcast %cst_104 : f32 to vector<8x30xf32>
    %609 = arith.select %604, %607, %608 : vector<8x30xi1>, vector<8x30xf32>
    %610 = arith.addf %601, %609 : vector<8x30xf32>
    %611 = vector.extract_strided_slice %410 {offsets = [0, 11], sizes = [8, 1], strides = [1, 1]} : vector<8x16xi32> to vector<8x1xi32>
    %612 = vector.broadcast %611 : vector<8x1xi32> to vector<8x30xi32>
    %613 = arith.cmpi eq, %85, %612 : vector<8x30xi32>
    %614 = vector.extract_strided_slice %407 {offsets = [0, 11], sizes = [8, 1], strides = [1, 1]} : vector<8x16xf32> to vector<8x1xf32>
    %cst_105 = arith.constant 0.000000e+00 : f32
    %615 = vector.shape_cast %614 : vector<8x1xf32> to vector<8x1xf32>
    %616 = vector.broadcast %615 : vector<8x1xf32> to vector<8x30xf32>
    %617 = vector.broadcast %cst_105 : f32 to vector<8x30xf32>
    %618 = arith.select %613, %616, %617 : vector<8x30xi1>, vector<8x30xf32>
    %619 = arith.addf %610, %618 : vector<8x30xf32>
    %620 = vector.extract_strided_slice %411 {offsets = [0, 11], sizes = [8, 1], strides = [1, 1]} : vector<8x16xi32> to vector<8x1xi32>
    %621 = vector.broadcast %620 : vector<8x1xi32> to vector<8x30xi32>
    %622 = arith.cmpi eq, %85, %621 : vector<8x30xi32>
    %623 = vector.extract_strided_slice %409 {offsets = [0, 11], sizes = [8, 1], strides = [1, 1]} : vector<8x16xf32> to vector<8x1xf32>
    %cst_106 = arith.constant 0.000000e+00 : f32
    %624 = vector.shape_cast %623 : vector<8x1xf32> to vector<8x1xf32>
    %625 = vector.broadcast %624 : vector<8x1xf32> to vector<8x30xf32>
    %626 = vector.broadcast %cst_106 : f32 to vector<8x30xf32>
    %627 = arith.select %622, %625, %626 : vector<8x30xi1>, vector<8x30xf32>
    %628 = arith.addf %619, %627 : vector<8x30xf32>
    %629 = vector.extract_strided_slice %410 {offsets = [0, 12], sizes = [8, 1], strides = [1, 1]} : vector<8x16xi32> to vector<8x1xi32>
    %630 = vector.broadcast %629 : vector<8x1xi32> to vector<8x30xi32>
    %631 = arith.cmpi eq, %85, %630 : vector<8x30xi32>
    %632 = vector.extract_strided_slice %407 {offsets = [0, 12], sizes = [8, 1], strides = [1, 1]} : vector<8x16xf32> to vector<8x1xf32>
    %cst_107 = arith.constant 0.000000e+00 : f32
    %633 = vector.shape_cast %632 : vector<8x1xf32> to vector<8x1xf32>
    %634 = vector.broadcast %633 : vector<8x1xf32> to vector<8x30xf32>
    %635 = vector.broadcast %cst_107 : f32 to vector<8x30xf32>
    %636 = arith.select %631, %634, %635 : vector<8x30xi1>, vector<8x30xf32>
    %637 = arith.addf %628, %636 : vector<8x30xf32>
    %638 = vector.extract_strided_slice %411 {offsets = [0, 12], sizes = [8, 1], strides = [1, 1]} : vector<8x16xi32> to vector<8x1xi32>
    %639 = vector.broadcast %638 : vector<8x1xi32> to vector<8x30xi32>
    %640 = arith.cmpi eq, %85, %639 : vector<8x30xi32>
    %641 = vector.extract_strided_slice %409 {offsets = [0, 12], sizes = [8, 1], strides = [1, 1]} : vector<8x16xf32> to vector<8x1xf32>
    %cst_108 = arith.constant 0.000000e+00 : f32
    %642 = vector.shape_cast %641 : vector<8x1xf32> to vector<8x1xf32>
    %643 = vector.broadcast %642 : vector<8x1xf32> to vector<8x30xf32>
    %644 = vector.broadcast %cst_108 : f32 to vector<8x30xf32>
    %645 = arith.select %640, %643, %644 : vector<8x30xi1>, vector<8x30xf32>
    %646 = arith.addf %637, %645 : vector<8x30xf32>
    %647 = vector.extract_strided_slice %410 {offsets = [0, 13], sizes = [8, 1], strides = [1, 1]} : vector<8x16xi32> to vector<8x1xi32>
    %648 = vector.broadcast %647 : vector<8x1xi32> to vector<8x30xi32>
    %649 = arith.cmpi eq, %85, %648 : vector<8x30xi32>
    %650 = vector.extract_strided_slice %407 {offsets = [0, 13], sizes = [8, 1], strides = [1, 1]} : vector<8x16xf32> to vector<8x1xf32>
    %cst_109 = arith.constant 0.000000e+00 : f32
    %651 = vector.shape_cast %650 : vector<8x1xf32> to vector<8x1xf32>
    %652 = vector.broadcast %651 : vector<8x1xf32> to vector<8x30xf32>
    %653 = vector.broadcast %cst_109 : f32 to vector<8x30xf32>
    %654 = arith.select %649, %652, %653 : vector<8x30xi1>, vector<8x30xf32>
    %655 = arith.addf %646, %654 : vector<8x30xf32>
    %656 = vector.extract_strided_slice %411 {offsets = [0, 13], sizes = [8, 1], strides = [1, 1]} : vector<8x16xi32> to vector<8x1xi32>
    %657 = vector.broadcast %656 : vector<8x1xi32> to vector<8x30xi32>
    %658 = arith.cmpi eq, %85, %657 : vector<8x30xi32>
    %659 = vector.extract_strided_slice %409 {offsets = [0, 13], sizes = [8, 1], strides = [1, 1]} : vector<8x16xf32> to vector<8x1xf32>
    %cst_110 = arith.constant 0.000000e+00 : f32
    %660 = vector.shape_cast %659 : vector<8x1xf32> to vector<8x1xf32>
    %661 = vector.broadcast %660 : vector<8x1xf32> to vector<8x30xf32>
    %662 = vector.broadcast %cst_110 : f32 to vector<8x30xf32>
    %663 = arith.select %658, %661, %662 : vector<8x30xi1>, vector<8x30xf32>
    %664 = arith.addf %655, %663 : vector<8x30xf32>
    %665 = vector.extract_strided_slice %410 {offsets = [0, 14], sizes = [8, 1], strides = [1, 1]} : vector<8x16xi32> to vector<8x1xi32>
    %666 = vector.broadcast %665 : vector<8x1xi32> to vector<8x30xi32>
    %667 = arith.cmpi eq, %85, %666 : vector<8x30xi32>
    %668 = vector.extract_strided_slice %407 {offsets = [0, 14], sizes = [8, 1], strides = [1, 1]} : vector<8x16xf32> to vector<8x1xf32>
    %cst_111 = arith.constant 0.000000e+00 : f32
    %669 = vector.shape_cast %668 : vector<8x1xf32> to vector<8x1xf32>
    %670 = vector.broadcast %669 : vector<8x1xf32> to vector<8x30xf32>
    %671 = vector.broadcast %cst_111 : f32 to vector<8x30xf32>
    %672 = arith.select %667, %670, %671 : vector<8x30xi1>, vector<8x30xf32>
    %673 = arith.addf %664, %672 : vector<8x30xf32>
    %674 = vector.extract_strided_slice %411 {offsets = [0, 14], sizes = [8, 1], strides = [1, 1]} : vector<8x16xi32> to vector<8x1xi32>
    %675 = vector.broadcast %674 : vector<8x1xi32> to vector<8x30xi32>
    %676 = arith.cmpi eq, %85, %675 : vector<8x30xi32>
    %677 = vector.extract_strided_slice %409 {offsets = [0, 14], sizes = [8, 1], strides = [1, 1]} : vector<8x16xf32> to vector<8x1xf32>
    %cst_112 = arith.constant 0.000000e+00 : f32
    %678 = vector.shape_cast %677 : vector<8x1xf32> to vector<8x1xf32>
    %679 = vector.broadcast %678 : vector<8x1xf32> to vector<8x30xf32>
    %680 = vector.broadcast %cst_112 : f32 to vector<8x30xf32>
    %681 = arith.select %676, %679, %680 : vector<8x30xi1>, vector<8x30xf32>
    %682 = arith.addf %673, %681 : vector<8x30xf32>
    %683 = vector.extract_strided_slice %410 {offsets = [0, 15], sizes = [8, 1], strides = [1, 1]} : vector<8x16xi32> to vector<8x1xi32>
    %684 = vector.broadcast %683 : vector<8x1xi32> to vector<8x30xi32>
    %685 = arith.cmpi eq, %85, %684 : vector<8x30xi32>
    %686 = vector.extract_strided_slice %407 {offsets = [0, 15], sizes = [8, 1], strides = [1, 1]} : vector<8x16xf32> to vector<8x1xf32>
    %cst_113 = arith.constant 0.000000e+00 : f32
    %687 = vector.shape_cast %686 : vector<8x1xf32> to vector<8x1xf32>
    %688 = vector.broadcast %687 : vector<8x1xf32> to vector<8x30xf32>
    %689 = vector.broadcast %cst_113 : f32 to vector<8x30xf32>
    %690 = arith.select %685, %688, %689 : vector<8x30xi1>, vector<8x30xf32>
    %691 = arith.addf %682, %690 : vector<8x30xf32>
    %692 = vector.extract_strided_slice %411 {offsets = [0, 15], sizes = [8, 1], strides = [1, 1]} : vector<8x16xi32> to vector<8x1xi32>
    %693 = vector.broadcast %692 : vector<8x1xi32> to vector<8x30xi32>
    %694 = arith.cmpi eq, %85, %693 : vector<8x30xi32>
    %695 = vector.extract_strided_slice %409 {offsets = [0, 15], sizes = [8, 1], strides = [1, 1]} : vector<8x16xf32> to vector<8x1xf32>
    %cst_114 = arith.constant 0.000000e+00 : f32
    %696 = vector.shape_cast %695 : vector<8x1xf32> to vector<8x1xf32>
    %697 = vector.broadcast %696 : vector<8x1xf32> to vector<8x30xf32>
    %698 = vector.broadcast %cst_114 : f32 to vector<8x30xf32>
    %699 = arith.select %694, %697, %698 : vector<8x30xi1>, vector<8x30xf32>
    %700 = arith.addf %691, %699 : vector<8x30xf32>
    %701 = arith.truncf %700 : vector<8x30xf32> to vector<8x30xbf16>
    %702 = vector.extract_strided_slice %15 {offsets = [0, 16], sizes = [30, 16], strides = [1, 1]} : vector<30x32xbf16> to vector<30x16xbf16>
    %cst_115 = arith.constant dense<0.000000e+00> : vector<8x16xf32>
    %703 = tpu.matmul %701, %702, %cst_115 {dimension_numbers = #tpu.dot_dimension_numbers<[1], [0], [0], [1], [0, 0, 1, 1], [], []>} : vector<8x30xbf16>, vector<30x16xbf16>, vector<8x16xf32> -> vector<8x16xf32>
    %704 = tpu.concatenate %394, %703 in 1 : vector<8x16xf32>, vector<8x16xf32> -> vector<8x32xf32>
    %705 = arith.truncf %704 : vector<8x32xf32> to vector<8x32xbf16>
    %c0_116 = arith.constant 0 : index
    %c0_117 = arith.constant 0 : index
    %706 = vector.load %arg13[%c0_116, %c0_117] : memref<32x32xf32, #tpu.memory_space<vmem>>, vector<32x32xf32>
    %707 = arith.truncf %706 : vector<32x32xf32> to vector<32x32xbf16>
    %cst_118 = arith.constant dense<0.000000e+00> : vector<8x32xf32>
    %708 = tpu.matmul %705, %707, %cst_118 {dimension_numbers = #tpu.dot_dimension_numbers<[1], [0], [0], [1], [0, 0, 1, 1], [], []>} : vector<8x32xbf16>, vector<32x32xbf16>, vector<8x32xf32> -> vector<8x32xf32>
    %c0_119 = arith.constant 0 : index
    %c0_120 = arith.constant 0 : index
    %709 = vector.load %arg14[%c0_119, %c0_120] : memref<1x32xf32, #tpu.memory_space<vmem>>, vector<1x32xf32>
    %710 = vector.broadcast %709 : vector<1x32xf32> to vector<8x32xf32>
    %711 = arith.addf %708, %710 : vector<8x32xf32>
    %712 = arith.addf %1, %711 : vector<8x32xf32>
    %cst_121 = arith.constant dense<0.000000e+00> : vector<8xf32>
    %713 = vector.multi_reduction <add>, %712, %cst_121 [1] : vector<8x32xf32> to vector<8xf32>
    %714 = vector.shape_cast %713 : vector<8xf32> to vector<8x1xf32>
    %cst_122 = arith.constant 3.200000e+01 : f32
    %715 = vector.broadcast %cst_122 : f32 to vector<8x1xf32>
    %716 = arith.divf %714, %715 : vector<8x1xf32>
    %717 = vector.broadcast %716 : vector<8x1xf32> to vector<8x32xf32>
    %718 = arith.subf %712, %717 : vector<8x32xf32>
    %719 = arith.mulf %718, %718 : vector<8x32xf32>
    %cst_123 = arith.constant dense<0.000000e+00> : vector<8xf32>
    %720 = vector.multi_reduction <add>, %719, %cst_123 [1] : vector<8x32xf32> to vector<8xf32>
    %721 = vector.shape_cast %720 : vector<8xf32> to vector<8x1xf32>
    %cst_124 = arith.constant 3.200000e+01 : f32
    %722 = vector.broadcast %cst_124 : f32 to vector<8x1xf32>
    %723 = arith.divf %721, %722 : vector<8x1xf32>
    %724 = vector.broadcast %716 : vector<8x1xf32> to vector<8x32xf32>
    %725 = arith.subf %712, %724 : vector<8x32xf32>
    %cst_125 = arith.constant 9.99999974E-6 : f32
    %726 = vector.broadcast %cst_125 : f32 to vector<8x1xf32>
    %727 = arith.addf %723, %726 : vector<8x1xf32>
    %728 = math.rsqrt %727 : vector<8x1xf32>
    %729 = vector.broadcast %728 : vector<8x1xf32> to vector<8x32xf32>
    %730 = arith.mulf %725, %729 : vector<8x32xf32>
    %c0_126 = arith.constant 0 : index
    %c0_127 = arith.constant 0 : index
    %731 = vector.load %arg15[%c0_126, %c0_127] : memref<1x32xf32, #tpu.memory_space<vmem>>, vector<1x32xf32>
    %732 = vector.broadcast %731 : vector<1x32xf32> to vector<8x32xf32>
    %733 = arith.mulf %730, %732 : vector<8x32xf32>
    %c0_128 = arith.constant 0 : index
    %c0_129 = arith.constant 0 : index
    %734 = vector.load %arg16[%c0_128, %c0_129] : memref<1x32xf32, #tpu.memory_space<vmem>>, vector<1x32xf32>
    %735 = vector.broadcast %734 : vector<1x32xf32> to vector<8x32xf32>
    %736 = arith.addf %733, %735 : vector<8x32xf32>
    %c0_130 = arith.constant 0 : index
    %c0_131 = arith.constant 0 : index
    %c0_132 = arith.constant 0 : index
    %737 = vector.load %arg17[%c0_130, %c0_131, %c0_132] : memref<1x8x32xf32, #tpu.memory_space<vmem>>, vector<1x8x32xf32>
    %738 = vector.shape_cast %737 : vector<1x8x32xf32> to vector<8x32xf32>
    %739 = vector.shape_cast %736 : vector<8x32xf32> to vector<1x8x32xf32>
    tpu.vector_store %arg17[%c0_130, %c0_131, %c0_132], %739 {strides = array<i32>} : memref<1x8x32xf32, #tpu.memory_space<vmem>>, vector<1x8x32xf32>,
    return
  }
  func.func @transform_0(%arg0: i32) -> (i32, i32, i32) {
    %c0_i32 = arith.constant 0 : i32
    %c0_i32_0 = arith.constant 0 : i32
    %c0_i32_1 = arith.constant 0 : i32
    return %arg0, %c0_i32, %c0_i32_0 : i32, i32, i32
  }
  func.func @transform_1(%arg0: i32) -> (i32, i32, i32) {
    %c0_i32 = arith.constant 0 : i32
    %c0_i32_0 = arith.constant 0 : i32
    %c0_i32_1 = arith.constant 0 : i32
    return %arg0, %c0_i32, %c0_i32_0 : i32, i32, i32
  }
  func.func @transform_2(%arg0: i32) -> (i32, i32, i32) {
    %c0_i32 = arith.constant 0 : i32
    %c0_i32_0 = arith.constant 0 : i32
    %c0_i32_1 = arith.constant 0 : i32
    return %arg0, %c0_i32, %c0_i32_0 : i32, i32, i32
  }
  func.func @transform_3(%arg0: i32) -> (i32, i32, i32) {
    %c0_i32 = arith.constant 0 : i32
    %c0_i32_0 = arith.constant 0 : i32
    %c0_i32_1 = arith.constant 0 : i32
    return %arg0, %c0_i32, %c0_i32_0 : i32, i32, i32
  }
  func.func @transform_4(%arg0: i32) -> (i32, i32) {
    %c0_i32 = arith.constant 0 : i32
    %c0_i32_0 = arith.constant 0 : i32
    %c0_i32_1 = arith.constant 0 : i32
    return %c0_i32, %c0_i32_0 : i32, i32
  }
  func.func @transform_5(%arg0: i32) -> (i32, i32) {
    %c0_i32 = arith.constant 0 : i32
    %c0_i32_0 = arith.constant 0 : i32
    %c0_i32_1 = arith.constant 0 : i32
    return %c0_i32, %c0_i32_0 : i32, i32
  }
  func.func @transform_6(%arg0: i32) -> (i32, i32) {
    %c0_i32 = arith.constant 0 : i32
    %c0_i32_0 = arith.constant 0 : i32
    %c0_i32_1 = arith.constant 0 : i32
    return %c0_i32, %c0_i32_0 : i32, i32
  }
  func.func @transform_7(%arg0: i32) -> (i32, i32) {
    %c0_i32 = arith.constant 0 : i32
    %c0_i32_0 = arith.constant 0 : i32
    %c0_i32_1 = arith.constant 0 : i32
    return %c0_i32, %c0_i32_0 : i32, i32
  }
  func.func @transform_8(%arg0: i32) -> (i32, i32, i32) {
    %c0_i32 = arith.constant 0 : i32
    %c0_i32_0 = arith.constant 0 : i32
    %c0_i32_1 = arith.constant 0 : i32
    return %arg0, %c0_i32, %c0_i32_0 : i32, i32, i32
  }
  func.func @transform_9(%arg0: i32) -> (i32, i32, i32) {
    %c0_i32 = arith.constant 0 : i32
    %c0_i32_0 = arith.constant 0 : i32
    %c0_i32_1 = arith.constant 0 : i32
    return %arg0, %c0_i32, %c0_i32_0 : i32, i32, i32
  }
  func.func @transform_10(%arg0: i32) -> (i32, i32) {
    %c0_i32 = arith.constant 0 : i32
    %c0_i32_0 = arith.constant 0 : i32
    %c0_i32_1 = arith.constant 0 : i32
    return %c0_i32, %c0_i32_0 : i32, i32
  }
  func.func @transform_11(%arg0: i32) -> (i32, i32) {
    %c0_i32 = arith.constant 0 : i32
    %c0_i32_0 = arith.constant 0 : i32
    %c0_i32_1 = arith.constant 0 : i32
    return %c0_i32, %c0_i32_0 : i32, i32
  }
  func.func @transform_12(%arg0: i32) -> (i32, i32) {
    %c0_i32 = arith.constant 0 : i32
    %c0_i32_0 = arith.constant 0 : i32
    %c0_i32_1 = arith.constant 0 : i32
    return %c0_i32, %c0_i32_0 : i32, i32
  }
  func.func @transform_13(%arg0: i32) -> (i32, i32) {
    %c0_i32 = arith.constant 0 : i32
    %c0_i32_0 = arith.constant 0 : i32
    %c0_i32_1 = arith.constant 0 : i32
    return %c0_i32, %c0_i32_0 : i32, i32
  }
  func.func @transform_14(%arg0: i32) -> (i32, i32) {
    %c0_i32 = arith.constant 0 : i32
    %c0_i32_0 = arith.constant 0 : i32
    %c0_i32_1 = arith.constant 0 : i32
    return %c0_i32, %c0_i32_0 : i32, i32
  }
  func.func @transform_15(%arg0: i32) -> (i32, i32) {
    %c0_i32 = arith.constant 0 : i32
    %c0_i32_0 = arith.constant 0 : i32
    %c0_i32_1 = arith.constant 0 : i32
    return %c0_i32, %c0_i32_0 : i32, i32
  }
  func.func @transform_16(%arg0: i32) -> (i32, i32, i32) {
    %c0_i32 = arith.constant 0 : i32
    %c0_i32_0 = arith.constant 0 : i32
    %c0_i32_1 = arith.constant 0 : i32
    return %arg0, %c0_i32, %c0_i32_0 : i32, i32, i32
  }
  func.func @transform_17(%arg0: i32) -> (i32, i32, i32) {
    %c0_i32 = arith.constant 0 : i32
    %c0_i32_0 = arith.constant 0 : i32
    %c0_i32_1 = arith.constant 0 : i32
    return %arg0, %c0_i32, %c0_i32_0 : i32, i32, i32
  }
}

module attributes {stable_mosaic.version = 11 : i64} {
  func.func @_ffn_ln_kernel(%arg0: i32, %arg1: memref<16x32xf32, #tpu.memory_space<vmem>>, %arg2: memref<32x64xf32, #tpu.memory_space<vmem>>, %arg3: memref<1x64xf32, #tpu.memory_space<vmem>>, %arg4: memref<64x32xf32, #tpu.memory_space<vmem>>, %arg5: memref<1x32xf32, #tpu.memory_space<vmem>>, %arg6: memref<1x32xf32, #tpu.memory_space<vmem>>, %arg7: memref<1x32xf32, #tpu.memory_space<vmem>>, %arg8: memref<16x32xf32, #tpu.memory_space<vmem>>) attributes {dimension_semantics = [#tpu.dimension_semantics<parallel>], iteration_bounds = array<i64: 1>, scalar_prefetch = 0 : i64, scratch_operands = 0 : i64, tpu.core_type = #tpu.core_type<tc>, window_params = [{transform_indices = @transform_0, window_bounds = array<i64: 16, 32>}, {pipeline_mode = #tpu.pipeline_mode<synchronous>, transform_indices = @transform_1, window_bounds = array<i64: 32, 64>}, {pipeline_mode = #tpu.pipeline_mode<synchronous>, transform_indices = @transform_2, window_bounds = array<i64: 1, 64>}, {pipeline_mode = #tpu.pipeline_mode<synchronous>, transform_indices = @transform_3, window_bounds = array<i64: 64, 32>}, {pipeline_mode = #tpu.pipeline_mode<synchronous>, transform_indices = @transform_4, window_bounds = array<i64: 1, 32>}, {pipeline_mode = #tpu.pipeline_mode<synchronous>, transform_indices = @transform_5, window_bounds = array<i64: 1, 32>}, {pipeline_mode = #tpu.pipeline_mode<synchronous>, transform_indices = @transform_6, window_bounds = array<i64: 1, 32>}, {transform_indices = @transform_7, window_bounds = array<i64: 16, 32>}]} {
    %c0 = arith.constant 0 : index
    %c0_0 = arith.constant 0 : index
    %0 = vector.load %arg1[%c0, %c0_0] : memref<16x32xf32, #tpu.memory_space<vmem>>, vector<16x32xf32>
    %1 = arith.truncf %0 : vector<16x32xf32> to vector<16x32xbf16>
    %c0_1 = arith.constant 0 : index
    %c0_2 = arith.constant 0 : index
    %2 = vector.load %arg2[%c0_1, %c0_2] : memref<32x64xf32, #tpu.memory_space<vmem>>, vector<32x64xf32>
    %3 = arith.truncf %2 : vector<32x64xf32> to vector<32x64xbf16>
    %cst = arith.constant dense<0.000000e+00> : vector<16x64xf32>
    %4 = tpu.matmul %1, %3, %cst {dimension_numbers = #tpu.dot_dimension_numbers<[1], [0], [0], [1], [0, 0, 1, 1], [], []>} : vector<16x32xbf16>, vector<32x64xbf16>, vector<16x64xf32> -> vector<16x64xf32>
    %c0_3 = arith.constant 0 : index
    %c0_4 = arith.constant 0 : index
    %5 = vector.load %arg3[%c0_3, %c0_4] : memref<1x64xf32, #tpu.memory_space<vmem>>, vector<1x64xf32>
    %6 = vector.broadcast %5 : vector<1x64xf32> to vector<16x64xf32>
    %7 = arith.addf %4, %6 : vector<16x64xf32>
    %cst_5 = arith.constant 0.000000e+00 : f32
    %8 = vector.broadcast %cst_5 : f32 to vector<16x64xf32>
    %9 = arith.maximumf %7, %8 : vector<16x64xf32>
    %10 = arith.truncf %9 : vector<16x64xf32> to vector<16x64xbf16>
    %c0_6 = arith.constant 0 : index
    %c0_7 = arith.constant 0 : index
    %11 = vector.load %arg4[%c0_6, %c0_7] : memref<64x32xf32, #tpu.memory_space<vmem>>, vector<64x32xf32>
    %12 = arith.truncf %11 : vector<64x32xf32> to vector<64x32xbf16>
    %cst_8 = arith.constant dense<0.000000e+00> : vector<16x32xf32>
    %13 = tpu.matmul %10, %12, %cst_8 {dimension_numbers = #tpu.dot_dimension_numbers<[1], [0], [0], [1], [0, 0, 1, 1], [], []>} : vector<16x64xbf16>, vector<64x32xbf16>, vector<16x32xf32> -> vector<16x32xf32>
    %c0_9 = arith.constant 0 : index
    %c0_10 = arith.constant 0 : index
    %14 = vector.load %arg5[%c0_9, %c0_10] : memref<1x32xf32, #tpu.memory_space<vmem>>, vector<1x32xf32>
    %15 = vector.broadcast %14 : vector<1x32xf32> to vector<16x32xf32>
    %16 = arith.addf %13, %15 : vector<16x32xf32>
    %17 = arith.addf %0, %16 : vector<16x32xf32>
    %cst_11 = arith.constant dense<0.000000e+00> : vector<16xf32>
    %18 = vector.multi_reduction <add>, %17, %cst_11 [1] : vector<16x32xf32> to vector<16xf32>
    %19 = vector.shape_cast %18 : vector<16xf32> to vector<16x1xf32>
    %cst_12 = arith.constant 3.200000e+01 : f32
    %20 = vector.broadcast %cst_12 : f32 to vector<16x1xf32>
    %21 = arith.divf %19, %20 : vector<16x1xf32>
    %22 = vector.broadcast %21 : vector<16x1xf32> to vector<16x32xf32>
    %23 = arith.subf %17, %22 : vector<16x32xf32>
    %24 = arith.mulf %23, %23 : vector<16x32xf32>
    %cst_13 = arith.constant dense<0.000000e+00> : vector<16xf32>
    %25 = vector.multi_reduction <add>, %24, %cst_13 [1] : vector<16x32xf32> to vector<16xf32>
    %26 = vector.shape_cast %25 : vector<16xf32> to vector<16x1xf32>
    %cst_14 = arith.constant 3.200000e+01 : f32
    %27 = vector.broadcast %cst_14 : f32 to vector<16x1xf32>
    %28 = arith.divf %26, %27 : vector<16x1xf32>
    %29 = vector.broadcast %21 : vector<16x1xf32> to vector<16x32xf32>
    %30 = arith.subf %17, %29 : vector<16x32xf32>
    %cst_15 = arith.constant 9.99999974E-6 : f32
    %31 = vector.broadcast %cst_15 : f32 to vector<16x1xf32>
    %32 = arith.addf %28, %31 : vector<16x1xf32>
    %33 = math.rsqrt %32 : vector<16x1xf32>
    %34 = vector.broadcast %33 : vector<16x1xf32> to vector<16x32xf32>
    %35 = arith.mulf %30, %34 : vector<16x32xf32>
    %c0_16 = arith.constant 0 : index
    %c0_17 = arith.constant 0 : index
    %36 = vector.load %arg6[%c0_16, %c0_17] : memref<1x32xf32, #tpu.memory_space<vmem>>, vector<1x32xf32>
    %37 = vector.broadcast %36 : vector<1x32xf32> to vector<16x32xf32>
    %38 = arith.mulf %35, %37 : vector<16x32xf32>
    %c0_18 = arith.constant 0 : index
    %c0_19 = arith.constant 0 : index
    %39 = vector.load %arg7[%c0_18, %c0_19] : memref<1x32xf32, #tpu.memory_space<vmem>>, vector<1x32xf32>
    %40 = vector.broadcast %39 : vector<1x32xf32> to vector<16x32xf32>
    %41 = arith.addf %38, %40 : vector<16x32xf32>
    %c0_20 = arith.constant 0 : index
    %c0_21 = arith.constant 0 : index
    %42 = vector.load %arg8[%c0_20, %c0_21] : memref<16x32xf32, #tpu.memory_space<vmem>>, vector<16x32xf32>
    tpu.vector_store %arg8[%c0_20, %c0_21], %41 {strides = array<i32>} : memref<16x32xf32, #tpu.memory_space<vmem>>, vector<16x32xf32>,
    return
  }
  func.func @transform_0(%arg0: i32) -> (i32, i32) {
    %c0_i32 = arith.constant 0 : i32
    %c0_i32_0 = arith.constant 0 : i32
    return %arg0, %c0_i32 : i32, i32
  }
  func.func @transform_1(%arg0: i32) -> (i32, i32) {
    %c0_i32 = arith.constant 0 : i32
    %c0_i32_0 = arith.constant 0 : i32
    %c0_i32_1 = arith.constant 0 : i32
    return %c0_i32, %c0_i32_0 : i32, i32
  }
  func.func @transform_2(%arg0: i32) -> (i32, i32) {
    %c0_i32 = arith.constant 0 : i32
    %c0_i32_0 = arith.constant 0 : i32
    %c0_i32_1 = arith.constant 0 : i32
    return %c0_i32, %c0_i32_0 : i32, i32
  }
  func.func @transform_3(%arg0: i32) -> (i32, i32) {
    %c0_i32 = arith.constant 0 : i32
    %c0_i32_0 = arith.constant 0 : i32
    %c0_i32_1 = arith.constant 0 : i32
    return %c0_i32, %c0_i32_0 : i32, i32
  }
  func.func @transform_4(%arg0: i32) -> (i32, i32) {
    %c0_i32 = arith.constant 0 : i32
    %c0_i32_0 = arith.constant 0 : i32
    %c0_i32_1 = arith.constant 0 : i32
    return %c0_i32, %c0_i32_0 : i32, i32
  }
  func.func @transform_5(%arg0: i32) -> (i32, i32) {
    %c0_i32 = arith.constant 0 : i32
    %c0_i32_0 = arith.constant 0 : i32
    %c0_i32_1 = arith.constant 0 : i32
    return %c0_i32, %c0_i32_0 : i32, i32
  }
  func.func @transform_6(%arg0: i32) -> (i32, i32) {
    %c0_i32 = arith.constant 0 : i32
    %c0_i32_0 = arith.constant 0 : i32
    %c0_i32_1 = arith.constant 0 : i32
    return %c0_i32, %c0_i32_0 : i32, i32
  }
  func.func @transform_7(%arg0: i32) -> (i32, i32) {
    %c0_i32 = arith.constant 0 : i32
    %c0_i32_0 = arith.constant 0 : i32
    return %arg0, %c0_i32 : i32, i32
  }
}

module attributes {stable_mosaic.version = 11 : i64} {
  func.func @_deform_kernel(%arg0: i32, %arg1: memref<1x8x32xf32, #tpu.memory_space<vmem>>, %arg2: memref<1x8x32xf32, #tpu.memory_space<vmem>>, %arg3: memref<1x30x32xf32, #tpu.memory_space<vmem>>, %arg4: memref<1x30x1xf32, #tpu.memory_space<vmem>>, %arg5: memref<32x32xf32, #tpu.memory_space<vmem>>, %arg6: memref<1x32xf32, #tpu.memory_space<vmem>>, %arg7: memref<32x64xf32, #tpu.memory_space<vmem>>, %arg8: memref<1x64xf32, #tpu.memory_space<vmem>>, %arg9: memref<1x8x32xf32, #tpu.memory_space<vmem>>, %arg10: memref<1x8x32xf32, #tpu.memory_space<vmem>>, %arg11: memref<1x32xi32, #tpu.memory_space<vmem>>, %arg12: memref<1x32xi32, #tpu.memory_space<vmem>>, %arg13: memref<32x32xf32, #tpu.memory_space<vmem>>, %arg14: memref<1x32xf32, #tpu.memory_space<vmem>>, %arg15: memref<1x32xf32, #tpu.memory_space<vmem>>, %arg16: memref<1x32xf32, #tpu.memory_space<vmem>>, %arg17: memref<1x8x32xf32, #tpu.memory_space<vmem>>, %arg18: memref<1x8x32xf32, #tpu.memory_space<vmem>>) attributes {dimension_semantics = [#tpu.dimension_semantics<parallel>], iteration_bounds = array<i64: 2>, scalar_prefetch = 0 : i64, scratch_operands = 0 : i64, tpu.core_type = #tpu.core_type<tc>, window_params = [{transform_indices = @transform_0, window_bounds = array<i64: 1, 8, 32>}, {transform_indices = @transform_1, window_bounds = array<i64: 1, 8, 32>}, {transform_indices = @transform_2, window_bounds = array<i64: 1, 30, 32>}, {transform_indices = @transform_3, window_bounds = array<i64: 1, 30, 1>}, {pipeline_mode = #tpu.pipeline_mode<synchronous>, transform_indices = @transform_4, window_bounds = array<i64: 32, 32>}, {pipeline_mode = #tpu.pipeline_mode<synchronous>, transform_indices = @transform_5, window_bounds = array<i64: 1, 32>}, {pipeline_mode = #tpu.pipeline_mode<synchronous>, transform_indices = @transform_6, window_bounds = array<i64: 32, 64>}, {pipeline_mode = #tpu.pipeline_mode<synchronous>, transform_indices = @transform_7, window_bounds = array<i64: 1, 64>}, {transform_indices = @transform_8, window_bounds = array<i64: 1, 8, 32>}, {transform_indices = @transform_9, window_bounds = array<i64: 1, 8, 32>}, {pipeline_mode = #tpu.pipeline_mode<synchronous>, transform_indices = @transform_10, window_bounds = array<i64: 1, 32>}, {pipeline_mode = #tpu.pipeline_mode<synchronous>, transform_indices = @transform_11, window_bounds = array<i64: 1, 32>}, {pipeline_mode = #tpu.pipeline_mode<synchronous>, transform_indices = @transform_12, window_bounds = array<i64: 32, 32>}, {pipeline_mode = #tpu.pipeline_mode<synchronous>, transform_indices = @transform_13, window_bounds = array<i64: 1, 32>}, {pipeline_mode = #tpu.pipeline_mode<synchronous>, transform_indices = @transform_14, window_bounds = array<i64: 1, 32>}, {pipeline_mode = #tpu.pipeline_mode<synchronous>, transform_indices = @transform_15, window_bounds = array<i64: 1, 32>}, {transform_indices = @transform_16, window_bounds = array<i64: 1, 8, 32>}, {transform_indices = @transform_17, window_bounds = array<i64: 1, 8, 32>}]} {
    %c0 = arith.constant 0 : index
    %c0_0 = arith.constant 0 : index
    %c0_1 = arith.constant 0 : index
    %0 = vector.load %arg1[%c0, %c0_0, %c0_1] : memref<1x8x32xf32, #tpu.memory_space<vmem>>, vector<1x8x32xf32>
    %1 = vector.shape_cast %0 : vector<1x8x32xf32> to vector<8x32xf32>
    %c0_2 = arith.constant 0 : index
    %c0_3 = arith.constant 0 : index
    %c0_4 = arith.constant 0 : index
    %2 = vector.load %arg3[%c0_2, %c0_3, %c0_4] : memref<1x30x32xf32, #tpu.memory_space<vmem>>, vector<1x30x32xf32>
    %3 = vector.shape_cast %2 : vector<1x30x32xf32> to vector<30x32xf32>
    %4 = arith.truncf %3 : vector<30x32xf32> to vector<30x32xbf16>
    %c0_5 = arith.constant 0 : index
    %c0_6 = arith.constant 0 : index
    %5 = vector.load %arg5[%c0_5, %c0_6] : memref<32x32xf32, #tpu.memory_space<vmem>>, vector<32x32xf32>
    %6 = arith.truncf %5 : vector<32x32xf32> to vector<32x32xbf16>
    %cst = arith.constant dense<0.000000e+00> : vector<30x32xf32>
    %7 = tpu.matmul %4, %6, %cst {dimension_numbers = #tpu.dot_dimension_numbers<[1], [0], [0], [1], [0, 0, 1, 1], [], []>} : vector<30x32xbf16>, vector<32x32xbf16>, vector<30x32xf32> -> vector<30x32xf32>
    %c0_7 = arith.constant 0 : index
    %c0_8 = arith.constant 0 : index
    %8 = vector.load %arg6[%c0_7, %c0_8] : memref<1x32xf32, #tpu.memory_space<vmem>>, vector<1x32xf32>
    %9 = vector.broadcast %8 : vector<1x32xf32> to vector<30x32xf32>
    %10 = arith.addf %7, %9 : vector<30x32xf32>
    %c0_9 = arith.constant 0 : index
    %c0_10 = arith.constant 0 : index
    %c0_11 = arith.constant 0 : index
    %11 = vector.load %arg4[%c0_9, %c0_10, %c0_11] : memref<1x30x1xf32, #tpu.memory_space<vmem>>, vector<1x30x1xf32>
    %12 = vector.shape_cast %11 : vector<1x30x1xf32> to vector<30x1xf32>
    %13 = vector.broadcast %12 : vector<30x1xf32> to vector<30x32xf32>
    %14 = arith.mulf %10, %13 : vector<30x32xf32>
    %15 = arith.truncf %14 : vector<30x32xf32> to vector<30x32xbf16>
    %c0_12 = arith.constant 0 : index
    %c0_13 = arith.constant 0 : index
    %c0_14 = arith.constant 0 : index
    %16 = vector.load %arg2[%c0_12, %c0_13, %c0_14] : memref<1x8x32xf32, #tpu.memory_space<vmem>>, vector<1x8x32xf32>
    %17 = vector.shape_cast %16 : vector<1x8x32xf32> to vector<8x32xf32>
    %18 = arith.addf %1, %17 : vector<8x32xf32>
    %19 = arith.truncf %18 : vector<8x32xf32> to vector<8x32xbf16>
    %c0_15 = arith.constant 0 : index
    %c0_16 = arith.constant 0 : index
    %20 = vector.load %arg7[%c0_15, %c0_16] : memref<32x64xf32, #tpu.memory_space<vmem>>, vector<32x64xf32>
    %21 = arith.truncf %20 : vector<32x64xf32> to vector<32x64xbf16>
    %cst_17 = arith.constant dense<0.000000e+00> : vector<8x64xf32>
    %22 = tpu.matmul %19, %21, %cst_17 {dimension_numbers = #tpu.dot_dimension_numbers<[1], [0], [0], [1], [0, 0, 1, 1], [], []>} : vector<8x32xbf16>, vector<32x64xbf16>, vector<8x64xf32> -> vector<8x64xf32>
    %c0_18 = arith.constant 0 : index
    %c0_19 = arith.constant 0 : index
    %23 = vector.load %arg8[%c0_18, %c0_19] : memref<1x64xf32, #tpu.memory_space<vmem>>, vector<1x64xf32>
    %24 = vector.broadcast %23 : vector<1x64xf32> to vector<8x64xf32>
    %25 = arith.addf %22, %24 : vector<8x64xf32>
    %26 = vector.extract_strided_slice %25 {offsets = [0, 0], sizes = [8, 32], strides = [1, 1]} : vector<8x64xf32> to vector<8x32xf32>
    %27 = vector.extract_strided_slice %25 {offsets = [0, 32], sizes = [8, 32], strides = [1, 1]} : vector<8x64xf32> to vector<8x32xf32>
    %c0_20 = arith.constant 0 : index
    %c0_21 = arith.constant 0 : index
    %c0_22 = arith.constant 0 : index
    %28 = vector.load %arg9[%c0_20, %c0_21, %c0_22] : memref<1x8x32xf32, #tpu.memory_space<vmem>>, vector<1x8x32xf32>
    %29 = vector.shape_cast %28 : vector<1x8x32xf32> to vector<8x32xf32>
    %c0_23 = arith.constant 0 : index
    %c0_24 = arith.constant 0 : index
    %c0_25 = arith.constant 0 : index
    %30 = vector.load %arg10[%c0_23, %c0_24, %c0_25] : memref<1x8x32xf32, #tpu.memory_space<vmem>>, vector<1x8x32xf32>
    %31 = vector.shape_cast %30 : vector<1x8x32xf32> to vector<8x32xf32>
    %32 = arith.mulf %26, %31 : vector<8x32xf32>
    %33 = arith.addf %29, %32 : vector<8x32xf32>
    %c0_26 = arith.constant 0 : index
    %c0_27 = arith.constant 0 : index
    %c0_28 = arith.constant 0 : index
    %34 = vector.load %arg18[%c0_26, %c0_27, %c0_28] : memref<1x8x32xf32, #tpu.memory_space<vmem>>, vector<1x8x32xf32>
    %35 = vector.shape_cast %34 : vector<1x8x32xf32> to vector<8x32xf32>
    %36 = vector.shape_cast %33 : vector<8x32xf32> to vector<1x8x32xf32>
    tpu.vector_store %arg18[%c0_26, %c0_27, %c0_28], %36 {strides = array<i32>} : memref<1x8x32xf32, #tpu.memory_space<vmem>>, vector<1x8x32xf32>,
    %c0_29 = arith.constant 0 : index
    %c0_30 = arith.constant 0 : index
    %37 = vector.load %arg11[%c0_29, %c0_30] : memref<1x32xi32, #tpu.memory_space<vmem>>, vector<1x32xi32>
    %38 = arith.sitofp %37 : vector<1x32xi32> to vector<1x32xf32>
    %c0_31 = arith.constant 0 : index
    %c0_32 = arith.constant 0 : index
    %39 = vector.load %arg12[%c0_31, %c0_32] : memref<1x32xi32, #tpu.memory_space<vmem>>, vector<1x32xi32>
    %40 = vector.broadcast %38 : vector<1x32xf32> to vector<8x32xf32>
    %41 = arith.mulf %33, %40 : vector<8x32xf32>
    %cst_33 = arith.constant 5.000000e-01 : f32
    %42 = vector.broadcast %cst_33 : f32 to vector<8x32xf32>
    %43 = arith.subf %41, %42 : vector<8x32xf32>
    %44 = math.floor %43 : vector<8x32xf32>
    %45 = arith.subf %43, %44 : vector<8x32xf32>
    %46 = arith.fptosi %44 : vector<8x32xf32> to vector<8x32xi32>
    %c0_i32 = arith.constant 0 : i32
    %47 = vector.broadcast %c0_i32 : i32 to vector<8x32xi32>
    %48 = arith.cmpi sge, %46, %47 : vector<8x32xi32>
    %49 = vector.broadcast %37 : vector<1x32xi32> to vector<8x32xi32>
    %50 = arith.cmpi slt, %46, %49 : vector<8x32xi32>
    %51 = arith.andi %48, %50 : vector<8x32xi1>
    %c1_i32 = arith.constant 1 : i32
    %52 = vector.broadcast %c1_i32 : i32 to vector<8x32xi32>
    %53 = arith.addi %46, %52 : vector<8x32xi32>
    %c0_i32_34 = arith.constant 0 : i32
    %54 = vector.broadcast %c0_i32_34 : i32 to vector<8x32xi32>
    %55 = arith.cmpi sge, %53, %54 : vector<8x32xi32>
    %c1_i32_35 = arith.constant 1 : i32
    %56 = vector.broadcast %c1_i32_35 : i32 to vector<8x32xi32>
    %57 = arith.addi %46, %56 : vector<8x32xi32>
    %58 = vector.broadcast %37 : vector<1x32xi32> to vector<8x32xi32>
    %59 = arith.cmpi slt, %57, %58 : vector<8x32xi32>
    %60 = arith.andi %55, %59 : vector<8x32xi1>
    %c1_i32_36 = arith.constant 1 : i32
    %61 = vector.broadcast %c1_i32_36 : i32 to vector<1x32xi32>
    %62 = arith.subi %37, %61 : vector<1x32xi32>
    %c0_i32_37 = arith.constant 0 : i32
    %63 = vector.broadcast %c0_i32_37 : i32 to vector<8x32xi32>
    %64 = arith.maxsi %63, %46 : vector<8x32xi32>
    %65 = vector.broadcast %62 : vector<1x32xi32> to vector<8x32xi32>
    %66 = arith.minsi %65, %64 : vector<8x32xi32>
    %67 = vector.broadcast %39 : vector<1x32xi32> to vector<8x32xi32>
    %68 = arith.addi %67, %66 : vector<8x32xi32>
    %c1_i32_38 = arith.constant 1 : i32
    %69 = vector.broadcast %c1_i32_38 : i32 to vector<8x32xi32>
    %70 = arith.addi %46, %69 : vector<8x32xi32>
    %c1_i32_39 = arith.constant 1 : i32
    %71 = vector.broadcast %c1_i32_39 : i32 to vector<1x32xi32>
    %72 = arith.subi %37, %71 : vector<1x32xi32>
    %c0_i32_40 = arith.constant 0 : i32
    %73 = vector.broadcast %c0_i32_40 : i32 to vector<8x32xi32>
    %74 = arith.maxsi %73, %70 : vector<8x32xi32>
    %75 = vector.broadcast %72 : vector<1x32xi32> to vector<8x32xi32>
    %76 = arith.minsi %75, %74 : vector<8x32xi32>
    %77 = vector.broadcast %39 : vector<1x32xi32> to vector<8x32xi32>
    %78 = arith.addi %77, %76 : vector<8x32xi32>
    %cst_41 = arith.constant 1.000000e+00 : f32
    %79 = vector.broadcast %cst_41 : f32 to vector<8x32xf32>
    %80 = arith.subf %79, %45 : vector<8x32xf32>
    %cst_42 = arith.constant 0.000000e+00 : f32
    %81 = vector.broadcast %cst_42 : f32 to vector<8x32xf32>
    %82 = arith.select %51, %80, %81 : vector<8x32xi1>, vector<8x32xf32>
    %cst_43 = arith.constant 0.000000e+00 : f32
    %83 = vector.broadcast %cst_43 : f32 to vector<8x32xf32>
    %84 = arith.select %60, %45, %83 : vector<8x32xi1>, vector<8x32xf32>
    %85 = tpu.iota {dimensions = array<i32: 1>} : vector<8x30xi32>
    %86 = vector.extract_strided_slice %27 {offsets = [0, 0], sizes = [8, 16], strides = [1, 1]} : vector<8x32xf32> to vector<8x16xf32>
    %cst_44 = arith.constant dense<0xFF800000> : vector<8xf32>
    %87 = vector.multi_reduction <maximumf>, %86, %cst_44 [1] : vector<8x16xf32> to vector<8xf32>
    %88 = vector.shape_cast %87 : vector<8xf32> to vector<8x1xf32>
    %89 = vector.broadcast %88 : vector<8x1xf32> to vector<8x16xf32>
    %90 = arith.subf %86, %89 : vector<8x16xf32>
    %91 = math.exp %90 : vector<8x16xf32>
    %cst_45 = arith.constant dense<0.000000e+00> : vector<8xf32>
    %92 = vector.multi_reduction <add>, %91, %cst_45 [1] : vector<8x16xf32> to vector<8xf32>
    %93 = vector.shape_cast %92 : vector<8xf32> to vector<8x1xf32>
    %94 = tpu.reciprocal %93 {approx = true} : vector<8x1xf32> -> vector<8x1xf32>
    %95 = vector.broadcast %94 : vector<8x1xf32> to vector<8x16xf32>
    %96 = arith.mulf %91, %95 : vector<8x16xf32>
    %97 = vector.extract_strided_slice %82 {offsets = [0, 0], sizes = [8, 16], strides = [1, 1]} : vector<8x32xf32> to vector<8x16xf32>
    %98 = arith.mulf %96, %97 : vector<8x16xf32>
    %99 = vector.extract_strided_slice %84 {offsets = [0, 0], sizes = [8, 16], strides = [1, 1]} : vector<8x32xf32> to vector<8x16xf32>
    %100 = arith.mulf %96, %99 : vector<8x16xf32>
    %101 = vector.extract_strided_slice %68 {offsets = [0, 0], sizes = [8, 16], strides = [1, 1]} : vector<8x32xi32> to vector<8x16xi32>
    %102 = vector.extract_strided_slice %78 {offsets = [0, 0], sizes = [8, 16], strides = [1, 1]} : vector<8x32xi32> to vector<8x16xi32>
    %cst_46 = arith.constant 0.000000e+00 : f32
    %103 = vector.broadcast %cst_46 : f32 to vector<8x30xf32>
    %104 = vector.extract_strided_slice %101 {offsets = [0, 0], sizes = [8, 1], strides = [1, 1]} : vector<8x16xi32> to vector<8x1xi32>
    %105 = vector.broadcast %104 : vector<8x1xi32> to vector<8x30xi32>
    %106 = arith.cmpi eq, %85, %105 : vector<8x30xi32>
    %107 = vector.extract_strided_slice %98 {offsets = [0, 0], sizes = [8, 1], strides = [1, 1]} : vector<8x16xf32> to vector<8x1xf32>
    %cst_47 = arith.constant 0.000000e+00 : f32
    %108 = vector.shape_cast %107 : vector<8x1xf32> to vector<8x1xf32>
    %109 = vector.broadcast %108 : vector<8x1xf32> to vector<8x30xf32>
    %110 = vector.broadcast %cst_47 : f32 to vector<8x30xf32>
    %111 = arith.select %106, %109, %110 : vector<8x30xi1>, vector<8x30xf32>
    %112 = arith.addf %103, %111 : vector<8x30xf32>
    %113 = vector.extract_strided_slice %102 {offsets = [0, 0], sizes = [8, 1], strides = [1, 1]} : vector<8x16xi32> to vector<8x1xi32>
    %114 = vector.broadcast %113 : vector<8x1xi32> to vector<8x30xi32>
    %115 = arith.cmpi eq, %85, %114 : vector<8x30xi32>
    %116 = vector.extract_strided_slice %100 {offsets = [0, 0], sizes = [8, 1], strides = [1, 1]} : vector<8x16xf32> to vector<8x1xf32>
    %cst_48 = arith.constant 0.000000e+00 : f32
    %117 = vector.shape_cast %116 : vector<8x1xf32> to vector<8x1xf32>
    %118 = vector.broadcast %117 : vector<8x1xf32> to vector<8x30xf32>
    %119 = vector.broadcast %cst_48 : f32 to vector<8x30xf32>
    %120 = arith.select %115, %118, %119 : vector<8x30xi1>, vector<8x30xf32>
    %121 = arith.addf %112, %120 : vector<8x30xf32>
    %122 = vector.extract_strided_slice %101 {offsets = [0, 1], sizes = [8, 1], strides = [1, 1]} : vector<8x16xi32> to vector<8x1xi32>
    %123 = vector.broadcast %122 : vector<8x1xi32> to vector<8x30xi32>
    %124 = arith.cmpi eq, %85, %123 : vector<8x30xi32>
    %125 = vector.extract_strided_slice %98 {offsets = [0, 1], sizes = [8, 1], strides = [1, 1]} : vector<8x16xf32> to vector<8x1xf32>
    %cst_49 = arith.constant 0.000000e+00 : f32
    %126 = vector.shape_cast %125 : vector<8x1xf32> to vector<8x1xf32>
    %127 = vector.broadcast %126 : vector<8x1xf32> to vector<8x30xf32>
    %128 = vector.broadcast %cst_49 : f32 to vector<8x30xf32>
    %129 = arith.select %124, %127, %128 : vector<8x30xi1>, vector<8x30xf32>
    %130 = arith.addf %121, %129 : vector<8x30xf32>
    %131 = vector.extract_strided_slice %102 {offsets = [0, 1], sizes = [8, 1], strides = [1, 1]} : vector<8x16xi32> to vector<8x1xi32>
    %132 = vector.broadcast %131 : vector<8x1xi32> to vector<8x30xi32>
    %133 = arith.cmpi eq, %85, %132 : vector<8x30xi32>
    %134 = vector.extract_strided_slice %100 {offsets = [0, 1], sizes = [8, 1], strides = [1, 1]} : vector<8x16xf32> to vector<8x1xf32>
    %cst_50 = arith.constant 0.000000e+00 : f32
    %135 = vector.shape_cast %134 : vector<8x1xf32> to vector<8x1xf32>
    %136 = vector.broadcast %135 : vector<8x1xf32> to vector<8x30xf32>
    %137 = vector.broadcast %cst_50 : f32 to vector<8x30xf32>
    %138 = arith.select %133, %136, %137 : vector<8x30xi1>, vector<8x30xf32>
    %139 = arith.addf %130, %138 : vector<8x30xf32>
    %140 = vector.extract_strided_slice %101 {offsets = [0, 2], sizes = [8, 1], strides = [1, 1]} : vector<8x16xi32> to vector<8x1xi32>
    %141 = vector.broadcast %140 : vector<8x1xi32> to vector<8x30xi32>
    %142 = arith.cmpi eq, %85, %141 : vector<8x30xi32>
    %143 = vector.extract_strided_slice %98 {offsets = [0, 2], sizes = [8, 1], strides = [1, 1]} : vector<8x16xf32> to vector<8x1xf32>
    %cst_51 = arith.constant 0.000000e+00 : f32
    %144 = vector.shape_cast %143 : vector<8x1xf32> to vector<8x1xf32>
    %145 = vector.broadcast %144 : vector<8x1xf32> to vector<8x30xf32>
    %146 = vector.broadcast %cst_51 : f32 to vector<8x30xf32>
    %147 = arith.select %142, %145, %146 : vector<8x30xi1>, vector<8x30xf32>
    %148 = arith.addf %139, %147 : vector<8x30xf32>
    %149 = vector.extract_strided_slice %102 {offsets = [0, 2], sizes = [8, 1], strides = [1, 1]} : vector<8x16xi32> to vector<8x1xi32>
    %150 = vector.broadcast %149 : vector<8x1xi32> to vector<8x30xi32>
    %151 = arith.cmpi eq, %85, %150 : vector<8x30xi32>
    %152 = vector.extract_strided_slice %100 {offsets = [0, 2], sizes = [8, 1], strides = [1, 1]} : vector<8x16xf32> to vector<8x1xf32>
    %cst_52 = arith.constant 0.000000e+00 : f32
    %153 = vector.shape_cast %152 : vector<8x1xf32> to vector<8x1xf32>
    %154 = vector.broadcast %153 : vector<8x1xf32> to vector<8x30xf32>
    %155 = vector.broadcast %cst_52 : f32 to vector<8x30xf32>
    %156 = arith.select %151, %154, %155 : vector<8x30xi1>, vector<8x30xf32>
    %157 = arith.addf %148, %156 : vector<8x30xf32>
    %158 = vector.extract_strided_slice %101 {offsets = [0, 3], sizes = [8, 1], strides = [1, 1]} : vector<8x16xi32> to vector<8x1xi32>
    %159 = vector.broadcast %158 : vector<8x1xi32> to vector<8x30xi32>
    %160 = arith.cmpi eq, %85, %159 : vector<8x30xi32>
    %161 = vector.extract_strided_slice %98 {offsets = [0, 3], sizes = [8, 1], strides = [1, 1]} : vector<8x16xf32> to vector<8x1xf32>
    %cst_53 = arith.constant 0.000000e+00 : f32
    %162 = vector.shape_cast %161 : vector<8x1xf32> to vector<8x1xf32>
    %163 = vector.broadcast %162 : vector<8x1xf32> to vector<8x30xf32>
    %164 = vector.broadcast %cst_53 : f32 to vector<8x30xf32>
    %165 = arith.select %160, %163, %164 : vector<8x30xi1>, vector<8x30xf32>
    %166 = arith.addf %157, %165 : vector<8x30xf32>
    %167 = vector.extract_strided_slice %102 {offsets = [0, 3], sizes = [8, 1], strides = [1, 1]} : vector<8x16xi32> to vector<8x1xi32>
    %168 = vector.broadcast %167 : vector<8x1xi32> to vector<8x30xi32>
    %169 = arith.cmpi eq, %85, %168 : vector<8x30xi32>
    %170 = vector.extract_strided_slice %100 {offsets = [0, 3], sizes = [8, 1], strides = [1, 1]} : vector<8x16xf32> to vector<8x1xf32>
    %cst_54 = arith.constant 0.000000e+00 : f32
    %171 = vector.shape_cast %170 : vector<8x1xf32> to vector<8x1xf32>
    %172 = vector.broadcast %171 : vector<8x1xf32> to vector<8x30xf32>
    %173 = vector.broadcast %cst_54 : f32 to vector<8x30xf32>
    %174 = arith.select %169, %172, %173 : vector<8x30xi1>, vector<8x30xf32>
    %175 = arith.addf %166, %174 : vector<8x30xf32>
    %176 = vector.extract_strided_slice %101 {offsets = [0, 4], sizes = [8, 1], strides = [1, 1]} : vector<8x16xi32> to vector<8x1xi32>
    %177 = vector.broadcast %176 : vector<8x1xi32> to vector<8x30xi32>
    %178 = arith.cmpi eq, %85, %177 : vector<8x30xi32>
    %179 = vector.extract_strided_slice %98 {offsets = [0, 4], sizes = [8, 1], strides = [1, 1]} : vector<8x16xf32> to vector<8x1xf32>
    %cst_55 = arith.constant 0.000000e+00 : f32
    %180 = vector.shape_cast %179 : vector<8x1xf32> to vector<8x1xf32>
    %181 = vector.broadcast %180 : vector<8x1xf32> to vector<8x30xf32>
    %182 = vector.broadcast %cst_55 : f32 to vector<8x30xf32>
    %183 = arith.select %178, %181, %182 : vector<8x30xi1>, vector<8x30xf32>
    %184 = arith.addf %175, %183 : vector<8x30xf32>
    %185 = vector.extract_strided_slice %102 {offsets = [0, 4], sizes = [8, 1], strides = [1, 1]} : vector<8x16xi32> to vector<8x1xi32>
    %186 = vector.broadcast %185 : vector<8x1xi32> to vector<8x30xi32>
    %187 = arith.cmpi eq, %85, %186 : vector<8x30xi32>
    %188 = vector.extract_strided_slice %100 {offsets = [0, 4], sizes = [8, 1], strides = [1, 1]} : vector<8x16xf32> to vector<8x1xf32>
    %cst_56 = arith.constant 0.000000e+00 : f32
    %189 = vector.shape_cast %188 : vector<8x1xf32> to vector<8x1xf32>
    %190 = vector.broadcast %189 : vector<8x1xf32> to vector<8x30xf32>
    %191 = vector.broadcast %cst_56 : f32 to vector<8x30xf32>
    %192 = arith.select %187, %190, %191 : vector<8x30xi1>, vector<8x30xf32>
    %193 = arith.addf %184, %192 : vector<8x30xf32>
    %194 = vector.extract_strided_slice %101 {offsets = [0, 5], sizes = [8, 1], strides = [1, 1]} : vector<8x16xi32> to vector<8x1xi32>
    %195 = vector.broadcast %194 : vector<8x1xi32> to vector<8x30xi32>
    %196 = arith.cmpi eq, %85, %195 : vector<8x30xi32>
    %197 = vector.extract_strided_slice %98 {offsets = [0, 5], sizes = [8, 1], strides = [1, 1]} : vector<8x16xf32> to vector<8x1xf32>
    %cst_57 = arith.constant 0.000000e+00 : f32
    %198 = vector.shape_cast %197 : vector<8x1xf32> to vector<8x1xf32>
    %199 = vector.broadcast %198 : vector<8x1xf32> to vector<8x30xf32>
    %200 = vector.broadcast %cst_57 : f32 to vector<8x30xf32>
    %201 = arith.select %196, %199, %200 : vector<8x30xi1>, vector<8x30xf32>
    %202 = arith.addf %193, %201 : vector<8x30xf32>
    %203 = vector.extract_strided_slice %102 {offsets = [0, 5], sizes = [8, 1], strides = [1, 1]} : vector<8x16xi32> to vector<8x1xi32>
    %204 = vector.broadcast %203 : vector<8x1xi32> to vector<8x30xi32>
    %205 = arith.cmpi eq, %85, %204 : vector<8x30xi32>
    %206 = vector.extract_strided_slice %100 {offsets = [0, 5], sizes = [8, 1], strides = [1, 1]} : vector<8x16xf32> to vector<8x1xf32>
    %cst_58 = arith.constant 0.000000e+00 : f32
    %207 = vector.shape_cast %206 : vector<8x1xf32> to vector<8x1xf32>
    %208 = vector.broadcast %207 : vector<8x1xf32> to vector<8x30xf32>
    %209 = vector.broadcast %cst_58 : f32 to vector<8x30xf32>
    %210 = arith.select %205, %208, %209 : vector<8x30xi1>, vector<8x30xf32>
    %211 = arith.addf %202, %210 : vector<8x30xf32>
    %212 = vector.extract_strided_slice %101 {offsets = [0, 6], sizes = [8, 1], strides = [1, 1]} : vector<8x16xi32> to vector<8x1xi32>
    %213 = vector.broadcast %212 : vector<8x1xi32> to vector<8x30xi32>
    %214 = arith.cmpi eq, %85, %213 : vector<8x30xi32>
    %215 = vector.extract_strided_slice %98 {offsets = [0, 6], sizes = [8, 1], strides = [1, 1]} : vector<8x16xf32> to vector<8x1xf32>
    %cst_59 = arith.constant 0.000000e+00 : f32
    %216 = vector.shape_cast %215 : vector<8x1xf32> to vector<8x1xf32>
    %217 = vector.broadcast %216 : vector<8x1xf32> to vector<8x30xf32>
    %218 = vector.broadcast %cst_59 : f32 to vector<8x30xf32>
    %219 = arith.select %214, %217, %218 : vector<8x30xi1>, vector<8x30xf32>
    %220 = arith.addf %211, %219 : vector<8x30xf32>
    %221 = vector.extract_strided_slice %102 {offsets = [0, 6], sizes = [8, 1], strides = [1, 1]} : vector<8x16xi32> to vector<8x1xi32>
    %222 = vector.broadcast %221 : vector<8x1xi32> to vector<8x30xi32>
    %223 = arith.cmpi eq, %85, %222 : vector<8x30xi32>
    %224 = vector.extract_strided_slice %100 {offsets = [0, 6], sizes = [8, 1], strides = [1, 1]} : vector<8x16xf32> to vector<8x1xf32>
    %cst_60 = arith.constant 0.000000e+00 : f32
    %225 = vector.shape_cast %224 : vector<8x1xf32> to vector<8x1xf32>
    %226 = vector.broadcast %225 : vector<8x1xf32> to vector<8x30xf32>
    %227 = vector.broadcast %cst_60 : f32 to vector<8x30xf32>
    %228 = arith.select %223, %226, %227 : vector<8x30xi1>, vector<8x30xf32>
    %229 = arith.addf %220, %228 : vector<8x30xf32>
    %230 = vector.extract_strided_slice %101 {offsets = [0, 7], sizes = [8, 1], strides = [1, 1]} : vector<8x16xi32> to vector<8x1xi32>
    %231 = vector.broadcast %230 : vector<8x1xi32> to vector<8x30xi32>
    %232 = arith.cmpi eq, %85, %231 : vector<8x30xi32>
    %233 = vector.extract_strided_slice %98 {offsets = [0, 7], sizes = [8, 1], strides = [1, 1]} : vector<8x16xf32> to vector<8x1xf32>
    %cst_61 = arith.constant 0.000000e+00 : f32
    %234 = vector.shape_cast %233 : vector<8x1xf32> to vector<8x1xf32>
    %235 = vector.broadcast %234 : vector<8x1xf32> to vector<8x30xf32>
    %236 = vector.broadcast %cst_61 : f32 to vector<8x30xf32>
    %237 = arith.select %232, %235, %236 : vector<8x30xi1>, vector<8x30xf32>
    %238 = arith.addf %229, %237 : vector<8x30xf32>
    %239 = vector.extract_strided_slice %102 {offsets = [0, 7], sizes = [8, 1], strides = [1, 1]} : vector<8x16xi32> to vector<8x1xi32>
    %240 = vector.broadcast %239 : vector<8x1xi32> to vector<8x30xi32>
    %241 = arith.cmpi eq, %85, %240 : vector<8x30xi32>
    %242 = vector.extract_strided_slice %100 {offsets = [0, 7], sizes = [8, 1], strides = [1, 1]} : vector<8x16xf32> to vector<8x1xf32>
    %cst_62 = arith.constant 0.000000e+00 : f32
    %243 = vector.shape_cast %242 : vector<8x1xf32> to vector<8x1xf32>
    %244 = vector.broadcast %243 : vector<8x1xf32> to vector<8x30xf32>
    %245 = vector.broadcast %cst_62 : f32 to vector<8x30xf32>
    %246 = arith.select %241, %244, %245 : vector<8x30xi1>, vector<8x30xf32>
    %247 = arith.addf %238, %246 : vector<8x30xf32>
    %248 = vector.extract_strided_slice %101 {offsets = [0, 8], sizes = [8, 1], strides = [1, 1]} : vector<8x16xi32> to vector<8x1xi32>
    %249 = vector.broadcast %248 : vector<8x1xi32> to vector<8x30xi32>
    %250 = arith.cmpi eq, %85, %249 : vector<8x30xi32>
    %251 = vector.extract_strided_slice %98 {offsets = [0, 8], sizes = [8, 1], strides = [1, 1]} : vector<8x16xf32> to vector<8x1xf32>
    %cst_63 = arith.constant 0.000000e+00 : f32
    %252 = vector.shape_cast %251 : vector<8x1xf32> to vector<8x1xf32>
    %253 = vector.broadcast %252 : vector<8x1xf32> to vector<8x30xf32>
    %254 = vector.broadcast %cst_63 : f32 to vector<8x30xf32>
    %255 = arith.select %250, %253, %254 : vector<8x30xi1>, vector<8x30xf32>
    %256 = arith.addf %247, %255 : vector<8x30xf32>
    %257 = vector.extract_strided_slice %102 {offsets = [0, 8], sizes = [8, 1], strides = [1, 1]} : vector<8x16xi32> to vector<8x1xi32>
    %258 = vector.broadcast %257 : vector<8x1xi32> to vector<8x30xi32>
    %259 = arith.cmpi eq, %85, %258 : vector<8x30xi32>
    %260 = vector.extract_strided_slice %100 {offsets = [0, 8], sizes = [8, 1], strides = [1, 1]} : vector<8x16xf32> to vector<8x1xf32>
    %cst_64 = arith.constant 0.000000e+00 : f32
    %261 = vector.shape_cast %260 : vector<8x1xf32> to vector<8x1xf32>
    %262 = vector.broadcast %261 : vector<8x1xf32> to vector<8x30xf32>
    %263 = vector.broadcast %cst_64 : f32 to vector<8x30xf32>
    %264 = arith.select %259, %262, %263 : vector<8x30xi1>, vector<8x30xf32>
    %265 = arith.addf %256, %264 : vector<8x30xf32>
    %266 = vector.extract_strided_slice %101 {offsets = [0, 9], sizes = [8, 1], strides = [1, 1]} : vector<8x16xi32> to vector<8x1xi32>
    %267 = vector.broadcast %266 : vector<8x1xi32> to vector<8x30xi32>
    %268 = arith.cmpi eq, %85, %267 : vector<8x30xi32>
    %269 = vector.extract_strided_slice %98 {offsets = [0, 9], sizes = [8, 1], strides = [1, 1]} : vector<8x16xf32> to vector<8x1xf32>
    %cst_65 = arith.constant 0.000000e+00 : f32
    %270 = vector.shape_cast %269 : vector<8x1xf32> to vector<8x1xf32>
    %271 = vector.broadcast %270 : vector<8x1xf32> to vector<8x30xf32>
    %272 = vector.broadcast %cst_65 : f32 to vector<8x30xf32>
    %273 = arith.select %268, %271, %272 : vector<8x30xi1>, vector<8x30xf32>
    %274 = arith.addf %265, %273 : vector<8x30xf32>
    %275 = vector.extract_strided_slice %102 {offsets = [0, 9], sizes = [8, 1], strides = [1, 1]} : vector<8x16xi32> to vector<8x1xi32>
    %276 = vector.broadcast %275 : vector<8x1xi32> to vector<8x30xi32>
    %277 = arith.cmpi eq, %85, %276 : vector<8x30xi32>
    %278 = vector.extract_strided_slice %100 {offsets = [0, 9], sizes = [8, 1], strides = [1, 1]} : vector<8x16xf32> to vector<8x1xf32>
    %cst_66 = arith.constant 0.000000e+00 : f32
    %279 = vector.shape_cast %278 : vector<8x1xf32> to vector<8x1xf32>
    %280 = vector.broadcast %279 : vector<8x1xf32> to vector<8x30xf32>
    %281 = vector.broadcast %cst_66 : f32 to vector<8x30xf32>
    %282 = arith.select %277, %280, %281 : vector<8x30xi1>, vector<8x30xf32>
    %283 = arith.addf %274, %282 : vector<8x30xf32>
    %284 = vector.extract_strided_slice %101 {offsets = [0, 10], sizes = [8, 1], strides = [1, 1]} : vector<8x16xi32> to vector<8x1xi32>
    %285 = vector.broadcast %284 : vector<8x1xi32> to vector<8x30xi32>
    %286 = arith.cmpi eq, %85, %285 : vector<8x30xi32>
    %287 = vector.extract_strided_slice %98 {offsets = [0, 10], sizes = [8, 1], strides = [1, 1]} : vector<8x16xf32> to vector<8x1xf32>
    %cst_67 = arith.constant 0.000000e+00 : f32
    %288 = vector.shape_cast %287 : vector<8x1xf32> to vector<8x1xf32>
    %289 = vector.broadcast %288 : vector<8x1xf32> to vector<8x30xf32>
    %290 = vector.broadcast %cst_67 : f32 to vector<8x30xf32>
    %291 = arith.select %286, %289, %290 : vector<8x30xi1>, vector<8x30xf32>
    %292 = arith.addf %283, %291 : vector<8x30xf32>
    %293 = vector.extract_strided_slice %102 {offsets = [0, 10], sizes = [8, 1], strides = [1, 1]} : vector<8x16xi32> to vector<8x1xi32>
    %294 = vector.broadcast %293 : vector<8x1xi32> to vector<8x30xi32>
    %295 = arith.cmpi eq, %85, %294 : vector<8x30xi32>
    %296 = vector.extract_strided_slice %100 {offsets = [0, 10], sizes = [8, 1], strides = [1, 1]} : vector<8x16xf32> to vector<8x1xf32>
    %cst_68 = arith.constant 0.000000e+00 : f32
    %297 = vector.shape_cast %296 : vector<8x1xf32> to vector<8x1xf32>
    %298 = vector.broadcast %297 : vector<8x1xf32> to vector<8x30xf32>
    %299 = vector.broadcast %cst_68 : f32 to vector<8x30xf32>
    %300 = arith.select %295, %298, %299 : vector<8x30xi1>, vector<8x30xf32>
    %301 = arith.addf %292, %300 : vector<8x30xf32>
    %302 = vector.extract_strided_slice %101 {offsets = [0, 11], sizes = [8, 1], strides = [1, 1]} : vector<8x16xi32> to vector<8x1xi32>
    %303 = vector.broadcast %302 : vector<8x1xi32> to vector<8x30xi32>
    %304 = arith.cmpi eq, %85, %303 : vector<8x30xi32>
    %305 = vector.extract_strided_slice %98 {offsets = [0, 11], sizes = [8, 1], strides = [1, 1]} : vector<8x16xf32> to vector<8x1xf32>
    %cst_69 = arith.constant 0.000000e+00 : f32
    %306 = vector.shape_cast %305 : vector<8x1xf32> to vector<8x1xf32>
    %307 = vector.broadcast %306 : vector<8x1xf32> to vector<8x30xf32>
    %308 = vector.broadcast %cst_69 : f32 to vector<8x30xf32>
    %309 = arith.select %304, %307, %308 : vector<8x30xi1>, vector<8x30xf32>
    %310 = arith.addf %301, %309 : vector<8x30xf32>
    %311 = vector.extract_strided_slice %102 {offsets = [0, 11], sizes = [8, 1], strides = [1, 1]} : vector<8x16xi32> to vector<8x1xi32>
    %312 = vector.broadcast %311 : vector<8x1xi32> to vector<8x30xi32>
    %313 = arith.cmpi eq, %85, %312 : vector<8x30xi32>
    %314 = vector.extract_strided_slice %100 {offsets = [0, 11], sizes = [8, 1], strides = [1, 1]} : vector<8x16xf32> to vector<8x1xf32>
    %cst_70 = arith.constant 0.000000e+00 : f32
    %315 = vector.shape_cast %314 : vector<8x1xf32> to vector<8x1xf32>
    %316 = vector.broadcast %315 : vector<8x1xf32> to vector<8x30xf32>
    %317 = vector.broadcast %cst_70 : f32 to vector<8x30xf32>
    %318 = arith.select %313, %316, %317 : vector<8x30xi1>, vector<8x30xf32>
    %319 = arith.addf %310, %318 : vector<8x30xf32>
    %320 = vector.extract_strided_slice %101 {offsets = [0, 12], sizes = [8, 1], strides = [1, 1]} : vector<8x16xi32> to vector<8x1xi32>
    %321 = vector.broadcast %320 : vector<8x1xi32> to vector<8x30xi32>
    %322 = arith.cmpi eq, %85, %321 : vector<8x30xi32>
    %323 = vector.extract_strided_slice %98 {offsets = [0, 12], sizes = [8, 1], strides = [1, 1]} : vector<8x16xf32> to vector<8x1xf32>
    %cst_71 = arith.constant 0.000000e+00 : f32
    %324 = vector.shape_cast %323 : vector<8x1xf32> to vector<8x1xf32>
    %325 = vector.broadcast %324 : vector<8x1xf32> to vector<8x30xf32>
    %326 = vector.broadcast %cst_71 : f32 to vector<8x30xf32>
    %327 = arith.select %322, %325, %326 : vector<8x30xi1>, vector<8x30xf32>
    %328 = arith.addf %319, %327 : vector<8x30xf32>
    %329 = vector.extract_strided_slice %102 {offsets = [0, 12], sizes = [8, 1], strides = [1, 1]} : vector<8x16xi32> to vector<8x1xi32>
    %330 = vector.broadcast %329 : vector<8x1xi32> to vector<8x30xi32>
    %331 = arith.cmpi eq, %85, %330 : vector<8x30xi32>
    %332 = vector.extract_strided_slice %100 {offsets = [0, 12], sizes = [8, 1], strides = [1, 1]} : vector<8x16xf32> to vector<8x1xf32>
    %cst_72 = arith.constant 0.000000e+00 : f32
    %333 = vector.shape_cast %332 : vector<8x1xf32> to vector<8x1xf32>
    %334 = vector.broadcast %333 : vector<8x1xf32> to vector<8x30xf32>
    %335 = vector.broadcast %cst_72 : f32 to vector<8x30xf32>
    %336 = arith.select %331, %334, %335 : vector<8x30xi1>, vector<8x30xf32>
    %337 = arith.addf %328, %336 : vector<8x30xf32>
    %338 = vector.extract_strided_slice %101 {offsets = [0, 13], sizes = [8, 1], strides = [1, 1]} : vector<8x16xi32> to vector<8x1xi32>
    %339 = vector.broadcast %338 : vector<8x1xi32> to vector<8x30xi32>
    %340 = arith.cmpi eq, %85, %339 : vector<8x30xi32>
    %341 = vector.extract_strided_slice %98 {offsets = [0, 13], sizes = [8, 1], strides = [1, 1]} : vector<8x16xf32> to vector<8x1xf32>
    %cst_73 = arith.constant 0.000000e+00 : f32
    %342 = vector.shape_cast %341 : vector<8x1xf32> to vector<8x1xf32>
    %343 = vector.broadcast %342 : vector<8x1xf32> to vector<8x30xf32>
    %344 = vector.broadcast %cst_73 : f32 to vector<8x30xf32>
    %345 = arith.select %340, %343, %344 : vector<8x30xi1>, vector<8x30xf32>
    %346 = arith.addf %337, %345 : vector<8x30xf32>
    %347 = vector.extract_strided_slice %102 {offsets = [0, 13], sizes = [8, 1], strides = [1, 1]} : vector<8x16xi32> to vector<8x1xi32>
    %348 = vector.broadcast %347 : vector<8x1xi32> to vector<8x30xi32>
    %349 = arith.cmpi eq, %85, %348 : vector<8x30xi32>
    %350 = vector.extract_strided_slice %100 {offsets = [0, 13], sizes = [8, 1], strides = [1, 1]} : vector<8x16xf32> to vector<8x1xf32>
    %cst_74 = arith.constant 0.000000e+00 : f32
    %351 = vector.shape_cast %350 : vector<8x1xf32> to vector<8x1xf32>
    %352 = vector.broadcast %351 : vector<8x1xf32> to vector<8x30xf32>
    %353 = vector.broadcast %cst_74 : f32 to vector<8x30xf32>
    %354 = arith.select %349, %352, %353 : vector<8x30xi1>, vector<8x30xf32>
    %355 = arith.addf %346, %354 : vector<8x30xf32>
    %356 = vector.extract_strided_slice %101 {offsets = [0, 14], sizes = [8, 1], strides = [1, 1]} : vector<8x16xi32> to vector<8x1xi32>
    %357 = vector.broadcast %356 : vector<8x1xi32> to vector<8x30xi32>
    %358 = arith.cmpi eq, %85, %357 : vector<8x30xi32>
    %359 = vector.extract_strided_slice %98 {offsets = [0, 14], sizes = [8, 1], strides = [1, 1]} : vector<8x16xf32> to vector<8x1xf32>
    %cst_75 = arith.constant 0.000000e+00 : f32
    %360 = vector.shape_cast %359 : vector<8x1xf32> to vector<8x1xf32>
    %361 = vector.broadcast %360 : vector<8x1xf32> to vector<8x30xf32>
    %362 = vector.broadcast %cst_75 : f32 to vector<8x30xf32>
    %363 = arith.select %358, %361, %362 : vector<8x30xi1>, vector<8x30xf32>
    %364 = arith.addf %355, %363 : vector<8x30xf32>
    %365 = vector.extract_strided_slice %102 {offsets = [0, 14], sizes = [8, 1], strides = [1, 1]} : vector<8x16xi32> to vector<8x1xi32>
    %366 = vector.broadcast %365 : vector<8x1xi32> to vector<8x30xi32>
    %367 = arith.cmpi eq, %85, %366 : vector<8x30xi32>
    %368 = vector.extract_strided_slice %100 {offsets = [0, 14], sizes = [8, 1], strides = [1, 1]} : vector<8x16xf32> to vector<8x1xf32>
    %cst_76 = arith.constant 0.000000e+00 : f32
    %369 = vector.shape_cast %368 : vector<8x1xf32> to vector<8x1xf32>
    %370 = vector.broadcast %369 : vector<8x1xf32> to vector<8x30xf32>
    %371 = vector.broadcast %cst_76 : f32 to vector<8x30xf32>
    %372 = arith.select %367, %370, %371 : vector<8x30xi1>, vector<8x30xf32>
    %373 = arith.addf %364, %372 : vector<8x30xf32>
    %374 = vector.extract_strided_slice %101 {offsets = [0, 15], sizes = [8, 1], strides = [1, 1]} : vector<8x16xi32> to vector<8x1xi32>
    %375 = vector.broadcast %374 : vector<8x1xi32> to vector<8x30xi32>
    %376 = arith.cmpi eq, %85, %375 : vector<8x30xi32>
    %377 = vector.extract_strided_slice %98 {offsets = [0, 15], sizes = [8, 1], strides = [1, 1]} : vector<8x16xf32> to vector<8x1xf32>
    %cst_77 = arith.constant 0.000000e+00 : f32
    %378 = vector.shape_cast %377 : vector<8x1xf32> to vector<8x1xf32>
    %379 = vector.broadcast %378 : vector<8x1xf32> to vector<8x30xf32>
    %380 = vector.broadcast %cst_77 : f32 to vector<8x30xf32>
    %381 = arith.select %376, %379, %380 : vector<8x30xi1>, vector<8x30xf32>
    %382 = arith.addf %373, %381 : vector<8x30xf32>
    %383 = vector.extract_strided_slice %102 {offsets = [0, 15], sizes = [8, 1], strides = [1, 1]} : vector<8x16xi32> to vector<8x1xi32>
    %384 = vector.broadcast %383 : vector<8x1xi32> to vector<8x30xi32>
    %385 = arith.cmpi eq, %85, %384 : vector<8x30xi32>
    %386 = vector.extract_strided_slice %100 {offsets = [0, 15], sizes = [8, 1], strides = [1, 1]} : vector<8x16xf32> to vector<8x1xf32>
    %cst_78 = arith.constant 0.000000e+00 : f32
    %387 = vector.shape_cast %386 : vector<8x1xf32> to vector<8x1xf32>
    %388 = vector.broadcast %387 : vector<8x1xf32> to vector<8x30xf32>
    %389 = vector.broadcast %cst_78 : f32 to vector<8x30xf32>
    %390 = arith.select %385, %388, %389 : vector<8x30xi1>, vector<8x30xf32>
    %391 = arith.addf %382, %390 : vector<8x30xf32>
    %392 = arith.truncf %391 : vector<8x30xf32> to vector<8x30xbf16>
    %393 = vector.extract_strided_slice %15 {offsets = [0, 0], sizes = [30, 16], strides = [1, 1]} : vector<30x32xbf16> to vector<30x16xbf16>
    %cst_79 = arith.constant dense<0.000000e+00> : vector<8x16xf32>
    %394 = tpu.matmul %392, %393, %cst_79 {dimension_numbers = #tpu.dot_dimension_numbers<[1], [0], [0], [1], [0, 0, 1, 1], [], []>} : vector<8x30xbf16>, vector<30x16xbf16>, vector<8x16xf32> -> vector<8x16xf32>
    %395 = vector.extract_strided_slice %27 {offsets = [0, 16], sizes = [8, 16], strides = [1, 1]} : vector<8x32xf32> to vector<8x16xf32>
    %cst_80 = arith.constant dense<0xFF800000> : vector<8xf32>
    %396 = vector.multi_reduction <maximumf>, %395, %cst_80 [1] : vector<8x16xf32> to vector<8xf32>
    %397 = vector.shape_cast %396 : vector<8xf32> to vector<8x1xf32>
    %398 = vector.broadcast %397 : vector<8x1xf32> to vector<8x16xf32>
    %399 = arith.subf %395, %398 : vector<8x16xf32>
    %400 = math.exp %399 : vector<8x16xf32>
    %cst_81 = arith.constant dense<0.000000e+00> : vector<8xf32>
    %401 = vector.multi_reduction <add>, %400, %cst_81 [1] : vector<8x16xf32> to vector<8xf32>
    %402 = vector.shape_cast %401 : vector<8xf32> to vector<8x1xf32>
    %403 = tpu.reciprocal %402 {approx = true} : vector<8x1xf32> -> vector<8x1xf32>
    %404 = vector.broadcast %403 : vector<8x1xf32> to vector<8x16xf32>
    %405 = arith.mulf %400, %404 : vector<8x16xf32>
    %406 = vector.extract_strided_slice %82 {offsets = [0, 16], sizes = [8, 16], strides = [1, 1]} : vector<8x32xf32> to vector<8x16xf32>
    %407 = arith.mulf %405, %406 : vector<8x16xf32>
    %408 = vector.extract_strided_slice %84 {offsets = [0, 16], sizes = [8, 16], strides = [1, 1]} : vector<8x32xf32> to vector<8x16xf32>
    %409 = arith.mulf %405, %408 : vector<8x16xf32>
    %410 = vector.extract_strided_slice %68 {offsets = [0, 16], sizes = [8, 16], strides = [1, 1]} : vector<8x32xi32> to vector<8x16xi32>
    %411 = vector.extract_strided_slice %78 {offsets = [0, 16], sizes = [8, 16], strides = [1, 1]} : vector<8x32xi32> to vector<8x16xi32>
    %cst_82 = arith.constant 0.000000e+00 : f32
    %412 = vector.broadcast %cst_82 : f32 to vector<8x30xf32>
    %413 = vector.extract_strided_slice %410 {offsets = [0, 0], sizes = [8, 1], strides = [1, 1]} : vector<8x16xi32> to vector<8x1xi32>
    %414 = vector.broadcast %413 : vector<8x1xi32> to vector<8x30xi32>
    %415 = arith.cmpi eq, %85, %414 : vector<8x30xi32>
    %416 = vector.extract_strided_slice %407 {offsets = [0, 0], sizes = [8, 1], strides = [1, 1]} : vector<8x16xf32> to vector<8x1xf32>
    %cst_83 = arith.constant 0.000000e+00 : f32
    %417 = vector.shape_cast %416 : vector<8x1xf32> to vector<8x1xf32>
    %418 = vector.broadcast %417 : vector<8x1xf32> to vector<8x30xf32>
    %419 = vector.broadcast %cst_83 : f32 to vector<8x30xf32>
    %420 = arith.select %415, %418, %419 : vector<8x30xi1>, vector<8x30xf32>
    %421 = arith.addf %412, %420 : vector<8x30xf32>
    %422 = vector.extract_strided_slice %411 {offsets = [0, 0], sizes = [8, 1], strides = [1, 1]} : vector<8x16xi32> to vector<8x1xi32>
    %423 = vector.broadcast %422 : vector<8x1xi32> to vector<8x30xi32>
    %424 = arith.cmpi eq, %85, %423 : vector<8x30xi32>
    %425 = vector.extract_strided_slice %409 {offsets = [0, 0], sizes = [8, 1], strides = [1, 1]} : vector<8x16xf32> to vector<8x1xf32>
    %cst_84 = arith.constant 0.000000e+00 : f32
    %426 = vector.shape_cast %425 : vector<8x1xf32> to vector<8x1xf32>
    %427 = vector.broadcast %426 : vector<8x1xf32> to vector<8x30xf32>
    %428 = vector.broadcast %cst_84 : f32 to vector<8x30xf32>
    %429 = arith.select %424, %427, %428 : vector<8x30xi1>, vector<8x30xf32>
    %430 = arith.addf %421, %429 : vector<8x30xf32>
    %431 = vector.extract_strided_slice %410 {offsets = [0, 1], sizes = [8, 1], strides = [1, 1]} : vector<8x16xi32> to vector<8x1xi32>
    %432 = vector.broadcast %431 : vector<8x1xi32> to vector<8x30xi32>
    %433 = arith.cmpi eq, %85, %432 : vector<8x30xi32>
    %434 = vector.extract_strided_slice %407 {offsets = [0, 1], sizes = [8, 1], strides = [1, 1]} : vector<8x16xf32> to vector<8x1xf32>
    %cst_85 = arith.constant 0.000000e+00 : f32
    %435 = vector.shape_cast %434 : vector<8x1xf32> to vector<8x1xf32>
    %436 = vector.broadcast %435 : vector<8x1xf32> to vector<8x30xf32>
    %437 = vector.broadcast %cst_85 : f32 to vector<8x30xf32>
    %438 = arith.select %433, %436, %437 : vector<8x30xi1>, vector<8x30xf32>
    %439 = arith.addf %430, %438 : vector<8x30xf32>
    %440 = vector.extract_strided_slice %411 {offsets = [0, 1], sizes = [8, 1], strides = [1, 1]} : vector<8x16xi32> to vector<8x1xi32>
    %441 = vector.broadcast %440 : vector<8x1xi32> to vector<8x30xi32>
    %442 = arith.cmpi eq, %85, %441 : vector<8x30xi32>
    %443 = vector.extract_strided_slice %409 {offsets = [0, 1], sizes = [8, 1], strides = [1, 1]} : vector<8x16xf32> to vector<8x1xf32>
    %cst_86 = arith.constant 0.000000e+00 : f32
    %444 = vector.shape_cast %443 : vector<8x1xf32> to vector<8x1xf32>
    %445 = vector.broadcast %444 : vector<8x1xf32> to vector<8x30xf32>
    %446 = vector.broadcast %cst_86 : f32 to vector<8x30xf32>
    %447 = arith.select %442, %445, %446 : vector<8x30xi1>, vector<8x30xf32>
    %448 = arith.addf %439, %447 : vector<8x30xf32>
    %449 = vector.extract_strided_slice %410 {offsets = [0, 2], sizes = [8, 1], strides = [1, 1]} : vector<8x16xi32> to vector<8x1xi32>
    %450 = vector.broadcast %449 : vector<8x1xi32> to vector<8x30xi32>
    %451 = arith.cmpi eq, %85, %450 : vector<8x30xi32>
    %452 = vector.extract_strided_slice %407 {offsets = [0, 2], sizes = [8, 1], strides = [1, 1]} : vector<8x16xf32> to vector<8x1xf32>
    %cst_87 = arith.constant 0.000000e+00 : f32
    %453 = vector.shape_cast %452 : vector<8x1xf32> to vector<8x1xf32>
    %454 = vector.broadcast %453 : vector<8x1xf32> to vector<8x30xf32>
    %455 = vector.broadcast %cst_87 : f32 to vector<8x30xf32>
    %456 = arith.select %451, %454, %455 : vector<8x30xi1>, vector<8x30xf32>
    %457 = arith.addf %448, %456 : vector<8x30xf32>
    %458 = vector.extract_strided_slice %411 {offsets = [0, 2], sizes = [8, 1], strides = [1, 1]} : vector<8x16xi32> to vector<8x1xi32>
    %459 = vector.broadcast %458 : vector<8x1xi32> to vector<8x30xi32>
    %460 = arith.cmpi eq, %85, %459 : vector<8x30xi32>
    %461 = vector.extract_strided_slice %409 {offsets = [0, 2], sizes = [8, 1], strides = [1, 1]} : vector<8x16xf32> to vector<8x1xf32>
    %cst_88 = arith.constant 0.000000e+00 : f32
    %462 = vector.shape_cast %461 : vector<8x1xf32> to vector<8x1xf32>
    %463 = vector.broadcast %462 : vector<8x1xf32> to vector<8x30xf32>
    %464 = vector.broadcast %cst_88 : f32 to vector<8x30xf32>
    %465 = arith.select %460, %463, %464 : vector<8x30xi1>, vector<8x30xf32>
    %466 = arith.addf %457, %465 : vector<8x30xf32>
    %467 = vector.extract_strided_slice %410 {offsets = [0, 3], sizes = [8, 1], strides = [1, 1]} : vector<8x16xi32> to vector<8x1xi32>
    %468 = vector.broadcast %467 : vector<8x1xi32> to vector<8x30xi32>
    %469 = arith.cmpi eq, %85, %468 : vector<8x30xi32>
    %470 = vector.extract_strided_slice %407 {offsets = [0, 3], sizes = [8, 1], strides = [1, 1]} : vector<8x16xf32> to vector<8x1xf32>
    %cst_89 = arith.constant 0.000000e+00 : f32
    %471 = vector.shape_cast %470 : vector<8x1xf32> to vector<8x1xf32>
    %472 = vector.broadcast %471 : vector<8x1xf32> to vector<8x30xf32>
    %473 = vector.broadcast %cst_89 : f32 to vector<8x30xf32>
    %474 = arith.select %469, %472, %473 : vector<8x30xi1>, vector<8x30xf32>
    %475 = arith.addf %466, %474 : vector<8x30xf32>
    %476 = vector.extract_strided_slice %411 {offsets = [0, 3], sizes = [8, 1], strides = [1, 1]} : vector<8x16xi32> to vector<8x1xi32>
    %477 = vector.broadcast %476 : vector<8x1xi32> to vector<8x30xi32>
    %478 = arith.cmpi eq, %85, %477 : vector<8x30xi32>
    %479 = vector.extract_strided_slice %409 {offsets = [0, 3], sizes = [8, 1], strides = [1, 1]} : vector<8x16xf32> to vector<8x1xf32>
    %cst_90 = arith.constant 0.000000e+00 : f32
    %480 = vector.shape_cast %479 : vector<8x1xf32> to vector<8x1xf32>
    %481 = vector.broadcast %480 : vector<8x1xf32> to vector<8x30xf32>
    %482 = vector.broadcast %cst_90 : f32 to vector<8x30xf32>
    %483 = arith.select %478, %481, %482 : vector<8x30xi1>, vector<8x30xf32>
    %484 = arith.addf %475, %483 : vector<8x30xf32>
    %485 = vector.extract_strided_slice %410 {offsets = [0, 4], sizes = [8, 1], strides = [1, 1]} : vector<8x16xi32> to vector<8x1xi32>
    %486 = vector.broadcast %485 : vector<8x1xi32> to vector<8x30xi32>
    %487 = arith.cmpi eq, %85, %486 : vector<8x30xi32>
    %488 = vector.extract_strided_slice %407 {offsets = [0, 4], sizes = [8, 1], strides = [1, 1]} : vector<8x16xf32> to vector<8x1xf32>
    %cst_91 = arith.constant 0.000000e+00 : f32
    %489 = vector.shape_cast %488 : vector<8x1xf32> to vector<8x1xf32>
    %490 = vector.broadcast %489 : vector<8x1xf32> to vector<8x30xf32>
    %491 = vector.broadcast %cst_91 : f32 to vector<8x30xf32>
    %492 = arith.select %487, %490, %491 : vector<8x30xi1>, vector<8x30xf32>
    %493 = arith.addf %484, %492 : vector<8x30xf32>
    %494 = vector.extract_strided_slice %411 {offsets = [0, 4], sizes = [8, 1], strides = [1, 1]} : vector<8x16xi32> to vector<8x1xi32>
    %495 = vector.broadcast %494 : vector<8x1xi32> to vector<8x30xi32>
    %496 = arith.cmpi eq, %85, %495 : vector<8x30xi32>
    %497 = vector.extract_strided_slice %409 {offsets = [0, 4], sizes = [8, 1], strides = [1, 1]} : vector<8x16xf32> to vector<8x1xf32>
    %cst_92 = arith.constant 0.000000e+00 : f32
    %498 = vector.shape_cast %497 : vector<8x1xf32> to vector<8x1xf32>
    %499 = vector.broadcast %498 : vector<8x1xf32> to vector<8x30xf32>
    %500 = vector.broadcast %cst_92 : f32 to vector<8x30xf32>
    %501 = arith.select %496, %499, %500 : vector<8x30xi1>, vector<8x30xf32>
    %502 = arith.addf %493, %501 : vector<8x30xf32>
    %503 = vector.extract_strided_slice %410 {offsets = [0, 5], sizes = [8, 1], strides = [1, 1]} : vector<8x16xi32> to vector<8x1xi32>
    %504 = vector.broadcast %503 : vector<8x1xi32> to vector<8x30xi32>
    %505 = arith.cmpi eq, %85, %504 : vector<8x30xi32>
    %506 = vector.extract_strided_slice %407 {offsets = [0, 5], sizes = [8, 1], strides = [1, 1]} : vector<8x16xf32> to vector<8x1xf32>
    %cst_93 = arith.constant 0.000000e+00 : f32
    %507 = vector.shape_cast %506 : vector<8x1xf32> to vector<8x1xf32>
    %508 = vector.broadcast %507 : vector<8x1xf32> to vector<8x30xf32>
    %509 = vector.broadcast %cst_93 : f32 to vector<8x30xf32>
    %510 = arith.select %505, %508, %509 : vector<8x30xi1>, vector<8x30xf32>
    %511 = arith.addf %502, %510 : vector<8x30xf32>
    %512 = vector.extract_strided_slice %411 {offsets = [0, 5], sizes = [8, 1], strides = [1, 1]} : vector<8x16xi32> to vector<8x1xi32>
    %513 = vector.broadcast %512 : vector<8x1xi32> to vector<8x30xi32>
    %514 = arith.cmpi eq, %85, %513 : vector<8x30xi32>
    %515 = vector.extract_strided_slice %409 {offsets = [0, 5], sizes = [8, 1], strides = [1, 1]} : vector<8x16xf32> to vector<8x1xf32>
    %cst_94 = arith.constant 0.000000e+00 : f32
    %516 = vector.shape_cast %515 : vector<8x1xf32> to vector<8x1xf32>
    %517 = vector.broadcast %516 : vector<8x1xf32> to vector<8x30xf32>
    %518 = vector.broadcast %cst_94 : f32 to vector<8x30xf32>
    %519 = arith.select %514, %517, %518 : vector<8x30xi1>, vector<8x30xf32>
    %520 = arith.addf %511, %519 : vector<8x30xf32>
    %521 = vector.extract_strided_slice %410 {offsets = [0, 6], sizes = [8, 1], strides = [1, 1]} : vector<8x16xi32> to vector<8x1xi32>
    %522 = vector.broadcast %521 : vector<8x1xi32> to vector<8x30xi32>
    %523 = arith.cmpi eq, %85, %522 : vector<8x30xi32>
    %524 = vector.extract_strided_slice %407 {offsets = [0, 6], sizes = [8, 1], strides = [1, 1]} : vector<8x16xf32> to vector<8x1xf32>
    %cst_95 = arith.constant 0.000000e+00 : f32
    %525 = vector.shape_cast %524 : vector<8x1xf32> to vector<8x1xf32>
    %526 = vector.broadcast %525 : vector<8x1xf32> to vector<8x30xf32>
    %527 = vector.broadcast %cst_95 : f32 to vector<8x30xf32>
    %528 = arith.select %523, %526, %527 : vector<8x30xi1>, vector<8x30xf32>
    %529 = arith.addf %520, %528 : vector<8x30xf32>
    %530 = vector.extract_strided_slice %411 {offsets = [0, 6], sizes = [8, 1], strides = [1, 1]} : vector<8x16xi32> to vector<8x1xi32>
    %531 = vector.broadcast %530 : vector<8x1xi32> to vector<8x30xi32>
    %532 = arith.cmpi eq, %85, %531 : vector<8x30xi32>
    %533 = vector.extract_strided_slice %409 {offsets = [0, 6], sizes = [8, 1], strides = [1, 1]} : vector<8x16xf32> to vector<8x1xf32>
    %cst_96 = arith.constant 0.000000e+00 : f32
    %534 = vector.shape_cast %533 : vector<8x1xf32> to vector<8x1xf32>
    %535 = vector.broadcast %534 : vector<8x1xf32> to vector<8x30xf32>
    %536 = vector.broadcast %cst_96 : f32 to vector<8x30xf32>
    %537 = arith.select %532, %535, %536 : vector<8x30xi1>, vector<8x30xf32>
    %538 = arith.addf %529, %537 : vector<8x30xf32>
    %539 = vector.extract_strided_slice %410 {offsets = [0, 7], sizes = [8, 1], strides = [1, 1]} : vector<8x16xi32> to vector<8x1xi32>
    %540 = vector.broadcast %539 : vector<8x1xi32> to vector<8x30xi32>
    %541 = arith.cmpi eq, %85, %540 : vector<8x30xi32>
    %542 = vector.extract_strided_slice %407 {offsets = [0, 7], sizes = [8, 1], strides = [1, 1]} : vector<8x16xf32> to vector<8x1xf32>
    %cst_97 = arith.constant 0.000000e+00 : f32
    %543 = vector.shape_cast %542 : vector<8x1xf32> to vector<8x1xf32>
    %544 = vector.broadcast %543 : vector<8x1xf32> to vector<8x30xf32>
    %545 = vector.broadcast %cst_97 : f32 to vector<8x30xf32>
    %546 = arith.select %541, %544, %545 : vector<8x30xi1>, vector<8x30xf32>
    %547 = arith.addf %538, %546 : vector<8x30xf32>
    %548 = vector.extract_strided_slice %411 {offsets = [0, 7], sizes = [8, 1], strides = [1, 1]} : vector<8x16xi32> to vector<8x1xi32>
    %549 = vector.broadcast %548 : vector<8x1xi32> to vector<8x30xi32>
    %550 = arith.cmpi eq, %85, %549 : vector<8x30xi32>
    %551 = vector.extract_strided_slice %409 {offsets = [0, 7], sizes = [8, 1], strides = [1, 1]} : vector<8x16xf32> to vector<8x1xf32>
    %cst_98 = arith.constant 0.000000e+00 : f32
    %552 = vector.shape_cast %551 : vector<8x1xf32> to vector<8x1xf32>
    %553 = vector.broadcast %552 : vector<8x1xf32> to vector<8x30xf32>
    %554 = vector.broadcast %cst_98 : f32 to vector<8x30xf32>
    %555 = arith.select %550, %553, %554 : vector<8x30xi1>, vector<8x30xf32>
    %556 = arith.addf %547, %555 : vector<8x30xf32>
    %557 = vector.extract_strided_slice %410 {offsets = [0, 8], sizes = [8, 1], strides = [1, 1]} : vector<8x16xi32> to vector<8x1xi32>
    %558 = vector.broadcast %557 : vector<8x1xi32> to vector<8x30xi32>
    %559 = arith.cmpi eq, %85, %558 : vector<8x30xi32>
    %560 = vector.extract_strided_slice %407 {offsets = [0, 8], sizes = [8, 1], strides = [1, 1]} : vector<8x16xf32> to vector<8x1xf32>
    %cst_99 = arith.constant 0.000000e+00 : f32
    %561 = vector.shape_cast %560 : vector<8x1xf32> to vector<8x1xf32>
    %562 = vector.broadcast %561 : vector<8x1xf32> to vector<8x30xf32>
    %563 = vector.broadcast %cst_99 : f32 to vector<8x30xf32>
    %564 = arith.select %559, %562, %563 : vector<8x30xi1>, vector<8x30xf32>
    %565 = arith.addf %556, %564 : vector<8x30xf32>
    %566 = vector.extract_strided_slice %411 {offsets = [0, 8], sizes = [8, 1], strides = [1, 1]} : vector<8x16xi32> to vector<8x1xi32>
    %567 = vector.broadcast %566 : vector<8x1xi32> to vector<8x30xi32>
    %568 = arith.cmpi eq, %85, %567 : vector<8x30xi32>
    %569 = vector.extract_strided_slice %409 {offsets = [0, 8], sizes = [8, 1], strides = [1, 1]} : vector<8x16xf32> to vector<8x1xf32>
    %cst_100 = arith.constant 0.000000e+00 : f32
    %570 = vector.shape_cast %569 : vector<8x1xf32> to vector<8x1xf32>
    %571 = vector.broadcast %570 : vector<8x1xf32> to vector<8x30xf32>
    %572 = vector.broadcast %cst_100 : f32 to vector<8x30xf32>
    %573 = arith.select %568, %571, %572 : vector<8x30xi1>, vector<8x30xf32>
    %574 = arith.addf %565, %573 : vector<8x30xf32>
    %575 = vector.extract_strided_slice %410 {offsets = [0, 9], sizes = [8, 1], strides = [1, 1]} : vector<8x16xi32> to vector<8x1xi32>
    %576 = vector.broadcast %575 : vector<8x1xi32> to vector<8x30xi32>
    %577 = arith.cmpi eq, %85, %576 : vector<8x30xi32>
    %578 = vector.extract_strided_slice %407 {offsets = [0, 9], sizes = [8, 1], strides = [1, 1]} : vector<8x16xf32> to vector<8x1xf32>
    %cst_101 = arith.constant 0.000000e+00 : f32
    %579 = vector.shape_cast %578 : vector<8x1xf32> to vector<8x1xf32>
    %580 = vector.broadcast %579 : vector<8x1xf32> to vector<8x30xf32>
    %581 = vector.broadcast %cst_101 : f32 to vector<8x30xf32>
    %582 = arith.select %577, %580, %581 : vector<8x30xi1>, vector<8x30xf32>
    %583 = arith.addf %574, %582 : vector<8x30xf32>
    %584 = vector.extract_strided_slice %411 {offsets = [0, 9], sizes = [8, 1], strides = [1, 1]} : vector<8x16xi32> to vector<8x1xi32>
    %585 = vector.broadcast %584 : vector<8x1xi32> to vector<8x30xi32>
    %586 = arith.cmpi eq, %85, %585 : vector<8x30xi32>
    %587 = vector.extract_strided_slice %409 {offsets = [0, 9], sizes = [8, 1], strides = [1, 1]} : vector<8x16xf32> to vector<8x1xf32>
    %cst_102 = arith.constant 0.000000e+00 : f32
    %588 = vector.shape_cast %587 : vector<8x1xf32> to vector<8x1xf32>
    %589 = vector.broadcast %588 : vector<8x1xf32> to vector<8x30xf32>
    %590 = vector.broadcast %cst_102 : f32 to vector<8x30xf32>
    %591 = arith.select %586, %589, %590 : vector<8x30xi1>, vector<8x30xf32>
    %592 = arith.addf %583, %591 : vector<8x30xf32>
    %593 = vector.extract_strided_slice %410 {offsets = [0, 10], sizes = [8, 1], strides = [1, 1]} : vector<8x16xi32> to vector<8x1xi32>
    %594 = vector.broadcast %593 : vector<8x1xi32> to vector<8x30xi32>
    %595 = arith.cmpi eq, %85, %594 : vector<8x30xi32>
    %596 = vector.extract_strided_slice %407 {offsets = [0, 10], sizes = [8, 1], strides = [1, 1]} : vector<8x16xf32> to vector<8x1xf32>
    %cst_103 = arith.constant 0.000000e+00 : f32
    %597 = vector.shape_cast %596 : vector<8x1xf32> to vector<8x1xf32>
    %598 = vector.broadcast %597 : vector<8x1xf32> to vector<8x30xf32>
    %599 = vector.broadcast %cst_103 : f32 to vector<8x30xf32>
    %600 = arith.select %595, %598, %599 : vector<8x30xi1>, vector<8x30xf32>
    %601 = arith.addf %592, %600 : vector<8x30xf32>
    %602 = vector.extract_strided_slice %411 {offsets = [0, 10], sizes = [8, 1], strides = [1, 1]} : vector<8x16xi32> to vector<8x1xi32>
    %603 = vector.broadcast %602 : vector<8x1xi32> to vector<8x30xi32>
    %604 = arith.cmpi eq, %85, %603 : vector<8x30xi32>
    %605 = vector.extract_strided_slice %409 {offsets = [0, 10], sizes = [8, 1], strides = [1, 1]} : vector<8x16xf32> to vector<8x1xf32>
    %cst_104 = arith.constant 0.000000e+00 : f32
    %606 = vector.shape_cast %605 : vector<8x1xf32> to vector<8x1xf32>
    %607 = vector.broadcast %606 : vector<8x1xf32> to vector<8x30xf32>
    %608 = vector.broadcast %cst_104 : f32 to vector<8x30xf32>
    %609 = arith.select %604, %607, %608 : vector<8x30xi1>, vector<8x30xf32>
    %610 = arith.addf %601, %609 : vector<8x30xf32>
    %611 = vector.extract_strided_slice %410 {offsets = [0, 11], sizes = [8, 1], strides = [1, 1]} : vector<8x16xi32> to vector<8x1xi32>
    %612 = vector.broadcast %611 : vector<8x1xi32> to vector<8x30xi32>
    %613 = arith.cmpi eq, %85, %612 : vector<8x30xi32>
    %614 = vector.extract_strided_slice %407 {offsets = [0, 11], sizes = [8, 1], strides = [1, 1]} : vector<8x16xf32> to vector<8x1xf32>
    %cst_105 = arith.constant 0.000000e+00 : f32
    %615 = vector.shape_cast %614 : vector<8x1xf32> to vector<8x1xf32>
    %616 = vector.broadcast %615 : vector<8x1xf32> to vector<8x30xf32>
    %617 = vector.broadcast %cst_105 : f32 to vector<8x30xf32>
    %618 = arith.select %613, %616, %617 : vector<8x30xi1>, vector<8x30xf32>
    %619 = arith.addf %610, %618 : vector<8x30xf32>
    %620 = vector.extract_strided_slice %411 {offsets = [0, 11], sizes = [8, 1], strides = [1, 1]} : vector<8x16xi32> to vector<8x1xi32>
    %621 = vector.broadcast %620 : vector<8x1xi32> to vector<8x30xi32>
    %622 = arith.cmpi eq, %85, %621 : vector<8x30xi32>
    %623 = vector.extract_strided_slice %409 {offsets = [0, 11], sizes = [8, 1], strides = [1, 1]} : vector<8x16xf32> to vector<8x1xf32>
    %cst_106 = arith.constant 0.000000e+00 : f32
    %624 = vector.shape_cast %623 : vector<8x1xf32> to vector<8x1xf32>
    %625 = vector.broadcast %624 : vector<8x1xf32> to vector<8x30xf32>
    %626 = vector.broadcast %cst_106 : f32 to vector<8x30xf32>
    %627 = arith.select %622, %625, %626 : vector<8x30xi1>, vector<8x30xf32>
    %628 = arith.addf %619, %627 : vector<8x30xf32>
    %629 = vector.extract_strided_slice %410 {offsets = [0, 12], sizes = [8, 1], strides = [1, 1]} : vector<8x16xi32> to vector<8x1xi32>
    %630 = vector.broadcast %629 : vector<8x1xi32> to vector<8x30xi32>
    %631 = arith.cmpi eq, %85, %630 : vector<8x30xi32>
    %632 = vector.extract_strided_slice %407 {offsets = [0, 12], sizes = [8, 1], strides = [1, 1]} : vector<8x16xf32> to vector<8x1xf32>
    %cst_107 = arith.constant 0.000000e+00 : f32
    %633 = vector.shape_cast %632 : vector<8x1xf32> to vector<8x1xf32>
    %634 = vector.broadcast %633 : vector<8x1xf32> to vector<8x30xf32>
    %635 = vector.broadcast %cst_107 : f32 to vector<8x30xf32>
    %636 = arith.select %631, %634, %635 : vector<8x30xi1>, vector<8x30xf32>
    %637 = arith.addf %628, %636 : vector<8x30xf32>
    %638 = vector.extract_strided_slice %411 {offsets = [0, 12], sizes = [8, 1], strides = [1, 1]} : vector<8x16xi32> to vector<8x1xi32>
    %639 = vector.broadcast %638 : vector<8x1xi32> to vector<8x30xi32>
    %640 = arith.cmpi eq, %85, %639 : vector<8x30xi32>
    %641 = vector.extract_strided_slice %409 {offsets = [0, 12], sizes = [8, 1], strides = [1, 1]} : vector<8x16xf32> to vector<8x1xf32>
    %cst_108 = arith.constant 0.000000e+00 : f32
    %642 = vector.shape_cast %641 : vector<8x1xf32> to vector<8x1xf32>
    %643 = vector.broadcast %642 : vector<8x1xf32> to vector<8x30xf32>
    %644 = vector.broadcast %cst_108 : f32 to vector<8x30xf32>
    %645 = arith.select %640, %643, %644 : vector<8x30xi1>, vector<8x30xf32>
    %646 = arith.addf %637, %645 : vector<8x30xf32>
    %647 = vector.extract_strided_slice %410 {offsets = [0, 13], sizes = [8, 1], strides = [1, 1]} : vector<8x16xi32> to vector<8x1xi32>
    %648 = vector.broadcast %647 : vector<8x1xi32> to vector<8x30xi32>
    %649 = arith.cmpi eq, %85, %648 : vector<8x30xi32>
    %650 = vector.extract_strided_slice %407 {offsets = [0, 13], sizes = [8, 1], strides = [1, 1]} : vector<8x16xf32> to vector<8x1xf32>
    %cst_109 = arith.constant 0.000000e+00 : f32
    %651 = vector.shape_cast %650 : vector<8x1xf32> to vector<8x1xf32>
    %652 = vector.broadcast %651 : vector<8x1xf32> to vector<8x30xf32>
    %653 = vector.broadcast %cst_109 : f32 to vector<8x30xf32>
    %654 = arith.select %649, %652, %653 : vector<8x30xi1>, vector<8x30xf32>
    %655 = arith.addf %646, %654 : vector<8x30xf32>
    %656 = vector.extract_strided_slice %411 {offsets = [0, 13], sizes = [8, 1], strides = [1, 1]} : vector<8x16xi32> to vector<8x1xi32>
    %657 = vector.broadcast %656 : vector<8x1xi32> to vector<8x30xi32>
    %658 = arith.cmpi eq, %85, %657 : vector<8x30xi32>
    %659 = vector.extract_strided_slice %409 {offsets = [0, 13], sizes = [8, 1], strides = [1, 1]} : vector<8x16xf32> to vector<8x1xf32>
    %cst_110 = arith.constant 0.000000e+00 : f32
    %660 = vector.shape_cast %659 : vector<8x1xf32> to vector<8x1xf32>
    %661 = vector.broadcast %660 : vector<8x1xf32> to vector<8x30xf32>
    %662 = vector.broadcast %cst_110 : f32 to vector<8x30xf32>
    %663 = arith.select %658, %661, %662 : vector<8x30xi1>, vector<8x30xf32>
    %664 = arith.addf %655, %663 : vector<8x30xf32>
    %665 = vector.extract_strided_slice %410 {offsets = [0, 14], sizes = [8, 1], strides = [1, 1]} : vector<8x16xi32> to vector<8x1xi32>
    %666 = vector.broadcast %665 : vector<8x1xi32> to vector<8x30xi32>
    %667 = arith.cmpi eq, %85, %666 : vector<8x30xi32>
    %668 = vector.extract_strided_slice %407 {offsets = [0, 14], sizes = [8, 1], strides = [1, 1]} : vector<8x16xf32> to vector<8x1xf32>
    %cst_111 = arith.constant 0.000000e+00 : f32
    %669 = vector.shape_cast %668 : vector<8x1xf32> to vector<8x1xf32>
    %670 = vector.broadcast %669 : vector<8x1xf32> to vector<8x30xf32>
    %671 = vector.broadcast %cst_111 : f32 to vector<8x30xf32>
    %672 = arith.select %667, %670, %671 : vector<8x30xi1>, vector<8x30xf32>
    %673 = arith.addf %664, %672 : vector<8x30xf32>
    %674 = vector.extract_strided_slice %411 {offsets = [0, 14], sizes = [8, 1], strides = [1, 1]} : vector<8x16xi32> to vector<8x1xi32>
    %675 = vector.broadcast %674 : vector<8x1xi32> to vector<8x30xi32>
    %676 = arith.cmpi eq, %85, %675 : vector<8x30xi32>
    %677 = vector.extract_strided_slice %409 {offsets = [0, 14], sizes = [8, 1], strides = [1, 1]} : vector<8x16xf32> to vector<8x1xf32>
    %cst_112 = arith.constant 0.000000e+00 : f32
    %678 = vector.shape_cast %677 : vector<8x1xf32> to vector<8x1xf32>
    %679 = vector.broadcast %678 : vector<8x1xf32> to vector<8x30xf32>
    %680 = vector.broadcast %cst_112 : f32 to vector<8x30xf32>
    %681 = arith.select %676, %679, %680 : vector<8x30xi1>, vector<8x30xf32>
    %682 = arith.addf %673, %681 : vector<8x30xf32>
    %683 = vector.extract_strided_slice %410 {offsets = [0, 15], sizes = [8, 1], strides = [1, 1]} : vector<8x16xi32> to vector<8x1xi32>
    %684 = vector.broadcast %683 : vector<8x1xi32> to vector<8x30xi32>
    %685 = arith.cmpi eq, %85, %684 : vector<8x30xi32>
    %686 = vector.extract_strided_slice %407 {offsets = [0, 15], sizes = [8, 1], strides = [1, 1]} : vector<8x16xf32> to vector<8x1xf32>
    %cst_113 = arith.constant 0.000000e+00 : f32
    %687 = vector.shape_cast %686 : vector<8x1xf32> to vector<8x1xf32>
    %688 = vector.broadcast %687 : vector<8x1xf32> to vector<8x30xf32>
    %689 = vector.broadcast %cst_113 : f32 to vector<8x30xf32>
    %690 = arith.select %685, %688, %689 : vector<8x30xi1>, vector<8x30xf32>
    %691 = arith.addf %682, %690 : vector<8x30xf32>
    %692 = vector.extract_strided_slice %411 {offsets = [0, 15], sizes = [8, 1], strides = [1, 1]} : vector<8x16xi32> to vector<8x1xi32>
    %693 = vector.broadcast %692 : vector<8x1xi32> to vector<8x30xi32>
    %694 = arith.cmpi eq, %85, %693 : vector<8x30xi32>
    %695 = vector.extract_strided_slice %409 {offsets = [0, 15], sizes = [8, 1], strides = [1, 1]} : vector<8x16xf32> to vector<8x1xf32>
    %cst_114 = arith.constant 0.000000e+00 : f32
    %696 = vector.shape_cast %695 : vector<8x1xf32> to vector<8x1xf32>
    %697 = vector.broadcast %696 : vector<8x1xf32> to vector<8x30xf32>
    %698 = vector.broadcast %cst_114 : f32 to vector<8x30xf32>
    %699 = arith.select %694, %697, %698 : vector<8x30xi1>, vector<8x30xf32>
    %700 = arith.addf %691, %699 : vector<8x30xf32>
    %701 = arith.truncf %700 : vector<8x30xf32> to vector<8x30xbf16>
    %702 = vector.extract_strided_slice %15 {offsets = [0, 16], sizes = [30, 16], strides = [1, 1]} : vector<30x32xbf16> to vector<30x16xbf16>
    %cst_115 = arith.constant dense<0.000000e+00> : vector<8x16xf32>
    %703 = tpu.matmul %701, %702, %cst_115 {dimension_numbers = #tpu.dot_dimension_numbers<[1], [0], [0], [1], [0, 0, 1, 1], [], []>} : vector<8x30xbf16>, vector<30x16xbf16>, vector<8x16xf32> -> vector<8x16xf32>
    %704 = tpu.concatenate %394, %703 in 1 : vector<8x16xf32>, vector<8x16xf32> -> vector<8x32xf32>
    %705 = arith.truncf %704 : vector<8x32xf32> to vector<8x32xbf16>
    %c0_116 = arith.constant 0 : index
    %c0_117 = arith.constant 0 : index
    %706 = vector.load %arg13[%c0_116, %c0_117] : memref<32x32xf32, #tpu.memory_space<vmem>>, vector<32x32xf32>
    %707 = arith.truncf %706 : vector<32x32xf32> to vector<32x32xbf16>
    %cst_118 = arith.constant dense<0.000000e+00> : vector<8x32xf32>
    %708 = tpu.matmul %705, %707, %cst_118 {dimension_numbers = #tpu.dot_dimension_numbers<[1], [0], [0], [1], [0, 0, 1, 1], [], []>} : vector<8x32xbf16>, vector<32x32xbf16>, vector<8x32xf32> -> vector<8x32xf32>
    %c0_119 = arith.constant 0 : index
    %c0_120 = arith.constant 0 : index
    %709 = vector.load %arg14[%c0_119, %c0_120] : memref<1x32xf32, #tpu.memory_space<vmem>>, vector<1x32xf32>
    %710 = vector.broadcast %709 : vector<1x32xf32> to vector<8x32xf32>
    %711 = arith.addf %708, %710 : vector<8x32xf32>
    %712 = arith.addf %1, %711 : vector<8x32xf32>
    %cst_121 = arith.constant dense<0.000000e+00> : vector<8xf32>
    %713 = vector.multi_reduction <add>, %712, %cst_121 [1] : vector<8x32xf32> to vector<8xf32>
    %714 = vector.shape_cast %713 : vector<8xf32> to vector<8x1xf32>
    %cst_122 = arith.constant 3.200000e+01 : f32
    %715 = vector.broadcast %cst_122 : f32 to vector<8x1xf32>
    %716 = arith.divf %714, %715 : vector<8x1xf32>
    %717 = vector.broadcast %716 : vector<8x1xf32> to vector<8x32xf32>
    %718 = arith.subf %712, %717 : vector<8x32xf32>
    %719 = arith.mulf %718, %718 : vector<8x32xf32>
    %cst_123 = arith.constant dense<0.000000e+00> : vector<8xf32>
    %720 = vector.multi_reduction <add>, %719, %cst_123 [1] : vector<8x32xf32> to vector<8xf32>
    %721 = vector.shape_cast %720 : vector<8xf32> to vector<8x1xf32>
    %cst_124 = arith.constant 3.200000e+01 : f32
    %722 = vector.broadcast %cst_124 : f32 to vector<8x1xf32>
    %723 = arith.divf %721, %722 : vector<8x1xf32>
    %724 = vector.broadcast %716 : vector<8x1xf32> to vector<8x32xf32>
    %725 = arith.subf %712, %724 : vector<8x32xf32>
    %cst_125 = arith.constant 9.99999974E-6 : f32
    %726 = vector.broadcast %cst_125 : f32 to vector<8x1xf32>
    %727 = arith.addf %723, %726 : vector<8x1xf32>
    %728 = math.rsqrt %727 : vector<8x1xf32>
    %729 = vector.broadcast %728 : vector<8x1xf32> to vector<8x32xf32>
    %730 = arith.mulf %725, %729 : vector<8x32xf32>
    %c0_126 = arith.constant 0 : index
    %c0_127 = arith.constant 0 : index
    %731 = vector.load %arg15[%c0_126, %c0_127] : memref<1x32xf32, #tpu.memory_space<vmem>>, vector<1x32xf32>
    %732 = vector.broadcast %731 : vector<1x32xf32> to vector<8x32xf32>
    %733 = arith.mulf %730, %732 : vector<8x32xf32>
    %c0_128 = arith.constant 0 : index
    %c0_129 = arith.constant 0 : index
    %734 = vector.load %arg16[%c0_128, %c0_129] : memref<1x32xf32, #tpu.memory_space<vmem>>, vector<1x32xf32>
    %735 = vector.broadcast %734 : vector<1x32xf32> to vector<8x32xf32>
    %736 = arith.addf %733, %735 : vector<8x32xf32>
    %c0_130 = arith.constant 0 : index
    %c0_131 = arith.constant 0 : index
    %c0_132 = arith.constant 0 : index
    %737 = vector.load %arg17[%c0_130, %c0_131, %c0_132] : memref<1x8x32xf32, #tpu.memory_space<vmem>>, vector<1x8x32xf32>
    %738 = vector.shape_cast %737 : vector<1x8x32xf32> to vector<8x32xf32>
    %739 = vector.shape_cast %736 : vector<8x32xf32> to vector<1x8x32xf32>
    tpu.vector_store %arg17[%c0_130, %c0_131, %c0_132], %739 {strides = array<i32>} : memref<1x8x32xf32, #tpu.memory_space<vmem>>, vector<1x8x32xf32>,
    return
  }
  func.func @transform_0(%arg0: i32) -> (i32, i32, i32) {
    %c0_i32 = arith.constant 0 : i32
    %c0_i32_0 = arith.constant 0 : i32
    %c0_i32_1 = arith.constant 0 : i32
    return %arg0, %c0_i32, %c0_i32_0 : i32, i32, i32
  }
  func.func @transform_1(%arg0: i32) -> (i32, i32, i32) {
    %c0_i32 = arith.constant 0 : i32
    %c0_i32_0 = arith.constant 0 : i32
    %c0_i32_1 = arith.constant 0 : i32
    return %arg0, %c0_i32, %c0_i32_0 : i32, i32, i32
  }
  func.func @transform_2(%arg0: i32) -> (i32, i32, i32) {
    %c0_i32 = arith.constant 0 : i32
    %c0_i32_0 = arith.constant 0 : i32
    %c0_i32_1 = arith.constant 0 : i32
    return %arg0, %c0_i32, %c0_i32_0 : i32, i32, i32
  }
  func.func @transform_3(%arg0: i32) -> (i32, i32, i32) {
    %c0_i32 = arith.constant 0 : i32
    %c0_i32_0 = arith.constant 0 : i32
    %c0_i32_1 = arith.constant 0 : i32
    return %arg0, %c0_i32, %c0_i32_0 : i32, i32, i32
  }
  func.func @transform_4(%arg0: i32) -> (i32, i32) {
    %c0_i32 = arith.constant 0 : i32
    %c0_i32_0 = arith.constant 0 : i32
    %c0_i32_1 = arith.constant 0 : i32
    return %c0_i32, %c0_i32_0 : i32, i32
  }
  func.func @transform_5(%arg0: i32) -> (i32, i32) {
    %c0_i32 = arith.constant 0 : i32
    %c0_i32_0 = arith.constant 0 : i32
    %c0_i32_1 = arith.constant 0 : i32
    return %c0_i32, %c0_i32_0 : i32, i32
  }
  func.func @transform_6(%arg0: i32) -> (i32, i32) {
    %c0_i32 = arith.constant 0 : i32
    %c0_i32_0 = arith.constant 0 : i32
    %c0_i32_1 = arith.constant 0 : i32
    return %c0_i32, %c0_i32_0 : i32, i32
  }
  func.func @transform_7(%arg0: i32) -> (i32, i32) {
    %c0_i32 = arith.constant 0 : i32
    %c0_i32_0 = arith.constant 0 : i32
    %c0_i32_1 = arith.constant 0 : i32
    return %c0_i32, %c0_i32_0 : i32, i32
  }
  func.func @transform_8(%arg0: i32) -> (i32, i32, i32) {
    %c0_i32 = arith.constant 0 : i32
    %c0_i32_0 = arith.constant 0 : i32
    %c0_i32_1 = arith.constant 0 : i32
    return %arg0, %c0_i32, %c0_i32_0 : i32, i32, i32
  }
  func.func @transform_9(%arg0: i32) -> (i32, i32, i32) {
    %c0_i32 = arith.constant 0 : i32
    %c0_i32_0 = arith.constant 0 : i32
    %c0_i32_1 = arith.constant 0 : i32
    return %arg0, %c0_i32, %c0_i32_0 : i32, i32, i32
  }
  func.func @transform_10(%arg0: i32) -> (i32, i32) {
    %c0_i32 = arith.constant 0 : i32
    %c0_i32_0 = arith.constant 0 : i32
    %c0_i32_1 = arith.constant 0 : i32
    return %c0_i32, %c0_i32_0 : i32, i32
  }
  func.func @transform_11(%arg0: i32) -> (i32, i32) {
    %c0_i32 = arith.constant 0 : i32
    %c0_i32_0 = arith.constant 0 : i32
    %c0_i32_1 = arith.constant 0 : i32
    return %c0_i32, %c0_i32_0 : i32, i32
  }
  func.func @transform_12(%arg0: i32) -> (i32, i32) {
    %c0_i32 = arith.constant 0 : i32
    %c0_i32_0 = arith.constant 0 : i32
    %c0_i32_1 = arith.constant 0 : i32
    return %c0_i32, %c0_i32_0 : i32, i32
  }
  func.func @transform_13(%arg0: i32) -> (i32, i32) {
    %c0_i32 = arith.constant 0 : i32
    %c0_i32_0 = arith.constant 0 : i32
    %c0_i32_1 = arith.constant 0 : i32
    return %c0_i32, %c0_i32_0 : i32, i32
  }
  func.func @transform_14(%arg0: i32) -> (i32, i32) {
    %c0_i32 = arith.constant 0 : i32
    %c0_i32_0 = arith.constant 0 : i32
    %c0_i32_1 = arith.constant 0 : i32
    return %c0_i32, %c0_i32_0 : i32, i32
  }
  func.func @transform_15(%arg0: i32) -> (i32, i32) {
    %c0_i32 = arith.constant 0 : i32
    %c0_i32_0 = arith.constant 0 : i32
    %c0_i32_1 = arith.constant 0 : i32
    return %c0_i32, %c0_i32_0 : i32, i32
  }
  func.func @transform_16(%arg0: i32) -> (i32, i32, i32) {
    %c0_i32 = arith.constant 0 : i32
    %c0_i32_0 = arith.constant 0 : i32
    %c0_i32_1 = arith.constant 0 : i32
    return %arg0, %c0_i32, %c0_i32_0 : i32, i32, i32
  }
  func.func @transform_17(%arg0: i32) -> (i32, i32, i32) {
    %c0_i32 = arith.constant 0 : i32
    %c0_i32_0 = arith.constant 0 : i32
    %c0_i32_1 = arith.constant 0 : i32
    return %arg0, %c0_i32, %c0_i32_0 : i32, i32, i32
  }
}

</mosaic_0001>

<llo_original>
// kernel: decoder_forward.7
$region0: #{decoder_forward.7}
  #allocation0 [shape = 'u32[]', space=smem, size = 0x4, offset = 0x4, fixed_abs, tag = 'smem constant byte address 0x4 - core index']
  #allocation1 [shape = 'u32[144,128]{1,0:T(1,128)}', space=vmem, size = 0x12000, scoped, tag = 'internal scratch']
  %s0 = inlined_call_operand.vmem [shape: f32[16,64], index: 0, kind: input, shape index: {}]
  %s1 = inlined_call_operand.vmem [shape: f32[64,32], index: 1, kind: input, shape index: {}]
  %s2 = inlined_call_operand.vmem [shape: f32[1,32], index: 2, kind: input, shape index: {}]
  %s3 = inlined_call_operand.vmem [shape: f32[32,32], index: 3, kind: input, shape index: {}]
  %s4 = inlined_call_operand.vmem [shape: f32[1,32], index: 4, kind: input, shape index: {}]
  %s5 = inlined_call_operand.vmem [shape: f32[16,32], index: 5, kind: output, shape index: {}]
  %s6 = sld [smem:[#allocation0]]
  $region30: #{decoder_forward.7} parent=0
    _
  %s8 = ssub.s32 1, %s6
  %s9 = scalar_select 0, %s8, %s6
  // Predicated region
  $region2: #{decoder_forward.7} parent=0 // pred_check
    _
  $region3: #{decoder_forward.7} parent=0 // pred_check_branch
    %11 = sbr.rel (0) target = $region5
  $region4: #{decoder_forward.7} parent=0 // pred_region
    _
  $region5: #{decoder_forward.7} parent=0 // pred_fallthru
    _
  // Predicated region
  $region6: #{decoder_forward.7} parent=0 // pred_check
    _
  $region7: #{decoder_forward.7} parent=0 // pred_check_branch
    %13 = sbr.rel (0) target = $region9
  $region8: #{decoder_forward.7} parent=0 // pred_region
    _
  $region9: #{decoder_forward.7} parent=0 // pred_fallthru
    _
  // Predicated region
  $region10: #{decoder_forward.7} parent=0 // pred_check
    _
  $region11: #{decoder_forward.7} parent=0 // pred_check_branch
    %15 = sbr.rel (0) target = $region13
  $region12: #{decoder_forward.7} parent=0 // pred_region
    _
  $region13: #{decoder_forward.7} parent=0 // pred_fallthru
    _
  // Predicated region
  $region14: #{decoder_forward.7} parent=0 // pred_check
    _
  $region15: #{decoder_forward.7} parent=0 // pred_check_branch
    %17 = sbr.rel (0) target = $region17
  $region16: #{decoder_forward.7} parent=0 // pred_region
    _
  $region17: #{decoder_forward.7} parent=0 // pred_fallthru
    _
  // Predicated region
  $region18: #{decoder_forward.7} parent=0 // pred_check
    _
  $region19: #{decoder_forward.7} parent=0 // pred_check_branch
    %19 = sbr.rel (0) target = $region21
  $region20: #{decoder_forward.7} parent=0 // pred_region
    _
  $region21: #{decoder_forward.7} parent=0 // pred_fallthru
    _
  %v21 = vld [vmem:[%s0] sm:$0xff]
  %v22 = vld [vmem:[%s0 + $0x8] sm:$0xff]
  %v23 = vpack.c.bf16 %v22, %v21
  %v24 = vld [vmem:[%s1] sm:$0xff]
  %v25 = vld [vmem:[%s1 + $0x8] sm:$0xff]
  %v26 = vld [vmem:[%s1 + $0x10] sm:$0xff]
  %v27 = vld [vmem:[%s1 + $0x18] sm:$0xff]
  %v28 = vld [vmem:[%s1 + $0x20] sm:$0xff]
  %v29 = vld [vmem:[%s1 + $0x28] sm:$0xff]
  %v30 = vld [vmem:[%s1 + $0x30] sm:$0xff]
  %v31 = vld [vmem:[%s1 + $0x38] sm:$0xff]
  %v32 = vpack.c.bf16 %v25, %v24
  %v33 = vpack.c.bf16 %v27, %v26
  %v34 = vpack.c.bf16 %v29, %v28
  %v35 = vpack.c.bf16 %v31, %v30
  %v36 = vld [vmem:[%s2] sm:$0x1]
  %v38 = vlaneseq
  %v39 = vshrl.u32 %v38, 7
  %v40 = vsub.s32 0, %v39
  %v41 = vrot.slane %v36, %v40
  %vm43 = vcmask 523264
  %v45 = vsel %vm43, %v23, 0
  %47 = vmatprep.subr.bf16.mxu0 0
  %48 = vmatpush1.bf16.msra.mxu0 %v32
  %49 = vmatprep.subr.bf16.mxu0 0
  %50 = vmatpush1.bf16.msra.mxu0 %v33
  %51 = vmatprep.subr.bf16.mxu0 0
  %52 = vmatpush1.bf16.msra.mxu0 %v34
  %53 = vmatprep.subr.bf16.mxu0 0
  %54 = vmatpush1.bf16.msra.mxu0 %v35
  %55 = vmatprep.subr.bf16.mxu0 0
  %56 = vmatpush1.bf16.msra.mxu0 0
  %57 = vmatprep.subr.bf16.mxu0 0
  %58 = vmatpush1.bf16.msra.mxu0 0
  %59 = vmatprep.subr.bf16.mxu0 0
  %60 = vmatpush1.bf16.msra.mxu0 0
  %61 = vmatprep.subr.bf16.mxu0 0
  %62 = vmatpush1.bf16.msra.mxu0 0
  %63 = vmatprep.subr.bf16.mxu0 0
  %64 = vmatpush1.bf16.msra.mxu0 0
  %65 = vmatprep.subr.bf16.mxu0 0
  %66 = vmatpush1.bf16.msra.mxu0 0
  %67 = vmatprep.subr.bf16.mxu0 0
  %68 = vmatpush1.bf16.msra.mxu0 0
  %69 = vmatprep.subr.bf16.mxu0 0
  %70 = vmatpush1.bf16.msra.mxu0 0
  %71 = vmatprep.subr.bf16.mxu0 0
  %72 = vmatpush1.bf16.msra.mxu0 0
  %73 = vmatprep.subr.bf16.mxu0 0
  %74 = vmatpush1.bf16.msra.mxu0 0
  %75 = vmatprep.subr.bf16.mxu0 0
  %76 = vmatpush1.bf16.msra.mxu0 0
  %77 = vmatprep.subr.bf16.mxu0 0
  %78 = vmatpush1.bf16.msra.mxu0 0
  %79 = vmatprep.mubr.bf16.mxu0 0
  %80 = vmatmul.mubr.bf16.gmra.mrb[0].mxu0 %v45
  %v81 = vpop.f32.mrb[0].mxu0
  %v82 = vadd.f32 %v41, %v81
  %v83 = vpop.f32.mrb[0].mxu0
  %v84 = vpop.f32.mrb[0].mxu0
  %v85 = vadd.f32 %v41, %v84
  %v86 = vpop.f32.mrb[0].mxu0
  %87 = vdwg.mxu0
  %v88 = vmax.f32 %v82, 0.0
  %v89 = vmax.f32 %v85, 0.0
  %v90 = vpack.c.bf16 %v89, %v88
  %v91 = vld [vmem:[%s3] sm:$0xff]
  %v92 = vld [vmem:[%s3 + $0x8] sm:$0xff]
  %v93 = vld [vmem:[%s3 + $0x10] sm:$0xff]
  %v94 = vld [vmem:[%s3 + $0x18] sm:$0xff]
  %v95 = vpack.c.bf16 %v92, %v91
  %v96 = vpack.c.bf16 %v94, %v93
  %v97 = vld [vmem:[%s4] sm:$0x1]
  %v99 = vlaneseq
  %v100 = vshrl.u32 %v99, 7
  %v101 = vsub.s32 0, %v100
  %v102 = vrot.slane %v97, %v101
  %vm104 = vcmask 261120
  %v106 = vsel %vm104, %v90, 0
  %108 = vmatprep.subr.bf16.mxu0 0
  %109 = vmatpush1.bf16.msra.mxu0 %v95
  %110 = vmatprep.subr.bf16.mxu0 0
  %111 = vmatpush1.bf16.msra.mxu0 %v96
  %112 = vmatprep.subr.bf16.mxu0 0
  %113 = vmatpush1.bf16.msra.mxu0 0
  %114 = vmatprep.subr.bf16.mxu0 0
  %115 = vmatpush1.bf16.msra.mxu0 0
  %116 = vmatprep.subr.bf16.mxu0 0
  %117 = vmatpush1.bf16.msra.mxu0 0
  %118 = vmatprep.subr.bf16.mxu0 0
  %119 = vmatpush1.bf16.msra.mxu0 0
  %120 = vmatprep.subr.bf16.mxu0 0
  %121 = vmatpush1.bf16.msra.mxu0 0
  %122 = vmatprep.subr.bf16.mxu0 0
  %123 = vmatpush1.bf16.msra.mxu0 0
  %124 = vmatprep.subr.bf16.mxu0 0
  %125 = vmatpush1.bf16.msra.mxu0 0
  %126 = vmatprep.subr.bf16.mxu0 0
  %127 = vmatpush1.bf16.msra.mxu0 0
  %128 = vmatprep.subr.bf16.mxu0 0
  %129 = vmatpush1.bf16.msra.mxu0 0
  %130 = vmatprep.subr.bf16.mxu0 0
  %131 = vmatpush1.bf16.msra.mxu0 0
  %132 = vmatprep.subr.bf16.mxu0 0
  %133 = vmatpush1.bf16.msra.mxu0 0
  %134 = vmatprep.subr.bf16.mxu0 0
  %135 = vmatpush1.bf16.msra.mxu0 0
  %136 = vmatprep.subr.bf16.mxu0 0
  %137 = vmatpush1.bf16.msra.mxu0 0
  %138 = vmatprep.subr.bf16.mxu0 0
  %139 = vmatpush1.bf16.msra.mxu0 0
  %140 = vmatprep.mubr.bf16.mxu0 0
  %141 = vmatmul.mubr.bf16.gmra.mrb[0].mxu0 %v106
  %v142 = vpop.f32.mrb[0].mxu0
  %v143 = vadd.f32 %v102, %v142
  %v144 = vpop.f32.mrb[0].mxu0
  %v145 = vpop.f32.mrb[0].mxu0
  %v146 = vadd.f32 %v102, %v145
  %v147 = vpop.f32.mrb[0].mxu0
  %148 = vdwg.mxu0
  %149 = vst.msk [vmem:[%s5] sm:$0xff] %vm104, %v143
  %150 = vst.msk [vmem:[%s5 + $0x8] sm:$0xff] %vm104, %v146
  // Predicated region
  $region22: #{decoder_forward.7} parent=0 // pred_check
    _
  $region23: #{decoder_forward.7} parent=0 // pred_check_branch
    %152 = sbr.rel (0) target = $region25
  $region24: #{decoder_forward.7} parent=0 // pred_region
    _
  $region25: #{decoder_forward.7} parent=0 // pred_fallthru
    _
  // Predicated region
  $region26: #{decoder_forward.7} parent=0 // pred_check
    _
  $region27: #{decoder_forward.7} parent=0 // pred_check_branch
    %154 = sbr.rel (0) target = $region29
  $region28: #{decoder_forward.7} parent=0 // pred_region
    _
  $region29: #{decoder_forward.7} parent=0 // pred_fallthru
    _

// kernel: decoder_forward.10
$region0: #{decoder_forward.10}
  #allocation0 [shape = 'u32[]', space=smem, size = 0x4, offset = 0x4, fixed_abs, tag = 'smem constant byte address 0x4 - core index']
  #allocation1 [shape = 'u32[144,128]{1,0:T(1,128)}', space=vmem, size = 0x12000, scoped, tag = 'internal scratch']
  %s0 = inlined_call_operand.vmem [shape: f32[16,32], index: 0, kind: input, shape index: {}]
  %s1 = inlined_call_operand.vmem [shape: f32[32,64], index: 1, kind: input, shape index: {}]
  %s2 = inlined_call_operand.vmem [shape: f32[1,64], index: 2, kind: input, shape index: {}]
  %s3 = inlined_call_operand.vmem [shape: f32[64,32], index: 3, kind: input, shape index: {}]
  %s4 = inlined_call_operand.vmem [shape: f32[1,32], index: 4, kind: input, shape index: {}]
  %s5 = inlined_call_operand.vmem [shape: f32[1,32], index: 5, kind: input, shape index: {}]
  %s6 = inlined_call_operand.vmem [shape: f32[1,32], index: 6, kind: input, shape index: {}]
  %s7 = inlined_call_operand.vmem [shape: f32[16,32], index: 7, kind: output, shape index: {}]
  %s8 = sld [smem:[#allocation0]]
  $region38: #{decoder_forward.10} parent=0
    _
  %s10 = ssub.s32 1, %s8
  %s11 = scalar_select 0, %s10, %s8
  // Predicated region
  $region2: #{decoder_forward.10} parent=0 // pred_check
    _
  $region3: #{decoder_forward.10} parent=0 // pred_check_branch
    %13 = sbr.rel (0) target = $region5
  $region4: #{decoder_forward.10} parent=0 // pred_region
    _
  $region5: #{decoder_forward.10} parent=0 // pred_fallthru
    _
  // Predicated region
  $region6: #{decoder_forward.10} parent=0 // pred_check
    _
  $region7: #{decoder_forward.10} parent=0 // pred_check_branch
    %15 = sbr.rel (0) target = $region9
  $region8: #{decoder_forward.10} parent=0 // pred_region
    _
  $region9: #{decoder_forward.10} parent=0 // pred_fallthru
    _
  // Predicated region
  $region10: #{decoder_forward.10} parent=0 // pred_check
    _
  $region11: #{decoder_forward.10} parent=0 // pred_check_branch
    %17 = sbr.rel (0) target = $region13
  $region12: #{decoder_forward.10} parent=0 // pred_region
    _
  $region13: #{decoder_forward.10} parent=0 // pred_fallthru
    _
  // Predicated region
  $region14: #{decoder_forward.10} parent=0 // pred_check
    _
  $region15: #{decoder_forward.10} parent=0 // pred_check_branch
    %19 = sbr.rel (0) target = $region17
  $region16: #{decoder_forward.10} parent=0 // pred_region
    _
  $region17: #{decoder_forward.10} parent=0 // pred_fallthru
    _
  // Predicated region
  $region18: #{decoder_forward.10} parent=0 // pred_check
    _
  $region19: #{decoder_forward.10} parent=0 // pred_check_branch
    %21 = sbr.rel (0) target = $region21
  $region20: #{decoder_forward.10} parent=0 // pred_region
    _
  $region21: #{decoder_forward.10} parent=0 // pred_fallthru
    _
  // Predicated region
  $region22: #{decoder_forward.10} parent=0 // pred_check
    _
  $region23: #{decoder_forward.10} parent=0 // pred_check_branch
    %23 = sbr.rel (0) target = $region25
  $region24: #{decoder_forward.10} parent=0 // pred_region
    _
  $region25: #{decoder_forward.10} parent=0 // pred_fallthru
    _
  // Predicated region
  $region26: #{decoder_forward.10} parent=0 // pred_check
    _
  $region27: #{decoder_forward.10} parent=0 // pred_check_branch
    %25 = sbr.rel (0) target = $region29
  $region28: #{decoder_forward.10} parent=0 // pred_region
    _
  $region29: #{decoder_forward.10} parent=0 // pred_fallthru
    _
  %v27 = vld [vmem:[%s0] sm:$0xff]
  %v28 = vld [vmem:[%s0 + $0x8] sm:$0xff]
  %v29 = vpack.c.bf16 %v28, %v27
  %v30 = vld [vmem:[%s1] sm:$0xff]
  %v31 = vld [vmem:[%s1 + $0x8] sm:$0xff]
  %v32 = vld [vmem:[%s1 + $0x10] sm:$0xff]
  %v33 = vld [vmem:[%s1 + $0x18] sm:$0xff]
  %v34 = vpack.c.bf16 %v31, %v30
  %v35 = vpack.c.bf16 %v33, %v32
  %v36 = vld [vmem:[%s2] sm:$0x1]
  %v38 = vlaneseq
  %v39 = vshrl.u32 %v38, 7
  %v40 = vsub.s32 0, %v39
  %v41 = vrot.slane %v36, %v40
  %vm43 = vcmask 261120
  %v45 = vsel %vm43, %v29, 0
  %47 = vmatprep.subr.bf16.mxu0 0
  %48 = vmatpush1.bf16.msra.mxu0 %v34
  %49 = vmatprep.subr.bf16.mxu0 0
  %50 = vmatpush1.bf16.msra.mxu0 %v35
  %51 = vmatprep.subr.bf16.mxu0 0
  %52 = vmatpush1.bf16.msra.mxu0 0
  %53 = vmatprep.subr.bf16.mxu0 0
  %54 = vmatpush1.bf16.msra.mxu0 0
  %55 = vmatprep.subr.bf16.mxu0 0
  %56 = vmatpush1.bf16.msra.mxu0 0
  %57 = vmatprep.subr.bf16.mxu0 0
  %58 = vmatpush1.bf16.msra.mxu0 0
  %59 = vmatprep.subr.bf16.mxu0 0
  %60 = vmatpush1.bf16.msra.mxu0 0
  %61 = vmatprep.subr.bf16.mxu0 0
  %62 = vmatpush1.bf16.msra.mxu0 0
  %63 = vmatprep.subr.bf16.mxu0 0
  %64 = vmatpush1.bf16.msra.mxu0 0
  %65 = vmatprep.subr.bf16.mxu0 0
  %66 = vmatpush1.bf16.msra.mxu0 0
  %67 = vmatprep.subr.bf16.mxu0 0
  %68 = vmatpush1.bf16.msra.mxu0 0
  %69 = vmatprep.subr.bf16.mxu0 0
  %70 = vmatpush1.bf16.msra.mxu0 0
  %71 = vmatprep.subr.bf16.mxu0 0
  %72 = vmatpush1.bf16.msra.mxu0 0
  %73 = vmatprep.subr.bf16.mxu0 0
  %74 = vmatpush1.bf16.msra.mxu0 0
  %75 = vmatprep.subr.bf16.mxu0 0
  %76 = vmatpush1.bf16.msra.mxu0 0
  %77 = vmatprep.subr.bf16.mxu0 0
  %78 = vmatpush1.bf16.msra.mxu0 0
  %79 = vmatprep.mubr.bf16.mxu0 0
  %80 = vmatmul.mubr.bf16.gmra.mrb[0].mxu0 %v45
  %v81 = vpop.f32.mrb[0].mxu0
  %v82 = vadd.f32 %v41, %v81
  %v83 = vpop.f32.mrb[0].mxu0
  %v84 = vpop.f32.mrb[0].mxu0
  %v85 = vadd.f32 %v41, %v84
  %v86 = vpop.f32.mrb[0].mxu0
  %87 = vdwg.mxu0
  %v88 = vmax.f32 %v82, 0.0
  %v89 = vmax.f32 %v85, 0.0
  %v90 = vpack.c.bf16 %v89, %v88
  %v91 = vld [vmem:[%s3] sm:$0xff]
  %v92 = vld [vmem:[%s3 + $0x8] sm:$0xff]
  %v93 = vld [vmem:[%s3 + $0x10] sm:$0xff]
  %v94 = vld [vmem:[%s3 + $0x18] sm:$0xff]
  %v95 = vld [vmem:[%s3 + $0x20] sm:$0xff]
  %v96 = vld [vmem:[%s3 + $0x28] sm:$0xff]
  %v97 = vld [vmem:[%s3 + $0x30] sm:$0xff]
  %v98 = vld [vmem:[%s3 + $0x38] sm:$0xff]
  %v99 = vpack.c.bf16 %v92, %v91
  %v100 = vpack.c.bf16 %v94, %v93
  %v101 = vpack.c.bf16 %v96, %v95
  %v102 = vpack.c.bf16 %v98, %v97
  %v103 = vld [vmem:[%s4] sm:$0x1]
  %v105 = vlaneseq
  %v106 = vshrl.u32 %v105, 7
  %v107 = vsub.s32 0, %v106
  %v108 = vrot.slane %v103, %v107
  %vm110 = vcmask 523264
  %v112 = vsel %vm110, %v90, 0
  %114 = vmatprep.subr.bf16.mxu0 0
  %115 = vmatpush1.bf16.msra.mxu0 %v99
  %116 = vmatprep.subr.bf16.mxu0 0
  %117 = vmatpush1.bf16.msra.mxu0 %v100
  %118 = vmatprep.subr.bf16.mxu0 0
  %119 = vmatpush1.bf16.msra.mxu0 %v101
  %120 = vmatprep.subr.bf16.mxu0 0
  %121 = vmatpush1.bf16.msra.mxu0 %v102
  %122 = vmatprep.subr.bf16.mxu0 0
  %123 = vmatpush1.bf16.msra.mxu0 0
  %124 = vmatprep.subr.bf16.mxu0 0
  %125 = vmatpush1.bf16.msra.mxu0 0
  %126 = vmatprep.subr.bf16.mxu0 0
  %127 = vmatpush1.bf16.msra.mxu0 0
  %128 = vmatprep.subr.bf16.mxu0 0
  %129 = vmatpush1.bf16.msra.mxu0 0
  %130 = vmatprep.subr.bf16.mxu0 0
  %131 = vmatpush1.bf16.msra.mxu0 0
  %132 = vmatprep.subr.bf16.mxu0 0
  %133 = vmatpush1.bf16.msra.mxu0 0
  %134 = vmatprep.subr.bf16.mxu0 0
  %135 = vmatpush1.bf16.msra.mxu0 0
  %136 = vmatprep.subr.bf16.mxu0 0
  %137 = vmatpush1.bf16.msra.mxu0 0
  %138 = vmatprep.subr.bf16.mxu0 0
  %139 = vmatpush1.bf16.msra.mxu0 0
  %140 = vmatprep.subr.bf16.mxu0 0
  %141 = vmatpush1.bf16.msra.mxu0 0
  %142 = vmatprep.subr.bf16.mxu0 0
  %143 = vmatpush1.bf16.msra.mxu0 0
  %144 = vmatprep.subr.bf16.mxu0 0
  %145 = vmatpush1.bf16.msra.mxu0 0
  %146 = vmatprep.mubr.bf16.mxu0 0
  %147 = vmatmul.mubr.bf16.gmra.mrb[0].mxu0 %v112
  %v148 = vpop.f32.mrb[0].mxu0
  %v149 = vadd.f32 %v108, %v148
  %v150 = vpop.f32.mrb[0].mxu0
  %v151 = vpop.f32.mrb[0].mxu0
  %v152 = vadd.f32 %v108, %v151
  %v153 = vpop.f32.mrb[0].mxu0
  %154 = vdwg.mxu0
  %v155 = vadd.f32 %v27, %v149
  %v156 = vadd.f32 %v28, %v152
  %v157 = vsel %vm43, %v155, 0.0
  %158 = vadd.xlane.f32.xlu0 %v157
  %v159 = vpop.xlane.xlu0 %158
  %v160 = vsel %vm43, %v156, 0.0
  %161 = vadd.xlane.f32.xlu0 %v160
  %v162 = vpop.xlane.xlu0 %161
  %v163 = vrcp.pop 32.0
  %v164 = vmul.f32 %v159, %v163
  %v165 = vmul.f32 %v162, %v163
  %v166 = vsub.f32 %v155, %v164
  %v167 = vsub.f32 %v156, %v165
  %v168 = vmul.f32 %v166, %v166
  %v169 = vmul.f32 %v167, %v167
  %v170 = vsel %vm43, %v168, 0.0
  %171 = vadd.xlane.f32.xlu0 %v170
  %v172 = vpop.xlane.xlu0 %171
  %v173 = vsel %vm43, %v169, 0.0
  %174 = vadd.xlane.f32.xlu0 %v173
  %v175 = vpop.xlane.xlu0 %174
  %v176 = vmul.f32 %v172, %v163
  %v177 = vmul.f32 %v175, %v163
  %v178 = vadd.f32 %v176, 1e-05
  %v179 = vadd.f32 %v177, 1e-05
  %v180 = vrsqrt.pop %v178
  %v181 = vrsqrt.pop %v179
  %v182 = vmul.f32 %v166, %v180
  %v183 = vmul.f32 %v167, %v181
  %v184 = vld [vmem:[%s5] sm:$0x1]
  %v186 = vlaneseq
  %v187 = vshrl.u32 %v186, 7
  %v188 = vsub.s32 0, %v187
  %v189 = vrot.slane %v184, %v188
  %v191 = vmul.f32 %v182, %v189
  %v192 = vmul.f32 %v183, %v189
  %v193 = vld [vmem:[%s6] sm:$0x1]
  %v195 = vlaneseq
  %v196 = vshrl.u32 %v195, 7
  %v197 = vsub.s32 0, %v196
  %v198 = vrot.slane %v193, %v197
  %v200 = vadd.f32 %v191, %v198
  %v201 = vadd.f32 %v192, %v198
  %202 = vst.msk [vmem:[%s7] sm:$0xff] %vm43, %v200
  %203 = vst.msk [vmem:[%s7 + $0x8] sm:$0xff] %vm43, %v201
  // Predicated region
  $region30: #{decoder_forward.10} parent=0 // pred_check
    _
  $region31: #{decoder_forward.10} parent=0 // pred_check_branch
    %205 = sbr.rel (0) target = $region33
  $region32: #{decoder_forward.10} parent=0 // pred_region
    _
  $region33: #{decoder_forward.10} parent=0 // pred_fallthru
    _
  // Predicated region
  $region34: #{decoder_forward.10} parent=0 // pred_check
    _
  $region35: #{decoder_forward.10} parent=0 // pred_check_branch
    %207 = sbr.rel (0) target = $region37
  $region36: #{decoder_forward.10} parent=0 // pred_region
    _
  $region37: #{decoder_forward.10} parent=0 // pred_fallthru
    _

// kernel: decoder_forward.8
$region0: #{decoder_forward.8}
  #allocation0 [shape = 'u32[]', space=smem, size = 0x4, offset = 0x4, fixed_abs, tag = 'smem constant byte address 0x4 - core index']
  #allocation1 [shape = 'u32[144,128]{1,0:T(1,128)}', space=vmem, size = 0x12000, scoped, tag = 'internal scratch']
  %s0 = inlined_call_operand.vmem [shape: f32[2,8,32], index: 0, kind: input, shape index: {}]
  %s1 = inlined_call_operand.vmem [shape: f32[2,8,32], index: 1, kind: input, shape index: {}]
  %s2 = inlined_call_operand.vmem [shape: f32[32,32], index: 2, kind: input, shape index: {}]
  %s3 = inlined_call_operand.vmem [shape: f32[1,32], index: 3, kind: input, shape index: {}]
  %s4 = inlined_call_operand.vmem [shape: f32[32,32], index: 4, kind: input, shape index: {}]
  %s5 = inlined_call_operand.vmem [shape: f32[1,32], index: 5, kind: input, shape index: {}]
  %s6 = inlined_call_operand.vmem [shape: f32[32,64], index: 6, kind: input, shape index: {}]
  %s7 = inlined_call_operand.vmem [shape: f32[1,64], index: 7, kind: input, shape index: {}]
  %s8 = inlined_call_operand.vmem [shape: f32[32,32], index: 8, kind: input, shape index: {}]
  %s9 = inlined_call_operand.vmem [shape: f32[1,32], index: 9, kind: input, shape index: {}]
  %s10 = inlined_call_operand.vmem [shape: f32[32,32], index: 10, kind: input, shape index: {}]
  %s11 = inlined_call_operand.vmem [shape: f32[1,32], index: 11, kind: input, shape index: {}]
  %s12 = inlined_call_operand.vmem [shape: f32[1,32], index: 12, kind: input, shape index: {}]
  %s13 = inlined_call_operand.vmem [shape: f32[1,32], index: 13, kind: input, shape index: {}]
  %s14 = inlined_call_operand.vmem [shape: f32[2,8,32], index: 14, kind: output, shape index: {0}]
  %s15 = inlined_call_operand.vmem [shape: f32[2,8,32], index: 15, kind: output, shape index: {1}]
  %16 = xla_tuple %s14, %s15
  %s17 = sld [smem:[#allocation0]]
  $region97: #{decoder_forward.8} parent=0
    _
  %s19 = ssub.s32 1, %s17
  %s20 = scalar_select 0, %s19, %s17
  loop: start=0, step=1, limit=4
  $region2: #{decoder_forward.8} parent=0 // loop_pre_header
    _
  $region3: #{decoder_forward.8} parent=0 // loop_header
    %s22 = sphi 0, %s26
    %p23 = scmp.ge.s32.totalorder %s22, 4
    %s32 = sphi 0, %s34
    %s35 = sphi 0, %s32
    %s36 = sphi 0, %s35
    %s52 = sphi 0, %s36
    %s58 = sphi 0, %s60
    %s61 = sphi 0, %s58
    %s62 = sphi 0, %s61
    %s78 = sphi 0, %s62
    %s82 = sphi 0, %s82
    %s84 = sphi 0, %s82
    %s85 = sphi 0, %s84
    %s99 = sphi 0, %s85
    %s103 = sphi 0, %s103
    %s105 = sphi 0, %s103
    %s106 = sphi 0, %s105
    %s120 = sphi 0, %s106
    %s124 = sphi 0, %s124
    %s126 = sphi 0, %s124
    %s127 = sphi 0, %s126
    %s141 = sphi 0, %s127
    %s145 = sphi 0, %s145
    %s147 = sphi 0, %s145
    %s148 = sphi 0, %s147
    %s162 = sphi 0, %s148
    %s166 = sphi 0, %s166
    %s168 = sphi 0, %s166
    %s169 = sphi 0, %s168
    %s183 = sphi 0, %s169
    %s187 = sphi 0, %s187
    %s189 = sphi 0, %s187
    %s190 = sphi 0, %s189
    %s204 = sphi 0, %s190
    %s208 = sphi 0, %s208
    %s210 = sphi 0, %s208
    %s211 = sphi 0, %s210
    %s225 = sphi 0, %s211
    %s229 = sphi 0, %s229
    %s231 = sphi 0, %s229
    %s232 = sphi 0, %s231
    %s246 = sphi 0, %s232
    %s250 = sphi 0, %s250
    %s252 = sphi 0, %s250
    %s253 = sphi 0, %s252
    %s267 = sphi 0, %s253
    %s271 = sphi 0, %s271
    %s273 = sphi 0, %s271
    %s274 = sphi 0, %s273
    %s288 = sphi 0, %s274
    %s292 = sphi 0, %s292
    %s294 = sphi 0, %s292
    %s295 = sphi 0, %s294
    %s309 = sphi 0, %s295
    %s313 = sphi 0, %s313
    %s315 = sphi 0, %s313
    %s316 = sphi 0, %s315
    %s330 = sphi 0, %s316
    %s336 = sphi 0, %s338
    %s339 = sphi 0, %s336
    %s340 = sphi 0, %s339
    %s356 = sphi 0, %s340
    %s362 = sphi 0, %s364
    %s365 = sphi 0, %s362
    %s366 = sphi 0, %s365
    %s382 = sphi 0, %s366
  $region4: #{decoder_forward.8} parent=0 // loop_header_branch
    %25 = sbr.rel (%p23) target = $region8
  $region5: #{decoder_forward.8} parent=0 // loop_body
    %s27 = ssub.s32 %s22, 1
    %s28 = ssub.s32 %s22, 2
    %s29 = sadd.s32 %s22, 1
    %s30 = ssub.s32 %s22, %s29
    %p31 = scmp.eq.s32.totalorder %s30, 0
    %s33 = sadd.s32 %s32, 1
    %s34 = scalar_select %p31, %s32, %s33
    %p37 = pneg %p31
    %p38 = scmp.eq.s32.totalorder %s22, 1
    %p39 = por %p37, %p38
    %p40 = scmp.ne.s32.totalorder %s32, %s35
    %p41 = scmp.eq.s32.totalorder %s22, 0
    %p42 = por %p40, %p41
    %p43 = scmp.ne.s32.totalorder %s32, %s35
    %p44 = scmp.eq.s32.totalorder %s27, 1
    %p45 = por %p43, %p44
    %p46 = scmp.ne.s32.totalorder %s35, %s36
    %p47 = scmp.eq.s32.totalorder %s27, 0
    %p48 = por %p46, %p47
    %p49 = scmp.ne.s32.totalorder %s35, %s36
    %p50 = scmp.eq.s32.totalorder %s28, 1
    %p51 = por %p49, %p50
    %p53 = scmp.ne.s32.totalorder %s36, %s52
    %p54 = scmp.eq.s32.totalorder %s28, 0
    %p55 = por %p53, %p54
    %s56 = ssub.s32 %s22, %s29
    %p57 = scmp.eq.s32.totalorder %s56, 0
    %s59 = sadd.s32 %s58, 1
    %s60 = scalar_select %p57, %s58, %s59
    %p63 = pneg %p57
    %p64 = scmp.eq.s32.totalorder %s22, 1
    %p65 = por %p63, %p64
    %p66 = scmp.ne.s32.totalorder %s58, %s61
    %p67 = scmp.eq.s32.totalorder %s22, 0
    %p68 = por %p66, %p67
    %p69 = scmp.ne.s32.totalorder %s58, %s61
    %p70 = scmp.eq.s32.totalorder %s27, 1
    %p71 = por %p69, %p70
    %p72 = scmp.ne.s32.totalorder %s61, %s62
    %p73 = scmp.eq.s32.totalorder %s27, 0
    %p74 = por %p72, %p73
    %p75 = scmp.ne.s32.totalorder %s61, %s62
    %p76 = scmp.eq.s32.totalorder %s28, 1
    %p77 = por %p75, %p76
    %p79 = scmp.ne.s32.totalorder %s62, %s78
    %p80 = scmp.eq.s32.totalorder %s28, 0
    %p81 = por %p79, %p80
    %s83 = sadd.s32 %s82, 1
    %p86 = scmp.eq.s32.totalorder %s22, 1
    %p87 = scmp.ne.s32.totalorder %s82, %s84
    %p88 = scmp.eq.s32.totalorder %s22, 0
    %p89 = por %p87, %p88
    %p90 = scmp.ne.s32.totalorder %s82, %s84
    %p91 = scmp.eq.s32.totalorder %s27, 1
    %p92 = por %p90, %p91
    %p93 = scmp.ne.s32.totalorder %s84, %s85
    %p94 = scmp.eq.s32.totalorder %s27, 0
    %p95 = por %p93, %p94
    %p96 = scmp.ne.s32.totalorder %s84, %s85
    %p97 = scmp.eq.s32.totalorder %s28, 1
    %p98 = por %p96, %p97
    %p100 = scmp.ne.s32.totalorder %s85, %s99
    %p101 = scmp.eq.s32.totalorder %s28, 0
    %p102 = por %p100, %p101
    %s104 = sadd.s32 %s103, 1
    %p107 = scmp.eq.s32.totalorder %s22, 1
    %p108 = scmp.ne.s32.totalorder %s103, %s105
    %p109 = scmp.eq.s32.totalorder %s22, 0
    %p110 = por %p108, %p109
    %p111 = scmp.ne.s32.totalorder %s103, %s105
    %p112 = scmp.eq.s32.totalorder %s27, 1
    %p113 = por %p111, %p112
    %p114 = scmp.ne.s32.totalorder %s105, %s106
    %p115 = scmp.eq.s32.totalorder %s27, 0
    %p116 = por %p114, %p115
    %p117 = scmp.ne.s32.totalorder %s105, %s106
    %p118 = scmp.eq.s32.totalorder %s28, 1
    %p119 = por %p117, %p118
    %p121 = scmp.ne.s32.totalorder %s106, %s120
    %p122 = scmp.eq.s32.totalorder %s28, 0
    %p123 = por %p121, %p122
    %s125 = sadd.s32 %s124, 1
    %p128 = scmp.eq.s32.totalorder %s22, 1
    %p129 = scmp.ne.s32.totalorder %s124, %s126
    %p130 = scmp.eq.s32.totalorder %s22, 0
    %p131 = por %p129, %p130
    %p132 = scmp.ne.s32.totalorder %s124, %s126
    %p133 = scmp.eq.s32.totalorder %s27, 1
    %p134 = por %p132, %p133
    %p135 = scmp.ne.s32.totalorder %s126, %s127
    %p136 = scmp.eq.s32.totalorder %s27, 0
    %p137 = por %p135, %p136
    %p138 = scmp.ne.s32.totalorder %s126, %s127
    %p139 = scmp.eq.s32.totalorder %s28, 1
    %p140 = por %p138, %p139
    %p142 = scmp.ne.s32.totalorder %s127, %s141
    %p143 = scmp.eq.s32.totalorder %s28, 0
    %p144 = por %p142, %p143
    %s146 = sadd.s32 %s145, 1
    %p149 = scmp.eq.s32.totalorder %s22, 1
    %p150 = scmp.ne.s32.totalorder %s145, %s147
    %p151 = scmp.eq.s32.totalorder %s22, 0
    %p152 = por %p150, %p151
    %p153 = scmp.ne.s32.totalorder %s145, %s147
    %p154 = scmp.eq.s32.totalorder %s27, 1
    %p155 = por %p153, %p154
    %p156 = scmp.ne.s32.totalorder %s147, %s148
    %p157 = scmp.eq.s32.totalorder %s27, 0
    %p158 = por %p156, %p157
    %p159 = scmp.ne.s32.totalorder %s147, %s148
    %p160 = scmp.eq.s32.totalorder %s28, 1
    %p161 = por %p159, %p160
    %p163 = scmp.ne.s32.totalorder %s148, %s162
    %p164 = scmp.eq.s32.totalorder %s28, 0
    %p165 = por %p163, %p164
    %s167 = sadd.s32 %s166, 1
    %p170 = scmp.eq.s32.totalorder %s22, 1
    %p171 = scmp.ne.s32.totalorder %s166, %s168
    %p172 = scmp.eq.s32.totalorder %s22, 0
    %p173 = por %p171, %p172
    %p174 = scmp.ne.s32.totalorder %s166, %s168
    %p175 = scmp.eq.s32.totalorder %s27, 1
    %p176 = por %p174, %p175
    %p177 = scmp.ne.s32.totalorder %s168, %s169
    %p178 = scmp.eq.s32.totalorder %s27, 0
    %p179 = por %p177, %p178
    %p180 = scmp.ne.s32.totalorder %s168, %s169
    %p181 = scmp.eq.s32.totalorder %s28, 1
    %p182 = por %p180, %p181
    %p184 = scmp.ne.s32.totalorder %s169, %s183
    %p185 = scmp.eq.s32.totalorder %s28, 0
    %p186 = por %p184, %p185
    %s188 = sadd.s32 %s187, 1
    %p191 = scmp.eq.s32.totalorder %s22, 1
    %p192 = scmp.ne.s32.totalorder %s187, %s189
    %p193 = scmp.eq.s32.totalorder %s22, 0
    %p194 = por %p192, %p193
    %p195 = scmp.ne.s32.totalorder %s187, %s189
    %p196 = scmp.eq.s32.totalorder %s27, 1
    %p197 = por %p195, %p196
    %p198 = scmp.ne.s32.totalorder %s189, %s190
    %p199 = scmp.eq.s32.totalorder %s27, 0
    %p200 = por %p198, %p199
    %p201 = scmp.ne.s32.totalorder %s189, %s190
    %p202 = scmp.eq.s32.totalorder %s28, 1
    %p203 = por %p201, %p202
    %p205 = scmp.ne.s32.totalorder %s190, %s204
    %p206 = scmp.eq.s32.totalorder %s28, 0
    %p207 = por %p205, %p206
    %s209 = sadd.s32 %s208, 1
    %p212 = scmp.eq.s32.totalorder %s22, 1
    %p213 = scmp.ne.s32.totalorder %s208, %s210
    %p214 = scmp.eq.s32.totalorder %s22, 0
    %p215 = por %p213, %p214
    %p216 = scmp.ne.s32.totalorder %s208, %s210
    %p217 = scmp.eq.s32.totalorder %s27, 1
    %p218 = por %p216, %p217
    %p219 = scmp.ne.s32.totalorder %s210, %s211
    %p220 = scmp.eq.s32.totalorder %s27, 0
    %p221 = por %p219, %p220
    %p222 = scmp.ne.s32.totalorder %s210, %s211
    %p223 = scmp.eq.s32.totalorder %s28, 1
    %p224 = por %p222, %p223
    %p226 = scmp.ne.s32.totalorder %s211, %s225
    %p227 = scmp.eq.s32.totalorder %s28, 0
    %p228 = por %p226, %p227
    %s230 = sadd.s32 %s229, 1
    %p233 = scmp.eq.s32.totalorder %s22, 1
    %p234 = scmp.ne.s32.totalorder %s229, %s231
    %p235 = scmp.eq.s32.totalorder %s22, 0
    %p236 = por %p234, %p235
    %p237 = scmp.ne.s32.totalorder %s229, %s231
    %p238 = scmp.eq.s32.totalorder %s27, 1
    %p239 = por %p237, %p238
    %p240 = scmp.ne.s32.totalorder %s231, %s232
    %p241 = scmp.eq.s32.totalorder %s27, 0
    %p242 = por %p240, %p241
    %p243 = scmp.ne.s32.totalorder %s231, %s232
    %p244 = scmp.eq.s32.totalorder %s28, 1
    %p245 = por %p243, %p244
    %p247 = scmp.ne.s32.totalorder %s232, %s246
    %p248 = scmp.eq.s32.totalorder %s28, 0
    %p249 = por %p247, %p248
    %s251 = sadd.s32 %s250, 1
    %p254 = scmp.eq.s32.totalorder %s22, 1
    %p255 = scmp.ne.s32.totalorder %s250, %s252
    %p256 = scmp.eq.s32.totalorder %s22, 0
    %p257 = por %p255, %p256
    %p258 = scmp.ne.s32.totalorder %s250, %s252
    %p259 = scmp.eq.s32.totalorder %s27, 1
    %p260 = por %p258, %p259
    %p261 = scmp.ne.s32.totalorder %s252, %s253
    %p262 = scmp.eq.s32.totalorder %s27, 0
    %p263 = por %p261, %p262
    %p264 = scmp.ne.s32.totalorder %s252, %s253
    %p265 = scmp.eq.s32.totalorder %s28, 1
    %p266 = por %p264, %p265
    %p268 = scmp.ne.s32.totalorder %s253, %s267
    %p269 = scmp.eq.s32.totalorder %s28, 0
    %p270 = por %p268, %p269
    %s272 = sadd.s32 %s271, 1
    %p275 = scmp.eq.s32.totalorder %s22, 1
    %p276 = scmp.ne.s32.totalorder %s271, %s273
    %p277 = scmp.eq.s32.totalorder %s22, 0
    %p278 = por %p276, %p277
    %p279 = scmp.ne.s32.totalorder %s271, %s273
    %p280 = scmp.eq.s32.totalorder %s27, 1
    %p281 = por %p279, %p280
    %p282 = scmp.ne.s32.totalorder %s273, %s274
    %p283 = scmp.eq.s32.totalorder %s27, 0
    %p284 = por %p282, %p283
    %p285 = scmp.ne.s32.totalorder %s273, %s274
    %p286 = scmp.eq.s32.totalorder %s28, 1
    %p287 = por %p285, %p286
    %p289 = scmp.ne.s32.totalorder %s274, %s288
    %p290 = scmp.eq.s32.totalorder %s28, 0
    %p291 = por %p289, %p290
    %s293 = sadd.s32 %s292, 1
    %p296 = scmp.eq.s32.totalorder %s22, 1
    %p297 = scmp.ne.s32.totalorder %s292, %s294
    %p298 = scmp.eq.s32.totalorder %s22, 0
    %p299 = por %p297, %p298
    %p300 = scmp.ne.s32.totalorder %s292, %s294
    %p301 = scmp.eq.s32.totalorder %s27, 1
    %p302 = por %p300, %p301
    %p303 = scmp.ne.s32.totalorder %s294, %s295
    %p304 = scmp.eq.s32.totalorder %s27, 0
    %p305 = por %p303, %p304
    %p306 = scmp.ne.s32.totalorder %s294, %s295
    %p307 = scmp.eq.s32.totalorder %s28, 1
    %p308 = por %p306, %p307
    %p310 = scmp.ne.s32.totalorder %s295, %s309
    %p311 = scmp.eq.s32.totalorder %s28, 0
    %p312 = por %p310, %p311
    %s314 = sadd.s32 %s313, 1
    %p317 = scmp.eq.s32.totalorder %s22, 1
    %p318 = scmp.ne.s32.totalorder %s313, %s315
    %p319 = scmp.eq.s32.totalorder %s22, 0
    %p320 = por %p318, %p319
    %p321 = scmp.ne.s32.totalorder %s313, %s315
    %p322 = scmp.eq.s32.totalorder %s27, 1
    %p323 = por %p321, %p322
    %p324 = scmp.ne.s32.totalorder %s315, %s316
    %p325 = scmp.eq.s32.totalorder %s27, 0
    %p326 = por %p324, %p325
    %p327 = scmp.ne.s32.totalorder %s315, %s316
    %p328 = scmp.eq.s32.totalorder %s28, 1
    %p329 = por %p327, %p328
    %p331 = scmp.ne.s32.totalorder %s316, %s330
    %p332 = scmp.eq.s32.totalorder %s28, 0
    %p333 = por %p331, %p332
    %s334 = ssub.s32 %s22, %s29
    %p335 = scmp.eq.s32.totalorder %s334, 0
    %s337 = sadd.s32 %s336, 1
    %s338 = scalar_select %p335, %s336, %s337
    %p341 = pneg %p335
    %p342 = scmp.eq.s32.totalorder %s22, 1
    %p343 = por %p341, %p342
    %p344 = scmp.ne.s32.totalorder %s336, %s339
    %p345 = scmp.eq.s32.totalorder %s22, 0
    %p346 = por %p344, %p345
    %p347 = scmp.ne.s32.totalorder %s336, %s339
    %p348 = scmp.eq.s32.totalorder %s27, 1
    %p349 = por %p347, %p348
    %p350 = scmp.ne.s32.totalorder %s339, %s340
    %p351 = scmp.eq.s32.totalorder %s27, 0
    %p352 = por %p350, %p351
    %p353 = scmp.ne.s32.totalorder %s339, %s340
    %p354 = scmp.eq.s32.totalorder %s28, 1
    %p355 = por %p353, %p354
    %p357 = scmp.ne.s32.totalorder %s340, %s356
    %p358 = scmp.eq.s32.totalorder %s28, 0
    %p359 = por %p357, %p358
    %s360 = ssub.s32 %s22, %s29
    %p361 = scmp.eq.s32.totalorder %s360, 0
    %s363 = sadd.s32 %s362, 1
    %s364 = scalar_select %p361, %s362, %s363
    %p367 = pneg %p361
    %p368 = scmp.eq.s32.totalorder %s22, 1
    %p369 = por %p367, %p368
    %p370 = scmp.ne.s32.totalorder %s362, %s365
    %p371 = scmp.eq.s32.totalorder %s22, 0
    %p372 = por %p370, %p371
    %p373 = scmp.ne.s32.totalorder %s362, %s365
    %p374 = scmp.eq.s32.totalorder %s27, 1
    %p375 = por %p373, %p374
    %p376 = scmp.ne.s32.totalorder %s365, %s366
    %p377 = scmp.eq.s32.totalorder %s27, 0
    %p378 = por %p376, %p377
    %p379 = scmp.ne.s32.totalorder %s365, %s366
    %p380 = scmp.eq.s32.totalorder %s28, 1
    %p381 = por %p379, %p380
    %p383 = scmp.ne.s32.totalorder %s366, %s382
    %p384 = scmp.eq.s32.totalorder %s28, 0
    %p385 = por %p383, %p384
    %p386 = scmp.le.s32.totalorder 1, %s22
    %p387 = scmp.lt.s32.totalorder %s22, 3
    %p388 = pnand %p386, %p387
    %p389 = pneg %p388
    // Predicated region
    $region9: #{decoder_forward.8} parent=5 // pred_check
      _
    $region10: #{decoder_forward.8} parent=5 // pred_check_branch
      %391 = sbr.rel (%p388) target = $region12
    $region11: #{decoder_forward.8} parent=5 // pred_region
      %s392 = ssub.s32 %s22, 1
      // Predicated region
      $region13: #{decoder_forward.8} parent=11 // pred_check
        %p393 = pneg %p95
      $region14: #{decoder_forward.8} parent=11 // pred_check_branch
        %395 = sbr.rel (%p393) target = $region16
      $region15: #{decoder_forward.8} parent=11 // pred_region
        _
      $region16: #{decoder_forward.8} parent=11 // pred_fallthru
        _
      // Predicated region
      $region17: #{decoder_forward.8} parent=11 // pred_check
        %p396 = pneg %p116
      $region18: #{decoder_forward.8} parent=11 // pred_check_branch
        %398 = sbr.rel (%p396) target = $region20
      $region19: #{decoder_forward.8} parent=11 // pred_region
        _
      $region20: #{decoder_forward.8} parent=11 // pred_fallthru
        _
      // Predicated region
      $region21: #{decoder_forward.8} parent=11 // pred_check
        %p399 = pneg %p137
      $region22: #{decoder_forward.8} parent=11 // pred_check_branch
        %401 = sbr.rel (%p399) target = $region24
      $region23: #{decoder_forward.8} parent=11 // pred_region
        _
      $region24: #{decoder_forward.8} parent=11 // pred_fallthru
        _
      // Predicated region
      $region25: #{decoder_forward.8} parent=11 // pred_check
        %p402 = pneg %p158
      $region26: #{decoder_forward.8} parent=11 // pred_check_branch
        %404 = sbr.rel (%p402) target = $region28
      $region27: #{decoder_forward.8} parent=11 // pred_region
        _
      $region28: #{decoder_forward.8} parent=11 // pred_fallthru
        _
      // Predicated region
      $region29: #{decoder_forward.8} parent=11 // pred_check
        %p405 = pneg %p179
      $region30: #{decoder_forward.8} parent=11 // pred_check_branch
        %407 = sbr.rel (%p405) target = $region32
      $region31: #{decoder_forward.8} parent=11 // pred_region
        _
      $region32: #{decoder_forward.8} parent=11 // pred_fallthru
        _
      // Predicated region
      $region33: #{decoder_forward.8} parent=11 // pred_check
        %p408 = pneg %p200
      $region34: #{decoder_forward.8} parent=11 // pred_check_branch
        %410 = sbr.rel (%p408) target = $region36
      $region35: #{decoder_forward.8} parent=11 // pred_region
        _
      $region36: #{decoder_forward.8} parent=11 // pred_fallthru
        _
      // Predicated region
      $region37: #{decoder_forward.8} parent=11 // pred_check
        %p411 = pneg %p221
      $region38: #{decoder_forward.8} parent=11 // pred_check_branch
        %413 = sbr.rel (%p411) target = $region40
      $region39: #{decoder_forward.8} parent=11 // pred_region
        _
      $region40: #{decoder_forward.8} parent=11 // pred_fallthru
        _
      // Predicated region
      $region41: #{decoder_forward.8} parent=11 // pred_check
        %p414 = pneg %p242
      $region42: #{decoder_forward.8} parent=11 // pred_check_branch
        %416 = sbr.rel (%p414) target = $region44
      $region43: #{decoder_forward.8} parent=11 // pred_region
        _
      $region44: #{decoder_forward.8} parent=11 // pred_fallthru
        _
      // Predicated region
      $region45: #{decoder_forward.8} parent=11 // pred_check
        %p417 = pneg %p263
      $region46: #{decoder_forward.8} parent=11 // pred_check_branch
        %419 = sbr.rel (%p417) target = $region48
      $region47: #{decoder_forward.8} parent=11 // pred_region
        _
      $region48: #{decoder_forward.8} parent=11 // pred_fallthru
        _
      // Predicated region
      $region49: #{decoder_forward.8} parent=11 // pred_check
        %p420 = pneg %p284
      $region50: #{decoder_forward.8} parent=11 // pred_check_branch
        %422 = sbr.rel (%p420) target = $region52
      $region51: #{decoder_forward.8} parent=11 // pred_region
        _
      $region52: #{decoder_forward.8} parent=11 // pred_fallthru
        _
      // Predicated region
      $region53: #{decoder_forward.8} parent=11 // pred_check
        %p423 = pneg %p305
      $region54: #{decoder_forward.8} parent=11 // pred_check_branch
        %425 = sbr.rel (%p423) target = $region56
      $region55: #{decoder_forward.8} parent=11 // pred_region
        _
      $region56: #{decoder_forward.8} parent=11 // pred_fallthru
        _
      // Predicated region
      $region57: #{decoder_forward.8} parent=11 // pred_check
        %p426 = pneg %p326
      $region58: #{decoder_forward.8} parent=11 // pred_check_branch
        %428 = sbr.rel (%p426) target = $region60
      $region59: #{decoder_forward.8} parent=11 // pred_region
        _
      $region60: #{decoder_forward.8} parent=11 // pred_fallthru
        _
    $region12: #{decoder_forward.8} parent=5 // pred_fallthru
      _
    %p429 = scmp.lt.s32.totalorder %s22, 2
    // Predicated region
    $region61: #{decoder_forward.8} parent=5 // pred_check
      %p430 = pneg %p429
    $region62: #{decoder_forward.8} parent=5 // pred_check_branch
      %432 = sbr.rel (%p430) target = $region64
    $region63: #{decoder_forward.8} parent=5 // pred_region
      // Predicated region
      $region65: #{decoder_forward.8} parent=63 // pred_check
        %p433 = pneg %p42
      $region66: #{decoder_forward.8} parent=63 // pred_check_branch
        %435 = sbr.rel (%p433) target = $region68
      $region67: #{decoder_forward.8} parent=63 // pred_region
        %p436 = scmp.lt.s32.totalorder %s22, 1
        %s437 = scalar_select %p436, %s22, 1
        %s438 = smul.addr %s437, 8
        %s439 = scalar_lea.vmem %s0, %s438
      $region68: #{decoder_forward.8} parent=63 // pred_fallthru
        _
      // Predicated region
      $region69: #{decoder_forward.8} parent=63 // pred_check
        %p440 = pneg %p68
      $region70: #{decoder_forward.8} parent=63 // pred_check_branch
        %442 = sbr.rel (%p440) target = $region72
      $region71: #{decoder_forward.8} parent=63 // pred_region
        %p443 = scmp.lt.s32.totalorder %s22, 1
        %s444 = scalar_select %p443, %s22, 1
        %s445 = smul.addr %s444, 8
        %s446 = scalar_lea.vmem %s1, %s445
      $region72: #{decoder_forward.8} parent=63 // pred_fallthru
        _
    $region64: #{decoder_forward.8} parent=5 // pred_fallthru
      _
    %p447 = scmp.le.s32.totalorder 1, %s22
    %p448 = scmp.lt.s32.totalorder %s22, 3
    %p449 = pnand %p447, %p448
    %p450 = pneg %p449
    // Predicated region
    $region73: #{decoder_forward.8} parent=5 // pred_check
      _
    $region74: #{decoder_forward.8} parent=5 // pred_check_branch
      %452 = sbr.rel (%p449) target = $region76
    $region75: #{decoder_forward.8} parent=5 // pred_region
      %s453 = ssub.s32 %s22, 1
      %p454 = scmp.lt.s32.totalorder %s27, 1
      %s455 = scalar_select %p454, %s27, 1
      %s456 = smul.addr %s455, 8
      %s457 = scalar_lea.vmem %s0, %s456
      %p458 = pneg %p48
      %p459 = pneg %p45
      %p460 = scmp.lt.s32.totalorder %s27, 1
      %s461 = scalar_select %p460, %s27, 1
      %s462 = smul.addr %s461, 8
      %s463 = scalar_lea.vmem %s1, %s462
      %p464 = pneg %p74
      %p465 = pneg %p71
      %p466 = pneg %p95
      %p467 = pneg %p92
      %p468 = pneg %p116
      %p469 = pneg %p113
      %p470 = pneg %p137
      %p471 = pneg %p134
      %p472 = pneg %p158
      %p473 = pneg %p155
      %p474 = pneg %p179
      %p475 = pneg %p176
      %p476 = pneg %p200
      %p477 = pneg %p197
      %p478 = pneg %p221
      %p479 = pneg %p218
      %p480 = pneg %p242
      %p481 = pneg %p239
      %p482 = pneg %p263
      %p483 = pneg %p260
      %p484 = pneg %p284
      %p485 = pneg %p281
      %p486 = pneg %p305
      %p487 = pneg %p302
      %p488 = pneg %p326
      %p489 = pneg %p323
      %p490 = pneg %p352
      %p491 = pneg %p349
      %p492 = scmp.lt.s32.totalorder %s27, 1
      %s493 = scalar_select %p492, %s27, 1
      %s494 = smul.addr %s493, 8
      %s495 = scalar_lea.vmem %s14, %s494
      %p496 = pneg %p378
      %p497 = pneg %p375
      %p498 = scmp.lt.s32.totalorder %s27, 1
      %s499 = scalar_select %p498, %s27, 1
      %s500 = smul.addr %s499, 8
      %s501 = scalar_lea.vmem %s15, %s500
      %p502 = scmp.lt.s32.totalorder %s27, 1
      %s503 = scalar_select %p502, %s27, 1
      %s504 = smul.addr %s503, 8
      %s505 = scalar_lea.vmem %s0, %s504
      %p506 = scmp.lt.s32.totalorder %s27, 1
      %s507 = scalar_select %p506, %s27, 1
      %s508 = smul.addr %s507, 8
      %s509 = scalar_lea.vmem %s1, %s508
      %p510 = scmp.lt.s32.totalorder %s27, 1
      %s511 = scalar_select %p510, %s27, 1
      %s512 = smul.addr %s511, 8
      %s513 = scalar_lea.vmem %s14, %s512
      %p514 = scmp.lt.s32.totalorder %s27, 1
      %s515 = scalar_select %p514, %s27, 1
      %s516 = smul.addr %s515, 8
      %s517 = scalar_lea.vmem %s15, %s516
      %v519 = vld [vmem:[%s505] sm:$0xff]
      %v520 = vpack.c.bf16 %v519, %v519
      %v521 = vld [vmem:[%s2] sm:$0xff]
      %v522 = vld [vmem:[%s2 + $0x8] sm:$0xff]
      %v523 = vld [vmem:[%s2 + $0x10] sm:$0xff]
      %v524 = vld [vmem:[%s2 + $0x18] sm:$0xff]
      %v525 = vpack.c.bf16 %v522, %v521
      %v526 = vpack.c.bf16 %v524, %v523
      %v527 = vld [vmem:[%s3] sm:$0x1]
      %v529 = vlaneseq
      %v530 = vshrl.u32 %v529, 7
      %v531 = vsub.s32 0, %v530
      %v532 = vrot.slane %v527, %v531
      %vm534 = vcmask 261120
      %v536 = vsel %vm534, %v520, 0
      %538 = vmatprep.subr.bf16.mxu0 0
      %539 = vmatpush1.bf16.msra.mxu0 %v525
      %540 = vmatprep.subr.bf16.mxu0 0
      %541 = vmatpush1.bf16.msra.mxu0 %v526
      %542 = vmatprep.subr.bf16.mxu0 0
      %543 = vmatpush1.bf16.msra.mxu0 0
      %544 = vmatprep.subr.bf16.mxu0 0
      %545 = vmatpush1.bf16.msra.mxu0 0
      %546 = vmatprep.subr.bf16.mxu0 0
      %547 = vmatpush1.bf16.msra.mxu0 0
      %548 = vmatprep.subr.bf16.mxu0 0
      %549 = vmatpush1.bf16.msra.mxu0 0
      %550 = vmatprep.subr.bf16.mxu0 0
      %551 = vmatpush1.bf16.msra.mxu0 0
      %552 = vmatprep.subr.bf16.mxu0 0
      %553 = vmatpush1.bf16.msra.mxu0 0
      %554 = vmatprep.subr.bf16.mxu0 0
      %555 = vmatpush1.bf16.msra.mxu0 0
      %556 = vmatprep.subr.bf16.mxu0 0
      %557 = vmatpush1.bf16.msra.mxu0 0
      %558 = vmatprep.subr.bf16.mxu0 0
      %559 = vmatpush1.bf16.msra.mxu0 0
      %560 = vmatprep.subr.bf16.mxu0 0
      %561 = vmatpush1.bf16.msra.mxu0 0
      %562 = vmatprep.subr.bf16.mxu0 0
      %563 = vmatpush1.bf16.msra.mxu0 0
      %564 = vmatprep.subr.bf16.mxu0 0
      %565 = vmatpush1.bf16.msra.mxu0 0
      %566 = vmatprep.subr.bf16.mxu0 0
      %567 = vmatpush1.bf16.msra.mxu0 0
      %568 = vmatprep.subr.bf16.mxu0 0
      %569 = vmatpush1.bf16.msra.mxu0 0
      %570 = vmatprep.mubr.bf16.mxu0 0
      %571 = vmatmul.mubr.bf16.gmra.mrb[0].mxu0 %v536
      %v572 = vpop.f32.mrb[0].mxu0
      %v573 = vadd.f32 %v532, %v572
      %v574 = vpop.f32.mrb[0].mxu0
      %v575 = vpop.f32.mrb[0].mxu0
      %v576 = vpop.f32.mrb[0].mxu0
      %577 = vdwg.mxu0
      %v578 = vmax.f32 %v573, 0.0
      %v579 = vpack.c.bf16 %v578, %v578
      %v580 = vld [vmem:[%s4] sm:$0xff]
      %v581 = vld [vmem:[%s4 + $0x8] sm:$0xff]
      %v582 = vld [vmem:[%s4 + $0x10] sm:$0xff]
      %v583 = vld [vmem:[%s4 + $0x18] sm:$0xff]
      %v584 = vpack.c.bf16 %v581, %v580
      %v585 = vpack.c.bf16 %v583, %v582
      %v586 = vld [vmem:[%s5] sm:$0x1]
      %v588 = vlaneseq
      %v589 = vshrl.u32 %v588, 7
      %v590 = vsub.s32 0, %v589
      %v591 = vrot.slane %v586, %v590
      %v594 = vsel %vm534, %v579, 0
      %596 = vmatprep.subr.bf16.mxu0 0
      %597 = vmatpush1.bf16.msra.mxu0 %v584
      %598 = vmatprep.subr.bf16.mxu0 0
      %599 = vmatpush1.bf16.msra.mxu0 %v585
      %600 = vmatprep.subr.bf16.mxu0 0
      %601 = vmatpush1.bf16.msra.mxu0 0
      %602 = vmatprep.subr.bf16.mxu0 0
      %603 = vmatpush1.bf16.msra.mxu0 0
      %604 = vmatprep.subr.bf16.mxu0 0
      %605 = vmatpush1.bf16.msra.mxu0 0
      %606 = vmatprep.subr.bf16.mxu0 0
      %607 = vmatpush1.bf16.msra.mxu0 0
      %608 = vmatprep.subr.bf16.mxu0 0
      %609 = vmatpush1.bf16.msra.mxu0 0
      %610 = vmatprep.subr.bf16.mxu0 0
      %611 = vmatpush1.bf16.msra.mxu0 0
      %612 = vmatprep.subr.bf16.mxu0 0
      %613 = vmatpush1.bf16.msra.mxu0 0
      %614 = vmatprep.subr.bf16.mxu0 0
      %615 = vmatpush1.bf16.msra.mxu0 0
      %616 = vmatprep.subr.bf16.mxu0 0
      %617 = vmatpush1.bf16.msra.mxu0 0
      %618 = vmatprep.subr.bf16.mxu0 0
      %619 = vmatpush1.bf16.msra.mxu0 0
      %620 = vmatprep.subr.bf16.mxu0 0
      %621 = vmatpush1.bf16.msra.mxu0 0
      %622 = vmatprep.subr.bf16.mxu0 0
      %623 = vmatpush1.bf16.msra.mxu0 0
      %624 = vmatprep.subr.bf16.mxu0 0
      %625 = vmatpush1.bf16.msra.mxu0 0
      %626 = vmatprep.subr.bf16.mxu0 0
      %627 = vmatpush1.bf16.msra.mxu0 0
      %628 = vmatprep.mubr.bf16.mxu0 0
      %629 = vmatmul.mubr.bf16.gmra.mrb[0].mxu0 %v594
      %v630 = vpop.f32.mrb[0].mxu0
      %v631 = vadd.f32 %v591, %v630
      %v632 = vpop.f32.mrb[0].mxu0
      %v633 = vpop.f32.mrb[0].mxu0
      %v634 = vpop.f32.mrb[0].mxu0
      %635 = vdwg.mxu0
      %v636 = vld [vmem:[%s509] sm:$0xff]
      %v637 = vmul.f32 %v631, %v636
      %638 = vst.msk [vmem:[%s517] sm:$0xff] %vm534, %v637
      %v639 = vadd.f32 %v519, %v637
      %v640 = vpack.c.bf16 %v639, %v639
      %v641 = vld [vmem:[%s6] sm:$0xff]
      %v642 = vld [vmem:[%s6 + $0x8] sm:$0xff]
      %v643 = vld [vmem:[%s6 + $0x10] sm:$0xff]
      %v644 = vld [vmem:[%s6 + $0x18] sm:$0xff]
      %v645 = vpack.c.bf16 %v642, %v641
      %v646 = vpack.c.bf16 %v644, %v643
      %v647 = vld [vmem:[%s7] sm:$0x1]
      %v649 = vlaneseq
      %v650 = vshrl.u32 %v649, 7
      %v651 = vsub.s32 0, %v650
      %v652 = vrot.slane %v647, %v651
      %v655 = vsel %vm534, %v640, 0
      %657 = vmatprep.subr.bf16.mxu0 0
      %658 = vmatpush1.bf16.msra.mxu0 %v645
      %659 = vmatprep.subr.bf16.mxu0 0
      %660 = vmatpush1.bf16.msra.mxu0 %v646
      %661 = vmatprep.subr.bf16.mxu0 0
      %662 = vmatpush1.bf16.msra.mxu0 0
      %663 = vmatprep.subr.bf16.mxu0 0
      %664 = vmatpush1.bf16.msra.mxu0 0
      %665 = vmatprep.subr.bf16.mxu0 0
      %666 = vmatpush1.bf16.msra.mxu0 0
      %667 = vmatprep.subr.bf16.mxu0 0
      %668 = vmatpush1.bf16.msra.mxu0 0
      %669 = vmatprep.subr.bf16.mxu0 0
      %670 = vmatpush1.bf16.msra.mxu0 0
      %671 = vmatprep.subr.bf16.mxu0 0
      %672 = vmatpush1.bf16.msra.mxu0 0
      %673 = vmatprep.subr.bf16.mxu0 0
      %674 = vmatpush1.bf16.msra.mxu0 0
      %675 = vmatprep.subr.bf16.mxu0 0
      %676 = vmatpush1.bf16.msra.mxu0 0
      %677 = vmatprep.subr.bf16.mxu0 0
      %678 = vmatpush1.bf16.msra.mxu0 0
      %679 = vmatprep.subr.bf16.mxu0 0
      %680 = vmatpush1.bf16.msra.mxu0 0
      %681 = vmatprep.subr.bf16.mxu0 0
      %682 = vmatpush1.bf16.msra.mxu0 0
      %683 = vmatprep.subr.bf16.mxu0 0
      %684 = vmatpush1.bf16.msra.mxu0 0
      %685 = vmatprep.subr.bf16.mxu0 0
      %686 = vmatpush1.bf16.msra.mxu0 0
      %687 = vmatprep.subr.bf16.mxu0 0
      %688 = vmatpush1.bf16.msra.mxu0 0
      %689 = vmatprep.mubr.bf16.mxu0 0
      %690 = vmatmul.mubr.bf16.gmra.mrb[0].mxu0 %v655
      %v691 = vpop.f32.mrb[0].mxu0
      %v692 = vadd.f32 %v652, %v691
      %v693 = vpop.f32.mrb[0].mxu0
      %v694 = vpop.f32.mrb[0].mxu0
      %v695 = vpop.f32.mrb[0].mxu0
      %696 = vdwg.mxu0
      %v697 = vld [vmem:[%s8] sm:$0xff]
      %v698 = vld [vmem:[%s8 + $0x8] sm:$0xff]
      %v699 = vld [vmem:[%s8 + $0x10] sm:$0xff]
      %v700 = vld [vmem:[%s8 + $0x18] sm:$0xff]
      %v701 = vpack.c.bf16 %v698, %v697
      %v702 = vpack.c.bf16 %v700, %v699
      %v703 = vld [vmem:[%s9] sm:$0x1]
      %v705 = vlaneseq
      %v706 = vshrl.u32 %v705, 7
      %v707 = vsub.s32 0, %v706
      %v708 = vrot.slane %v703, %v707
      %710 = vmatprep.subr.bf16.mxu0 0
      %711 = vmatpush1.bf16.msra.mxu0 %v701
      %712 = vmatprep.subr.bf16.mxu0 0
      %713 = vmatpush1.bf16.msra.mxu0 %v702
      %714 = vmatprep.subr.bf16.mxu0 0
      %715 = vmatpush1.bf16.msra.mxu0 0
      %716 = vmatprep.subr.bf16.mxu0 0
      %717 = vmatpush1.bf16.msra.mxu0 0
      %718 = vmatprep.subr.bf16.mxu0 0
      %719 = vmatpush1.bf16.msra.mxu0 0
      %720 = vmatprep.subr.bf16.mxu0 0
      %721 = vmatpush1.bf16.msra.mxu0 0
      %722 = vmatprep.subr.bf16.mxu0 0
      %723 = vmatpush1.bf16.msra.mxu0 0
      %724 = vmatprep.subr.bf16.mxu0 0
      %725 = vmatpush1.bf16.msra.mxu0 0
      %726 = vmatprep.subr.bf16.mxu0 0
      %727 = vmatpush1.bf16.msra.mxu0 0
      %728 = vmatprep.subr.bf16.mxu0 0
      %729 = vmatpush1.bf16.msra.mxu0 0
      %730 = vmatprep.subr.bf16.mxu0 0
      %731 = vmatpush1.bf16.msra.mxu0 0
      %732 = vmatprep.subr.bf16.mxu0 0
      %733 = vmatpush1.bf16.msra.mxu0 0
      %734 = vmatprep.subr.bf16.mxu0 0
      %735 = vmatpush1.bf16.msra.mxu0 0
      %736 = vmatprep.subr.bf16.mxu0 0
      %737 = vmatpush1.bf16.msra.mxu0 0
      %738 = vmatprep.subr.bf16.mxu0 0
      %739 = vmatpush1.bf16.msra.mxu0 0
      %740 = vmatprep.subr.bf16.mxu0 0
      %741 = vmatpush1.bf16.msra.mxu0 0
      %742 = vmatprep.mubr.bf16.mxu0 0
      %743 = vmatmul.mubr.bf16.gmra.mrb[0].mxu0 %v536
      %v744 = vpop.f32.mrb[0].mxu0
      %v745 = vadd.f32 %v708, %v744
      %v746 = vpop.f32.mrb[0].mxu0
      %v747 = vpop.f32.mrb[0].mxu0
      %v748 = vpop.f32.mrb[0].mxu0
      %749 = vdwg.mxu0
      %v750 = vpack.c.bf16 %v692, %v692
      %v751 = vpack.c.bf16 %v745, %v745
      %753 = vrot.lane.b32.xlu0 %v750, 96
      %v754 = vpop.permute.xlu0 %753
      %vm755 = vcmask 31744
      %v757 = vsel %vm755, %v750, 0
      %v760 = vsel %vm755, %v754, 0
      %762 = vmatprep.subr.bf16.mxu0 0
      %763 = vmatpush1.bf16.xpose.msra.mxu0 %v760
      %764 = vmatprep.subr.bf16.mxu0 0
      %765 = vmatpush1.bf16.xpose.msra.mxu0 0
      %766 = vmatprep.subr.bf16.mxu0 0
      %767 = vmatpush1.bf16.xpose.msra.mxu0 0
      %768 = vmatprep.subr.bf16.mxu0 0
      %769 = vmatpush1.bf16.xpose.msra.mxu0 0
      %770 = vmatprep.subr.bf16.mxu0 0
      %771 = vmatpush1.bf16.xpose.msra.mxu0 0
      %772 = vmatprep.subr.bf16.mxu0 0
      %773 = vmatpush1.bf16.xpose.msra.mxu0 0
      %774 = vmatprep.subr.bf16.mxu0 0
      %775 = vmatpush1.bf16.xpose.msra.mxu0 0
      %776 = vmatprep.subr.bf16.mxu0 0
      %777 = vmatpush1.bf16.xpose.msra.mxu0 0
      %778 = vmatprep.subr.bf16.mxu0 0
      %779 = vmatpush1.bf16.xpose.msra.mxu0 0
      %780 = vmatprep.subr.bf16.mxu0 0
      %781 = vmatpush1.bf16.xpose.msra.mxu0 0
      %782 = vmatprep.subr.bf16.mxu0 0
      %783 = vmatpush1.bf16.xpose.msra.mxu0 0
      %784 = vmatprep.subr.bf16.mxu0 0
      %785 = vmatpush1.bf16.xpose.msra.mxu0 0
      %786 = vmatprep.subr.bf16.mxu0 0
      %787 = vmatpush1.bf16.xpose.msra.mxu0 0
      %788 = vmatprep.subr.bf16.mxu0 0
      %789 = vmatpush1.bf16.xpose.msra.mxu0 0
      %790 = vmatprep.subr.bf16.mxu0 0
      %791 = vmatpush1.bf16.xpose.msra.mxu0 0
      %792 = vmatprep.subr.bf16.mxu0 0
      %793 = vmatpush1.bf16.xpose.msra.mxu0 0
      %794 = vmatprep.mubr.bf16.mxu0 0
      %795 = vmatmul.mubr.bf16.gmra.mrb[0].mxu0 %v757
      %v796 = vpop.f32.mrb[0].mxu0
      %v797 = vadd.f32 0.0, %v796
      %v798 = vpop.f32.mrb[0].mxu0
      %v799 = vpop.f32.mrb[0].mxu0
      %v800 = vpop.f32.mrb[0].mxu0
      %801 = vdwg.mxu0
      %v802 = vmul.f32 %v797, 0.5
      %vm803 = vcmask 64512
      %v804 = vsel %vm803, %v802, -inf
      %805 = vmax.xlane.f32.xlu0 %v804
      %v806 = vpop.xlane.xlu0 %805
      %v807 = vsub.f32 %v802, %v806
      %v808 = vmul.f32 %v807, 1.442695
      %v809 = vpow.pop %v808
      %v810 = vsel %vm803, %v809, 0.0
      %811 = vadd.xlane.f32.xlu0 %v810
      %v812 = vpop.xlane.xlu0 %811
      %v813 = vrcp.pop %v812
      %v814 = vmul.f32 %v809, %v813
      %v815 = vpack.c.bf16 %v814, %v814
      %v817 = vsel %vm803, %v815, 0
      %vm819 = vcmask 1043456
      %v821 = vsel %vm819, %v751, 0
      %823 = vmatprep.subr.bf16.mxu0 0
      %824 = vmatpush1.bf16.msra.mxu0 %v821
      %825 = vmatprep.subr.bf16.mxu0 0
      %826 = vmatpush1.bf16.msra.mxu0 0
      %827 = vmatprep.subr.bf16.mxu0 0
      %828 = vmatpush1.bf16.msra.mxu0 0
      %829 = vmatprep.subr.bf16.mxu0 0
      %830 = vmatpush1.bf16.msra.mxu0 0
      %831 = vmatprep.subr.bf16.mxu0 0
      %832 = vmatpush1.bf16.msra.mxu0 0
      %833 = vmatprep.subr.bf16.mxu0 0
      %834 = vmatpush1.bf16.msra.mxu0 0
      %835 = vmatprep.subr.bf16.mxu0 0
      %836 = vmatpush1.bf16.msra.mxu0 0
      %837 = vmatprep.subr.bf16.mxu0 0
      %838 = vmatpush1.bf16.msra.mxu0 0
      %839 = vmatprep.subr.bf16.mxu0 0
      %840 = vmatpush1.bf16.msra.mxu0 0
      %841 = vmatprep.subr.bf16.mxu0 0
      %842 = vmatpush1.bf16.msra.mxu0 0
      %843 = vmatprep.subr.bf16.mxu0 0
      %844 = vmatpush1.bf16.msra.mxu0 0
      %845 = vmatprep.subr.bf16.mxu0 0
      %846 = vmatpush1.bf16.msra.mxu0 0
      %847 = vmatprep.subr.bf16.mxu0 0
      %848 = vmatpush1.bf16.msra.mxu0 0
      %849 = vmatprep.subr.bf16.mxu0 0
      %850 = vmatpush1.bf16.msra.mxu0 0
      %851 = vmatprep.subr.bf16.mxu0 0
      %852 = vmatpush1.bf16.msra.mxu0 0
      %853 = vmatprep.subr.bf16.mxu0 0
      %854 = vmatpush1.bf16.msra.mxu0 0
      %855 = vmatprep.mubr.bf16.mxu0 0
      %856 = vmatmul.mubr.bf16.gmra.mrb[0].mxu0 %v817
      %v857 = vpop.f32.mrb[0].mxu0
      %v858 = vadd.f32 0.0, %v857
      %v859 = vpop.f32.mrb[0].mxu0
      %v860 = vpop.f32.mrb[0].mxu0
      %v861 = vpop.f32.mrb[0].mxu0
      %862 = vdwg.mxu0
      %863 = vrot.lane.b32.xlu0 %v750, 124
      %v864 = vpop.permute.xlu0 %863
      %865 = vrot.lane.b32.xlu0 %v750, 92
      %v866 = vpop.permute.xlu0 %865
      %v868 = vsel %vm755, %v864, 0
      %v871 = vsel %vm755, %v866, 0
      %873 = vmatprep.subr.bf16.mxu0 0
      %874 = vmatpush1.bf16.xpose.msra.mxu0 %v871
      %875 = vmatprep.subr.bf16.mxu0 0
      %876 = vmatpush1.bf16.xpose.msra.mxu0 0
      %877 = vmatprep.subr.bf16.mxu0 0
      %878 = vmatpush1.bf16.xpose.msra.mxu0 0
      %879 = vmatprep.subr.bf16.mxu0 0
      %880 = vmatpush1.bf16.xpose.msra.mxu0 0
      %881 = vmatprep.subr.bf16.mxu0 0
      %882 = vmatpush1.bf16.xpose.msra.mxu0 0
      %883 = vmatprep.subr.bf16.mxu0 0
      %884 = vmatpush1.bf16.xpose.msra.mxu0 0
      %885 = vmatprep.subr.bf16.mxu0 0
      %886 = vmatpush1.bf16.xpose.msra.mxu0 0
      %887 = vmatprep.subr.bf16.mxu0 0
      %888 = vmatpush1.bf16.xpose.msra.mxu0 0
      %889 = vmatprep.subr.bf16.mxu0 0
      %890 = vmatpush1.bf16.xpose.msra.mxu0 0
      %891 = vmatprep.subr.bf16.mxu0 0
      %892 = vmatpush1.bf16.xpose.msra.mxu0 0
      %893 = vmatprep.subr.bf16.mxu0 0
      %894 = vmatpush1.bf16.xpose.msra.mxu0 0
      %895 = vmatprep.subr.bf16.mxu0 0
      %896 = vmatpush1.bf16.xpose.msra.mxu0 0
      %897 = vmatprep.subr.bf16.mxu0 0
      %898 = vmatpush1.bf16.xpose.msra.mxu0 0
      %899 = vmatprep.subr.bf16.mxu0 0
      %900 = vmatpush1.bf16.xpose.msra.mxu0 0
      %901 = vmatprep.subr.bf16.mxu0 0
      %902 = vmatpush1.bf16.xpose.msra.mxu0 0
      %903 = vmatprep.subr.bf16.mxu0 0
      %904 = vmatpush1.bf16.xpose.msra.mxu0 0
      %905 = vmatprep.mubr.bf16.mxu0 0
      %906 = vmatmul.mubr.bf16.gmra.mrb[0].mxu0 %v868
      %v907 = vpop.f32.mrb[0].mxu0
      %v908 = vadd.f32 0.0, %v907
      %v909 = vpop.f32.mrb[0].mxu0
      %v910 = vpop.f32.mrb[0].mxu0
      %v911 = vpop.f32.mrb[0].mxu0
      %912 = vdwg.mxu0
      %v913 = vmul.f32 %v908, 0.5
      %v914 = vsel %vm803, %v913, -inf
      %915 = vmax.xlane.f32.xlu0 %v914
      %v916 = vpop.xlane.xlu0 %915
      %v917 = vsub.f32 %v913, %v916
      %v918 = vmul.f32 %v917, 1.442695
      %v919 = vpow.pop %v918
      %v920 = vsel %vm803, %v919, 0.0
      %921 = vadd.xlane.f32.xlu0 %v920
      %v922 = vpop.xlane.xlu0 %921
      %v923 = vrcp.pop %v922
      %v924 = vmul.f32 %v919, %v923
      %v925 = vpack.c.bf16 %v924, %v924
      %927 = vrot.lane.b32.xlu0 %v751, 124
      %v928 = vpop.permute.xlu0 %927
      %v930 = vsel %vm803, %v925, 0
      %v933 = vsel %vm819, %v928, 0
      %935 = vmatprep.subr.bf16.mxu0 0
      %936 = vmatpush1.bf16.msra.mxu0 %v933
      %937 = vmatprep.subr.bf16.mxu0 0
      %938 = vmatpush1.bf16.msra.mxu0 0
      %939 = vmatprep.subr.bf16.mxu0 0
      %940 = vmatpush1.bf16.msra.mxu0 0
      %941 = vmatprep.subr.bf16.mxu0 0
      %942 = vmatpush1.bf16.msra.mxu0 0
      %943 = vmatprep.subr.bf16.mxu0 0
      %944 = vmatpush1.bf16.msra.mxu0 0
      %945 = vmatprep.subr.bf16.mxu0 0
      %946 = vmatpush1.bf16.msra.mxu0 0
      %947 = vmatprep.subr.bf16.mxu0 0
      %948 = vmatpush1.bf16.msra.mxu0 0
      %949 = vmatprep.subr.bf16.mxu0 0
      %950 = vmatpush1.bf16.msra.mxu0 0
      %951 = vmatprep.subr.bf16.mxu0 0
      %952 = vmatpush1.bf16.msra.mxu0 0
      %953 = vmatprep.subr.bf16.mxu0 0
      %954 = vmatpush1.bf16.msra.mxu0 0
      %955 = vmatprep.subr.bf16.mxu0 0
      %956 = vmatpush1.bf16.msra.mxu0 0
      %957 = vmatprep.subr.bf16.mxu0 0
      %958 = vmatpush1.bf16.msra.mxu0 0
      %959 = vmatprep.subr.bf16.mxu0 0
      %960 = vmatpush1.bf16.msra.mxu0 0
      %961 = vmatprep.subr.bf16.mxu0 0
      %962 = vmatpush1.bf16.msra.mxu0 0
      %963 = vmatprep.subr.bf16.mxu0 0
      %964 = vmatpush1.bf16.msra.mxu0 0
      %965 = vmatprep.subr.bf16.mxu0 0
      %966 = vmatpush1.bf16.msra.mxu0 0
      %967 = vmatprep.mubr.bf16.mxu0 0
      %968 = vmatmul.mubr.bf16.gmra.mrb[0].mxu0 %v930
      %v969 = vpop.f32.mrb[0].mxu0
      %v970 = vadd.f32 0.0, %v969
      %v971 = vpop.f32.mrb[0].mxu0
      %v972 = vpop.f32.mrb[0].mxu0
      %v973 = vpop.f32.mrb[0].mxu0
      %974 = vdwg.mxu0
      %975 = vrot.lane.b32.xlu0 %v750, 120
      %v976 = vpop.permute.xlu0 %975
      %977 = vrot.lane.b32.xlu0 %v750, 88
      %v978 = vpop.permute.xlu0 %977
      %v980 = vsel %vm755, %v976, 0
      %v983 = vsel %vm755, %v978, 0
      %985 = vmatprep.subr.bf16.mxu0 0
      %986 = vmatpush1.bf16.xpose.msra.mxu0 %v983
      %987 = vmatprep.subr.bf16.mxu0 0
      %988 = vmatpush1.bf16.xpose.msra.mxu0 0
      %989 = vmatprep.subr.bf16.mxu0 0
      %990 = vmatpush1.bf16.xpose.msra.mxu0 0
      %991 = vmatprep.subr.bf16.mxu0 0
      %992 = vmatpush1.bf16.xpose.msra.mxu0 0
      %993 = vmatprep.subr.bf16.mxu0 0
      %994 = vmatpush1.bf16.xpose.msra.mxu0 0
      %995 = vmatprep.subr.bf16.mxu0 0
      %996 = vmatpush1.bf16.xpose.msra.mxu0 0
      %997 = vmatprep.subr.bf16.mxu0 0
      %998 = vmatpush1.bf16.xpose.msra.mxu0 0
      %999 = vmatprep.subr.bf16.mxu0 0
      %1000 = vmatpush1.bf16.xpose.msra.mxu0 0
      %1001 = vmatprep.subr.bf16.mxu0 0
      %1002 = vmatpush1.bf16.xpose.msra.mxu0 0
      %1003 = vmatprep.subr.bf16.mxu0 0
      %1004 = vmatpush1.bf16.xpose.msra.mxu0 0
      %1005 = vmatprep.subr.bf16.mxu0 0
      %1006 = vmatpush1.bf16.xpose.msra.mxu0 0
      %1007 = vmatprep.subr.bf16.mxu0 0
      %1008 = vmatpush1.bf16.xpose.msra.mxu0 0
      %1009 = vmatprep.subr.bf16.mxu0 0
      %1010 = vmatpush1.bf16.xpose.msra.mxu0 0
      %1011 = vmatprep.subr.bf16.mxu0 0
      %1012 = vmatpush1.bf16.xpose.msra.mxu0 0
      %1013 = vmatprep.subr.bf16.mxu0 0
      %1014 = vmatpush1.bf16.xpose.msra.mxu0 0
      %1015 = vmatprep.subr.bf16.mxu0 0
      %1016 = vmatpush1.bf16.xpose.msra.mxu0 0
      %1017 = vmatprep.mubr.bf16.mxu0 0
      %1018 = vmatmul.mubr.bf16.gmra.mrb[0].mxu0 %v980
      %v1019 = vpop.f32.mrb[0].mxu0
      %v1020 = vadd.f32 0.0, %v1019
      %v1021 = vpop.f32.mrb[0].mxu0
      %v1022 = vpop.f32.mrb[0].mxu0
      %v1023 = vpop.f32.mrb[0].mxu0
      %1024 = vdwg.mxu0
      %v1025 = vmul.f32 %v1020, 0.5
      %v1026 = vsel %vm803, %v1025, -inf
      %1027 = vmax.xlane.f32.xlu0 %v1026
      %v1028 = vpop.xlane.xlu0 %1027
      %v1029 = vsub.f32 %v1025, %v1028
      %v1030 = vmul.f32 %v1029, 1.442695
      %v1031 = vpow.pop %v1030
      %v1032 = vsel %vm803, %v1031, 0.0
      %1033 = vadd.xlane.f32.xlu0 %v1032
      %v1034 = vpop.xlane.xlu0 %1033
      %v1035 = vrcp.pop %v1034
      %v1036 = vmul.f32 %v1031, %v1035
      %v1037 = vpack.c.bf16 %v1036, %v1036
      %1038 = vrot.lane.b32.xlu0 %v751, 120
      %v1039 = vpop.permute.xlu0 %1038
      %v1041 = vsel %vm803, %v1037, 0
      %v1044 = vsel %vm819, %v1039, 0
      %1046 = vmatprep.subr.bf16.mxu0 0
      %1047 = vmatpush1.bf16.msra.mxu0 %v1044
      %1048 = vmatprep.subr.bf16.mxu0 0
      %1049 = vmatpush1.bf16.msra.mxu0 0
      %1050 = vmatprep.subr.bf16.mxu0 0
      %1051 = vmatpush1.bf16.msra.mxu0 0
      %1052 = vmatprep.subr.bf16.mxu0 0
      %1053 = vmatpush1.bf16.msra.mxu0 0
      %1054 = vmatprep.subr.bf16.mxu0 0
      %1055 = vmatpush1.bf16.msra.mxu0 0
      %1056 = vmatprep.subr.bf16.mxu0 0
      %1057 = vmatpush1.bf16.msra.mxu0 0
      %1058 = vmatprep.subr.bf16.mxu0 0
      %1059 = vmatpush1.bf16.msra.mxu0 0
      %1060 = vmatprep.subr.bf16.mxu0 0
      %1061 = vmatpush1.bf16.msra.mxu0 0
      %1062 = vmatprep.subr.bf16.mxu0 0
      %1063 = vmatpush1.bf16.msra.mxu0 0
      %1064 = vmatprep.subr.bf16.mxu0 0
      %1065 = vmatpush1.bf16.msra.mxu0 0
      %1066 = vmatprep.subr.bf16.mxu0 0
      %1067 = vmatpush1.bf16.msra.mxu0 0
      %1068 = vmatprep.subr.bf16.mxu0 0
      %1069 = vmatpush1.bf16.msra.mxu0 0
      %1070 = vmatprep.subr.bf16.mxu0 0
      %1071 = vmatpush1.bf16.msra.mxu0 0
      %1072 = vmatprep.subr.bf16.mxu0 0
      %1073 = vmatpush1.bf16.msra.mxu0 0
      %1074 = vmatprep.subr.bf16.mxu0 0
      %1075 = vmatpush1.bf16.msra.mxu0 0
      %1076 = vmatprep.subr.bf16.mxu0 0
      %1077 = vmatpush1.bf16.msra.mxu0 0
      %1078 = vmatprep.mubr.bf16.mxu0 0
      %1079 = vmatmul.mubr.bf16.gmra.mrb[0].mxu0 %v1041
      %v1080 = vpop.f32.mrb[0].mxu0
      %v1081 = vadd.f32 0.0, %v1080
      %v1082 = vpop.f32.mrb[0].mxu0
      %v1083 = vpop.f32.mrb[0].mxu0
      %v1084 = vpop.f32.mrb[0].mxu0
      %1085 = vdwg.mxu0
      %1086 = vrot.lane.b32.xlu0 %v750, 116
      %v1087 = vpop.permute.xlu0 %1086
      %1088 = vrot.lane.b32.xlu0 %v750, 84
      %v1089 = vpop.permute.xlu0 %1088
      %v1091 = vsel %vm755, %v1087, 0
      %v1094 = vsel %vm755, %v1089, 0
      %1096 = vmatprep.subr.bf16.mxu0 0
      %1097 = vmatpush1.bf16.xpose.msra.mxu0 %v1094
      %1098 = vmatprep.subr.bf16.mxu0 0
      %1099 = vmatpush1.bf16.xpose.msra.mxu0 0
      %1100 = vmatprep.subr.bf16.mxu0 0
      %1101 = vmatpush1.bf16.xpose.msra.mxu0 0
      %1102 = vmatprep.subr.bf16.mxu0 0
      %1103 = vmatpush1.bf16.xpose.msra.mxu0 0
      %1104 = vmatprep.subr.bf16.mxu0 0
      %1105 = vmatpush1.bf16.xpose.msra.mxu0 0
      %1106 = vmatprep.subr.bf16.mxu0 0
      %1107 = vmatpush1.bf16.xpose.msra.mxu0 0
      %1108 = vmatprep.subr.bf16.mxu0 0
      %1109 = vmatpush1.bf16.xpose.msra.mxu0 0
      %1110 = vmatprep.subr.bf16.mxu0 0
      %1111 = vmatpush1.bf16.xpose.msra.mxu0 0
      %1112 = vmatprep.subr.bf16.mxu0 0
      %1113 = vmatpush1.bf16.xpose.msra.mxu0 0
      %1114 = vmatprep.subr.bf16.mxu0 0
      %1115 = vmatpush1.bf16.xpose.msra.mxu0 0
      %1116 = vmatprep.subr.bf16.mxu0 0
      %1117 = vmatpush1.bf16.xpose.msra.mxu0 0
      %1118 = vmatprep.subr.bf16.mxu0 0
      %1119 = vmatpush1.bf16.xpose.msra.mxu0 0
      %1120 = vmatprep.subr.bf16.mxu0 0
      %1121 = vmatpush1.bf16.xpose.msra.mxu0 0
      %1122 = vmatprep.subr.bf16.mxu0 0
      %1123 = vmatpush1.bf16.xpose.msra.mxu0 0
      %1124 = vmatprep.subr.bf16.mxu0 0
      %1125 = vmatpush1.bf16.xpose.msra.mxu0 0
      %1126 = vmatprep.subr.bf16.mxu0 0
      %1127 = vmatpush1.bf16.xpose.msra.mxu0 0
      %1128 = vmatprep.mubr.bf16.mxu0 0
      %1129 = vmatmul.mubr.bf16.gmra.mrb[0].mxu0 %v1091
      %v1130 = vpop.f32.mrb[0].mxu0
      %v1131 = vadd.f32 0.0, %v1130
      %v1132 = vpop.f32.mrb[0].mxu0
      %v1133 = vpop.f32.mrb[0].mxu0
      %v1134 = vpop.f32.mrb[0].mxu0
      %1135 = vdwg.mxu0
      %v1136 = vmul.f32 %v1131, 0.5
      %v1137 = vsel %vm803, %v1136, -inf
      %1138 = vmax.xlane.f32.xlu0 %v1137
      %v1139 = vpop.xlane.xlu0 %1138
      %v1140 = vsub.f32 %v1136, %v1139
      %v1141 = vmul.f32 %v1140, 1.442695
      %v1142 = vpow.pop %v1141
      %v1143 = vsel %vm803, %v1142, 0.0
      %1144 = vadd.xlane.f32.xlu0 %v1143
      %v1145 = vpop.xlane.xlu0 %1144
      %v1146 = vrcp.pop %v1145
      %v1147 = vmul.f32 %v1142, %v1146
      %v1148 = vpack.c.bf16 %v1147, %v1147
      %1149 = vrot.lane.b32.xlu0 %v751, 116
      %v1150 = vpop.permute.xlu0 %1149
      %v1152 = vsel %vm803, %v1148, 0
      %v1155 = vsel %vm819, %v1150, 0
      %1157 = vmatprep.subr.bf16.mxu0 0
      %1158 = vmatpush1.bf16.msra.mxu0 %v1155
      %1159 = vmatprep.subr.bf16.mxu0 0
      %1160 = vmatpush1.bf16.msra.mxu0 0
      %1161 = vmatprep.subr.bf16.mxu0 0
      %1162 = vmatpush1.bf16.msra.mxu0 0
      %1163 = vmatprep.subr.bf16.mxu0 0
      %1164 = vmatpush1.bf16.msra.mxu0 0
      %1165 = vmatprep.subr.bf16.mxu0 0
      %1166 = vmatpush1.bf16.msra.mxu0 0
      %1167 = vmatprep.subr.bf16.mxu0 0
      %1168 = vmatpush1.bf16.msra.mxu0 0
      %1169 = vmatprep.subr.bf16.mxu0 0
      %1170 = vmatpush1.bf16.msra.mxu0 0
      %1171 = vmatprep.subr.bf16.mxu0 0
      %1172 = vmatpush1.bf16.msra.mxu0 0
      %1173 = vmatprep.subr.bf16.mxu0 0
      %1174 = vmatpush1.bf16.msra.mxu0 0
      %1175 = vmatprep.subr.bf16.mxu0 0
      %1176 = vmatpush1.bf16.msra.mxu0 0
      %1177 = vmatprep.subr.bf16.mxu0 0
      %1178 = vmatpush1.bf16.msra.mxu0 0
      %1179 = vmatprep.subr.bf16.mxu0 0
      %1180 = vmatpush1.bf16.msra.mxu0 0
      %1181 = vmatprep.subr.bf16.mxu0 0
      %1182 = vmatpush1.bf16.msra.mxu0 0
      %1183 = vmatprep.subr.bf16.mxu0 0
      %1184 = vmatpush1.bf16.msra.mxu0 0
      %1185 = vmatprep.subr.bf16.mxu0 0
      %1186 = vmatpush1.bf16.msra.mxu0 0
      %1187 = vmatprep.subr.bf16.mxu0 0
      %1188 = vmatpush1.bf16.msra.mxu0 0
      %1189 = vmatprep.mubr.bf16.mxu0 0
      %1190 = vmatmul.mubr.bf16.gmra.mrb[0].mxu0 %v1152
      %v1191 = vpop.f32.mrb[0].mxu0
      %v1192 = vadd.f32 0.0, %v1191
      %v1193 = vpop.f32.mrb[0].mxu0
      %v1194 = vpop.f32.mrb[0].mxu0
      %v1195 = vpop.f32.mrb[0].mxu0
      %1196 = vdwg.mxu0
      %1197 = vrot.lane.b32.xlu0 %v750, 112
      %v1198 = vpop.permute.xlu0 %1197
      %1199 = vrot.lane.b32.xlu0 %v750, 80
      %v1200 = vpop.permute.xlu0 %1199
      %v1202 = vsel %vm755, %v1198, 0
      %v1205 = vsel %vm755, %v1200, 0
      %1207 = vmatprep.subr.bf16.mxu0 0
      %1208 = vmatpush1.bf16.xpose.msra.mxu0 %v1205
      %1209 = vmatprep.subr.bf16.mxu0 0
      %1210 = vmatpush1.bf16.xpose.msra.mxu0 0
      %1211 = vmatprep.subr.bf16.mxu0 0
      %1212 = vmatpush1.bf16.xpose.msra.mxu0 0
      %1213 = vmatprep.subr.bf16.mxu0 0
      %1214 = vmatpush1.bf16.xpose.msra.mxu0 0
      %1215 = vmatprep.subr.bf16.mxu0 0
      %1216 = vmatpush1.bf16.xpose.msra.mxu0 0
      %1217 = vmatprep.subr.bf16.mxu0 0
      %1218 = vmatpush1.bf16.xpose.msra.mxu0 0
      %1219 = vmatprep.subr.bf16.mxu0 0
      %1220 = vmatpush1.bf16.xpose.msra.mxu0 0
      %1221 = vmatprep.subr.bf16.mxu0 0
      %1222 = vmatpush1.bf16.xpose.msra.mxu0 0
      %1223 = vmatprep.subr.bf16.mxu0 0
      %1224 = vmatpush1.bf16.xpose.msra.mxu0 0
      %1225 = vmatprep.subr.bf16.mxu0 0
      %1226 = vmatpush1.bf16.xpose.msra.mxu0 0
      %1227 = vmatprep.subr.bf16.mxu0 0
      %1228 = vmatpush1.bf16.xpose.msra.mxu0 0
      %1229 = vmatprep.subr.bf16.mxu0 0
      %1230 = vmatpush1.bf16.xpose.msra.mxu0 0
      %1231 = vmatprep.subr.bf16.mxu0 0
      %1232 = vmatpush1.bf16.xpose.msra.mxu0 0
      %1233 = vmatprep.subr.bf16.mxu0 0
      %1234 = vmatpush1.bf16.xpose.msra.mxu0 0
      %1235 = vmatprep.subr.bf16.mxu0 0
      %1236 = vmatpush1.bf16.xpose.msra.mxu0 0
      %1237 = vmatprep.subr.bf16.mxu0 0
      %1238 = vmatpush1.bf16.xpose.msra.mxu0 0
      %1239 = vmatprep.mubr.bf16.mxu0 0
      %1240 = vmatmul.mubr.bf16.gmra.mrb[0].mxu0 %v1202
      %v1241 = vpop.f32.mrb[0].mxu0
      %v1242 = vadd.f32 0.0, %v1241
      %v1243 = vpop.f32.mrb[0].mxu0
      %v1244 = vpop.f32.mrb[0].mxu0
      %v1245 = vpop.f32.mrb[0].mxu0
      %1246 = vdwg.mxu0
      %v1247 = vmul.f32 %v1242, 0.5
      %v1248 = vsel %vm803, %v1247, -inf
      %1249 = vmax.xlane.f32.xlu0 %v1248
      %v1250 = vpop.xlane.xlu0 %1249
      %v1251 = vsub.f32 %v1247, %v1250
      %v1252 = vmul.f32 %v1251, 1.442695
      %v1253 = vpow.pop %v1252
      %v1254 = vsel %vm803, %v1253, 0.0
      %1255 = vadd.xlane.f32.xlu0 %v1254
      %v1256 = vpop.xlane.xlu0 %1255
      %v1257 = vrcp.pop %v1256
      %v1258 = vmul.f32 %v1253, %v1257
      %v1259 = vpack.c.bf16 %v1258, %v1258
      %1260 = vrot.lane.b32.xlu0 %v751, 112
      %v1261 = vpop.permute.xlu0 %1260
      %v1263 = vsel %vm803, %v1259, 0
      %v1266 = vsel %vm819, %v1261, 0
      %1268 = vmatprep.subr.bf16.mxu0 0
      %1269 = vmatpush1.bf16.msra.mxu0 %v1266
      %1270 = vmatprep.subr.bf16.mxu0 0
      %1271 = vmatpush1.bf16.msra.mxu0 0
      %1272 = vmatprep.subr.bf16.mxu0 0
      %1273 = vmatpush1.bf16.msra.mxu0 0
      %1274 = vmatprep.subr.bf16.mxu0 0
      %1275 = vmatpush1.bf16.msra.mxu0 0
      %1276 = vmatprep.subr.bf16.mxu0 0
      %1277 = vmatpush1.bf16.msra.mxu0 0
      %1278 = vmatprep.subr.bf16.mxu0 0
      %1279 = vmatpush1.bf16.msra.mxu0 0
      %1280 = vmatprep.subr.bf16.mxu0 0
      %1281 = vmatpush1.bf16.msra.mxu0 0
      %1282 = vmatprep.subr.bf16.mxu0 0
      %1283 = vmatpush1.bf16.msra.mxu0 0
      %1284 = vmatprep.subr.bf16.mxu0 0
      %1285 = vmatpush1.bf16.msra.mxu0 0
      %1286 = vmatprep.subr.bf16.mxu0 0
      %1287 = vmatpush1.bf16.msra.mxu0 0
      %1288 = vmatprep.subr.bf16.mxu0 0
      %1289 = vmatpush1.bf16.msra.mxu0 0
      %1290 = vmatprep.subr.bf16.mxu0 0
      %1291 = vmatpush1.bf16.msra.mxu0 0
      %1292 = vmatprep.subr.bf16.mxu0 0
      %1293 = vmatpush1.bf16.msra.mxu0 0
      %1294 = vmatprep.subr.bf16.mxu0 0
      %1295 = vmatpush1.bf16.msra.mxu0 0
      %1296 = vmatprep.subr.bf16.mxu0 0
      %1297 = vmatpush1.bf16.msra.mxu0 0
      %1298 = vmatprep.subr.bf16.mxu0 0
      %1299 = vmatpush1.bf16.msra.mxu0 0
      %1300 = vmatprep.mubr.bf16.mxu0 0
      %1301 = vmatmul.mubr.bf16.gmra.mrb[0].mxu0 %v1263
      %v1302 = vpop.f32.mrb[0].mxu0
      %v1303 = vadd.f32 0.0, %v1302
      %v1304 = vpop.f32.mrb[0].mxu0
      %v1305 = vpop.f32.mrb[0].mxu0
      %v1306 = vpop.f32.mrb[0].mxu0
      %1307 = vdwg.mxu0
      %1308 = vrot.lane.b32.xlu0 %v750, 108
      %v1309 = vpop.permute.xlu0 %1308
      %1310 = vrot.lane.b32.xlu0 %v750, 76
      %v1311 = vpop.permute.xlu0 %1310
      %v1313 = vsel %vm755, %v1309, 0
      %v1316 = vsel %vm755, %v1311, 0
      %1318 = vmatprep.subr.bf16.mxu0 0
      %1319 = vmatpush1.bf16.xpose.msra.mxu0 %v1316
      %1320 = vmatprep.subr.bf16.mxu0 0
      %1321 = vmatpush1.bf16.xpose.msra.mxu0 0
      %1322 = vmatprep.subr.bf16.mxu0 0
      %1323 = vmatpush1.bf16.xpose.msra.mxu0 0
      %1324 = vmatprep.subr.bf16.mxu0 0
      %1325 = vmatpush1.bf16.xpose.msra.mxu0 0
      %1326 = vmatprep.subr.bf16.mxu0 0
      %1327 = vmatpush1.bf16.xpose.msra.mxu0 0
      %1328 = vmatprep.subr.bf16.mxu0 0
      %1329 = vmatpush1.bf16.xpose.msra.mxu0 0
      %1330 = vmatprep.subr.bf16.mxu0 0
      %1331 = vmatpush1.bf16.xpose.msra.mxu0 0
      %1332 = vmatprep.subr.bf16.mxu0 0
      %1333 = vmatpush1.bf16.xpose.msra.mxu0 0
      %1334 = vmatprep.subr.bf16.mxu0 0
      %1335 = vmatpush1.bf16.xpose.msra.mxu0 0
      %1336 = vmatprep.subr.bf16.mxu0 0
      %1337 = vmatpush1.bf16.xpose.msra.mxu0 0
      %1338 = vmatprep.subr.bf16.mxu0 0
      %1339 = vmatpush1.bf16.xpose.msra.mxu0 0
      %1340 = vmatprep.subr.bf16.mxu0 0
      %1341 = vmatpush1.bf16.xpose.msra.mxu0 0
      %1342 = vmatprep.subr.bf16.mxu0 0
      %1343 = vmatpush1.bf16.xpose.msra.mxu0 0
      %1344 = vmatprep.subr.bf16.mxu0 0
      %1345 = vmatpush1.bf16.xpose.msra.mxu0 0
      %1346 = vmatprep.subr.bf16.mxu0 0
      %1347 = vmatpush1.bf16.xpose.msra.mxu0 0
      %1348 = vmatprep.subr.bf16.mxu0 0
      %1349 = vmatpush1.bf16.xpose.msra.mxu0 0
      %1350 = vmatprep.mubr.bf16.mxu0 0
      %1351 = vmatmul.mubr.bf16.gmra.mrb[0].mxu0 %v1313
      %v1352 = vpop.f32.mrb[0].mxu0
      %v1353 = vadd.f32 0.0, %v1352
      %v1354 = vpop.f32.mrb[0].mxu0
      %v1355 = vpop.f32.mrb[0].mxu0
      %v1356 = vpop.f32.mrb[0].mxu0
      %1357 = vdwg.mxu0
      %v1358 = vmul.f32 %v1353, 0.5
      %v1359 = vsel %vm803, %v1358, -inf
      %1360 = vmax.xlane.f32.xlu0 %v1359
      %v1361 = vpop.xlane.xlu0 %1360
      %v1362 = vsub.f32 %v1358, %v1361
      %v1363 = vmul.f32 %v1362, 1.442695
      %v1364 = vpow.pop %v1363
      %v1365 = vsel %vm803, %v1364, 0.0
      %1366 = vadd.xlane.f32.xlu0 %v1365
      %v1367 = vpop.xlane.xlu0 %1366
      %v1368 = vrcp.pop %v1367
      %v1369 = vmul.f32 %v1364, %v1368
      %v1370 = vpack.c.bf16 %v1369, %v1369
      %1371 = vrot.lane.b32.xlu0 %v751, 108
      %v1372 = vpop.permute.xlu0 %1371
      %v1374 = vsel %vm803, %v1370, 0
      %v1377 = vsel %vm819, %v1372, 0
      %1379 = vmatprep.subr.bf16.mxu0 0
      %1380 = vmatpush1.bf16.msra.mxu0 %v1377
      %1381 = vmatprep.subr.bf16.mxu0 0
      %1382 = vmatpush1.bf16.msra.mxu0 0
      %1383 = vmatprep.subr.bf16.mxu0 0
      %1384 = vmatpush1.bf16.msra.mxu0 0
      %1385 = vmatprep.subr.bf16.mxu0 0
      %1386 = vmatpush1.bf16.msra.mxu0 0
      %1387 = vmatprep.subr.bf16.mxu0 0
      %1388 = vmatpush1.bf16.msra.mxu0 0
      %1389 = vmatprep.subr.bf16.mxu0 0
      %1390 = vmatpush1.bf16.msra.mxu0 0
      %1391 = vmatprep.subr.bf16.mxu0 0
      %1392 = vmatpush1.bf16.msra.mxu0 0
      %1393 = vmatprep.subr.bf16.mxu0 0
      %1394 = vmatpush1.bf16.msra.mxu0 0
      %1395 = vmatprep.subr.bf16.mxu0 0
      %1396 = vmatpush1.bf16.msra.mxu0 0
      %1397 = vmatprep.subr.bf16.mxu0 0
      %1398 = vmatpush1.bf16.msra.mxu0 0
      %1399 = vmatprep.subr.bf16.mxu0 0
      %1400 = vmatpush1.bf16.msra.mxu0 0
      %1401 = vmatprep.subr.bf16.mxu0 0
      %1402 = vmatpush1.bf16.msra.mxu0 0
      %1403 = vmatprep.subr.bf16.mxu0 0
      %1404 = vmatpush1.bf16.msra.mxu0 0
      %1405 = vmatprep.subr.bf16.mxu0 0
      %1406 = vmatpush1.bf16.msra.mxu0 0
      %1407 = vmatprep.subr.bf16.mxu0 0
      %1408 = vmatpush1.bf16.msra.mxu0 0
      %1409 = vmatprep.subr.bf16.mxu0 0
      %1410 = vmatpush1.bf16.msra.mxu0 0
      %1411 = vmatprep.mubr.bf16.mxu0 0
      %1412 = vmatmul.mubr.bf16.gmra.mrb[0].mxu0 %v1374
      %v1413 = vpop.f32.mrb[0].mxu0
      %v1414 = vadd.f32 0.0, %v1413
      %v1415 = vpop.f32.mrb[0].mxu0
      %v1416 = vpop.f32.mrb[0].mxu0
      %v1417 = vpop.f32.mrb[0].mxu0
      %1418 = vdwg.mxu0
      %1419 = vrot.lane.b32.xlu0 %v750, 104
      %v1420 = vpop.permute.xlu0 %1419
      %1421 = vrot.lane.b32.xlu0 %v750, 72
      %v1422 = vpop.permute.xlu0 %1421
      %v1424 = vsel %vm755, %v1420, 0
      %v1427 = vsel %vm755, %v1422, 0
      %1429 = vmatprep.subr.bf16.mxu0 0
      %1430 = vmatpush1.bf16.xpose.msra.mxu0 %v1427
      %1431 = vmatprep.subr.bf16.mxu0 0
      %1432 = vmatpush1.bf16.xpose.msra.mxu0 0
      %1433 = vmatprep.subr.bf16.mxu0 0
      %1434 = vmatpush1.bf16.xpose.msra.mxu0 0
      %1435 = vmatprep.subr.bf16.mxu0 0
      %1436 = vmatpush1.bf16.xpose.msra.mxu0 0
      %1437 = vmatprep.subr.bf16.mxu0 0
      %1438 = vmatpush1.bf16.xpose.msra.mxu0 0
      %1439 = vmatprep.subr.bf16.mxu0 0
      %1440 = vmatpush1.bf16.xpose.msra.mxu0 0
      %1441 = vmatprep.subr.bf16.mxu0 0
      %1442 = vmatpush1.bf16.xpose.msra.mxu0 0
      %1443 = vmatprep.subr.bf16.mxu0 0
      %1444 = vmatpush1.bf16.xpose.msra.mxu0 0
      %1445 = vmatprep.subr.bf16.mxu0 0
      %1446 = vmatpush1.bf16.xpose.msra.mxu0 0
      %1447 = vmatprep.subr.bf16.mxu0 0
      %1448 = vmatpush1.bf16.xpose.msra.mxu0 0
      %1449 = vmatprep.subr.bf16.mxu0 0
      %1450 = vmatpush1.bf16.xpose.msra.mxu0 0
      %1451 = vmatprep.subr.bf16.mxu0 0
      %1452 = vmatpush1.bf16.xpose.msra.mxu0 0
      %1453 = vmatprep.subr.bf16.mxu0 0
      %1454 = vmatpush1.bf16.xpose.msra.mxu0 0
      %1455 = vmatprep.subr.bf16.mxu0 0
      %1456 = vmatpush1.bf16.xpose.msra.mxu0 0
      %1457 = vmatprep.subr.bf16.mxu0 0
      %1458 = vmatpush1.bf16.xpose.msra.mxu0 0
      %1459 = vmatprep.subr.bf16.mxu0 0
      %1460 = vmatpush1.bf16.xpose.msra.mxu0 0
      %1461 = vmatprep.mubr.bf16.mxu0 0
      %1462 = vmatmul.mubr.bf16.gmra.mrb[0].mxu0 %v1424
      %v1463 = vpop.f32.mrb[0].mxu0
      %v1464 = vadd.f32 0.0, %v1463
      %v1465 = vpop.f32.mrb[0].mxu0
      %v1466 = vpop.f32.mrb[0].mxu0
      %v1467 = vpop.f32.mrb[0].mxu0
      %1468 = vdwg.mxu0
      %v1469 = vmul.f32 %v1464, 0.5
      %v1470 = vsel %vm803, %v1469, -inf
      %1471 = vmax.xlane.f32.xlu0 %v1470
      %v1472 = vpop.xlane.xlu0 %1471
      %v1473 = vsub.f32 %v1469, %v1472
      %v1474 = vmul.f32 %v1473, 1.442695
      %v1475 = vpow.pop %v1474
      %v1476 = vsel %vm803, %v1475, 0.0
      %1477 = vadd.xlane.f32.xlu0 %v1476
      %v1478 = vpop.xlane.xlu0 %1477
      %v1479 = vrcp.pop %v1478
      %v1480 = vmul.f32 %v1475, %v1479
      %v1481 = vpack.c.bf16 %v1480, %v1480
      %1482 = vrot.lane.b32.xlu0 %v751, 104
      %v1483 = vpop.permute.xlu0 %1482
      %v1485 = vsel %vm803, %v1481, 0
      %v1488 = vsel %vm819, %v1483, 0
      %1490 = vmatprep.subr.bf16.mxu0 0
      %1491 = vmatpush1.bf16.msra.mxu0 %v1488
      %1492 = vmatprep.subr.bf16.mxu0 0
      %1493 = vmatpush1.bf16.msra.mxu0 0
      %1494 = vmatprep.subr.bf16.mxu0 0
      %1495 = vmatpush1.bf16.msra.mxu0 0
      %1496 = vmatprep.subr.bf16.mxu0 0
      %1497 = vmatpush1.bf16.msra.mxu0 0
      %1498 = vmatprep.subr.bf16.mxu0 0
      %1499 = vmatpush1.bf16.msra.mxu0 0
      %1500 = vmatprep.subr.bf16.mxu0 0
      %1501 = vmatpush1.bf16.msra.mxu0 0
      %1502 = vmatprep.subr.bf16.mxu0 0
      %1503 = vmatpush1.bf16.msra.mxu0 0
      %1504 = vmatprep.subr.bf16.mxu0 0
      %1505 = vmatpush1.bf16.msra.mxu0 0
      %1506 = vmatprep.subr.bf16.mxu0 0
      %1507 = vmatpush1.bf16.msra.mxu0 0
      %1508 = vmatprep.subr.bf16.mxu0 0
      %1509 = vmatpush1.bf16.msra.mxu0 0
      %1510 = vmatprep.subr.bf16.mxu0 0
      %1511 = vmatpush1.bf16.msra.mxu0 0
      %1512 = vmatprep.subr.bf16.mxu0 0
      %1513 = vmatpush1.bf16.msra.mxu0 0
      %1514 = vmatprep.subr.bf16.mxu0 0
      %1515 = vmatpush1.bf16.msra.mxu0 0
      %1516 = vmatprep.subr.bf16.mxu0 0
      %1517 = vmatpush1.bf16.msra.mxu0 0
      %1518 = vmatprep.subr.bf16.mxu0 0
      %1519 = vmatpush1.bf16.msra.mxu0 0
      %1520 = vmatprep.subr.bf16.mxu0 0
      %1521 = vmatpush1.bf16.msra.mxu0 0
      %1522 = vmatprep.mubr.bf16.mxu0 0
      %1523 = vmatmul.mubr.bf16.gmra.mrb[0].mxu0 %v1485
      %v1524 = vpop.f32.mrb[0].mxu0
      %v1525 = vadd.f32 0.0, %v1524
      %v1526 = vpop.f32.mrb[0].mxu0
      %v1527 = vpop.f32.mrb[0].mxu0
      %v1528 = vpop.f32.mrb[0].mxu0
      %1529 = vdwg.mxu0
      %1530 = vrot.lane.b32.xlu0 %v750, 100
      %v1531 = vpop.permute.xlu0 %1530
      %1532 = vrot.lane.b32.xlu0 %v750, 68
      %v1533 = vpop.permute.xlu0 %1532
      %v1535 = vsel %vm755, %v1531, 0
      %v1538 = vsel %vm755, %v1533, 0
      %1540 = vmatprep.subr.bf16.mxu0 0
      %1541 = vmatpush1.bf16.xpose.msra.mxu0 %v1538
      %1542 = vmatprep.subr.bf16.mxu0 0
      %1543 = vmatpush1.bf16.xpose.msra.mxu0 0
      %1544 = vmatprep.subr.bf16.mxu0 0
      %1545 = vmatpush1.bf16.xpose.msra.mxu0 0
      %1546 = vmatprep.subr.bf16.mxu0 0
      %1547 = vmatpush1.bf16.xpose.msra.mxu0 0
      %1548 = vmatprep.subr.bf16.mxu0 0
      %1549 = vmatpush1.bf16.xpose.msra.mxu0 0
      %1550 = vmatprep.subr.bf16.mxu0 0
      %1551 = vmatpush1.bf16.xpose.msra.mxu0 0
      %1552 = vmatprep.subr.bf16.mxu0 0
      %1553 = vmatpush1.bf16.xpose.msra.mxu0 0
      %1554 = vmatprep.subr.bf16.mxu0 0
      %1555 = vmatpush1.bf16.xpose.msra.mxu0 0
      %1556 = vmatprep.subr.bf16.mxu0 0
      %1557 = vmatpush1.bf16.xpose.msra.mxu0 0
      %1558 = vmatprep.subr.bf16.mxu0 0
      %1559 = vmatpush1.bf16.xpose.msra.mxu0 0
      %1560 = vmatprep.subr.bf16.mxu0 0
      %1561 = vmatpush1.bf16.xpose.msra.mxu0 0
      %1562 = vmatprep.subr.bf16.mxu0 0
      %1563 = vmatpush1.bf16.xpose.msra.mxu0 0
      %1564 = vmatprep.subr.bf16.mxu0 0
      %1565 = vmatpush1.bf16.xpose.msra.mxu0 0
      %1566 = vmatprep.subr.bf16.mxu0 0
      %1567 = vmatpush1.bf16.xpose.msra.mxu0 0
      %1568 = vmatprep.subr.bf16.mxu0 0
      %1569 = vmatpush1.bf16.xpose.msra.mxu0 0
      %1570 = vmatprep.subr.bf16.mxu0 0
      %1571 = vmatpush1.bf16.xpose.msra.mxu0 0
      %1572 = vmatprep.mubr.bf16.mxu0 0
      %1573 = vmatmul.mubr.bf16.gmra.mrb[0].mxu0 %v1535
      %v1574 = vpop.f32.mrb[0].mxu0
      %v1575 = vadd.f32 0.0, %v1574
      %v1576 = vpop.f32.mrb[0].mxu0
      %v1577 = vpop.f32.mrb[0].mxu0
      %v1578 = vpop.f32.mrb[0].mxu0
      %1579 = vdwg.mxu0
      %v1580 = vmul.f32 %v1575, 0.5
      %v1581 = vsel %vm803, %v1580, -inf
      %1582 = vmax.xlane.f32.xlu0 %v1581
      %v1583 = vpop.xlane.xlu0 %1582
      %v1584 = vsub.f32 %v1580, %v1583
      %v1585 = vmul.f32 %v1584, 1.442695
      %v1586 = vpow.pop %v1585
      %v1587 = vsel %vm803, %v1586, 0.0
      %1588 = vadd.xlane.f32.xlu0 %v1587
      %v1589 = vpop.xlane.xlu0 %1588
      %v1590 = vrcp.pop %v1589
      %v1591 = vmul.f32 %v1586, %v1590
      %v1592 = vpack.c.bf16 %v1591, %v1591
      %1593 = vrot.lane.b32.xlu0 %v751, 100
      %v1594 = vpop.permute.xlu0 %1593
      %v1596 = vsel %vm803, %v1592, 0
      %v1599 = vsel %vm819, %v1594, 0
      %1601 = vmatprep.subr.bf16.mxu0 0
      %1602 = vmatpush1.bf16.msra.mxu0 %v1599
      %1603 = vmatprep.subr.bf16.mxu0 0
      %1604 = vmatpush1.bf16.msra.mxu0 0
      %1605 = vmatprep.subr.bf16.mxu0 0
      %1606 = vmatpush1.bf16.msra.mxu0 0
      %1607 = vmatprep.subr.bf16.mxu0 0
      %1608 = vmatpush1.bf16.msra.mxu0 0
      %1609 = vmatprep.subr.bf16.mxu0 0
      %1610 = vmatpush1.bf16.msra.mxu0 0
      %1611 = vmatprep.subr.bf16.mxu0 0
      %1612 = vmatpush1.bf16.msra.mxu0 0
      %1613 = vmatprep.subr.bf16.mxu0 0
      %1614 = vmatpush1.bf16.msra.mxu0 0
      %1615 = vmatprep.subr.bf16.mxu0 0
      %1616 = vmatpush1.bf16.msra.mxu0 0
      %1617 = vmatprep.subr.bf16.mxu0 0
      %1618 = vmatpush1.bf16.msra.mxu0 0
      %1619 = vmatprep.subr.bf16.mxu0 0
      %1620 = vmatpush1.bf16.msra.mxu0 0
      %1621 = vmatprep.subr.bf16.mxu0 0
      %1622 = vmatpush1.bf16.msra.mxu0 0
      %1623 = vmatprep.subr.bf16.mxu0 0
      %1624 = vmatpush1.bf16.msra.mxu0 0
      %1625 = vmatprep.subr.bf16.mxu0 0
      %1626 = vmatpush1.bf16.msra.mxu0 0
      %1627 = vmatprep.subr.bf16.mxu0 0
      %1628 = vmatpush1.bf16.msra.mxu0 0
      %1629 = vmatprep.subr.bf16.mxu0 0
      %1630 = vmatpush1.bf16.msra.mxu0 0
      %1631 = vmatprep.subr.bf16.mxu0 0
      %1632 = vmatpush1.bf16.msra.mxu0 0
      %1633 = vmatprep.mubr.bf16.mxu0 0
      %1634 = vmatmul.mubr.bf16.gmra.mrb[0].mxu0 %v1596
      %v1635 = vpop.f32.mrb[0].mxu0
      %v1636 = vadd.f32 0.0, %v1635
      %v1637 = vpop.f32.mrb[0].mxu0
      %v1638 = vpop.f32.mrb[0].mxu0
      %v1639 = vpop.f32.mrb[0].mxu0
      %1640 = vdwg.mxu0
      %1642 = vrot.lane.b32.xlu0 %v970, 4
      %v1643 = vpop.permute.xlu0 %1642
      %1646 = vrot.lane.b32.xlu0 %v1081, 8
      %v1647 = vpop.permute.xlu0 %1646
      %1650 = vrot.lane.b32.xlu0 %v1192, 12
      %v1651 = vpop.permute.xlu0 %1650
      %1654 = vrot.lane.b32.xlu0 %v1303, 16
      %v1655 = vpop.permute.xlu0 %1654
      %1658 = vrot.lane.b32.xlu0 %v1414, 20
      %v1659 = vpop.permute.xlu0 %1658
      %1662 = vrot.lane.b32.xlu0 %v1525, 24
      %v1663 = vpop.permute.xlu0 %1662
      %1666 = vrot.lane.b32.xlu0 %v1636, 28
      %v1667 = vpop.permute.xlu0 %1666
      %v1669 = vsel %vm755, %v858, %v1643
      %v1670 = vsel %vm803, %v1669, %v1647
      %vm1671 = vcmask 97280
      %v1672 = vsel %vm1671, %v1670, %v1651
      %vm1673 = vcmask 130048
      %v1674 = vsel %vm1673, %v1672, %v1655
      %vm1675 = vcmask 162816
      %v1676 = vsel %vm1675, %v1674, %v1659
      %vm1677 = vcmask 195584
      %v1678 = vsel %vm1677, %v1676, %v1663
      %vm1679 = vcmask 228352
      %v1680 = vsel %vm1679, %v1678, %v1667
      %v1681 = vpack.c.bf16 %v1680, %v1680
      %v1682 = vld [vmem:[%s10] sm:$0xff]
      %v1683 = vld [vmem:[%s10 + $0x8] sm:$0xff]
      %v1684 = vld [vmem:[%s10 + $0x10] sm:$0xff]
      %v1685 = vld [vmem:[%s10 + $0x18] sm:$0xff]
      %v1686 = vpack.c.bf16 %v1683, %v1682
      %v1687 = vpack.c.bf16 %v1685, %v1684
      %v1688 = vld [vmem:[%s11] sm:$0x1]
      %v1690 = vlaneseq
      %v1691 = vshrl.u32 %v1690, 7
      %v1692 = vsub.s32 0, %v1691
      %v1693 = vrot.slane %v1688, %v1692
      %v1696 = vsel %vm534, %v1681, 0
      %1698 = vmatprep.subr.bf16.mxu0 0
      %1699 = vmatpush1.bf16.msra.mxu0 %v1686
      %1700 = vmatprep.subr.bf16.mxu0 0
      %1701 = vmatpush1.bf16.msra.mxu0 %v1687
      %1702 = vmatprep.subr.bf16.mxu0 0
      %1703 = vmatpush1.bf16.msra.mxu0 0
      %1704 = vmatprep.subr.bf16.mxu0 0
      %1705 = vmatpush1.bf16.msra.mxu0 0
      %1706 = vmatprep.subr.bf16.mxu0 0
      %1707 = vmatpush1.bf16.msra.mxu0 0
      %1708 = vmatprep.subr.bf16.mxu0 0
      %1709 = vmatpush1.bf16.msra.mxu0 0
      %1710 = vmatprep.subr.bf16.mxu0 0
      %1711 = vmatpush1.bf16.msra.mxu0 0
      %1712 = vmatprep.subr.bf16.mxu0 0
      %1713 = vmatpush1.bf16.msra.mxu0 0
      %1714 = vmatprep.subr.bf16.mxu0 0
      %1715 = vmatpush1.bf16.msra.mxu0 0
      %1716 = vmatprep.subr.bf16.mxu0 0
      %1717 = vmatpush1.bf16.msra.mxu0 0
      %1718 = vmatprep.subr.bf16.mxu0 0
      %1719 = vmatpush1.bf16.msra.mxu0 0
      %1720 = vmatprep.subr.bf16.mxu0 0
      %1721 = vmatpush1.bf16.msra.mxu0 0
      %1722 = vmatprep.subr.bf16.mxu0 0
      %1723 = vmatpush1.bf16.msra.mxu0 0
      %1724 = vmatprep.subr.bf16.mxu0 0
      %1725 = vmatpush1.bf16.msra.mxu0 0
      %1726 = vmatprep.subr.bf16.mxu0 0
      %1727 = vmatpush1.bf16.msra.mxu0 0
      %1728 = vmatprep.subr.bf16.mxu0 0
      %1729 = vmatpush1.bf16.msra.mxu0 0
      %1730 = vmatprep.mubr.bf16.mxu0 0
      %1731 = vmatmul.mubr.bf16.gmra.mrb[0].mxu0 %v1696
      %v1732 = vpop.f32.mrb[0].mxu0
      %v1733 = vadd.f32 %v1693, %v1732
      %v1734 = vpop.f32.mrb[0].mxu0
      %v1735 = vpop.f32.mrb[0].mxu0
      %v1736 = vpop.f32.mrb[0].mxu0
      %1737 = vdwg.mxu0
      %v1738 = vadd.f32 %v519, %v1733
      %v1739 = vsel %vm534, %v1738, 0.0
      %1740 = vadd.xlane.f32.xlu0 %v1739
      %v1741 = vpop.xlane.xlu0 %1740
      %v1742 = vrcp.pop 32.0
      %v1743 = vmul.f32 %v1741, %v1742
      %v1744 = vsub.f32 %v1738, %v1743
      %v1745 = vmul.f32 %v1744, %v1744
      %v1746 = vsel %vm534, %v1745, 0.0
      %1747 = vadd.xlane.f32.xlu0 %v1746
      %v1748 = vpop.xlane.xlu0 %1747
      %v1749 = vmul.f32 %v1748, %v1742
      %v1750 = vadd.f32 %v1749, 1e-05
      %v1751 = vrsqrt.pop %v1750
      %v1752 = vmul.f32 %v1744, %v1751
      %v1753 = vld [vmem:[%s12] sm:$0x1]
      %v1755 = vlaneseq
      %v1756 = vshrl.u32 %v1755, 7
      %v1757 = vsub.s32 0, %v1756
      %v1758 = vrot.slane %v1753, %v1757
      %v1760 = vmul.f32 %v1752, %v1758
      %v1761 = vld [vmem:[%s13] sm:$0x1]
      %v1763 = vlaneseq
      %v1764 = vshrl.u32 %v1763, 7
      %v1765 = vsub.s32 0, %v1764
      %v1766 = vrot.slane %v1761, %v1765
      %v1768 = vadd.f32 %v1760, %v1766
      %1769 = vst.msk [vmem:[%s513] sm:$0xff] %vm534, %v1768
      %p1770 = scmp.lt.s32.totalorder %s27, 1
      %s1771 = scalar_select %p1770, %s27, 1
      %s1772 = smul.addr %s1771, 8
      %s1773 = scalar_lea.vmem %s14, %s1772
      %p1774 = scmp.lt.s32.totalorder %s27, 1
      %s1775 = scalar_select %p1774, %s27, 1
      %s1776 = smul.addr %s1775, 8
      %s1777 = scalar_lea.vmem %s15, %s1776
      // Predicated region
      $region77: #{decoder_forward.8} parent=75 // pred_check
        %p1778 = pneg %p349
      $region78: #{decoder_forward.8} parent=75 // pred_check_branch
        %1780 = sbr.rel (%p1778) target = $region80
      $region79: #{decoder_forward.8} parent=75 // pred_region
        _
      $region80: #{decoder_forward.8} parent=75 // pred_fallthru
        _
      // Predicated region
      $region81: #{decoder_forward.8} parent=75 // pred_check
        %p1781 = pneg %p375
      $region82: #{decoder_forward.8} parent=75 // pred_check_branch
        %1783 = sbr.rel (%p1781) target = $region84
      $region83: #{decoder_forward.8} parent=75 // pred_region
        _
      $region84: #{decoder_forward.8} parent=75 // pred_fallthru
        _
    $region76: #{decoder_forward.8} parent=5 // pred_fallthru
      _
    %p1784 = scmp.le.s32.totalorder 2, %s22
    // Predicated region
    $region85: #{decoder_forward.8} parent=5 // pred_check
      %p1785 = pneg %p1784
    $region86: #{decoder_forward.8} parent=5 // pred_check_branch
      %1787 = sbr.rel (%p1785) target = $region88
    $region87: #{decoder_forward.8} parent=5 // pred_region
      %s1788 = ssub.s32 %s22, 2
      // Predicated region
      $region89: #{decoder_forward.8} parent=87 // pred_check
        %p1789 = pneg %p355
      $region90: #{decoder_forward.8} parent=87 // pred_check_branch
        %1791 = sbr.rel (%p1789) target = $region92
      $region91: #{decoder_forward.8} parent=87 // pred_region
        %p1792 = scmp.lt.s32.totalorder %s28, 1
        %s1793 = scalar_select %p1792, %s28, 1
        %s1794 = smul.addr %s1793, 8
        %s1795 = scalar_lea.vmem %s14, %s1794
      $region92: #{decoder_forward.8} parent=87 // pred_fallthru
        _
      // Predicated region
      $region93: #{decoder_forward.8} parent=87 // pred_check
        %p1796 = pneg %p381
      $region94: #{decoder_forward.8} parent=87 // pred_check_branch
        %1798 = sbr.rel (%p1796) target = $region96
      $region95: #{decoder_forward.8} parent=87 // pred_region
        %p1799 = scmp.lt.s32.totalorder %s28, 1
        %s1800 = scalar_select %p1799, %s28, 1
        %s1801 = smul.addr %s1800, 8
        %s1802 = scalar_lea.vmem %s15, %s1801
      $region96: #{decoder_forward.8} parent=87 // pred_fallthru
        _
    $region88: #{decoder_forward.8} parent=5 // pred_fallthru
      _
  $region6: #{decoder_forward.8} parent=0 // loop_footer
    %s26 = sadd.s32 1, %s22
  $region7: #{decoder_forward.8} parent=0 // loop_footer_branch
    %21 = sbr.rel target = $region3
  $region8: #{decoder_forward.8} parent=0 // loop_exit
    _

// kernel: decoder_forward.13
$region0: #{decoder_forward.13}
  #allocation0 [shape = 'u32[]', space=smem, size = 0x4, offset = 0x4, fixed_abs, tag = 'smem constant byte address 0x4 - core index']
  #allocation1 [shape = 'u32[144,128]{1,0:T(1,128)}', space=vmem, size = 0x12000, scoped, tag = 'internal scratch']
  %s0 = inlined_call_operand.vmem [shape: f32[16,32], index: 0, kind: input, shape index: {}]
  %s1 = inlined_call_operand.vmem [shape: f32[32,64], index: 1, kind: input, shape index: {}]
  %s2 = inlined_call_operand.vmem [shape: f32[1,64], index: 2, kind: input, shape index: {}]
  %s3 = inlined_call_operand.vmem [shape: f32[64,32], index: 3, kind: input, shape index: {}]
  %s4 = inlined_call_operand.vmem [shape: f32[1,32], index: 4, kind: input, shape index: {}]
  %s5 = inlined_call_operand.vmem [shape: f32[1,32], index: 5, kind: input, shape index: {}]
  %s6 = inlined_call_operand.vmem [shape: f32[1,32], index: 6, kind: input, shape index: {}]
  %s7 = inlined_call_operand.hbm [shape: f32[16,32], index: 7, kind: output, shape index: {}]
  %s8 = sld [smem:[#allocation0]]
  $region38: #{decoder_forward.13} parent=0
    _
  %s10 = ssub.s32 1, %s8
  %s11 = scalar_select 0, %s10, %s8
  $region1: #{decoder_forward.13} parent=0
    #allocation2 [shape = 'u8[8192]{0}', space=vmem, size = 0x2000, scoped, tag = 'output window, operand 0, single buffered']
    #allocation3 [shape = 's32[1]{0}', space=sflag, size = 0x4, scoped, tag = 'scoped memory for decoder_forward.13']
    %12 = vsyncpa [#allocation3], 0
    // Predicated region
    $region2: #{decoder_forward.13} parent=1 // pred_check
      _
    $region3: #{decoder_forward.13} parent=1 // pred_check_branch
      %14 = sbr.rel (0) target = $region5
    $region4: #{decoder_forward.13} parent=1 // pred_region
      _
    $region5: #{decoder_forward.13} parent=1 // pred_fallthru
      _
    // Predicated region
    $region6: #{decoder_forward.13} parent=1 // pred_check
      _
    $region7: #{decoder_forward.13} parent=1 // pred_check_branch
      %16 = sbr.rel (0) target = $region9
    $region8: #{decoder_forward.13} parent=1 // pred_region
      _
    $region9: #{decoder_forward.13} parent=1 // pred_fallthru
      _
    // Predicated region
    $region10: #{decoder_forward.13} parent=1 // pred_check
      _
    $region11: #{decoder_forward.13} parent=1 // pred_check_branch
      %18 = sbr.rel (0) target = $region13
    $region12: #{decoder_forward.13} parent=1 // pred_region
      _
    $region13: #{decoder_forward.13} parent=1 // pred_fallthru
      _
    // Predicated region
    $region14: #{decoder_forward.13} parent=1 // pred_check
      _
    $region15: #{decoder_forward.13} parent=1 // pred_check_branch
      %20 = sbr.rel (0) target = $region17
    $region16: #{decoder_forward.13} parent=1 // pred_region
      _
    $region17: #{decoder_forward.13} parent=1 // pred_fallthru
      _
    // Predicated region
    $region18: #{decoder_forward.13} parent=1 // pred_check
      _
    $region19: #{decoder_forward.13} parent=1 // pred_check_branch
      %22 = sbr.rel (0) target = $region21
    $region20: #{decoder_forward.13} parent=1 // pred_region
      _
    $region21: #{decoder_forward.13} parent=1 // pred_fallthru
      _
    // Predicated region
    $region22: #{decoder_forward.13} parent=1 // pred_check
      _
    $region23: #{decoder_forward.13} parent=1 // pred_check_branch
      %24 = sbr.rel (0) target = $region25
    $region24: #{decoder_forward.13} parent=1 // pred_region
      _
    $region25: #{decoder_forward.13} parent=1 // pred_fallthru
      _
    // Predicated region
    $region26: #{decoder_forward.13} parent=1 // pred_check
      _
    $region27: #{decoder_forward.13} parent=1 // pred_check_branch
      %26 = sbr.rel (0) target = $region29
    $region28: #{decoder_forward.13} parent=1 // pred_region
      _
    $region29: #{decoder_forward.13} parent=1 // pred_fallthru
      _
    %v28 = vld [vmem:[%s0] sm:$0xff]
    %v29 = vld [vmem:[%s0 + $0x8] sm:$0xff]
    %v30 = vpack.c.bf16 %v29, %v28
    %v31 = vld [vmem:[%s1] sm:$0xff]
    %v32 = vld [vmem:[%s1 + $0x8] sm:$0xff]
    %v33 = vld [vmem:[%s1 + $0x10] sm:$0xff]
    %v34 = vld [vmem:[%s1 + $0x18] sm:$0xff]
    %v35 = vpack.c.bf16 %v32, %v31
    %v36 = vpack.c.bf16 %v34, %v33
    %v37 = vld [vmem:[%s2] sm:$0x1]
    %v39 = vlaneseq
    %v40 = vshrl.u32 %v39, 7
    %v41 = vsub.s32 0, %v40
    %v42 = vrot.slane %v37, %v41
    %vm44 = vcmask 261120
    %v46 = vsel %vm44, %v30, 0
    %48 = vmatprep.subr.bf16.mxu0 0
    %49 = vmatpush1.bf16.msra.mxu0 %v35
    %50 = vmatprep.subr.bf16.mxu0 0
    %51 = vmatpush1.bf16.msra.mxu0 %v36
    %52 = vmatprep.subr.bf16.mxu0 0
    %53 = vmatpush1.bf16.msra.mxu0 0
    %54 = vmatprep.subr.bf16.mxu0 0
    %55 = vmatpush1.bf16.msra.mxu0 0
    %56 = vmatprep.subr.bf16.mxu0 0
    %57 = vmatpush1.bf16.msra.mxu0 0
    %58 = vmatprep.subr.bf16.mxu0 0
    %59 = vmatpush1.bf16.msra.mxu0 0
    %60 = vmatprep.subr.bf16.mxu0 0
    %61 = vmatpush1.bf16.msra.mxu0 0
    %62 = vmatprep.subr.bf16.mxu0 0
    %63 = vmatpush1.bf16.msra.mxu0 0
    %64 = vmatprep.subr.bf16.mxu0 0
    %65 = vmatpush1.bf16.msra.mxu0 0
    %66 = vmatprep.subr.bf16.mxu0 0
    %67 = vmatpush1.bf16.msra.mxu0 0
    %68 = vmatprep.subr.bf16.mxu0 0
    %69 = vmatpush1.bf16.msra.mxu0 0
    %70 = vmatprep.subr.bf16.mxu0 0
    %71 = vmatpush1.bf16.msra.mxu0 0
    %72 = vmatprep.subr.bf16.mxu0 0
    %73 = vmatpush1.bf16.msra.mxu0 0
    %74 = vmatprep.subr.bf16.mxu0 0
    %75 = vmatpush1.bf16.msra.mxu0 0
    %76 = vmatprep.subr.bf16.mxu0 0
    %77 = vmatpush1.bf16.msra.mxu0 0
    %78 = vmatprep.subr.bf16.mxu0 0
    %79 = vmatpush1.bf16.msra.mxu0 0
    %80 = vmatprep.mubr.bf16.mxu0 0
    %81 = vmatmul.mubr.bf16.gmra.mrb[0].mxu0 %v46
    %v82 = vpop.f32.mrb[0].mxu0
    %v83 = vadd.f32 %v42, %v82
    %v84 = vpop.f32.mrb[0].mxu0
    %v85 = vpop.f32.mrb[0].mxu0
    %v86 = vadd.f32 %v42, %v85
    %v87 = vpop.f32.mrb[0].mxu0
    %88 = vdwg.mxu0
    %v89 = vmax.f32 %v83, 0.0
    %v90 = vmax.f32 %v86, 0.0
    %v91 = vpack.c.bf16 %v90, %v89
    %v92 = vld [vmem:[%s3] sm:$0xff]
    %v93 = vld [vmem:[%s3 + $0x8] sm:$0xff]
    %v94 = vld [vmem:[%s3 + $0x10] sm:$0xff]
    %v95 = vld [vmem:[%s3 + $0x18] sm:$0xff]
    %v96 = vld [vmem:[%s3 + $0x20] sm:$0xff]
    %v97 = vld [vmem:[%s3 + $0x28] sm:$0xff]
    %v98 = vld [vmem:[%s3 + $0x30] sm:$0xff]
    %v99 = vld [vmem:[%s3 + $0x38] sm:$0xff]
    %v100 = vpack.c.bf16 %v93, %v92
    %v101 = vpack.c.bf16 %v95, %v94
    %v102 = vpack.c.bf16 %v97, %v96
    %v103 = vpack.c.bf16 %v99, %v98
    %v104 = vld [vmem:[%s4] sm:$0x1]
    %v106 = vlaneseq
    %v107 = vshrl.u32 %v106, 7
    %v108 = vsub.s32 0, %v107
    %v109 = vrot.slane %v104, %v108
    %vm111 = vcmask 523264
    %v113 = vsel %vm111, %v91, 0
    %115 = vmatprep.subr.bf16.mxu0 0
    %116 = vmatpush1.bf16.msra.mxu0 %v100
    %117 = vmatprep.subr.bf16.mxu0 0
    %118 = vmatpush1.bf16.msra.mxu0 %v101
    %119 = vmatprep.subr.bf16.mxu0 0
    %120 = vmatpush1.bf16.msra.mxu0 %v102
    %121 = vmatprep.subr.bf16.mxu0 0
    %122 = vmatpush1.bf16.msra.mxu0 %v103
    %123 = vmatprep.subr.bf16.mxu0 0
    %124 = vmatpush1.bf16.msra.mxu0 0
    %125 = vmatprep.subr.bf16.mxu0 0
    %126 = vmatpush1.bf16.msra.mxu0 0
    %127 = vmatprep.subr.bf16.mxu0 0
    %128 = vmatpush1.bf16.msra.mxu0 0
    %129 = vmatprep.subr.bf16.mxu0 0
    %130 = vmatpush1.bf16.msra.mxu0 0
    %131 = vmatprep.subr.bf16.mxu0 0
    %132 = vmatpush1.bf16.msra.mxu0 0
    %133 = vmatprep.subr.bf16.mxu0 0
    %134 = vmatpush1.bf16.msra.mxu0 0
    %135 = vmatprep.subr.bf16.mxu0 0
    %136 = vmatpush1.bf16.msra.mxu0 0
    %137 = vmatprep.subr.bf16.mxu0 0
    %138 = vmatpush1.bf16.msra.mxu0 0
    %139 = vmatprep.subr.bf16.mxu0 0
    %140 = vmatpush1.bf16.msra.mxu0 0
    %141 = vmatprep.subr.bf16.mxu0 0
    %142 = vmatpush1.bf16.msra.mxu0 0
    %143 = vmatprep.subr.bf16.mxu0 0
    %144 = vmatpush1.bf16.msra.mxu0 0
    %145 = vmatprep.subr.bf16.mxu0 0
    %146 = vmatpush1.bf16.msra.mxu0 0
    %147 = vmatprep.mubr.bf16.mxu0 0
    %148 = vmatmul.mubr.bf16.gmra.mrb[0].mxu0 %v113
    %v149 = vpop.f32.mrb[0].mxu0
    %v150 = vadd.f32 %v109, %v149
    %v151 = vpop.f32.mrb[0].mxu0
    %v152 = vpop.f32.mrb[0].mxu0
    %v153 = vadd.f32 %v109, %v152
    %v154 = vpop.f32.mrb[0].mxu0
    %155 = vdwg.mxu0
    %v156 = vadd.f32 %v28, %v150
    %v157 = vadd.f32 %v29, %v153
    %v158 = vsel %vm44, %v156, 0.0
    %159 = vadd.xlane.f32.xlu0 %v158
    %v160 = vpop.xlane.xlu0 %159
    %v161 = vsel %vm44, %v157, 0.0
    %162 = vadd.xlane.f32.xlu0 %v161
    %v163 = vpop.xlane.xlu0 %162
    %v164 = vrcp.pop 32.0
    %v165 = vmul.f32 %v160, %v164
    %v166 = vmul.f32 %v163, %v164
    %v167 = vsub.f32 %v156, %v165
    %v168 = vsub.f32 %v157, %v166
    %v169 = vmul.f32 %v167, %v167
    %v170 = vmul.f32 %v168, %v168
    %v171 = vsel %vm44, %v169, 0.0
    %172 = vadd.xlane.f32.xlu0 %v171
    %v173 = vpop.xlane.xlu0 %172
    %v174 = vsel %vm44, %v170, 0.0
    %175 = vadd.xlane.f32.xlu0 %v174
    %v176 = vpop.xlane.xlu0 %175
    %v177 = vmul.f32 %v173, %v164
    %v178 = vmul.f32 %v176, %v164
    %v179 = vadd.f32 %v177, 1e-05
    %v180 = vadd.f32 %v178, 1e-05
    %v181 = vrsqrt.pop %v179
    %v182 = vrsqrt.pop %v180
    %v183 = vmul.f32 %v167, %v181
    %v184 = vmul.f32 %v168, %v182
    %v185 = vld [vmem:[%s5] sm:$0x1]
    %v187 = vlaneseq
    %v188 = vshrl.u32 %v187, 7
    %v189 = vsub.s32 0, %v188
    %v190 = vrot.slane %v185, %v189
    %v192 = vmul.f32 %v183, %v190
    %v193 = vmul.f32 %v184, %v190
    %v194 = vld [vmem:[%s6] sm:$0x1]
    %v196 = vlaneseq
    %v197 = vshrl.u32 %v196, 7
    %v198 = vsub.s32 0, %v197
    %v199 = vrot.slane %v194, %v198
    %v201 = vadd.f32 %v192, %v199
    %v202 = vadd.f32 %v193, %v199
    %203 = vst.msk [vmem:[#allocation2] sm:$0xff] %vm44, %v201
    %204 = vst.msk [vmem:[#allocation2 + $0x8] sm:$0xff] %vm44, %v202
    // Predicated region
    $region30: #{decoder_forward.13} parent=1 // pred_check
      _
    $region31: #{decoder_forward.13} parent=1 // pred_check_branch
      %206 = sbr.rel (0) target = $region33
    $region32: #{decoder_forward.13} parent=1 // pred_region
      %s208 = ssub.s32 256, 256
      %209 = vsyncadd [#allocation3], %s208
      %s210 = sshll.u32 [#allocation2], 4
      %s211 = int_to_ptr.vmem [resolvable:$true] %s210
      %216 = dma.vmem_to_hbm [thread:$0]  %s211, 256, %s7, [#allocation3], 128, 128, 8
    $region33: #{decoder_forward.13} parent=1 // pred_fallthru
      _
    // Predicated region
    $region34: #{decoder_forward.13} parent=1 // pred_check
      _
    $region35: #{decoder_forward.13} parent=1 // pred_check_branch
      %218 = sbr.rel (0) target = $region37
    $region36: #{decoder_forward.13} parent=1 // pred_region
      %219 = dma.done [#allocation3], 256
    $region37: #{decoder_forward.13} parent=1 // pred_fallthru
      _
    %220 = vsyncpa [#allocation3], 1

// kernel: decoder_forward.9
$region0: #{decoder_forward.9}
  #allocation0 [shape = 'u32[]', space=smem, size = 0x4, offset = 0x4, fixed_abs, tag = 'smem constant byte address 0x4 - core index']
  #allocation1 [shape = 'u32[144,128]{1,0:T(1,128)}', space=vmem, size = 0x12000, scoped, tag = 'internal scratch']
  %s0 = inlined_call_operand.vmem [shape: f32[2,8,32], index: 0, kind: input, shape index: {}]
  %s1 = inlined_call_operand.vmem [shape: f32[2,8,32], index: 1, kind: input, shape index: {}]
  %s2 = inlined_call_operand.vmem [shape: f32[2,30,32], index: 2, kind: input, shape index: {}]
  %s3 = inlined_call_operand.vmem [shape: f32[2,30,1], index: 3, kind: input, shape index: {}]
  %s4 = inlined_call_operand.vmem [shape: f32[32,32], index: 4, kind: input, shape index: {}]
  %s5 = inlined_call_operand.vmem [shape: f32[1,32], index: 5, kind: input, shape index: {}]
  %s6 = inlined_call_operand.vmem [shape: f32[32,64], index: 6, kind: input, shape index: {}]
  %s7 = inlined_call_operand.vmem [shape: f32[1,64], index: 7, kind: input, shape index: {}]
  %s8 = inlined_call_operand.vmem [shape: f32[2,8,32], index: 8, kind: input, shape index: {}]
  %s9 = inlined_call_operand.vmem [shape: f32[2,8,32], index: 9, kind: input, shape index: {}]
  %s10 = inlined_call_operand.vmem [shape: s32[1,32], index: 10, kind: input, shape index: {}]
  %s11 = inlined_call_operand.vmem [shape: s32[1,32], index: 11, kind: input, shape index: {}]
  %s12 = inlined_call_operand.vmem [shape: f32[32,32], index: 12, kind: input, shape index: {}]
  %s13 = inlined_call_operand.vmem [shape: f32[1,32], index: 13, kind: input, shape index: {}]
  %s14 = inlined_call_operand.vmem [shape: f32[1,32], index: 14, kind: input, shape index: {}]
  %s15 = inlined_call_operand.vmem [shape: f32[1,32], index: 15, kind: input, shape index: {}]
  %s16 = inlined_call_operand.vmem [shape: f32[2,8,32], index: 16, kind: output, shape index: {0}]
  %s17 = inlined_call_operand.hbm [shape: f32[2,8,32], index: 17, kind: output, shape index: {1}]
  %18 = xla_tuple %s16, %s17
  %s19 = sld [smem:[#allocation0]]
  $region105: #{decoder_forward.9} parent=0
    _
  %s21 = ssub.s32 1, %s19
  %s22 = scalar_select 0, %s21, %s19
  $region1: #{decoder_forward.9} parent=0
    #allocation2 [shape = 'u8[8192]{0}', space=vmem, size = 0x2000, scoped, tag = 'output window, operand 1']
    #allocation3 [shape = 's32[2]{0}', space=sflag, size = 0x8, scoped, tag = 'scoped memory for decoder_forward.9']
    %23 = vsyncpa [#allocation3], 0
    %s24 = scalar_lea.sflag [#allocation3], 1
    %25 = vsyncpa %s24, 0
    loop: start=0, step=1, limit=4
    $region2: #{decoder_forward.9} parent=1 // loop_pre_header
      _
    $region3: #{decoder_forward.9} parent=1 // loop_header
      %s27 = sphi 0, %s31
      %p28 = scmp.ge.s32.totalorder %s27, 4
      %s37 = sphi 0, %s39
      %s40 = sphi 0, %s37
      %s41 = sphi 0, %s40
      %s57 = sphi 0, %s41
      %s63 = sphi 0, %s65
      %s66 = sphi 0, %s63
      %s67 = sphi 0, %s66
      %s83 = sphi 0, %s67
      %s89 = sphi 0, %s91
      %s92 = sphi 0, %s89
      %s93 = sphi 0, %s92
      %s109 = sphi 0, %s93
      %s115 = sphi 0, %s117
      %s118 = sphi 0, %s115
      %s119 = sphi 0, %s118
      %s135 = sphi 0, %s119
      %s139 = sphi 0, %s139
      %s141 = sphi 0, %s139
      %s142 = sphi 0, %s141
      %s156 = sphi 0, %s142
      %s160 = sphi 0, %s160
      %s162 = sphi 0, %s160
      %s163 = sphi 0, %s162
      %s177 = sphi 0, %s163
      %s181 = sphi 0, %s181
      %s183 = sphi 0, %s181
      %s184 = sphi 0, %s183
      %s198 = sphi 0, %s184
      %s202 = sphi 0, %s202
      %s204 = sphi 0, %s202
      %s205 = sphi 0, %s204
      %s219 = sphi 0, %s205
      %s225 = sphi 0, %s227
      %s228 = sphi 0, %s225
      %s229 = sphi 0, %s228
      %s245 = sphi 0, %s229
      %s251 = sphi 0, %s253
      %s254 = sphi 0, %s251
      %s255 = sphi 0, %s254
      %s271 = sphi 0, %s255
      %s275 = sphi 0, %s275
      %s277 = sphi 0, %s275
      %s278 = sphi 0, %s277
      %s292 = sphi 0, %s278
      %s296 = sphi 0, %s296
      %s298 = sphi 0, %s296
      %s299 = sphi 0, %s298
      %s313 = sphi 0, %s299
      %s317 = sphi 0, %s317
      %s319 = sphi 0, %s317
      %s320 = sphi 0, %s319
      %s334 = sphi 0, %s320
      %s338 = sphi 0, %s338
      %s340 = sphi 0, %s338
      %s341 = sphi 0, %s340
      %s355 = sphi 0, %s341
      %s359 = sphi 0, %s359
      %s361 = sphi 0, %s359
      %s362 = sphi 0, %s361
      %s376 = sphi 0, %s362
      %s380 = sphi 0, %s380
      %s382 = sphi 0, %s380
      %s383 = sphi 0, %s382
      %s397 = sphi 0, %s383
      %s403 = sphi 0, %s405
      %s406 = sphi 0, %s403
      %s407 = sphi 0, %s406
      %s423 = sphi 0, %s407
      %s429 = sphi 0, %s431
      %s432 = sphi 0, %s429
      %s433 = sphi 0, %s432
      %s449 = sphi 0, %s433
    $region4: #{decoder_forward.9} parent=1 // loop_header_branch
      %30 = sbr.rel (%p28) target = $region8
    $region5: #{decoder_forward.9} parent=1 // loop_body
      %s32 = ssub.s32 %s27, 1
      %s33 = ssub.s32 %s27, 2
      %s34 = sadd.s32 %s27, 1
      %s35 = ssub.s32 %s27, %s34
      %p36 = scmp.eq.s32.totalorder %s35, 0
      %s38 = sadd.s32 %s37, 1
      %s39 = scalar_select %p36, %s37, %s38
      %p42 = pneg %p36
      %p43 = scmp.eq.s32.totalorder %s27, 1
      %p44 = por %p42, %p43
      %p45 = scmp.ne.s32.totalorder %s37, %s40
      %p46 = scmp.eq.s32.totalorder %s27, 0
      %p47 = por %p45, %p46
      %p48 = scmp.ne.s32.totalorder %s37, %s40
      %p49 = scmp.eq.s32.totalorder %s32, 1
      %p50 = por %p48, %p49
      %p51 = scmp.ne.s32.totalorder %s40, %s41
      %p52 = scmp.eq.s32.totalorder %s32, 0
      %p53 = por %p51, %p52
      %p54 = scmp.ne.s32.totalorder %s40, %s41
      %p55 = scmp.eq.s32.totalorder %s33, 1
      %p56 = por %p54, %p55
      %p58 = scmp.ne.s32.totalorder %s41, %s57
      %p59 = scmp.eq.s32.totalorder %s33, 0
      %p60 = por %p58, %p59
      %s61 = ssub.s32 %s27, %s34
      %p62 = scmp.eq.s32.totalorder %s61, 0
      %s64 = sadd.s32 %s63, 1
      %s65 = scalar_select %p62, %s63, %s64
      %p68 = pneg %p62
      %p69 = scmp.eq.s32.totalorder %s27, 1
      %p70 = por %p68, %p69
      %p71 = scmp.ne.s32.totalorder %s63, %s66
      %p72 = scmp.eq.s32.totalorder %s27, 0
      %p73 = por %p71, %p72
      %p74 = scmp.ne.s32.totalorder %s63, %s66
      %p75 = scmp.eq.s32.totalorder %s32, 1
      %p76 = por %p74, %p75
      %p77 = scmp.ne.s32.totalorder %s66, %s67
      %p78 = scmp.eq.s32.totalorder %s32, 0
      %p79 = por %p77, %p78
      %p80 = scmp.ne.s32.totalorder %s66, %s67
      %p81 = scmp.eq.s32.totalorder %s33, 1
      %p82 = por %p80, %p81
      %p84 = scmp.ne.s32.totalorder %s67, %s83
      %p85 = scmp.eq.s32.totalorder %s33, 0
      %p86 = por %p84, %p85
      %s87 = ssub.s32 %s27, %s34
      %p88 = scmp.eq.s32.totalorder %s87, 0
      %s90 = sadd.s32 %s89, 1
      %s91 = scalar_select %p88, %s89, %s90
      %p94 = pneg %p88
      %p95 = scmp.eq.s32.totalorder %s27, 1
      %p96 = por %p94, %p95
      %p97 = scmp.ne.s32.totalorder %s89, %s92
      %p98 = scmp.eq.s32.totalorder %s27, 0
      %p99 = por %p97, %p98
      %p100 = scmp.ne.s32.totalorder %s89, %s92
      %p101 = scmp.eq.s32.totalorder %s32, 1
      %p102 = por %p100, %p101
      %p103 = scmp.ne.s32.totalorder %s92, %s93
      %p104 = scmp.eq.s32.totalorder %s32, 0
      %p105 = por %p103, %p104
      %p106 = scmp.ne.s32.totalorder %s92, %s93
      %p107 = scmp.eq.s32.totalorder %s33, 1
      %p108 = por %p106, %p107
      %p110 = scmp.ne.s32.totalorder %s93, %s109
      %p111 = scmp.eq.s32.totalorder %s33, 0
      %p112 = por %p110, %p111
      %s113 = ssub.s32 %s27, %s34
      %p114 = scmp.eq.s32.totalorder %s113, 0
      %s116 = sadd.s32 %s115, 1
      %s117 = scalar_select %p114, %s115, %s116
      %p120 = pneg %p114
      %p121 = scmp.eq.s32.totalorder %s27, 1
      %p122 = por %p120, %p121
      %p123 = scmp.ne.s32.totalorder %s115, %s118
      %p124 = scmp.eq.s32.totalorder %s27, 0
      %p125 = por %p123, %p124
      %p126 = scmp.ne.s32.totalorder %s115, %s118
      %p127 = scmp.eq.s32.totalorder %s32, 1
      %p128 = por %p126, %p127
      %p129 = scmp.ne.s32.totalorder %s118, %s119
      %p130 = scmp.eq.s32.totalorder %s32, 0
      %p131 = por %p129, %p130
      %p132 = scmp.ne.s32.totalorder %s118, %s119
      %p133 = scmp.eq.s32.totalorder %s33, 1
      %p134 = por %p132, %p133
      %p136 = scmp.ne.s32.totalorder %s119, %s135
      %p137 = scmp.eq.s32.totalorder %s33, 0
      %p138 = por %p136, %p137
      %s140 = sadd.s32 %s139, 1
      %p143 = scmp.eq.s32.totalorder %s27, 1
      %p144 = scmp.ne.s32.totalorder %s139, %s141
      %p145 = scmp.eq.s32.totalorder %s27, 0
      %p146 = por %p144, %p145
      %p147 = scmp.ne.s32.totalorder %s139, %s141
      %p148 = scmp.eq.s32.totalorder %s32, 1
      %p149 = por %p147, %p148
      %p150 = scmp.ne.s32.totalorder %s141, %s142
      %p151 = scmp.eq.s32.totalorder %s32, 0
      %p152 = por %p150, %p151
      %p153 = scmp.ne.s32.totalorder %s141, %s142
      %p154 = scmp.eq.s32.totalorder %s33, 1
      %p155 = por %p153, %p154
      %p157 = scmp.ne.s32.totalorder %s142, %s156
      %p158 = scmp.eq.s32.totalorder %s33, 0
      %p159 = por %p157, %p158
      %s161 = sadd.s32 %s160, 1
      %p164 = scmp.eq.s32.totalorder %s27, 1
      %p165 = scmp.ne.s32.totalorder %s160, %s162
      %p166 = scmp.eq.s32.totalorder %s27, 0
      %p167 = por %p165, %p166
      %p168 = scmp.ne.s32.totalorder %s160, %s162
      %p169 = scmp.eq.s32.totalorder %s32, 1
      %p170 = por %p168, %p169
      %p171 = scmp.ne.s32.totalorder %s162, %s163
      %p172 = scmp.eq.s32.totalorder %s32, 0
      %p173 = por %p171, %p172
      %p174 = scmp.ne.s32.totalorder %s162, %s163
      %p175 = scmp.eq.s32.totalorder %s33, 1
      %p176 = por %p174, %p175
      %p178 = scmp.ne.s32.totalorder %s163, %s177
      %p179 = scmp.eq.s32.totalorder %s33, 0
      %p180 = por %p178, %p179
      %s182 = sadd.s32 %s181, 1
      %p185 = scmp.eq.s32.totalorder %s27, 1
      %p186 = scmp.ne.s32.totalorder %s181, %s183
      %p187 = scmp.eq.s32.totalorder %s27, 0
      %p188 = por %p186, %p187
      %p189 = scmp.ne.s32.totalorder %s181, %s183
      %p190 = scmp.eq.s32.totalorder %s32, 1
      %p191 = por %p189, %p190
      %p192 = scmp.ne.s32.totalorder %s183, %s184
      %p193 = scmp.eq.s32.totalorder %s32, 0
      %p194 = por %p192, %p193
      %p195 = scmp.ne.s32.totalorder %s183, %s184
      %p196 = scmp.eq.s32.totalorder %s33, 1
      %p197 = por %p195, %p196
      %p199 = scmp.ne.s32.totalorder %s184, %s198
      %p200 = scmp.eq.s32.totalorder %s33, 0
      %p201 = por %p199, %p200
      %s203 = sadd.s32 %s202, 1
      %p206 = scmp.eq.s32.totalorder %s27, 1
      %p207 = scmp.ne.s32.totalorder %s202, %s204
      %p208 = scmp.eq.s32.totalorder %s27, 0
      %p209 = por %p207, %p208
      %p210 = scmp.ne.s32.totalorder %s202, %s204
      %p211 = scmp.eq.s32.totalorder %s32, 1
      %p212 = por %p210, %p211
      %p213 = scmp.ne.s32.totalorder %s204, %s205
      %p214 = scmp.eq.s32.totalorder %s32, 0
      %p215 = por %p213, %p214
      %p216 = scmp.ne.s32.totalorder %s204, %s205
      %p217 = scmp.eq.s32.totalorder %s33, 1
      %p218 = por %p216, %p217
      %p220 = scmp.ne.s32.totalorder %s205, %s219
      %p221 = scmp.eq.s32.totalorder %s33, 0
      %p222 = por %p220, %p221
      %s223 = ssub.s32 %s27, %s34
      %p224 = scmp.eq.s32.totalorder %s223, 0
      %s226 = sadd.s32 %s225, 1
      %s227 = scalar_select %p224, %s225, %s226
      %p230 = pneg %p224
      %p231 = scmp.eq.s32.totalorder %s27, 1
      %p232 = por %p230, %p231
      %p233 = scmp.ne.s32.totalorder %s225, %s228
      %p234 = scmp.eq.s32.totalorder %s27, 0
      %p235 = por %p233, %p234
      %p236 = scmp.ne.s32.totalorder %s225, %s228
      %p237 = scmp.eq.s32.totalorder %s32, 1
      %p238 = por %p236, %p237
      %p239 = scmp.ne.s32.totalorder %s228, %s229
      %p240 = scmp.eq.s32.totalorder %s32, 0
      %p241 = por %p239, %p240
      %p242 = scmp.ne.s32.totalorder %s228, %s229
      %p243 = scmp.eq.s32.totalorder %s33, 1
      %p244 = por %p242, %p243
      %p246 = scmp.ne.s32.totalorder %s229, %s245
      %p247 = scmp.eq.s32.totalorder %s33, 0
      %p248 = por %p246, %p247
      %s249 = ssub.s32 %s27, %s34
      %p250 = scmp.eq.s32.totalorder %s249, 0
      %s252 = sadd.s32 %s251, 1
      %s253 = scalar_select %p250, %s251, %s252
      %p256 = pneg %p250
      %p257 = scmp.eq.s32.totalorder %s27, 1
      %p258 = por %p256, %p257
      %p259 = scmp.ne.s32.totalorder %s251, %s254
      %p260 = scmp.eq.s32.totalorder %s27, 0
      %p261 = por %p259, %p260
      %p262 = scmp.ne.s32.totalorder %s251, %s254
      %p263 = scmp.eq.s32.totalorder %s32, 1
      %p264 = por %p262, %p263
      %p265 = scmp.ne.s32.totalorder %s254, %s255
      %p266 = scmp.eq.s32.totalorder %s32, 0
      %p267 = por %p265, %p266
      %p268 = scmp.ne.s32.totalorder %s254, %s255
      %p269 = scmp.eq.s32.totalorder %s33, 1
      %p270 = por %p268, %p269
      %p272 = scmp.ne.s32.totalorder %s255, %s271
      %p273 = scmp.eq.s32.totalorder %s33, 0
      %p274 = por %p272, %p273
      %s276 = sadd.s32 %s275, 1
      %p279 = scmp.eq.s32.totalorder %s27, 1
      %p280 = scmp.ne.s32.totalorder %s275, %s277
      %p281 = scmp.eq.s32.totalorder %s27, 0
      %p282 = por %p280, %p281
      %p283 = scmp.ne.s32.totalorder %s275, %s277
      %p284 = scmp.eq.s32.totalorder %s32, 1
      %p285 = por %p283, %p284
      %p286 = scmp.ne.s32.totalorder %s277, %s278
      %p287 = scmp.eq.s32.totalorder %s32, 0
      %p288 = por %p286, %p287
      %p289 = scmp.ne.s32.totalorder %s277, %s278
      %p290 = scmp.eq.s32.totalorder %s33, 1
      %p291 = por %p289, %p290
      %p293 = scmp.ne.s32.totalorder %s278, %s292
      %p294 = scmp.eq.s32.totalorder %s33, 0
      %p295 = por %p293, %p294
      %s297 = sadd.s32 %s296, 1
      %p300 = scmp.eq.s32.totalorder %s27, 1
      %p301 = scmp.ne.s32.totalorder %s296, %s298
      %p302 = scmp.eq.s32.totalorder %s27, 0
      %p303 = por %p301, %p302
      %p304 = scmp.ne.s32.totalorder %s296, %s298
      %p305 = scmp.eq.s32.totalorder %s32, 1
      %p306 = por %p304, %p305
      %p307 = scmp.ne.s32.totalorder %s298, %s299
      %p308 = scmp.eq.s32.totalorder %s32, 0
      %p309 = por %p307, %p308
      %p310 = scmp.ne.s32.totalorder %s298, %s299
      %p311 = scmp.eq.s32.totalorder %s33, 1
      %p312 = por %p310, %p311
      %p314 = scmp.ne.s32.totalorder %s299, %s313
      %p315 = scmp.eq.s32.totalorder %s33, 0
      %p316 = por %p314, %p315
      %s318 = sadd.s32 %s317, 1
      %p321 = scmp.eq.s32.totalorder %s27, 1
      %p322 = scmp.ne.s32.totalorder %s317, %s319
      %p323 = scmp.eq.s32.totalorder %s27, 0
      %p324 = por %p322, %p323
      %p325 = scmp.ne.s32.totalorder %s317, %s319
      %p326 = scmp.eq.s32.totalorder %s32, 1
      %p327 = por %p325, %p326
      %p328 = scmp.ne.s32.totalorder %s319, %s320
      %p329 = scmp.eq.s32.totalorder %s32, 0
      %p330 = por %p328, %p329
      %p331 = scmp.ne.s32.totalorder %s319, %s320
      %p332 = scmp.eq.s32.totalorder %s33, 1
      %p333 = por %p331, %p332
      %p335 = scmp.ne.s32.totalorder %s320, %s334
      %p336 = scmp.eq.s32.totalorder %s33, 0
      %p337 = por %p335, %p336
      %s339 = sadd.s32 %s338, 1
      %p342 = scmp.eq.s32.totalorder %s27, 1
      %p343 = scmp.ne.s32.totalorder %s338, %s340
      %p344 = scmp.eq.s32.totalorder %s27, 0
      %p345 = por %p343, %p344
      %p346 = scmp.ne.s32.totalorder %s338, %s340
      %p347 = scmp.eq.s32.totalorder %s32, 1
      %p348 = por %p346, %p347
      %p349 = scmp.ne.s32.totalorder %s340, %s341
      %p350 = scmp.eq.s32.totalorder %s32, 0
      %p351 = por %p349, %p350
      %p352 = scmp.ne.s32.totalorder %s340, %s341
      %p353 = scmp.eq.s32.totalorder %s33, 1
      %p354 = por %p352, %p353
      %p356 = scmp.ne.s32.totalorder %s341, %s355
      %p357 = scmp.eq.s32.totalorder %s33, 0
      %p358 = por %p356, %p357
      %s360 = sadd.s32 %s359, 1
      %p363 = scmp.eq.s32.totalorder %s27, 1
      %p364 = scmp.ne.s32.totalorder %s359, %s361
      %p365 = scmp.eq.s32.totalorder %s27, 0
      %p366 = por %p364, %p365
      %p367 = scmp.ne.s32.totalorder %s359, %s361
      %p368 = scmp.eq.s32.totalorder %s32, 1
      %p369 = por %p367, %p368
      %p370 = scmp.ne.s32.totalorder %s361, %s362
      %p371 = scmp.eq.s32.totalorder %s32, 0
      %p372 = por %p370, %p371
      %p373 = scmp.ne.s32.totalorder %s361, %s362
      %p374 = scmp.eq.s32.totalorder %s33, 1
      %p375 = por %p373, %p374
      %p377 = scmp.ne.s32.totalorder %s362, %s376
      %p378 = scmp.eq.s32.totalorder %s33, 0
      %p379 = por %p377, %p378
      %s381 = sadd.s32 %s380, 1
      %p384 = scmp.eq.s32.totalorder %s27, 1
      %p385 = scmp.ne.s32.totalorder %s380, %s382
      %p386 = scmp.eq.s32.totalorder %s27, 0
      %p387 = por %p385, %p386
      %p388 = scmp.ne.s32.totalorder %s380, %s382
      %p389 = scmp.eq.s32.totalorder %s32, 1
      %p390 = por %p388, %p389
      %p391 = scmp.ne.s32.totalorder %s382, %s383
      %p392 = scmp.eq.s32.totalorder %s32, 0
      %p393 = por %p391, %p392
      %p394 = scmp.ne.s32.totalorder %s382, %s383
      %p395 = scmp.eq.s32.totalorder %s33, 1
      %p396 = por %p394, %p395
      %p398 = scmp.ne.s32.totalorder %s383, %s397
      %p399 = scmp.eq.s32.totalorder %s33, 0
      %p400 = por %p398, %p399
      %s401 = ssub.s32 %s27, %s34
      %p402 = scmp.eq.s32.totalorder %s401, 0
      %s404 = sadd.s32 %s403, 1
      %s405 = scalar_select %p402, %s403, %s404
      %p408 = pneg %p402
      %p409 = scmp.eq.s32.totalorder %s27, 1
      %p410 = por %p408, %p409
      %p411 = scmp.ne.s32.totalorder %s403, %s406
      %p412 = scmp.eq.s32.totalorder %s27, 0
      %p413 = por %p411, %p412
      %p414 = scmp.ne.s32.totalorder %s403, %s406
      %p415 = scmp.eq.s32.totalorder %s32, 1
      %p416 = por %p414, %p415
      %p417 = scmp.ne.s32.totalorder %s406, %s407
      %p418 = scmp.eq.s32.totalorder %s32, 0
      %p419 = por %p417, %p418
      %p420 = scmp.ne.s32.totalorder %s406, %s407
      %p421 = scmp.eq.s32.totalorder %s33, 1
      %p422 = por %p420, %p421
      %p424 = scmp.ne.s32.totalorder %s407, %s423
      %p425 = scmp.eq.s32.totalorder %s33, 0
      %p426 = por %p424, %p425
      %s427 = ssub.s32 %s27, %s34
      %p428 = scmp.eq.s32.totalorder %s427, 0
      %s430 = sadd.s32 %s429, 1
      %s431 = scalar_select %p428, %s429, %s430
      %p434 = pneg %p428
      %p435 = scmp.eq.s32.totalorder %s27, 1
      %p436 = por %p434, %p435
      %p437 = scmp.ne.s32.totalorder %s429, %s432
      %p438 = scmp.eq.s32.totalorder %s27, 0
      %p439 = por %p437, %p438
      %p440 = scmp.ne.s32.totalorder %s429, %s432
      %p441 = scmp.eq.s32.totalorder %s32, 1
      %p442 = por %p440, %p441
      %p443 = scmp.ne.s32.totalorder %s432, %s433
      %p444 = scmp.eq.s32.totalorder %s32, 0
      %p445 = por %p443, %p444
      %p446 = scmp.ne.s32.totalorder %s432, %s433
      %p447 = scmp.eq.s32.totalorder %s33, 1
      %p448 = por %p446, %p447
      %p450 = scmp.ne.s32.totalorder %s433, %s449
      %p451 = scmp.eq.s32.totalorder %s33, 0
      %p452 = por %p450, %p451
      %p453 = scmp.le.s32.totalorder 1, %s27
      %p454 = scmp.lt.s32.totalorder %s27, 3
      %p455 = pnand %p453, %p454
      %p456 = pneg %p455
      // Predicated region
      $region9: #{decoder_forward.9} parent=5 // pred_check
        _
      $region10: #{decoder_forward.9} parent=5 // pred_check_branch
        %458 = sbr.rel (%p455) target = $region12
      $region11: #{decoder_forward.9} parent=5 // pred_region
        %s459 = ssub.s32 %s27, 1
        // Predicated region
        $region13: #{decoder_forward.9} parent=11 // pred_check
          %p460 = pneg %p152
        $region14: #{decoder_forward.9} parent=11 // pred_check_branch
          %462 = sbr.rel (%p460) target = $region16
        $region15: #{decoder_forward.9} parent=11 // pred_region
          _
        $region16: #{decoder_forward.9} parent=11 // pred_fallthru
          _
        // Predicated region
        $region17: #{decoder_forward.9} parent=11 // pred_check
          %p463 = pneg %p173
        $region18: #{decoder_forward.9} parent=11 // pred_check_branch
          %465 = sbr.rel (%p463) target = $region20
        $region19: #{decoder_forward.9} parent=11 // pred_region
          _
        $region20: #{decoder_forward.9} parent=11 // pred_fallthru
          _
        // Predicated region
        $region21: #{decoder_forward.9} parent=11 // pred_check
          %p466 = pneg %p194
        $region22: #{decoder_forward.9} parent=11 // pred_check_branch
          %468 = sbr.rel (%p466) target = $region24
        $region23: #{decoder_forward.9} parent=11 // pred_region
          _
        $region24: #{decoder_forward.9} parent=11 // pred_fallthru
          _
        // Predicated region
        $region25: #{decoder_forward.9} parent=11 // pred_check
          %p469 = pneg %p215
        $region26: #{decoder_forward.9} parent=11 // pred_check_branch
          %471 = sbr.rel (%p469) target = $region28
        $region27: #{decoder_forward.9} parent=11 // pred_region
          _
        $region28: #{decoder_forward.9} parent=11 // pred_fallthru
          _
        // Predicated region
        $region29: #{decoder_forward.9} parent=11 // pred_check
          %p472 = pneg %p288
        $region30: #{decoder_forward.9} parent=11 // pred_check_branch
          %474 = sbr.rel (%p472) target = $region32
        $region31: #{decoder_forward.9} parent=11 // pred_region
          _
        $region32: #{decoder_forward.9} parent=11 // pred_fallthru
          _
        // Predicated region
        $region33: #{decoder_forward.9} parent=11 // pred_check
          %p475 = pneg %p309
        $region34: #{decoder_forward.9} parent=11 // pred_check_branch
          %477 = sbr.rel (%p475) target = $region36
        $region35: #{decoder_forward.9} parent=11 // pred_region
          _
        $region36: #{decoder_forward.9} parent=11 // pred_fallthru
          _
        // Predicated region
        $region37: #{decoder_forward.9} parent=11 // pred_check
          %p478 = pneg %p330
        $region38: #{decoder_forward.9} parent=11 // pred_check_branch
          %480 = sbr.rel (%p478) target = $region40
        $region39: #{decoder_forward.9} parent=11 // pred_region
          _
        $region40: #{decoder_forward.9} parent=11 // pred_fallthru
          _
        // Predicated region
        $region41: #{decoder_forward.9} parent=11 // pred_check
          %p481 = pneg %p351
        $region42: #{decoder_forward.9} parent=11 // pred_check_branch
          %483 = sbr.rel (%p481) target = $region44
        $region43: #{decoder_forward.9} parent=11 // pred_region
          _
        $region44: #{decoder_forward.9} parent=11 // pred_fallthru
          _
        // Predicated region
        $region45: #{decoder_forward.9} parent=11 // pred_check
          %p484 = pneg %p372
        $region46: #{decoder_forward.9} parent=11 // pred_check_branch
          %486 = sbr.rel (%p484) target = $region48
        $region47: #{decoder_forward.9} parent=11 // pred_region
          _
        $region48: #{decoder_forward.9} parent=11 // pred_fallthru
          _
        // Predicated region
        $region49: #{decoder_forward.9} parent=11 // pred_check
          %p487 = pneg %p393
        $region50: #{decoder_forward.9} parent=11 // pred_check_branch
          %489 = sbr.rel (%p487) target = $region52
        $region51: #{decoder_forward.9} parent=11 // pred_region
          _
        $region52: #{decoder_forward.9} parent=11 // pred_fallthru
          _
      $region12: #{decoder_forward.9} parent=5 // pred_fallthru
        _
      %p490 = scmp.lt.s32.totalorder %s27, 2
      // Predicated region
      $region53: #{decoder_forward.9} parent=5 // pred_check
        %p491 = pneg %p490
      $region54: #{decoder_forward.9} parent=5 // pred_check_branch
        %493 = sbr.rel (%p491) target = $region56
      $region55: #{decoder_forward.9} parent=5 // pred_region
        // Predicated region
        $region57: #{decoder_forward.9} parent=55 // pred_check
          %p494 = pneg %p47
        $region58: #{decoder_forward.9} parent=55 // pred_check_branch
          %496 = sbr.rel (%p494) target = $region60
        $region59: #{decoder_forward.9} parent=55 // pred_region
          %p497 = scmp.lt.s32.totalorder %s27, 1
          %s498 = scalar_select %p497, %s27, 1
          %s499 = smul.addr %s498, 8
          %s500 = scalar_lea.vmem %s0, %s499
        $region60: #{decoder_forward.9} parent=55 // pred_fallthru
          _
        // Predicated region
        $region61: #{decoder_forward.9} parent=55 // pred_check
          %p501 = pneg %p73
        $region62: #{decoder_forward.9} parent=55 // pred_check_branch
          %503 = sbr.rel (%p501) target = $region64
        $region63: #{decoder_forward.9} parent=55 // pred_region
          %p504 = scmp.lt.s32.totalorder %s27, 1
          %s505 = scalar_select %p504, %s27, 1
          %s506 = smul.addr %s505, 8
          %s507 = scalar_lea.vmem %s1, %s506
        $region64: #{decoder_forward.9} parent=55 // pred_fallthru
          _
        // Predicated region
        $region65: #{decoder_forward.9} parent=55 // pred_check
          %p508 = pneg %p99
        $region66: #{decoder_forward.9} parent=55 // pred_check_branch
          %510 = sbr.rel (%p508) target = $region68
        $region67: #{decoder_forward.9} parent=55 // pred_region
          %p511 = scmp.lt.s32.totalorder %s27, 1
          %s512 = scalar_select %p511, %s27, 1
          %s513 = smul.addr %s512, 4
          %s514 = smul.addr %s513, 8
          %s515 = scalar_lea.vmem %s2, %s514
        $region68: #{decoder_forward.9} parent=55 // pred_fallthru
          _
        // Predicated region
        $region69: #{decoder_forward.9} parent=55 // pred_check
          %p516 = pneg %p125
        $region70: #{decoder_forward.9} parent=55 // pred_check_branch
          %518 = sbr.rel (%p516) target = $region72
        $region71: #{decoder_forward.9} parent=55 // pred_region
          %p519 = scmp.lt.s32.totalorder %s27, 1
          %s520 = scalar_select %p519, %s27, 1
          %s521 = smul.addr %s520, 4
          %s522 = smul.addr %s521, 8
          %s523 = scalar_lea.vmem %s3, %s522
        $region72: #{decoder_forward.9} parent=55 // pred_fallthru
          _
        // Predicated region
        $region73: #{decoder_forward.9} parent=55 // pred_check
          %p524 = pneg %p235
        $region74: #{decoder_forward.9} parent=55 // pred_check_branch
          %526 = sbr.rel (%p524) target = $region76
        $region75: #{decoder_forward.9} parent=55 // pred_region
          %p527 = scmp.lt.s32.totalorder %s27, 1
          %s528 = scalar_select %p527, %s27, 1
          %s529 = smul.addr %s528, 8
          %s530 = scalar_lea.vmem %s8, %s529
        $region76: #{decoder_forward.9} parent=55 // pred_fallthru
          _
        // Predicated region
        $region77: #{decoder_forward.9} parent=55 // pred_check
          %p531 = pneg %p261
        $region78: #{decoder_forward.9} parent=55 // pred_check_branch
          %533 = sbr.rel (%p531) target = $region80
        $region79: #{decoder_forward.9} parent=55 // pred_region
          %p534 = scmp.lt.s32.totalorder %s27, 1
          %s535 = scalar_select %p534, %s27, 1
          %s536 = smul.addr %s535, 8
          %s537 = scalar_lea.vmem %s9, %s536
        $region80: #{decoder_forward.9} parent=55 // pred_fallthru
          _
      $region56: #{decoder_forward.9} parent=5 // pred_fallthru
        _
      %p538 = scmp.le.s32.totalorder 1, %s27
      %p539 = scmp.lt.s32.totalorder %s27, 3
      %p540 = pnand %p538, %p539
      %p541 = pneg %p540
      // Predicated region
      $region81: #{decoder_forward.9} parent=5 // pred_check
        _
      $region82: #{decoder_forward.9} parent=5 // pred_check_branch
        %543 = sbr.rel (%p540) target = $region84
      $region83: #{decoder_forward.9} parent=5 // pred_region
        %s544 = ssub.s32 %s27, 1
        %p545 = scmp.lt.s32.totalorder %s32, 1
        %s546 = scalar_select %p545, %s32, 1
        %s547 = smul.addr %s546, 8
        %s548 = scalar_lea.vmem %s0, %s547
        %p549 = pneg %p53
        %p550 = pneg %p50
        %p551 = scmp.lt.s32.totalorder %s32, 1
        %s552 = scalar_select %p551, %s32, 1
        %s553 = smul.addr %s552, 8
        %s554 = scalar_lea.vmem %s1, %s553
        %p555 = pneg %p79
        %p556 = pneg %p76
        %p557 = scmp.lt.s32.totalorder %s32, 1
        %s558 = scalar_select %p557, %s32, 1
        %s559 = smul.addr %s558, 4
        %s560 = smul.addr %s559, 8
        %s561 = scalar_lea.vmem %s2, %s560
        %p562 = pneg %p105
        %p563 = pneg %p102
        %p564 = scmp.lt.s32.totalorder %s32, 1
        %s565 = scalar_select %p564, %s32, 1
        %s566 = smul.addr %s565, 4
        %s567 = smul.addr %s566, 8
        %s568 = scalar_lea.vmem %s3, %s567
        %p569 = pneg %p131
        %p570 = pneg %p128
        %p571 = pneg %p152
        %p572 = pneg %p149
        %p573 = pneg %p173
        %p574 = pneg %p170
        %p575 = pneg %p194
        %p576 = pneg %p191
        %p577 = pneg %p215
        %p578 = pneg %p212
        %p579 = scmp.lt.s32.totalorder %s32, 1
        %s580 = scalar_select %p579, %s32, 1
        %s581 = smul.addr %s580, 8
        %s582 = scalar_lea.vmem %s8, %s581
        %p583 = pneg %p241
        %p584 = pneg %p238
        %p585 = scmp.lt.s32.totalorder %s32, 1
        %s586 = scalar_select %p585, %s32, 1
        %s587 = smul.addr %s586, 8
        %s588 = scalar_lea.vmem %s9, %s587
        %p589 = pneg %p267
        %p590 = pneg %p264
        %p591 = pneg %p288
        %p592 = pneg %p285
        %p593 = pneg %p309
        %p594 = pneg %p306
        %p595 = pneg %p330
        %p596 = pneg %p327
        %p597 = pneg %p351
        %p598 = pneg %p348
        %p599 = pneg %p372
        %p600 = pneg %p369
        %p601 = pneg %p393
        %p602 = pneg %p390
        %p603 = pneg %p419
        %p604 = pneg %p416
        %p605 = scmp.lt.s32.totalorder %s32, 1
        %s606 = scalar_select %p605, %s32, 1
        %s607 = smul.addr %s606, 8
        %s608 = scalar_lea.vmem %s16, %s607
        %p609 = pneg %p445
        %p610 = pneg %p442
        %s611 = sand.u32 %s432, 1
        %s612 = scalar_lea.sflag [#allocation3], %s611
        %s613 = sand.u32 %s432, 1
        %s614 = smul.addr %s613, 8
        %s615 = scalar_lea.vmem [#allocation2], %s614
        %p616 = scmp.lt.s32.totalorder %s32, 1
        %s617 = scalar_select %p616, %s32, 1
        %s618 = smul.addr %s617, 8
        %s619 = scalar_lea.vmem %s0, %s618
        %p620 = scmp.lt.s32.totalorder %s32, 1
        %s621 = scalar_select %p620, %s32, 1
        %s622 = smul.addr %s621, 8
        %s623 = scalar_lea.vmem %s1, %s622
        %p624 = scmp.lt.s32.totalorder %s32, 1
        %s625 = scalar_select %p624, %s32, 1
        %s626 = smul.addr %s625, 4
        %s627 = smul.addr %s626, 8
        %s628 = scalar_lea.vmem %s2, %s627
        %p629 = scmp.lt.s32.totalorder %s32, 1
        %s630 = scalar_select %p629, %s32, 1
        %s631 = smul.addr %s630, 4
        %s632 = smul.addr %s631, 8
        %s633 = scalar_lea.vmem %s3, %s632
        %p634 = scmp.lt.s32.totalorder %s32, 1
        %s635 = scalar_select %p634, %s32, 1
        %s636 = smul.addr %s635, 8
        %s637 = scalar_lea.vmem %s8, %s636
        %p638 = scmp.lt.s32.totalorder %s32, 1
        %s639 = scalar_select %p638, %s32, 1
        %s640 = smul.addr %s639, 8
        %s641 = scalar_lea.vmem %s9, %s640
        %p642 = scmp.lt.s32.totalorder %s32, 1
        %s643 = scalar_select %p642, %s32, 1
        %s644 = smul.addr %s643, 8
        %s645 = scalar_lea.vmem %s16, %s644
        %v647 = vld [vmem:[%s619] sm:$0xff]
        %v648 = vld [vmem:[%s628] sm:$0xff]
        %v649 = vld [vmem:[%s628 + $0x8] sm:$0xff]
        %v650 = vld [vmem:[%s628 + $0x10] sm:$0xff]
        %v651 = vld [vmem:[%s628 + $0x18] sm:$0x3f]
        %v652 = vpack.c.bf16 %v649, %v648
        %v653 = vpack.c.bf16 %v651, %v650
        %v654 = vld [vmem:[%s4] sm:$0xff]
        %v655 = vld [vmem:[%s4 + $0x8] sm:$0xff]
        %v656 = vld [vmem:[%s4 + $0x10] sm:$0xff]
        %v657 = vld [vmem:[%s4 + $0x18] sm:$0xff]
        %v658 = vpack.c.bf16 %v655, %v654
        %v659 = vpack.c.bf16 %v657, %v656
        %v660 = vld [vmem:[%s5] sm:$0x1]
        %v662 = vlaneseq
        %v663 = vshrl.u32 %v662, 7
        %v664 = vsub.s32 0, %v663
        %v665 = vrot.slane %v660, %v664
        %vm667 = vcmask 261120
        %v669 = vsel %vm667, %v652, 0
        %v672 = vsel %vm667, %v653, 0
        %674 = vmatprep.subr.bf16.mxu0 0
        %675 = vmatpush1.bf16.msra.mxu0 %v658
        %676 = vmatprep.subr.bf16.mxu0 0
        %677 = vmatpush1.bf16.msra.mxu0 %v659
        %678 = vmatprep.subr.bf16.mxu0 0
        %679 = vmatpush1.bf16.msra.mxu0 0
        %680 = vmatprep.subr.bf16.mxu0 0
        %681 = vmatpush1.bf16.msra.mxu0 0
        %682 = vmatprep.subr.bf16.mxu0 0
        %683 = vmatpush1.bf16.msra.mxu0 0
        %684 = vmatprep.subr.bf16.mxu0 0
        %685 = vmatpush1.bf16.msra.mxu0 0
        %686 = vmatprep.subr.bf16.mxu0 0
        %687 = vmatpush1.bf16.msra.mxu0 0
        %688 = vmatprep.subr.bf16.mxu0 0
        %689 = vmatpush1.bf16.msra.mxu0 0
        %690 = vmatprep.subr.bf16.mxu0 0
        %691 = vmatpush1.bf16.msra.mxu0 0
        %692 = vmatprep.subr.bf16.mxu0 0
        %693 = vmatpush1.bf16.msra.mxu0 0
        %694 = vmatprep.subr.bf16.mxu0 0
        %695 = vmatpush1.bf16.msra.mxu0 0
        %696 = vmatprep.subr.bf16.mxu0 0
        %697 = vmatpush1.bf16.msra.mxu0 0
        %698 = vmatprep.subr.bf16.mxu0 0
        %699 = vmatpush1.bf16.msra.mxu0 0
        %700 = vmatprep.subr.bf16.mxu0 0
        %701 = vmatpush1.bf16.msra.mxu0 0
        %702 = vmatprep.subr.bf16.mxu0 0
        %703 = vmatpush1.bf16.msra.mxu0 0
        %704 = vmatprep.subr.bf16.mxu0 0
        %705 = vmatpush1.bf16.msra.mxu0 0
        %706 = vmatprep.mubr.bf16.mxu0 0
        %707 = vmatmul.mubr.bf16.gmra.mrb[0].mxu0 %v669
        %v708 = vpop.f32.mrb[0].mxu0
        %v709 = vadd.f32 %v665, %v708
        %v710 = vpop.f32.mrb[0].mxu0
        %v711 = vpop.f32.mrb[0].mxu0
        %v712 = vadd.f32 %v665, %v711
        %v713 = vpop.f32.mrb[0].mxu0
        %714 = vmatprep.mubr.bf16.mxu0 0
        %715 = vmatmul.mubr.bf16.gmra.mrb[0].mxu0 %v672
        %v716 = vpop.f32.mrb[0].mxu0
        %v717 = vadd.f32 %v665, %v716
        %v718 = vpop.f32.mrb[0].mxu0
        %v719 = vpop.f32.mrb[0].mxu0
        %v720 = vadd.f32 %v665, %v719
        %v721 = vpop.f32.mrb[0].mxu0
        %722 = vdwg.mxu0
        %v723 = vld [vmem:[%s633] sm:$0xff]
        %v724 = vld [vmem:[%s633 + $0x8] sm:$0xff]
        %v725 = vld [vmem:[%s633 + $0x10] sm:$0xff]
        %v726 = vld [vmem:[%s633 + $0x18] sm:$0x3f]
        %728 = vset.pattern.permute.xlu0 0
        %729 = vperm.xlu0 %728, %v723
        %v730 = vpop.permute.xlu0 %729
        %733 = vset.pattern.permute.xlu0 0
        %734 = vperm.xlu0 %733, %v724
        %v735 = vpop.permute.xlu0 %734
        %738 = vset.pattern.permute.xlu0 0
        %739 = vperm.xlu0 %738, %v725
        %v740 = vpop.permute.xlu0 %739
        %743 = vset.pattern.permute.xlu0 0
        %744 = vperm.xlu0 %743, %v726
        %v745 = vpop.permute.xlu0 %744
        %v747 = vmul.f32 %v709, %v730
        %v748 = vmul.f32 %v712, %v735
        %v749 = vmul.f32 %v717, %v740
        %v750 = vmul.f32 %v720, %v745
        %v751 = vpack.c.bf16 %v748, %v747
        %v752 = vpack.c.bf16 %v750, %v749
        %v753 = vld [vmem:[%s623] sm:$0xff]
        %v754 = vadd.f32 %v647, %v753
        %v755 = vpack.c.bf16 %v754, %v754
        %v756 = vld [vmem:[%s6] sm:$0xff]
        %v757 = vld [vmem:[%s6 + $0x8] sm:$0xff]
        %v758 = vld [vmem:[%s6 + $0x10] sm:$0xff]
        %v759 = vld [vmem:[%s6 + $0x18] sm:$0xff]
        %v760 = vpack.c.bf16 %v757, %v756
        %v761 = vpack.c.bf16 %v759, %v758
        %v762 = vld [vmem:[%s7] sm:$0x1]
        %v764 = vlaneseq
        %v765 = vshrl.u32 %v764, 7
        %v766 = vsub.s32 0, %v765
        %v767 = vrot.slane %v762, %v766
        %v770 = vsel %vm667, %v755, 0
        %772 = vmatprep.subr.bf16.mxu0 0
        %773 = vmatpush1.bf16.msra.mxu0 %v760
        %774 = vmatprep.subr.bf16.mxu0 0
        %775 = vmatpush1.bf16.msra.mxu0 %v761
        %776 = vmatprep.subr.bf16.mxu0 0
        %777 = vmatpush1.bf16.msra.mxu0 0
        %778 = vmatprep.subr.bf16.mxu0 0
        %779 = vmatpush1.bf16.msra.mxu0 0
        %780 = vmatprep.subr.bf16.mxu0 0
        %781 = vmatpush1.bf16.msra.mxu0 0
        %782 = vmatprep.subr.bf16.mxu0 0
        %783 = vmatpush1.bf16.msra.mxu0 0
        %784 = vmatprep.subr.bf16.mxu0 0
        %785 = vmatpush1.bf16.msra.mxu0 0
        %786 = vmatprep.subr.bf16.mxu0 0
        %787 = vmatpush1.bf16.msra.mxu0 0
        %788 = vmatprep.subr.bf16.mxu0 0
        %789 = vmatpush1.bf16.msra.mxu0 0
        %790 = vmatprep.subr.bf16.mxu0 0
        %791 = vmatpush1.bf16.msra.mxu0 0
        %792 = vmatprep.subr.bf16.mxu0 0
        %793 = vmatpush1.bf16.msra.mxu0 0
        %794 = vmatprep.subr.bf16.mxu0 0
        %795 = vmatpush1.bf16.msra.mxu0 0
        %796 = vmatprep.subr.bf16.mxu0 0
        %797 = vmatpush1.bf16.msra.mxu0 0
        %798 = vmatprep.subr.bf16.mxu0 0
        %799 = vmatpush1.bf16.msra.mxu0 0
        %800 = vmatprep.subr.bf16.mxu0 0
        %801 = vmatpush1.bf16.msra.mxu0 0
        %802 = vmatprep.subr.bf16.mxu0 0
        %803 = vmatpush1.bf16.msra.mxu0 0
        %804 = vmatprep.mubr.bf16.mxu0 0
        %805 = vmatmul.mubr.bf16.gmra.mrb[0].mxu0 %v770
        %v806 = vpop.f32.mrb[0].mxu0
        %v807 = vadd.f32 %v767, %v806
        %v808 = vpop.f32.mrb[0].mxu0
        %v809 = vpop.f32.mrb[0].mxu0
        %v810 = vpop.f32.mrb[0].mxu0
        %811 = vdwg.mxu0
        %v812 = vld [vmem:[%s637] sm:$0xff]
        %v813 = vld [vmem:[%s641] sm:$0xff]
        %v814 = vmul.f32 %v807, %v813
        %v815 = vadd.f32 %v812, %v814
        %816 = vst.msk [vmem:[%s615] sm:$0xff] %vm667, %v815
        %v817 = vld [vmem:[%s10] sm:$0x1]
        %v818 = vcvt.s32.f32 %v817
        %v819 = vld [vmem:[%s11] sm:$0x1]
        %v821 = vlaneseq
        %v822 = vshrl.u32 %v821, 7
        %v823 = vsub.s32 0, %v822
        %v824 = vrot.slane %v818, %v823
        %v826 = vmul.f32 %v815, %v824
        %v827 = vsub.f32 %v826, 0.5
        %v828 = vfloor.f32 %v827
        %v829 = vsub.f32 %v827, %v828
        %v830 = vcvt.f32.s32.to.zero.pseudo %v828
        %vm831 = vcmp.ge.s32.totalorder %v830, 0
        %v832 = vlaneseq
        %v833 = vshrl.u32 %v832, 7
        %v834 = vsub.s32 0, %v833
        %v835 = vrot.slane %v817, %v834
        %vm836 = vcmp.lt.s32.totalorder %v830, %v835
        %vm837 = vmand %vm831, %vm836
        %v838 = vadd.s32 %v830, 1
        %vm839 = vcmp.ge.s32.totalorder %v838, 0
        %vm840 = vcmp.lt.s32.totalorder %v838, %v835
        %vm841 = vmand %vm839, %vm840
        %v842 = vsub.s32 %v817, 1
        %vm843 = vcmp.gt.s32.totalorder %v830, 0
        %v844 = vsel %vm843, %v830, 0
        %v845 = vlaneseq
        %v846 = vshrl.u32 %v845, 7
        %v847 = vsub.s32 0, %v846
        %v848 = vrot.slane %v842, %v847
        %vm849 = vcmp.lt.s32.totalorder %v848, %v844
        %v850 = vsel %vm849, %v848, %v844
        %v851 = vlaneseq
        %v852 = vshrl.u32 %v851, 7
        %v853 = vsub.s32 0, %v852
        %v854 = vrot.slane %v819, %v853
        %v855 = vadd.s32 %v854, %v850
        %vm856 = vcmp.gt.s32.totalorder %v838, 0
        %v857 = vsel %vm856, %v838, 0
        %vm858 = vcmp.lt.s32.totalorder %v848, %v857
        %v859 = vsel %vm858, %v848, %v857
        %v860 = vadd.s32 %v854, %v859
        %v861 = vsub.f32 1.0, %v829
        %v862 = vsel %vm837, %v861, 0.0
        %v863 = vsel %vm841, %v829, 0.0
        %v864 = vlaneseq
        %v865 = vand.u32 %v864, 127
        %vm866 = vcmask 392448
        %v867 = vsel %vm866, %v807, -inf
        %868 = vmax.xlane.f32.xlu0 %v867
        %v869 = vpop.xlane.xlu0 %868
        %v870 = vsub.f32 %v807, %v869
        %v871 = vmul.f32 %v870, 1.442695
        %v872 = vpow.pop %v871
        %874 = vrot.lane.b32.xlu0 %v872, 96
        %v875 = vpop.permute.xlu0 %874
        %vm877 = vcmask 130048
        %v878 = vsel %vm877, %v875, 0.0
        %879 = vadd.xlane.f32.xlu0 %v878
        %v880 = vpop.xlane.xlu0 %879
        %v881 = vrcp.pop %v880
        %v882 = vmul.f32 %v872, %v881
        %884 = vrot.lane.b32.xlu0 %v862, 32
        %v885 = vpop.permute.xlu0 %884
        %v887 = vmul.f32 %v882, %v885
        %889 = vrot.lane.b32.xlu0 %v863, 32
        %v890 = vpop.permute.xlu0 %889
        %v892 = vmul.f32 %v882, %v890
        %893 = vset.pattern.permute.xlu0 0
        %894 = vperm.xlu0 %893, %v855
        %v895 = vpop.permute.xlu0 %894
        %vm896 = vcmp.eq.s32.totalorder %v865, %v895
        %898 = vset.pattern.permute.xlu0 32
        %899 = vperm.xlu0 %898, %v887
        %v900 = vpop.permute.xlu0 %899
        %v902 = vsel %vm896, %v900, 0.0
        %v903 = vadd.f32 %v902, 0.0
        %904 = vset.pattern.permute.xlu0 0
        %905 = vperm.xlu0 %904, %v860
        %v906 = vpop.permute.xlu0 %905
        %vm907 = vcmp.eq.s32.totalorder %v865, %v906
        %909 = vset.pattern.permute.xlu0 32
        %910 = vperm.xlu0 %909, %v892
        %v911 = vpop.permute.xlu0 %910
        %v913 = vsel %vm907, %v911, 0.0
        %v914 = vadd.f32 %v903, %v913
        %915 = vset.pattern.permute.xlu0 1
        %916 = vperm.xlu0 %915, %v855
        %v917 = vpop.permute.xlu0 %916
        %vm918 = vcmp.eq.s32.totalorder %v865, %v917
        %919 = vset.pattern.permute.xlu0 33
        %920 = vperm.xlu0 %919, %v887
        %v921 = vpop.permute.xlu0 %920
        %v923 = vsel %vm918, %v921, 0.0
        %v924 = vadd.f32 %v914, %v923
        %925 = vset.pattern.permute.xlu0 1
        %926 = vperm.xlu0 %925, %v860
        %v927 = vpop.permute.xlu0 %926
        %vm928 = vcmp.eq.s32.totalorder %v865, %v927
        %929 = vset.pattern.permute.xlu0 33
        %930 = vperm.xlu0 %929, %v892
        %v931 = vpop.permute.xlu0 %930
        %v933 = vsel %vm928, %v931, 0.0
        %v934 = vadd.f32 %v924, %v933
        %935 = vset.pattern.permute.xlu0 2
        %936 = vperm.xlu0 %935, %v855
        %v937 = vpop.permute.xlu0 %936
        %vm938 = vcmp.eq.s32.totalorder %v865, %v937
        %939 = vset.pattern.permute.xlu0 34
        %940 = vperm.xlu0 %939, %v887
        %v941 = vpop.permute.xlu0 %940
        %v943 = vsel %vm938, %v941, 0.0
        %v944 = vadd.f32 %v934, %v943
        %945 = vset.pattern.permute.xlu0 2
        %946 = vperm.xlu0 %945, %v860
        %v947 = vpop.permute.xlu0 %946
        %vm948 = vcmp.eq.s32.totalorder %v865, %v947
        %949 = vset.pattern.permute.xlu0 34
        %950 = vperm.xlu0 %949, %v892
        %v951 = vpop.permute.xlu0 %950
        %v953 = vsel %vm948, %v951, 0.0
        %v954 = vadd.f32 %v944, %v953
        %955 = vset.pattern.permute.xlu0 3
        %956 = vperm.xlu0 %955, %v855
        %v957 = vpop.permute.xlu0 %956
        %vm958 = vcmp.eq.s32.totalorder %v865, %v957
        %959 = vset.pattern.permute.xlu0 35
        %960 = vperm.xlu0 %959, %v887
        %v961 = vpop.permute.xlu0 %960
        %v963 = vsel %vm958, %v961, 0.0
        %v964 = vadd.f32 %v954, %v963
        %965 = vset.pattern.permute.xlu0 3
        %966 = vperm.xlu0 %965, %v860
        %v967 = vpop.permute.xlu0 %966
        %vm968 = vcmp.eq.s32.totalorder %v865, %v967
        %969 = vset.pattern.permute.xlu0 35
        %970 = vperm.xlu0 %969, %v892
        %v971 = vpop.permute.xlu0 %970
        %v973 = vsel %vm968, %v971, 0.0
        %v974 = vadd.f32 %v964, %v973
        %975 = vset.pattern.permute.xlu0 4
        %976 = vperm.xlu0 %975, %v855
        %v977 = vpop.permute.xlu0 %976
        %vm978 = vcmp.eq.s32.totalorder %v865, %v977
        %979 = vset.pattern.permute.xlu0 36
        %980 = vperm.xlu0 %979, %v887
        %v981 = vpop.permute.xlu0 %980
        %v983 = vsel %vm978, %v981, 0.0
        %v984 = vadd.f32 %v974, %v983
        %985 = vset.pattern.permute.xlu0 4
        %986 = vperm.xlu0 %985, %v860
        %v987 = vpop.permute.xlu0 %986
        %vm988 = vcmp.eq.s32.totalorder %v865, %v987
        %989 = vset.pattern.permute.xlu0 36
        %990 = vperm.xlu0 %989, %v892
        %v991 = vpop.permute.xlu0 %990
        %v993 = vsel %vm988, %v991, 0.0
        %v994 = vadd.f32 %v984, %v993
        %995 = vset.pattern.permute.xlu0 5
        %996 = vperm.xlu0 %995, %v855
        %v997 = vpop.permute.xlu0 %996
        %vm998 = vcmp.eq.s32.totalorder %v865, %v997
        %999 = vset.pattern.permute.xlu0 37
        %1000 = vperm.xlu0 %999, %v887
        %v1001 = vpop.permute.xlu0 %1000
        %v1003 = vsel %vm998, %v1001, 0.0
        %v1004 = vadd.f32 %v994, %v1003
        %1005 = vset.pattern.permute.xlu0 5
        %1006 = vperm.xlu0 %1005, %v860
        %v1007 = vpop.permute.xlu0 %1006
        %vm1008 = vcmp.eq.s32.totalorder %v865, %v1007
        %1009 = vset.pattern.permute.xlu0 37
        %1010 = vperm.xlu0 %1009, %v892
        %v1011 = vpop.permute.xlu0 %1010
        %v1013 = vsel %vm1008, %v1011, 0.0
        %v1014 = vadd.f32 %v1004, %v1013
        %1015 = vset.pattern.permute.xlu0 6
        %1016 = vperm.xlu0 %1015, %v855
        %v1017 = vpop.permute.xlu0 %1016
        %vm1018 = vcmp.eq.s32.totalorder %v865, %v1017
        %1019 = vset.pattern.permute.xlu0 38
        %1020 = vperm.xlu0 %1019, %v887
        %v1021 = vpop.permute.xlu0 %1020
        %v1023 = vsel %vm1018, %v1021, 0.0
        %v1024 = vadd.f32 %v1014, %v1023
        %1025 = vset.pattern.permute.xlu0 6
        %1026 = vperm.xlu0 %1025, %v860
        %v1027 = vpop.permute.xlu0 %1026
        %vm1028 = vcmp.eq.s32.totalorder %v865, %v1027
        %1029 = vset.pattern.permute.xlu0 38
        %1030 = vperm.xlu0 %1029, %v892
        %v1031 = vpop.permute.xlu0 %1030
        %v1033 = vsel %vm1028, %v1031, 0.0
        %v1034 = vadd.f32 %v1024, %v1033
        %1035 = vset.pattern.permute.xlu0 7
        %1036 = vperm.xlu0 %1035, %v855
        %v1037 = vpop.permute.xlu0 %1036
        %vm1038 = vcmp.eq.s32.totalorder %v865, %v1037
        %1039 = vset.pattern.permute.xlu0 39
        %1040 = vperm.xlu0 %1039, %v887
        %v1041 = vpop.permute.xlu0 %1040
        %v1043 = vsel %vm1038, %v1041, 0.0
        %v1044 = vadd.f32 %v1034, %v1043
        %1045 = vset.pattern.permute.xlu0 7
        %1046 = vperm.xlu0 %1045, %v860
        %v1047 = vpop.permute.xlu0 %1046
        %vm1048 = vcmp.eq.s32.totalorder %v865, %v1047
        %1049 = vset.pattern.permute.xlu0 39
        %1050 = vperm.xlu0 %1049, %v892
        %v1051 = vpop.permute.xlu0 %1050
        %v1053 = vsel %vm1048, %v1051, 0.0
        %v1054 = vadd.f32 %v1044, %v1053
        %1055 = vset.pattern.permute.xlu0 8
        %1056 = vperm.xlu0 %1055, %v855
        %v1057 = vpop.permute.xlu0 %1056
        %vm1058 = vcmp.eq.s32.totalorder %v865, %v1057
        %1059 = vset.pattern.permute.xlu0 40
        %1060 = vperm.xlu0 %1059, %v887
        %v1061 = vpop.permute.xlu0 %1060
        %v1063 = vsel %vm1058, %v1061, 0.0
        %v1064 = vadd.f32 %v1054, %v1063
        %1065 = vset.pattern.permute.xlu0 8
        %1066 = vperm.xlu0 %1065, %v860
        %v1067 = vpop.permute.xlu0 %1066
        %vm1068 = vcmp.eq.s32.totalorder %v865, %v1067
        %1069 = vset.pattern.permute.xlu0 40
        %1070 = vperm.xlu0 %1069, %v892
        %v1071 = vpop.permute.xlu0 %1070
        %v1073 = vsel %vm1068, %v1071, 0.0
        %v1074 = vadd.f32 %v1064, %v1073
        %1075 = vset.pattern.permute.xlu0 9
        %1076 = vperm.xlu0 %1075, %v855
        %v1077 = vpop.permute.xlu0 %1076
        %vm1078 = vcmp.eq.s32.totalorder %v865, %v1077
        %1079 = vset.pattern.permute.xlu0 41
        %1080 = vperm.xlu0 %1079, %v887
        %v1081 = vpop.permute.xlu0 %1080
        %v1083 = vsel %vm1078, %v1081, 0.0
        %v1084 = vadd.f32 %v1074, %v1083
        %1085 = vset.pattern.permute.xlu0 9
        %1086 = vperm.xlu0 %1085, %v860
        %v1087 = vpop.permute.xlu0 %1086
        %vm1088 = vcmp.eq.s32.totalorder %v865, %v1087
        %1089 = vset.pattern.permute.xlu0 41
        %1090 = vperm.xlu0 %1089, %v892
        %v1091 = vpop.permute.xlu0 %1090
        %v1093 = vsel %vm1088, %v1091, 0.0
        %v1094 = vadd.f32 %v1084, %v1093
        %1095 = vset.pattern.permute.xlu0 10
        %1096 = vperm.xlu0 %1095, %v855
        %v1097 = vpop.permute.xlu0 %1096
        %vm1098 = vcmp.eq.s32.totalorder %v865, %v1097
        %1099 = vset.pattern.permute.xlu0 42
        %1100 = vperm.xlu0 %1099, %v887
        %v1101 = vpop.permute.xlu0 %1100
        %v1103 = vsel %vm1098, %v1101, 0.0
        %v1104 = vadd.f32 %v1094, %v1103
        %1105 = vset.pattern.permute.xlu0 10
        %1106 = vperm.xlu0 %1105, %v860
        %v1107 = vpop.permute.xlu0 %1106
        %vm1108 = vcmp.eq.s32.totalorder %v865, %v1107
        %1109 = vset.pattern.permute.xlu0 42
        %1110 = vperm.xlu0 %1109, %v892
        %v1111 = vpop.permute.xlu0 %1110
        %v1113 = vsel %vm1108, %v1111, 0.0
        %v1114 = vadd.f32 %v1104, %v1113
        %1115 = vset.pattern.permute.xlu0 11
        %1116 = vperm.xlu0 %1115, %v855
        %v1117 = vpop.permute.xlu0 %1116
        %vm1118 = vcmp.eq.s32.totalorder %v865, %v1117
        %1119 = vset.pattern.permute.xlu0 43
        %1120 = vperm.xlu0 %1119, %v887
        %v1121 = vpop.permute.xlu0 %1120
        %v1123 = vsel %vm1118, %v1121, 0.0
        %v1124 = vadd.f32 %v1114, %v1123
        %1125 = vset.pattern.permute.xlu0 11
        %1126 = vperm.xlu0 %1125, %v860
        %v1127 = vpop.permute.xlu0 %1126
        %vm1128 = vcmp.eq.s32.totalorder %v865, %v1127
        %1129 = vset.pattern.permute.xlu0 43
        %1130 = vperm.xlu0 %1129, %v892
        %v1131 = vpop.permute.xlu0 %1130
        %v1133 = vsel %vm1128, %v1131, 0.0
        %v1134 = vadd.f32 %v1124, %v1133
        %1135 = vset.pattern.permute.xlu0 12
        %1136 = vperm.xlu0 %1135, %v855
        %v1137 = vpop.permute.xlu0 %1136
        %vm1138 = vcmp.eq.s32.totalorder %v865, %v1137
        %1139 = vset.pattern.permute.xlu0 44
        %1140 = vperm.xlu0 %1139, %v887
        %v1141 = vpop.permute.xlu0 %1140
        %v1143 = vsel %vm1138, %v1141, 0.0
        %v1144 = vadd.f32 %v1134, %v1143
        %1145 = vset.pattern.permute.xlu0 12
        %1146 = vperm.xlu0 %1145, %v860
        %v1147 = vpop.permute.xlu0 %1146
        %vm1148 = vcmp.eq.s32.totalorder %v865, %v1147
        %1149 = vset.pattern.permute.xlu0 44
        %1150 = vperm.xlu0 %1149, %v892
        %v1151 = vpop.permute.xlu0 %1150
        %v1153 = vsel %vm1148, %v1151, 0.0
        %v1154 = vadd.f32 %v1144, %v1153
        %1155 = vset.pattern.permute.xlu0 13
        %1156 = vperm.xlu0 %1155, %v855
        %v1157 = vpop.permute.xlu0 %1156
        %vm1158 = vcmp.eq.s32.totalorder %v865, %v1157
        %1159 = vset.pattern.permute.xlu0 45
        %1160 = vperm.xlu0 %1159, %v887
        %v1161 = vpop.permute.xlu0 %1160
        %v1163 = vsel %vm1158, %v1161, 0.0
        %v1164 = vadd.f32 %v1154, %v1163
        %1165 = vset.pattern.permute.xlu0 13
        %1166 = vperm.xlu0 %1165, %v860
        %v1167 = vpop.permute.xlu0 %1166
        %vm1168 = vcmp.eq.s32.totalorder %v865, %v1167
        %1169 = vset.pattern.permute.xlu0 45
        %1170 = vperm.xlu0 %1169, %v892
        %v1171 = vpop.permute.xlu0 %1170
        %v1173 = vsel %vm1168, %v1171, 0.0
        %v1174 = vadd.f32 %v1164, %v1173
        %1175 = vset.pattern.permute.xlu0 14
        %1176 = vperm.xlu0 %1175, %v855
        %v1177 = vpop.permute.xlu0 %1176
        %vm1178 = vcmp.eq.s32.totalorder %v865, %v1177
        %1179 = vset.pattern.permute.xlu0 46
        %1180 = vperm.xlu0 %1179, %v887
        %v1181 = vpop.permute.xlu0 %1180
        %v1183 = vsel %vm1178, %v1181, 0.0
        %v1184 = vadd.f32 %v1174, %v1183
        %1185 = vset.pattern.permute.xlu0 14
        %1186 = vperm.xlu0 %1185, %v860
        %v1187 = vpop.permute.xlu0 %1186
        %vm1188 = vcmp.eq.s32.totalorder %v865, %v1187
        %1189 = vset.pattern.permute.xlu0 46
        %1190 = vperm.xlu0 %1189, %v892
        %v1191 = vpop.permute.xlu0 %1190
        %v1193 = vsel %vm1188, %v1191, 0.0
        %v1194 = vadd.f32 %v1184, %v1193
        %1195 = vset.pattern.permute.xlu0 15
        %1196 = vperm.xlu0 %1195, %v855
        %v1197 = vpop.permute.xlu0 %1196
        %vm1198 = vcmp.eq.s32.totalorder %v865, %v1197
        %1199 = vset.pattern.permute.xlu0 47
        %1200 = vperm.xlu0 %1199, %v887
        %v1201 = vpop.permute.xlu0 %1200
        %v1203 = vsel %vm1198, %v1201, 0.0
        %v1204 = vadd.f32 %v1194, %v1203
        %1205 = vset.pattern.permute.xlu0 15
        %1206 = vperm.xlu0 %1205, %v860
        %v1207 = vpop.permute.xlu0 %1206
        %vm1208 = vcmp.eq.s32.totalorder %v865, %v1207
        %1209 = vset.pattern.permute.xlu0 47
        %1210 = vperm.xlu0 %1209, %v892
        %v1211 = vpop.permute.xlu0 %1210
        %v1213 = vsel %vm1208, %v1211, 0.0
        %v1214 = vadd.f32 %v1204, %v1213
        %v1215 = vpack.c.bf16 %v1214, %v1214
        %vm1216 = vcmask 244736
        %v1218 = vsel %vm1216, %v1215, 0
        %vm1220 = vcmask 1046528
        %v1222 = vsel %vm1220, %v752, 0
        %1224 = vmatprep.subr.bf16.mxu0 0
        %1225 = vmatpush1.bf16.msra.mxu0 %v751
        %1226 = vmatprep.subr.bf16.mxu0 0
        %1227 = vmatpush1.bf16.msra.mxu0 %v1222
        %1228 = vmatprep.subr.bf16.mxu0 0
        %1229 = vmatpush1.bf16.msra.mxu0 0
        %1230 = vmatprep.subr.bf16.mxu0 0
        %1231 = vmatpush1.bf16.msra.mxu0 0
        %1232 = vmatprep.subr.bf16.mxu0 0
        %1233 = vmatpush1.bf16.msra.mxu0 0
        %1234 = vmatprep.subr.bf16.mxu0 0
        %1235 = vmatpush1.bf16.msra.mxu0 0
        %1236 = vmatprep.subr.bf16.mxu0 0
        %1237 = vmatpush1.bf16.msra.mxu0 0
        %1238 = vmatprep.subr.bf16.mxu0 0
        %1239 = vmatpush1.bf16.msra.mxu0 0
        %1240 = vmatprep.subr.bf16.mxu0 0
        %1241 = vmatpush1.bf16.msra.mxu0 0
        %1242 = vmatprep.subr.bf16.mxu0 0
        %1243 = vmatpush1.bf16.msra.mxu0 0
        %1244 = vmatprep.subr.bf16.mxu0 0
        %1245 = vmatpush1.bf16.msra.mxu0 0
        %1246 = vmatprep.subr.bf16.mxu0 0
        %1247 = vmatpush1.bf16.msra.mxu0 0
        %1248 = vmatprep.subr.bf16.mxu0 0
        %1249 = vmatpush1.bf16.msra.mxu0 0
        %1250 = vmatprep.subr.bf16.mxu0 0
        %1251 = vmatpush1.bf16.msra.mxu0 0
        %1252 = vmatprep.subr.bf16.mxu0 0
        %1253 = vmatpush1.bf16.msra.mxu0 0
        %1254 = vmatprep.subr.bf16.mxu0 0
        %1255 = vmatpush1.bf16.msra.mxu0 0
        %1256 = vmatprep.mubr.bf16.mxu0 0
        %1257 = vmatmul.mubr.bf16.gmra.mrb[0].mxu0 %v1218
        %v1258 = vpop.f32.mrb[0].mxu0
        %v1259 = vadd.f32 0.0, %v1258
        %v1260 = vpop.f32.mrb[0].mxu0
        %v1261 = vpop.f32.mrb[0].mxu0
        %v1262 = vpop.f32.mrb[0].mxu0
        %1263 = vdwg.mxu0
        %vm1264 = vcmask 523648
        %v1265 = vsel %vm1264, %v807, -inf
        %1266 = vmax.xlane.f32.xlu0 %v1265
        %v1267 = vpop.xlane.xlu0 %1266
        %v1268 = vsub.f32 %v807, %v1267
        %v1269 = vmul.f32 %v1268, 1.442695
        %v1270 = vpow.pop %v1269
        %1272 = vrot.lane.b32.xlu0 %v1270, 80
        %v1273 = vpop.permute.xlu0 %1272
        %v1275 = vsel %vm877, %v1273, 0.0
        %1276 = vadd.xlane.f32.xlu0 %v1275
        %v1277 = vpop.xlane.xlu0 %1276
        %v1278 = vrcp.pop %v1277
        %v1279 = vmul.f32 %v1270, %v1278
        %v1280 = vmul.f32 %v1279, %v885
        %v1281 = vmul.f32 %v1279, %v890
        %1282 = vset.pattern.permute.xlu0 16
        %1283 = vperm.xlu0 %1282, %v855
        %v1284 = vpop.permute.xlu0 %1283
        %vm1285 = vcmp.eq.s32.totalorder %v865, %v1284
        %1287 = vset.pattern.permute.xlu0 48
        %1288 = vperm.xlu0 %1287, %v1280
        %v1289 = vpop.permute.xlu0 %1288
        %v1291 = vsel %vm1285, %v1289, 0.0
        %v1292 = vadd.f32 %v1291, 0.0
        %1293 = vset.pattern.permute.xlu0 16
        %1294 = vperm.xlu0 %1293, %v860
        %v1295 = vpop.permute.xlu0 %1294
        %vm1296 = vcmp.eq.s32.totalorder %v865, %v1295
        %1298 = vset.pattern.permute.xlu0 48
        %1299 = vperm.xlu0 %1298, %v1281
        %v1300 = vpop.permute.xlu0 %1299
        %v1302 = vsel %vm1296, %v1300, 0.0
        %v1303 = vadd.f32 %v1292, %v1302
        %1304 = vset.pattern.permute.xlu0 17
        %1305 = vperm.xlu0 %1304, %v855
        %v1306 = vpop.permute.xlu0 %1305
        %vm1307 = vcmp.eq.s32.totalorder %v865, %v1306
        %1308 = vset.pattern.permute.xlu0 49
        %1309 = vperm.xlu0 %1308, %v1280
        %v1310 = vpop.permute.xlu0 %1309
        %v1312 = vsel %vm1307, %v1310, 0.0
        %v1313 = vadd.f32 %v1303, %v1312
        %1314 = vset.pattern.permute.xlu0 17
        %1315 = vperm.xlu0 %1314, %v860
        %v1316 = vpop.permute.xlu0 %1315
        %vm1317 = vcmp.eq.s32.totalorder %v865, %v1316
        %1318 = vset.pattern.permute.xlu0 49
        %1319 = vperm.xlu0 %1318, %v1281
        %v1320 = vpop.permute.xlu0 %1319
        %v1322 = vsel %vm1317, %v1320, 0.0
        %v1323 = vadd.f32 %v1313, %v1322
        %1324 = vset.pattern.permute.xlu0 18
        %1325 = vperm.xlu0 %1324, %v855
        %v1326 = vpop.permute.xlu0 %1325
        %vm1327 = vcmp.eq.s32.totalorder %v865, %v1326
        %1328 = vset.pattern.permute.xlu0 50
        %1329 = vperm.xlu0 %1328, %v1280
        %v1330 = vpop.permute.xlu0 %1329
        %v1332 = vsel %vm1327, %v1330, 0.0
        %v1333 = vadd.f32 %v1323, %v1332
        %1334 = vset.pattern.permute.xlu0 18
        %1335 = vperm.xlu0 %1334, %v860
        %v1336 = vpop.permute.xlu0 %1335
        %vm1337 = vcmp.eq.s32.totalorder %v865, %v1336
        %1338 = vset.pattern.permute.xlu0 50
        %1339 = vperm.xlu0 %1338, %v1281
        %v1340 = vpop.permute.xlu0 %1339
        %v1342 = vsel %vm1337, %v1340, 0.0
        %v1343 = vadd.f32 %v1333, %v1342
        %1344 = vset.pattern.permute.xlu0 19
        %1345 = vperm.xlu0 %1344, %v855
        %v1346 = vpop.permute.xlu0 %1345
        %vm1347 = vcmp.eq.s32.totalorder %v865, %v1346
        %1348 = vset.pattern.permute.xlu0 51
        %1349 = vperm.xlu0 %1348, %v1280
        %v1350 = vpop.permute.xlu0 %1349
        %v1352 = vsel %vm1347, %v1350, 0.0
        %v1353 = vadd.f32 %v1343, %v1352
        %1354 = vset.pattern.permute.xlu0 19
        %1355 = vperm.xlu0 %1354, %v860
        %v1356 = vpop.permute.xlu0 %1355
        %vm1357 = vcmp.eq.s32.totalorder %v865, %v1356
        %1358 = vset.pattern.permute.xlu0 51
        %1359 = vperm.xlu0 %1358, %v1281
        %v1360 = vpop.permute.xlu0 %1359
        %v1362 = vsel %vm1357, %v1360, 0.0
        %v1363 = vadd.f32 %v1353, %v1362
        %1364 = vset.pattern.permute.xlu0 20
        %1365 = vperm.xlu0 %1364, %v855
        %v1366 = vpop.permute.xlu0 %1365
        %vm1367 = vcmp.eq.s32.totalorder %v865, %v1366
        %1368 = vset.pattern.permute.xlu0 52
        %1369 = vperm.xlu0 %1368, %v1280
        %v1370 = vpop.permute.xlu0 %1369
        %v1372 = vsel %vm1367, %v1370, 0.0
        %v1373 = vadd.f32 %v1363, %v1372
        %1374 = vset.pattern.permute.xlu0 20
        %1375 = vperm.xlu0 %1374, %v860
        %v1376 = vpop.permute.xlu0 %1375
        %vm1377 = vcmp.eq.s32.totalorder %v865, %v1376
        %1378 = vset.pattern.permute.xlu0 52
        %1379 = vperm.xlu0 %1378, %v1281
        %v1380 = vpop.permute.xlu0 %1379
        %v1382 = vsel %vm1377, %v1380, 0.0
        %v1383 = vadd.f32 %v1373, %v1382
        %1384 = vset.pattern.permute.xlu0 21
        %1385 = vperm.xlu0 %1384, %v855
        %v1386 = vpop.permute.xlu0 %1385
        %vm1387 = vcmp.eq.s32.totalorder %v865, %v1386
        %1388 = vset.pattern.permute.xlu0 53
        %1389 = vperm.xlu0 %1388, %v1280
        %v1390 = vpop.permute.xlu0 %1389
        %v1392 = vsel %vm1387, %v1390, 0.0
        %v1393 = vadd.f32 %v1383, %v1392
        %1394 = vset.pattern.permute.xlu0 21
        %1395 = vperm.xlu0 %1394, %v860
        %v1396 = vpop.permute.xlu0 %1395
        %vm1397 = vcmp.eq.s32.totalorder %v865, %v1396
        %1398 = vset.pattern.permute.xlu0 53
        %1399 = vperm.xlu0 %1398, %v1281
        %v1400 = vpop.permute.xlu0 %1399
        %v1402 = vsel %vm1397, %v1400, 0.0
        %v1403 = vadd.f32 %v1393, %v1402
        %1404 = vset.pattern.permute.xlu0 22
        %1405 = vperm.xlu0 %1404, %v855
        %v1406 = vpop.permute.xlu0 %1405
        %vm1407 = vcmp.eq.s32.totalorder %v865, %v1406
        %1408 = vset.pattern.permute.xlu0 54
        %1409 = vperm.xlu0 %1408, %v1280
        %v1410 = vpop.permute.xlu0 %1409
        %v1412 = vsel %vm1407, %v1410, 0.0
        %v1413 = vadd.f32 %v1403, %v1412
        %1414 = vset.pattern.permute.xlu0 22
        %1415 = vperm.xlu0 %1414, %v860
        %v1416 = vpop.permute.xlu0 %1415
        %vm1417 = vcmp.eq.s32.totalorder %v865, %v1416
        %1418 = vset.pattern.permute.xlu0 54
        %1419 = vperm.xlu0 %1418, %v1281
        %v1420 = vpop.permute.xlu0 %1419
        %v1422 = vsel %vm1417, %v1420, 0.0
        %v1423 = vadd.f32 %v1413, %v1422
        %1424 = vset.pattern.permute.xlu0 23
        %1425 = vperm.xlu0 %1424, %v855
        %v1426 = vpop.permute.xlu0 %1425
        %vm1427 = vcmp.eq.s32.totalorder %v865, %v1426
        %1428 = vset.pattern.permute.xlu0 55
        %1429 = vperm.xlu0 %1428, %v1280
        %v1430 = vpop.permute.xlu0 %1429
        %v1432 = vsel %vm1427, %v1430, 0.0
        %v1433 = vadd.f32 %v1423, %v1432
        %1434 = vset.pattern.permute.xlu0 23
        %1435 = vperm.xlu0 %1434, %v860
        %v1436 = vpop.permute.xlu0 %1435
        %vm1437 = vcmp.eq.s32.totalorder %v865, %v1436
        %1438 = vset.pattern.permute.xlu0 55
        %1439 = vperm.xlu0 %1438, %v1281
        %v1440 = vpop.permute.xlu0 %1439
        %v1442 = vsel %vm1437, %v1440, 0.0
        %v1443 = vadd.f32 %v1433, %v1442
        %1444 = vset.pattern.permute.xlu0 24
        %1445 = vperm.xlu0 %1444, %v855
        %v1446 = vpop.permute.xlu0 %1445
        %vm1447 = vcmp.eq.s32.totalorder %v865, %v1446
        %1448 = vset.pattern.permute.xlu0 56
        %1449 = vperm.xlu0 %1448, %v1280
        %v1450 = vpop.permute.xlu0 %1449
        %v1452 = vsel %vm1447, %v1450, 0.0
        %v1453 = vadd.f32 %v1443, %v1452
        %1454 = vset.pattern.permute.xlu0 24
        %1455 = vperm.xlu0 %1454, %v860
        %v1456 = vpop.permute.xlu0 %1455
        %vm1457 = vcmp.eq.s32.totalorder %v865, %v1456
        %1458 = vset.pattern.permute.xlu0 56
        %1459 = vperm.xlu0 %1458, %v1281
        %v1460 = vpop.permute.xlu0 %1459
        %v1462 = vsel %vm1457, %v1460, 0.0
        %v1463 = vadd.f32 %v1453, %v1462
        %1464 = vset.pattern.permute.xlu0 25
        %1465 = vperm.xlu0 %1464, %v855
        %v1466 = vpop.permute.xlu0 %1465
        %vm1467 = vcmp.eq.s32.totalorder %v865, %v1466
        %1468 = vset.pattern.permute.xlu0 57
        %1469 = vperm.xlu0 %1468, %v1280
        %v1470 = vpop.permute.xlu0 %1469
        %v1472 = vsel %vm1467, %v1470, 0.0
        %v1473 = vadd.f32 %v1463, %v1472
        %1474 = vset.pattern.permute.xlu0 25
        %1475 = vperm.xlu0 %1474, %v860
        %v1476 = vpop.permute.xlu0 %1475
        %vm1477 = vcmp.eq.s32.totalorder %v865, %v1476
        %1478 = vset.pattern.permute.xlu0 57
        %1479 = vperm.xlu0 %1478, %v1281
        %v1480 = vpop.permute.xlu0 %1479
        %v1482 = vsel %vm1477, %v1480, 0.0
        %v1483 = vadd.f32 %v1473, %v1482
        %1484 = vset.pattern.permute.xlu0 26
        %1485 = vperm.xlu0 %1484, %v855
        %v1486 = vpop.permute.xlu0 %1485
        %vm1487 = vcmp.eq.s32.totalorder %v865, %v1486
        %1488 = vset.pattern.permute.xlu0 58
        %1489 = vperm.xlu0 %1488, %v1280
        %v1490 = vpop.permute.xlu0 %1489
        %v1492 = vsel %vm1487, %v1490, 0.0
        %v1493 = vadd.f32 %v1483, %v1492
        %1494 = vset.pattern.permute.xlu0 26
        %1495 = vperm.xlu0 %1494, %v860
        %v1496 = vpop.permute.xlu0 %1495
        %vm1497 = vcmp.eq.s32.totalorder %v865, %v1496
        %1498 = vset.pattern.permute.xlu0 58
        %1499 = vperm.xlu0 %1498, %v1281
        %v1500 = vpop.permute.xlu0 %1499
        %v1502 = vsel %vm1497, %v1500, 0.0
        %v1503 = vadd.f32 %v1493, %v1502
        %1504 = vset.pattern.permute.xlu0 27
        %1505 = vperm.xlu0 %1504, %v855
        %v1506 = vpop.permute.xlu0 %1505
        %vm1507 = vcmp.eq.s32.totalorder %v865, %v1506
        %1508 = vset.pattern.permute.xlu0 59
        %1509 = vperm.xlu0 %1508, %v1280
        %v1510 = vpop.permute.xlu0 %1509
        %v1512 = vsel %vm1507, %v1510, 0.0
        %v1513 = vadd.f32 %v1503, %v1512
        %1514 = vset.pattern.permute.xlu0 27
        %1515 = vperm.xlu0 %1514, %v860
        %v1516 = vpop.permute.xlu0 %1515
        %vm1517 = vcmp.eq.s32.totalorder %v865, %v1516
        %1518 = vset.pattern.permute.xlu0 59
        %1519 = vperm.xlu0 %1518, %v1281
        %v1520 = vpop.permute.xlu0 %1519
        %v1522 = vsel %vm1517, %v1520, 0.0
        %v1523 = vadd.f32 %v1513, %v1522
        %1524 = vset.pattern.permute.xlu0 28
        %1525 = vperm.xlu0 %1524, %v855
        %v1526 = vpop.permute.xlu0 %1525
        %vm1527 = vcmp.eq.s32.totalorder %v865, %v1526
        %1528 = vset.pattern.permute.xlu0 60
        %1529 = vperm.xlu0 %1528, %v1280
        %v1530 = vpop.permute.xlu0 %1529
        %v1532 = vsel %vm1527, %v1530, 0.0
        %v1533 = vadd.f32 %v1523, %v1532
        %1534 = vset.pattern.permute.xlu0 28
        %1535 = vperm.xlu0 %1534, %v860
        %v1536 = vpop.permute.xlu0 %1535
        %vm1537 = vcmp.eq.s32.totalorder %v865, %v1536
        %1538 = vset.pattern.permute.xlu0 60
        %1539 = vperm.xlu0 %1538, %v1281
        %v1540 = vpop.permute.xlu0 %1539
        %v1542 = vsel %vm1537, %v1540, 0.0
        %v1543 = vadd.f32 %v1533, %v1542
        %1544 = vset.pattern.permute.xlu0 29
        %1545 = vperm.xlu0 %1544, %v855
        %v1546 = vpop.permute.xlu0 %1545
        %vm1547 = vcmp.eq.s32.totalorder %v865, %v1546
        %1548 = vset.pattern.permute.xlu0 61
        %1549 = vperm.xlu0 %1548, %v1280
        %v1550 = vpop.permute.xlu0 %1549
        %v1552 = vsel %vm1547, %v1550, 0.0
        %v1553 = vadd.f32 %v1543, %v1552
        %1554 = vset.pattern.permute.xlu0 29
        %1555 = vperm.xlu0 %1554, %v860
        %v1556 = vpop.permute.xlu0 %1555
        %vm1557 = vcmp.eq.s32.totalorder %v865, %v1556
        %1558 = vset.pattern.permute.xlu0 61
        %1559 = vperm.xlu0 %1558, %v1281
        %v1560 = vpop.permute.xlu0 %1559
        %v1562 = vsel %vm1557, %v1560, 0.0
        %v1563 = vadd.f32 %v1553, %v1562
        %1564 = vset.pattern.permute.xlu0 30
        %1565 = vperm.xlu0 %1564, %v855
        %v1566 = vpop.permute.xlu0 %1565
        %vm1567 = vcmp.eq.s32.totalorder %v865, %v1566
        %1568 = vset.pattern.permute.xlu0 62
        %1569 = vperm.xlu0 %1568, %v1280
        %v1570 = vpop.permute.xlu0 %1569
        %v1572 = vsel %vm1567, %v1570, 0.0
        %v1573 = vadd.f32 %v1563, %v1572
        %1574 = vset.pattern.permute.xlu0 30
        %1575 = vperm.xlu0 %1574, %v860
        %v1576 = vpop.permute.xlu0 %1575
        %vm1577 = vcmp.eq.s32.totalorder %v865, %v1576
        %1578 = vset.pattern.permute.xlu0 62
        %1579 = vperm.xlu0 %1578, %v1281
        %v1580 = vpop.permute.xlu0 %1579
        %v1582 = vsel %vm1577, %v1580, 0.0
        %v1583 = vadd.f32 %v1573, %v1582
        %1584 = vset.pattern.permute.xlu0 31
        %1585 = vperm.xlu0 %1584, %v855
        %v1586 = vpop.permute.xlu0 %1585
        %vm1587 = vcmp.eq.s32.totalorder %v865, %v1586
        %1588 = vset.pattern.permute.xlu0 63
        %1589 = vperm.xlu0 %1588, %v1280
        %v1590 = vpop.permute.xlu0 %1589
        %v1592 = vsel %vm1587, %v1590, 0.0
        %v1593 = vadd.f32 %v1583, %v1592
        %1594 = vset.pattern.permute.xlu0 31
        %1595 = vperm.xlu0 %1594, %v860
        %v1596 = vpop.permute.xlu0 %1595
        %vm1597 = vcmp.eq.s32.totalorder %v865, %v1596
        %1598 = vset.pattern.permute.xlu0 63
        %1599 = vperm.xlu0 %1598, %v1281
        %v1600 = vpop.permute.xlu0 %1599
        %v1602 = vsel %vm1597, %v1600, 0.0
        %v1603 = vadd.f32 %v1593, %v1602
        %v1604 = vpack.c.bf16 %v1603, %v1603
        %1607 = vrot.lane.b32.xlu0 %v751, 112
        %v1608 = vpop.permute.xlu0 %1607
        %1609 = vrot.lane.b32.xlu0 %v752, 112
        %v1610 = vpop.permute.xlu0 %1609
        %v1613 = vsel %vm1216, %v1604, 0
        %v1616 = vsel %vm1220, %v1610, 0
        %1618 = vmatprep.subr.bf16.mxu0 0
        %1619 = vmatpush1.bf16.msra.mxu0 %v1608
        %1620 = vmatprep.subr.bf16.mxu0 0
        %1621 = vmatpush1.bf16.msra.mxu0 %v1616
        %1622 = vmatprep.subr.bf16.mxu0 0
        %1623 = vmatpush1.bf16.msra.mxu0 0
        %1624 = vmatprep.subr.bf16.mxu0 0
        %1625 = vmatpush1.bf16.msra.mxu0 0
        %1626 = vmatprep.subr.bf16.mxu0 0
        %1627 = vmatpush1.bf16.msra.mxu0 0
        %1628 = vmatprep.subr.bf16.mxu0 0
        %1629 = vmatpush1.bf16.msra.mxu0 0
        %1630 = vmatprep.subr.bf16.mxu0 0
        %1631 = vmatpush1.bf16.msra.mxu0 0
        %1632 = vmatprep.subr.bf16.mxu0 0
        %1633 = vmatpush1.bf16.msra.mxu0 0
        %1634 = vmatprep.subr.bf16.mxu0 0
        %1635 = vmatpush1.bf16.msra.mxu0 0
        %1636 = vmatprep.subr.bf16.mxu0 0
        %1637 = vmatpush1.bf16.msra.mxu0 0
        %1638 = vmatprep.subr.bf16.mxu0 0
        %1639 = vmatpush1.bf16.msra.mxu0 0
        %1640 = vmatprep.subr.bf16.mxu0 0
        %1641 = vmatpush1.bf16.msra.mxu0 0
        %1642 = vmatprep.subr.bf16.mxu0 0
        %1643 = vmatpush1.bf16.msra.mxu0 0
        %1644 = vmatprep.subr.bf16.mxu0 0
        %1645 = vmatpush1.bf16.msra.mxu0 0
        %1646 = vmatprep.subr.bf16.mxu0 0
        %1647 = vmatpush1.bf16.msra.mxu0 0
        %1648 = vmatprep.subr.bf16.mxu0 0
        %1649 = vmatpush1.bf16.msra.mxu0 0
        %1650 = vmatprep.mubr.bf16.mxu0 0
        %1651 = vmatmul.mubr.bf16.gmra.mrb[0].mxu0 %v1613
        %v1652 = vpop.f32.mrb[0].mxu0
        %v1653 = vadd.f32 0.0, %v1652
        %v1654 = vpop.f32.mrb[0].mxu0
        %v1655 = vpop.f32.mrb[0].mxu0
        %v1656 = vpop.f32.mrb[0].mxu0
        %1657 = vdwg.mxu0
        %1659 = vrot.lane.b32.xlu0 %v1653, 16
        %v1660 = vpop.permute.xlu0 %1659
        %v1662 = vsel %vm877, %v1259, %v1660
        %v1663 = vpack.c.bf16 %v1662, %v1662
        %v1664 = vld [vmem:[%s12] sm:$0xff]
        %v1665 = vld [vmem:[%s12 + $0x8] sm:$0xff]
        %v1666 = vld [vmem:[%s12 + $0x10] sm:$0xff]
        %v1667 = vld [vmem:[%s12 + $0x18] sm:$0xff]
        %v1668 = vpack.c.bf16 %v1665, %v1664
        %v1669 = vpack.c.bf16 %v1667, %v1666
        %v1670 = vld [vmem:[%s13] sm:$0x1]
        %v1672 = vlaneseq
        %v1673 = vshrl.u32 %v1672, 7
        %v1674 = vsub.s32 0, %v1673
        %v1675 = vrot.slane %v1670, %v1674
        %v1678 = vsel %vm667, %v1663, 0
        %1680 = vmatprep.subr.bf16.mxu0 0
        %1681 = vmatpush1.bf16.msra.mxu0 %v1668
        %1682 = vmatprep.subr.bf16.mxu0 0
        %1683 = vmatpush1.bf16.msra.mxu0 %v1669
        %1684 = vmatprep.subr.bf16.mxu0 0
        %1685 = vmatpush1.bf16.msra.mxu0 0
        %1686 = vmatprep.subr.bf16.mxu0 0
        %1687 = vmatpush1.bf16.msra.mxu0 0
        %1688 = vmatprep.subr.bf16.mxu0 0
        %1689 = vmatpush1.bf16.msra.mxu0 0
        %1690 = vmatprep.subr.bf16.mxu0 0
        %1691 = vmatpush1.bf16.msra.mxu0 0
        %1692 = vmatprep.subr.bf16.mxu0 0
        %1693 = vmatpush1.bf16.msra.mxu0 0
        %1694 = vmatprep.subr.bf16.mxu0 0
        %1695 = vmatpush1.bf16.msra.mxu0 0
        %1696 = vmatprep.subr.bf16.mxu0 0
        %1697 = vmatpush1.bf16.msra.mxu0 0
        %1698 = vmatprep.subr.bf16.mxu0 0
        %1699 = vmatpush1.bf16.msra.mxu0 0
        %1700 = vmatprep.subr.bf16.mxu0 0
        %1701 = vmatpush1.bf16.msra.mxu0 0
        %1702 = vmatprep.subr.bf16.mxu0 0
        %1703 = vmatpush1.bf16.msra.mxu0 0
        %1704 = vmatprep.subr.bf16.mxu0 0
        %1705 = vmatpush1.bf16.msra.mxu0 0
        %1706 = vmatprep.subr.bf16.mxu0 0
        %1707 = vmatpush1.bf16.msra.mxu0 0
        %1708 = vmatprep.subr.bf16.mxu0 0
        %1709 = vmatpush1.bf16.msra.mxu0 0
        %1710 = vmatprep.subr.bf16.mxu0 0
        %1711 = vmatpush1.bf16.msra.mxu0 0
        %1712 = vmatprep.mubr.bf16.mxu0 0
        %1713 = vmatmul.mubr.bf16.gmra.mrb[0].mxu0 %v1678
        %v1714 = vpop.f32.mrb[0].mxu0
        %v1715 = vadd.f32 %v1675, %v1714
        %v1716 = vpop.f32.mrb[0].mxu0
        %v1717 = vpop.f32.mrb[0].mxu0
        %v1718 = vpop.f32.mrb[0].mxu0
        %1719 = vdwg.mxu0
        %v1720 = vadd.f32 %v647, %v1715
        %v1721 = vsel %vm667, %v1720, 0.0
        %1722 = vadd.xlane.f32.xlu0 %v1721
        %v1723 = vpop.xlane.xlu0 %1722
        %v1724 = vrcp.pop 32.0
        %v1725 = vmul.f32 %v1723, %v1724
        %v1726 = vsub.f32 %v1720, %v1725
        %v1727 = vmul.f32 %v1726, %v1726
        %v1728 = vsel %vm667, %v1727, 0.0
        %1729 = vadd.xlane.f32.xlu0 %v1728
        %v1730 = vpop.xlane.xlu0 %1729
        %v1731 = vmul.f32 %v1730, %v1724
        %v1732 = vadd.f32 %v1731, 1e-05
        %v1733 = vrsqrt.pop %v1732
        %v1734 = vmul.f32 %v1726, %v1733
        %v1735 = vld [vmem:[%s14] sm:$0x1]
        %v1737 = vlaneseq
        %v1738 = vshrl.u32 %v1737, 7
        %v1739 = vsub.s32 0, %v1738
        %v1740 = vrot.slane %v1735, %v1739
        %v1742 = vmul.f32 %v1734, %v1740
        %v1743 = vld [vmem:[%s15] sm:$0x1]
        %v1745 = vlaneseq
        %v1746 = vshrl.u32 %v1745, 7
        %v1747 = vsub.s32 0, %v1746
        %v1748 = vrot.slane %v1743, %v1747
        %v1750 = vadd.f32 %v1742, %v1748
        %1751 = vst.msk [vmem:[%s645] sm:$0xff] %vm667, %v1750
        %p1752 = scmp.lt.s32.totalorder %s32, 1
        %s1753 = scalar_select %p1752, %s32, 1
        %s1754 = smul.addr %s1753, 8
        %s1755 = scalar_lea.vmem %s16, %s1754
        %s1756 = sand.u32 %s432, 1
        %s1757 = scalar_lea.sflag [#allocation3], %s1756
        %s1758 = sand.u32 %s432, 1
        %s1759 = smul.addr %s1758, 8
        %s1760 = scalar_lea.vmem [#allocation2], %s1759
        // Predicated region
        $region85: #{decoder_forward.9} parent=83 // pred_check
          %p1761 = pneg %p416
        $region86: #{decoder_forward.9} parent=83 // pred_check_branch
          %1763 = sbr.rel (%p1761) target = $region88
        $region87: #{decoder_forward.9} parent=83 // pred_region
          _
        $region88: #{decoder_forward.9} parent=83 // pred_fallthru
          _
        // Predicated region
        $region89: #{decoder_forward.9} parent=83 // pred_check
          %p1764 = pneg %p442
        $region90: #{decoder_forward.9} parent=83 // pred_check_branch
          %1766 = sbr.rel (%p1764) target = $region92
        $region91: #{decoder_forward.9} parent=83 // pred_region
          %s1768 = ssub.s32 128, 128
          %1769 = vsyncadd %s1757, %s1768
          %s1770 = smul.addr %s32, 128
          %s1771 = scalar_lea.hbm %s17, %s1770
          %s1773 = sshll.u32 %s1760, 4
          %s1774 = int_to_ptr.vmem [resolvable:$true] %s1773
          %1776 = dma.vmem_to_hbm [thread:$0]  %s1774, 128, %s1771, %s1757
        $region92: #{decoder_forward.9} parent=83 // pred_fallthru
          _
      $region84: #{decoder_forward.9} parent=5 // pred_fallthru
        _
      %p1777 = scmp.le.s32.totalorder 2, %s27
      // Predicated region
      $region93: #{decoder_forward.9} parent=5 // pred_check
        %p1778 = pneg %p1777
      $region94: #{decoder_forward.9} parent=5 // pred_check_branch
        %1780 = sbr.rel (%p1778) target = $region96
      $region95: #{decoder_forward.9} parent=5 // pred_region
        %s1781 = ssub.s32 %s27, 2
        // Predicated region
        $region97: #{decoder_forward.9} parent=95 // pred_check
          %p1782 = pneg %p422
        $region98: #{decoder_forward.9} parent=95 // pred_check_branch
          %1784 = sbr.rel (%p1782) target = $region100
        $region99: #{decoder_forward.9} parent=95 // pred_region
          %p1785 = scmp.lt.s32.totalorder %s33, 1
          %s1786 = scalar_select %p1785, %s33, 1
          %s1787 = smul.addr %s1786, 8
          %s1788 = scalar_lea.vmem %s16, %s1787
        $region100: #{decoder_forward.9} parent=95 // pred_fallthru
          _
        // Predicated region
        $region101: #{decoder_forward.9} parent=95 // pred_check
          %p1789 = pneg %p448
        $region102: #{decoder_forward.9} parent=95 // pred_check_branch
          %1791 = sbr.rel (%p1789) target = $region104
        $region103: #{decoder_forward.9} parent=95 // pred_region
          %s1792 = sand.u32 %s433, 1
          %s1793 = scalar_lea.sflag [#allocation3], %s1792
          %s1794 = sand.u32 %s433, 1
          %s1795 = smul.addr %s1794, 8
          %s1796 = scalar_lea.vmem [#allocation2], %s1795
          %1797 = dma.done %s1793, 128
        $region104: #{decoder_forward.9} parent=95 // pred_fallthru
          _
      $region96: #{decoder_forward.9} parent=5 // pred_fallthru
        _
    $region6: #{decoder_forward.9} parent=1 // loop_footer
      %s31 = sadd.s32 1, %s27
    $region7: #{decoder_forward.9} parent=1 // loop_footer_branch
      %26 = sbr.rel target = $region3
    $region8: #{decoder_forward.9} parent=1 // loop_exit
      _
    %1798 = vsyncpa [#allocation3], 1
    %s1799 = scalar_lea.sflag [#allocation3], 1
    %1800 = vsyncpa %s1799, 1

// kernel: decoder_forward.12
$region0: #{decoder_forward.12}
  #allocation0 [shape = 'u32[]', space=smem, size = 0x4, offset = 0x4, fixed_abs, tag = 'smem constant byte address 0x4 - core index']
  #allocation1 [shape = 'u32[144,128]{1,0:T(1,128)}', space=vmem, size = 0x12000, scoped, tag = 'internal scratch']
  %s0 = inlined_call_operand.vmem [shape: f32[2,8,32], index: 0, kind: input, shape index: {}]
  %s1 = inlined_call_operand.vmem [shape: f32[2,8,32], index: 1, kind: input, shape index: {}]
  %s2 = inlined_call_operand.vmem [shape: f32[2,30,32], index: 2, kind: input, shape index: {}]
  %s3 = inlined_call_operand.vmem [shape: f32[2,30,1], index: 3, kind: input, shape index: {}]
  %s4 = inlined_call_operand.vmem [shape: f32[32,32], index: 4, kind: input, shape index: {}]
  %s5 = inlined_call_operand.vmem [shape: f32[1,32], index: 5, kind: input, shape index: {}]
  %s6 = inlined_call_operand.vmem [shape: f32[32,64], index: 6, kind: input, shape index: {}]
  %s7 = inlined_call_operand.vmem [shape: f32[1,64], index: 7, kind: input, shape index: {}]
  %s8 = inlined_call_operand.vmem [shape: f32[2,8,32], index: 8, kind: input, shape index: {}]
  %s9 = inlined_call_operand.vmem [shape: f32[2,8,32], index: 9, kind: input, shape index: {}]
  %s10 = inlined_call_operand.vmem [shape: s32[1,32], index: 10, kind: input, shape index: {}]
  %s11 = inlined_call_operand.vmem [shape: s32[1,32], index: 11, kind: input, shape index: {}]
  %s12 = inlined_call_operand.vmem [shape: f32[32,32], index: 12, kind: input, shape index: {}]
  %s13 = inlined_call_operand.vmem [shape: f32[1,32], index: 13, kind: input, shape index: {}]
  %s14 = inlined_call_operand.vmem [shape: f32[1,32], index: 14, kind: input, shape index: {}]
  %s15 = inlined_call_operand.vmem [shape: f32[1,32], index: 15, kind: input, shape index: {}]
  %s16 = inlined_call_operand.vmem [shape: f32[2,8,32], index: 16, kind: output, shape index: {0}]
  %s17 = inlined_call_operand.vmem [shape: f32[2,8,32], index: 17, kind: output, shape index: {1}]
  %18 = xla_tuple %s16, %s17
  %s19 = sld [smem:[#allocation0]]
  $region105: #{decoder_forward.12} parent=0
    _
  %s21 = ssub.s32 1, %s19
  %s22 = scalar_select 0, %s21, %s19
  loop: start=0, step=1, limit=4
  $region2: #{decoder_forward.12} parent=0 // loop_pre_header
    _
  $region3: #{decoder_forward.12} parent=0 // loop_header
    %s24 = sphi 0, %s28
    %p25 = scmp.ge.s32.totalorder %s24, 4
    %s34 = sphi 0, %s36
    %s37 = sphi 0, %s34
    %s38 = sphi 0, %s37
    %s54 = sphi 0, %s38
    %s60 = sphi 0, %s62
    %s63 = sphi 0, %s60
    %s64 = sphi 0, %s63
    %s80 = sphi 0, %s64
    %s86 = sphi 0, %s88
    %s89 = sphi 0, %s86
    %s90 = sphi 0, %s89
    %s106 = sphi 0, %s90
    %s112 = sphi 0, %s114
    %s115 = sphi 0, %s112
    %s116 = sphi 0, %s115
    %s132 = sphi 0, %s116
    %s136 = sphi 0, %s136
    %s138 = sphi 0, %s136
    %s139 = sphi 0, %s138
    %s153 = sphi 0, %s139
    %s157 = sphi 0, %s157
    %s159 = sphi 0, %s157
    %s160 = sphi 0, %s159
    %s174 = sphi 0, %s160
    %s178 = sphi 0, %s178
    %s180 = sphi 0, %s178
    %s181 = sphi 0, %s180
    %s195 = sphi 0, %s181
    %s199 = sphi 0, %s199
    %s201 = sphi 0, %s199
    %s202 = sphi 0, %s201
    %s216 = sphi 0, %s202
    %s222 = sphi 0, %s224
    %s225 = sphi 0, %s222
    %s226 = sphi 0, %s225
    %s242 = sphi 0, %s226
    %s248 = sphi 0, %s250
    %s251 = sphi 0, %s248
    %s252 = sphi 0, %s251
    %s268 = sphi 0, %s252
    %s272 = sphi 0, %s272
    %s274 = sphi 0, %s272
    %s275 = sphi 0, %s274
    %s289 = sphi 0, %s275
    %s293 = sphi 0, %s293
    %s295 = sphi 0, %s293
    %s296 = sphi 0, %s295
    %s310 = sphi 0, %s296
    %s314 = sphi 0, %s314
    %s316 = sphi 0, %s314
    %s317 = sphi 0, %s316
    %s331 = sphi 0, %s317
    %s335 = sphi 0, %s335
    %s337 = sphi 0, %s335
    %s338 = sphi 0, %s337
    %s352 = sphi 0, %s338
    %s356 = sphi 0, %s356
    %s358 = sphi 0, %s356
    %s359 = sphi 0, %s358
    %s373 = sphi 0, %s359
    %s377 = sphi 0, %s377
    %s379 = sphi 0, %s377
    %s380 = sphi 0, %s379
    %s394 = sphi 0, %s380
    %s400 = sphi 0, %s402
    %s403 = sphi 0, %s400
    %s404 = sphi 0, %s403
    %s420 = sphi 0, %s404
    %s426 = sphi 0, %s428
    %s429 = sphi 0, %s426
    %s430 = sphi 0, %s429
    %s446 = sphi 0, %s430
  $region4: #{decoder_forward.12} parent=0 // loop_header_branch
    %27 = sbr.rel (%p25) target = $region8
  $region5: #{decoder_forward.12} parent=0 // loop_body
    %s29 = ssub.s32 %s24, 1
    %s30 = ssub.s32 %s24, 2
    %s31 = sadd.s32 %s24, 1
    %s32 = ssub.s32 %s24, %s31
    %p33 = scmp.eq.s32.totalorder %s32, 0
    %s35 = sadd.s32 %s34, 1
    %s36 = scalar_select %p33, %s34, %s35
    %p39 = pneg %p33
    %p40 = scmp.eq.s32.totalorder %s24, 1
    %p41 = por %p39, %p40
    %p42 = scmp.ne.s32.totalorder %s34, %s37
    %p43 = scmp.eq.s32.totalorder %s24, 0
    %p44 = por %p42, %p43
    %p45 = scmp.ne.s32.totalorder %s34, %s37
    %p46 = scmp.eq.s32.totalorder %s29, 1
    %p47 = por %p45, %p46
    %p48 = scmp.ne.s32.totalorder %s37, %s38
    %p49 = scmp.eq.s32.totalorder %s29, 0
    %p50 = por %p48, %p49
    %p51 = scmp.ne.s32.totalorder %s37, %s38
    %p52 = scmp.eq.s32.totalorder %s30, 1
    %p53 = por %p51, %p52
    %p55 = scmp.ne.s32.totalorder %s38, %s54
    %p56 = scmp.eq.s32.totalorder %s30, 0
    %p57 = por %p55, %p56
    %s58 = ssub.s32 %s24, %s31
    %p59 = scmp.eq.s32.totalorder %s58, 0
    %s61 = sadd.s32 %s60, 1
    %s62 = scalar_select %p59, %s60, %s61
    %p65 = pneg %p59
    %p66 = scmp.eq.s32.totalorder %s24, 1
    %p67 = por %p65, %p66
    %p68 = scmp.ne.s32.totalorder %s60, %s63
    %p69 = scmp.eq.s32.totalorder %s24, 0
    %p70 = por %p68, %p69
    %p71 = scmp.ne.s32.totalorder %s60, %s63
    %p72 = scmp.eq.s32.totalorder %s29, 1
    %p73 = por %p71, %p72
    %p74 = scmp.ne.s32.totalorder %s63, %s64
    %p75 = scmp.eq.s32.totalorder %s29, 0
    %p76 = por %p74, %p75
    %p77 = scmp.ne.s32.totalorder %s63, %s64
    %p78 = scmp.eq.s32.totalorder %s30, 1
    %p79 = por %p77, %p78
    %p81 = scmp.ne.s32.totalorder %s64, %s80
    %p82 = scmp.eq.s32.totalorder %s30, 0
    %p83 = por %p81, %p82
    %s84 = ssub.s32 %s24, %s31
    %p85 = scmp.eq.s32.totalorder %s84, 0
    %s87 = sadd.s32 %s86, 1
    %s88 = scalar_select %p85, %s86, %s87
    %p91 = pneg %p85
    %p92 = scmp.eq.s32.totalorder %s24, 1
    %p93 = por %p91, %p92
    %p94 = scmp.ne.s32.totalorder %s86, %s89
    %p95 = scmp.eq.s32.totalorder %s24, 0
    %p96 = por %p94, %p95
    %p97 = scmp.ne.s32.totalorder %s86, %s89
    %p98 = scmp.eq.s32.totalorder %s29, 1
    %p99 = por %p97, %p98
    %p100 = scmp.ne.s32.totalorder %s89, %s90
    %p101 = scmp.eq.s32.totalorder %s29, 0
    %p102 = por %p100, %p101
    %p103 = scmp.ne.s32.totalorder %s89, %s90
    %p104 = scmp.eq.s32.totalorder %s30, 1
    %p105 = por %p103, %p104
    %p107 = scmp.ne.s32.totalorder %s90, %s106
    %p108 = scmp.eq.s32.totalorder %s30, 0
    %p109 = por %p107, %p108
    %s110 = ssub.s32 %s24, %s31
    %p111 = scmp.eq.s32.totalorder %s110, 0
    %s113 = sadd.s32 %s112, 1
    %s114 = scalar_select %p111, %s112, %s113
    %p117 = pneg %p111
    %p118 = scmp.eq.s32.totalorder %s24, 1
    %p119 = por %p117, %p118
    %p120 = scmp.ne.s32.totalorder %s112, %s115
    %p121 = scmp.eq.s32.totalorder %s24, 0
    %p122 = por %p120, %p121
    %p123 = scmp.ne.s32.totalorder %s112, %s115
    %p124 = scmp.eq.s32.totalorder %s29, 1
    %p125 = por %p123, %p124
    %p126 = scmp.ne.s32.totalorder %s115, %s116
    %p127 = scmp.eq.s32.totalorder %s29, 0
    %p128 = por %p126, %p127
    %p129 = scmp.ne.s32.totalorder %s115, %s116
    %p130 = scmp.eq.s32.totalorder %s30, 1
    %p131 = por %p129, %p130
    %p133 = scmp.ne.s32.totalorder %s116, %s132
    %p134 = scmp.eq.s32.totalorder %s30, 0
    %p135 = por %p133, %p134
    %s137 = sadd.s32 %s136, 1
    %p140 = scmp.eq.s32.totalorder %s24, 1
    %p141 = scmp.ne.s32.totalorder %s136, %s138
    %p142 = scmp.eq.s32.totalorder %s24, 0
    %p143 = por %p141, %p142
    %p144 = scmp.ne.s32.totalorder %s136, %s138
    %p145 = scmp.eq.s32.totalorder %s29, 1
    %p146 = por %p144, %p145
    %p147 = scmp.ne.s32.totalorder %s138, %s139
    %p148 = scmp.eq.s32.totalorder %s29, 0
    %p149 = por %p147, %p148
    %p150 = scmp.ne.s32.totalorder %s138, %s139
    %p151 = scmp.eq.s32.totalorder %s30, 1
    %p152 = por %p150, %p151
    %p154 = scmp.ne.s32.totalorder %s139, %s153
    %p155 = scmp.eq.s32.totalorder %s30, 0
    %p156 = por %p154, %p155
    %s158 = sadd.s32 %s157, 1
    %p161 = scmp.eq.s32.totalorder %s24, 1
    %p162 = scmp.ne.s32.totalorder %s157, %s159
    %p163 = scmp.eq.s32.totalorder %s24, 0
    %p164 = por %p162, %p163
    %p165 = scmp.ne.s32.totalorder %s157, %s159
    %p166 = scmp.eq.s32.totalorder %s29, 1
    %p167 = por %p165, %p166
    %p168 = scmp.ne.s32.totalorder %s159, %s160
    %p169 = scmp.eq.s32.totalorder %s29, 0
    %p170 = por %p168, %p169
    %p171 = scmp.ne.s32.totalorder %s159, %s160
    %p172 = scmp.eq.s32.totalorder %s30, 1
    %p173 = por %p171, %p172
    %p175 = scmp.ne.s32.totalorder %s160, %s174
    %p176 = scmp.eq.s32.totalorder %s30, 0
    %p177 = por %p175, %p176
    %s179 = sadd.s32 %s178, 1
    %p182 = scmp.eq.s32.totalorder %s24, 1
    %p183 = scmp.ne.s32.totalorder %s178, %s180
    %p184 = scmp.eq.s32.totalorder %s24, 0
    %p185 = por %p183, %p184
    %p186 = scmp.ne.s32.totalorder %s178, %s180
    %p187 = scmp.eq.s32.totalorder %s29, 1
    %p188 = por %p186, %p187
    %p189 = scmp.ne.s32.totalorder %s180, %s181
    %p190 = scmp.eq.s32.totalorder %s29, 0
    %p191 = por %p189, %p190
    %p192 = scmp.ne.s32.totalorder %s180, %s181
    %p193 = scmp.eq.s32.totalorder %s30, 1
    %p194 = por %p192, %p193
    %p196 = scmp.ne.s32.totalorder %s181, %s195
    %p197 = scmp.eq.s32.totalorder %s30, 0
    %p198 = por %p196, %p197
    %s200 = sadd.s32 %s199, 1
    %p203 = scmp.eq.s32.totalorder %s24, 1
    %p204 = scmp.ne.s32.totalorder %s199, %s201
    %p205 = scmp.eq.s32.totalorder %s24, 0
    %p206 = por %p204, %p205
    %p207 = scmp.ne.s32.totalorder %s199, %s201
    %p208 = scmp.eq.s32.totalorder %s29, 1
    %p209 = por %p207, %p208
    %p210 = scmp.ne.s32.totalorder %s201, %s202
    %p211 = scmp.eq.s32.totalorder %s29, 0
    %p212 = por %p210, %p211
    %p213 = scmp.ne.s32.totalorder %s201, %s202
    %p214 = scmp.eq.s32.totalorder %s30, 1
    %p215 = por %p213, %p214
    %p217 = scmp.ne.s32.totalorder %s202, %s216
    %p218 = scmp.eq.s32.totalorder %s30, 0
    %p219 = por %p217, %p218
    %s220 = ssub.s32 %s24, %s31
    %p221 = scmp.eq.s32.totalorder %s220, 0
    %s223 = sadd.s32 %s222, 1
    %s224 = scalar_select %p221, %s222, %s223
    %p227 = pneg %p221
    %p228 = scmp.eq.s32.totalorder %s24, 1
    %p229 = por %p227, %p228
    %p230 = scmp.ne.s32.totalorder %s222, %s225
    %p231 = scmp.eq.s32.totalorder %s24, 0
    %p232 = por %p230, %p231
    %p233 = scmp.ne.s32.totalorder %s222, %s225
    %p234 = scmp.eq.s32.totalorder %s29, 1
    %p235 = por %p233, %p234
    %p236 = scmp.ne.s32.totalorder %s225, %s226
    %p237 = scmp.eq.s32.totalorder %s29, 0
    %p238 = por %p236, %p237
    %p239 = scmp.ne.s32.totalorder %s225, %s226
    %p240 = scmp.eq.s32.totalorder %s30, 1
    %p241 = por %p239, %p240
    %p243 = scmp.ne.s32.totalorder %s226, %s242
    %p244 = scmp.eq.s32.totalorder %s30, 0
    %p245 = por %p243, %p244
    %s246 = ssub.s32 %s24, %s31
    %p247 = scmp.eq.s32.totalorder %s246, 0
    %s249 = sadd.s32 %s248, 1
    %s250 = scalar_select %p247, %s248, %s249
    %p253 = pneg %p247
    %p254 = scmp.eq.s32.totalorder %s24, 1
    %p255 = por %p253, %p254
    %p256 = scmp.ne.s32.totalorder %s248, %s251
    %p257 = scmp.eq.s32.totalorder %s24, 0
    %p258 = por %p256, %p257
    %p259 = scmp.ne.s32.totalorder %s248, %s251
    %p260 = scmp.eq.s32.totalorder %s29, 1
    %p261 = por %p259, %p260
    %p262 = scmp.ne.s32.totalorder %s251, %s252
    %p263 = scmp.eq.s32.totalorder %s29, 0
    %p264 = por %p262, %p263
    %p265 = scmp.ne.s32.totalorder %s251, %s252
    %p266 = scmp.eq.s32.totalorder %s30, 1
    %p267 = por %p265, %p266
    %p269 = scmp.ne.s32.totalorder %s252, %s268
    %p270 = scmp.eq.s32.totalorder %s30, 0
    %p271 = por %p269, %p270
    %s273 = sadd.s32 %s272, 1
    %p276 = scmp.eq.s32.totalorder %s24, 1
    %p277 = scmp.ne.s32.totalorder %s272, %s274
    %p278 = scmp.eq.s32.totalorder %s24, 0
    %p279 = por %p277, %p278
    %p280 = scmp.ne.s32.totalorder %s272, %s274
    %p281 = scmp.eq.s32.totalorder %s29, 1
    %p282 = por %p280, %p281
    %p283 = scmp.ne.s32.totalorder %s274, %s275
    %p284 = scmp.eq.s32.totalorder %s29, 0
    %p285 = por %p283, %p284
    %p286 = scmp.ne.s32.totalorder %s274, %s275
    %p287 = scmp.eq.s32.totalorder %s30, 1
    %p288 = por %p286, %p287
    %p290 = scmp.ne.s32.totalorder %s275, %s289
    %p291 = scmp.eq.s32.totalorder %s30, 0
    %p292 = por %p290, %p291
    %s294 = sadd.s32 %s293, 1
    %p297 = scmp.eq.s32.totalorder %s24, 1
    %p298 = scmp.ne.s32.totalorder %s293, %s295
    %p299 = scmp.eq.s32.totalorder %s24, 0
    %p300 = por %p298, %p299
    %p301 = scmp.ne.s32.totalorder %s293, %s295
    %p302 = scmp.eq.s32.totalorder %s29, 1
    %p303 = por %p301, %p302
    %p304 = scmp.ne.s32.totalorder %s295, %s296
    %p305 = scmp.eq.s32.totalorder %s29, 0
    %p306 = por %p304, %p305
    %p307 = scmp.ne.s32.totalorder %s295, %s296
    %p308 = scmp.eq.s32.totalorder %s30, 1
    %p309 = por %p307, %p308
    %p311 = scmp.ne.s32.totalorder %s296, %s310
    %p312 = scmp.eq.s32.totalorder %s30, 0
    %p313 = por %p311, %p312
    %s315 = sadd.s32 %s314, 1
    %p318 = scmp.eq.s32.totalorder %s24, 1
    %p319 = scmp.ne.s32.totalorder %s314, %s316
    %p320 = scmp.eq.s32.totalorder %s24, 0
    %p321 = por %p319, %p320
    %p322 = scmp.ne.s32.totalorder %s314, %s316
    %p323 = scmp.eq.s32.totalorder %s29, 1
    %p324 = por %p322, %p323
    %p325 = scmp.ne.s32.totalorder %s316, %s317
    %p326 = scmp.eq.s32.totalorder %s29, 0
    %p327 = por %p325, %p326
    %p328 = scmp.ne.s32.totalorder %s316, %s317
    %p329 = scmp.eq.s32.totalorder %s30, 1
    %p330 = por %p328, %p329
    %p332 = scmp.ne.s32.totalorder %s317, %s331
    %p333 = scmp.eq.s32.totalorder %s30, 0
    %p334 = por %p332, %p333
    %s336 = sadd.s32 %s335, 1
    %p339 = scmp.eq.s32.totalorder %s24, 1
    %p340 = scmp.ne.s32.totalorder %s335, %s337
    %p341 = scmp.eq.s32.totalorder %s24, 0
    %p342 = por %p340, %p341
    %p343 = scmp.ne.s32.totalorder %s335, %s337
    %p344 = scmp.eq.s32.totalorder %s29, 1
    %p345 = por %p343, %p344
    %p346 = scmp.ne.s32.totalorder %s337, %s338
    %p347 = scmp.eq.s32.totalorder %s29, 0
    %p348 = por %p346, %p347
    %p349 = scmp.ne.s32.totalorder %s337, %s338
    %p350 = scmp.eq.s32.totalorder %s30, 1
    %p351 = por %p349, %p350
    %p353 = scmp.ne.s32.totalorder %s338, %s352
    %p354 = scmp.eq.s32.totalorder %s30, 0
    %p355 = por %p353, %p354
    %s357 = sadd.s32 %s356, 1
    %p360 = scmp.eq.s32.totalorder %s24, 1
    %p361 = scmp.ne.s32.totalorder %s356, %s358
    %p362 = scmp.eq.s32.totalorder %s24, 0
    %p363 = por %p361, %p362
    %p364 = scmp.ne.s32.totalorder %s356, %s358
    %p365 = scmp.eq.s32.totalorder %s29, 1
    %p366 = por %p364, %p365
    %p367 = scmp.ne.s32.totalorder %s358, %s359
    %p368 = scmp.eq.s32.totalorder %s29, 0
    %p369 = por %p367, %p368
    %p370 = scmp.ne.s32.totalorder %s358, %s359
    %p371 = scmp.eq.s32.totalorder %s30, 1
    %p372 = por %p370, %p371
    %p374 = scmp.ne.s32.totalorder %s359, %s373
    %p375 = scmp.eq.s32.totalorder %s30, 0
    %p376 = por %p374, %p375
    %s378 = sadd.s32 %s377, 1
    %p381 = scmp.eq.s32.totalorder %s24, 1
    %p382 = scmp.ne.s32.totalorder %s377, %s379
    %p383 = scmp.eq.s32.totalorder %s24, 0
    %p384 = por %p382, %p383
    %p385 = scmp.ne.s32.totalorder %s377, %s379
    %p386 = scmp.eq.s32.totalorder %s29, 1
    %p387 = por %p385, %p386
    %p388 = scmp.ne.s32.totalorder %s379, %s380
    %p389 = scmp.eq.s32.totalorder %s29, 0
    %p390 = por %p388, %p389
    %p391 = scmp.ne.s32.totalorder %s379, %s380
    %p392 = scmp.eq.s32.totalorder %s30, 1
    %p393 = por %p391, %p392
    %p395 = scmp.ne.s32.totalorder %s380, %s394
    %p396 = scmp.eq.s32.totalorder %s30, 0
    %p397 = por %p395, %p396
    %s398 = ssub.s32 %s24, %s31
    %p399 = scmp.eq.s32.totalorder %s398, 0
    %s401 = sadd.s32 %s400, 1
    %s402 = scalar_select %p399, %s400, %s401
    %p405 = pneg %p399
    %p406 = scmp.eq.s32.totalorder %s24, 1
    %p407 = por %p405, %p406
    %p408 = scmp.ne.s32.totalorder %s400, %s403
    %p409 = scmp.eq.s32.totalorder %s24, 0
    %p410 = por %p408, %p409
    %p411 = scmp.ne.s32.totalorder %s400, %s403
    %p412 = scmp.eq.s32.totalorder %s29, 1
    %p413 = por %p411, %p412
    %p414 = scmp.ne.s32.totalorder %s403, %s404
    %p415 = scmp.eq.s32.totalorder %s29, 0
    %p416 = por %p414, %p415
    %p417 = scmp.ne.s32.totalorder %s403, %s404
    %p418 = scmp.eq.s32.totalorder %s30, 1
    %p419 = por %p417, %p418
    %p421 = scmp.ne.s32.totalorder %s404, %s420
    %p422 = scmp.eq.s32.totalorder %s30, 0
    %p423 = por %p421, %p422
    %s424 = ssub.s32 %s24, %s31
    %p425 = scmp.eq.s32.totalorder %s424, 0
    %s427 = sadd.s32 %s426, 1
    %s428 = scalar_select %p425, %s426, %s427
    %p431 = pneg %p425
    %p432 = scmp.eq.s32.totalorder %s24, 1
    %p433 = por %p431, %p432
    %p434 = scmp.ne.s32.totalorder %s426, %s429
    %p435 = scmp.eq.s32.totalorder %s24, 0
    %p436 = por %p434, %p435
    %p437 = scmp.ne.s32.totalorder %s426, %s429
    %p438 = scmp.eq.s32.totalorder %s29, 1
    %p439 = por %p437, %p438
    %p440 = scmp.ne.s32.totalorder %s429, %s430
    %p441 = scmp.eq.s32.totalorder %s29, 0
    %p442 = por %p440, %p441
    %p443 = scmp.ne.s32.totalorder %s429, %s430
    %p444 = scmp.eq.s32.totalorder %s30, 1
    %p445 = por %p443, %p444
    %p447 = scmp.ne.s32.totalorder %s430, %s446
    %p448 = scmp.eq.s32.totalorder %s30, 0
    %p449 = por %p447, %p448
    %p450 = scmp.le.s32.totalorder 1, %s24
    %p451 = scmp.lt.s32.totalorder %s24, 3
    %p452 = pnand %p450, %p451
    %p453 = pneg %p452
    // Predicated region
    $region9: #{decoder_forward.12} parent=5 // pred_check
      _
    $region10: #{decoder_forward.12} parent=5 // pred_check_branch
      %455 = sbr.rel (%p452) target = $region12
    $region11: #{decoder_forward.12} parent=5 // pred_region
      %s456 = ssub.s32 %s24, 1
      // Predicated region
      $region13: #{decoder_forward.12} parent=11 // pred_check
        %p457 = pneg %p149
      $region14: #{decoder_forward.12} parent=11 // pred_check_branch
        %459 = sbr.rel (%p457) target = $region16
      $region15: #{decoder_forward.12} parent=11 // pred_region
        _
      $region16: #{decoder_forward.12} parent=11 // pred_fallthru
        _
      // Predicated region
      $region17: #{decoder_forward.12} parent=11 // pred_check
        %p460 = pneg %p170
      $region18: #{decoder_forward.12} parent=11 // pred_check_branch
        %462 = sbr.rel (%p460) target = $region20
      $region19: #{decoder_forward.12} parent=11 // pred_region
        _
      $region20: #{decoder_forward.12} parent=11 // pred_fallthru
        _
      // Predicated region
      $region21: #{decoder_forward.12} parent=11 // pred_check
        %p463 = pneg %p191
      $region22: #{decoder_forward.12} parent=11 // pred_check_branch
        %465 = sbr.rel (%p463) target = $region24
      $region23: #{decoder_forward.12} parent=11 // pred_region
        _
      $region24: #{decoder_forward.12} parent=11 // pred_fallthru
        _
      // Predicated region
      $region25: #{decoder_forward.12} parent=11 // pred_check
        %p466 = pneg %p212
      $region26: #{decoder_forward.12} parent=11 // pred_check_branch
        %468 = sbr.rel (%p466) target = $region28
      $region27: #{decoder_forward.12} parent=11 // pred_region
        _
      $region28: #{decoder_forward.12} parent=11 // pred_fallthru
        _
      // Predicated region
      $region29: #{decoder_forward.12} parent=11 // pred_check
        %p469 = pneg %p285
      $region30: #{decoder_forward.12} parent=11 // pred_check_branch
        %471 = sbr.rel (%p469) target = $region32
      $region31: #{decoder_forward.12} parent=11 // pred_region
        _
      $region32: #{decoder_forward.12} parent=11 // pred_fallthru
        _
      // Predicated region
      $region33: #{decoder_forward.12} parent=11 // pred_check
        %p472 = pneg %p306
      $region34: #{decoder_forward.12} parent=11 // pred_check_branch
        %474 = sbr.rel (%p472) target = $region36
      $region35: #{decoder_forward.12} parent=11 // pred_region
        _
      $region36: #{decoder_forward.12} parent=11 // pred_fallthru
        _
      // Predicated region
      $region37: #{decoder_forward.12} parent=11 // pred_check
        %p475 = pneg %p327
      $region38: #{decoder_forward.12} parent=11 // pred_check_branch
        %477 = sbr.rel (%p475) target = $region40
      $region39: #{decoder_forward.12} parent=11 // pred_region
        _
      $region40: #{decoder_forward.12} parent=11 // pred_fallthru
        _
      // Predicated region
      $region41: #{decoder_forward.12} parent=11 // pred_check
        %p478 = pneg %p348
      $region42: #{decoder_forward.12} parent=11 // pred_check_branch
        %480 = sbr.rel (%p478) target = $region44
      $region43: #{decoder_forward.12} parent=11 // pred_region
        _
      $region44: #{decoder_forward.12} parent=11 // pred_fallthru
        _
      // Predicated region
      $region45: #{decoder_forward.12} parent=11 // pred_check
        %p481 = pneg %p369
      $region46: #{decoder_forward.12} parent=11 // pred_check_branch
        %483 = sbr.rel (%p481) target = $region48
      $region47: #{decoder_forward.12} parent=11 // pred_region
        _
      $region48: #{decoder_forward.12} parent=11 // pred_fallthru
        _
      // Predicated region
      $region49: #{decoder_forward.12} parent=11 // pred_check
        %p484 = pneg %p390
      $region50: #{decoder_forward.12} parent=11 // pred_check_branch
        %486 = sbr.rel (%p484) target = $region52
      $region51: #{decoder_forward.12} parent=11 // pred_region
        _
      $region52: #{decoder_forward.12} parent=11 // pred_fallthru
        _
    $region12: #{decoder_forward.12} parent=5 // pred_fallthru
      _
    %p487 = scmp.lt.s32.totalorder %s24, 2
    // Predicated region
    $region53: #{decoder_forward.12} parent=5 // pred_check
      %p488 = pneg %p487
    $region54: #{decoder_forward.12} parent=5 // pred_check_branch
      %490 = sbr.rel (%p488) target = $region56
    $region55: #{decoder_forward.12} parent=5 // pred_region
      // Predicated region
      $region57: #{decoder_forward.12} parent=55 // pred_check
        %p491 = pneg %p44
      $region58: #{decoder_forward.12} parent=55 // pred_check_branch
        %493 = sbr.rel (%p491) target = $region60
      $region59: #{decoder_forward.12} parent=55 // pred_region
        %p494 = scmp.lt.s32.totalorder %s24, 1
        %s495 = scalar_select %p494, %s24, 1
        %s496 = smul.addr %s495, 8
        %s497 = scalar_lea.vmem %s0, %s496
      $region60: #{decoder_forward.12} parent=55 // pred_fallthru
        _
      // Predicated region
      $region61: #{decoder_forward.12} parent=55 // pred_check
        %p498 = pneg %p70
      $region62: #{decoder_forward.12} parent=55 // pred_check_branch
        %500 = sbr.rel (%p498) target = $region64
      $region63: #{decoder_forward.12} parent=55 // pred_region
        %p501 = scmp.lt.s32.totalorder %s24, 1
        %s502 = scalar_select %p501, %s24, 1
        %s503 = smul.addr %s502, 8
        %s504 = scalar_lea.vmem %s1, %s503
      $region64: #{decoder_forward.12} parent=55 // pred_fallthru
        _
      // Predicated region
      $region65: #{decoder_forward.12} parent=55 // pred_check
        %p505 = pneg %p96
      $region66: #{decoder_forward.12} parent=55 // pred_check_branch
        %507 = sbr.rel (%p505) target = $region68
      $region67: #{decoder_forward.12} parent=55 // pred_region
        %p508 = scmp.lt.s32.totalorder %s24, 1
        %s509 = scalar_select %p508, %s24, 1
        %s510 = smul.addr %s509, 4
        %s511 = smul.addr %s510, 8
        %s512 = scalar_lea.vmem %s2, %s511
      $region68: #{decoder_forward.12} parent=55 // pred_fallthru
        _
      // Predicated region
      $region69: #{decoder_forward.12} parent=55 // pred_check
        %p513 = pneg %p122
      $region70: #{decoder_forward.12} parent=55 // pred_check_branch
        %515 = sbr.rel (%p513) target = $region72
      $region71: #{decoder_forward.12} parent=55 // pred_region
        %p516 = scmp.lt.s32.totalorder %s24, 1
        %s517 = scalar_select %p516, %s24, 1
        %s518 = smul.addr %s517, 4
        %s519 = smul.addr %s518, 8
        %s520 = scalar_lea.vmem %s3, %s519
      $region72: #{decoder_forward.12} parent=55 // pred_fallthru
        _
      // Predicated region
      $region73: #{decoder_forward.12} parent=55 // pred_check
        %p521 = pneg %p232
      $region74: #{decoder_forward.12} parent=55 // pred_check_branch
        %523 = sbr.rel (%p521) target = $region76
      $region75: #{decoder_forward.12} parent=55 // pred_region
        %p524 = scmp.lt.s32.totalorder %s24, 1
        %s525 = scalar_select %p524, %s24, 1
        %s526 = smul.addr %s525, 8
        %s527 = scalar_lea.vmem %s8, %s526
      $region76: #{decoder_forward.12} parent=55 // pred_fallthru
        _
      // Predicated region
      $region77: #{decoder_forward.12} parent=55 // pred_check
        %p528 = pneg %p258
      $region78: #{decoder_forward.12} parent=55 // pred_check_branch
        %530 = sbr.rel (%p528) target = $region80
      $region79: #{decoder_forward.12} parent=55 // pred_region
        %p531 = scmp.lt.s32.totalorder %s24, 1
        %s532 = scalar_select %p531, %s24, 1
        %s533 = smul.addr %s532, 8
        %s534 = scalar_lea.vmem %s9, %s533
      $region80: #{decoder_forward.12} parent=55 // pred_fallthru
        _
    $region56: #{decoder_forward.12} parent=5 // pred_fallthru
      _
    %p535 = scmp.le.s32.totalorder 1, %s24
    %p536 = scmp.lt.s32.totalorder %s24, 3
    %p537 = pnand %p535, %p536
    %p538 = pneg %p537
    // Predicated region
    $region81: #{decoder_forward.12} parent=5 // pred_check
      _
    $region82: #{decoder_forward.12} parent=5 // pred_check_branch
      %540 = sbr.rel (%p537) target = $region84
    $region83: #{decoder_forward.12} parent=5 // pred_region
      %s541 = ssub.s32 %s24, 1
      %p542 = scmp.lt.s32.totalorder %s29, 1
      %s543 = scalar_select %p542, %s29, 1
      %s544 = smul.addr %s543, 8
      %s545 = scalar_lea.vmem %s0, %s544
      %p546 = pneg %p50
      %p547 = pneg %p47
      %p548 = scmp.lt.s32.totalorder %s29, 1
      %s549 = scalar_select %p548, %s29, 1
      %s550 = smul.addr %s549, 8
      %s551 = scalar_lea.vmem %s1, %s550
      %p552 = pneg %p76
      %p553 = pneg %p73
      %p554 = scmp.lt.s32.totalorder %s29, 1
      %s555 = scalar_select %p554, %s29, 1
      %s556 = smul.addr %s555, 4
      %s557 = smul.addr %s556, 8
      %s558 = scalar_lea.vmem %s2, %s557
      %p559 = pneg %p102
      %p560 = pneg %p99
      %p561 = scmp.lt.s32.totalorder %s29, 1
      %s562 = scalar_select %p561, %s29, 1
      %s563 = smul.addr %s562, 4
      %s564 = smul.addr %s563, 8
      %s565 = scalar_lea.vmem %s3, %s564
      %p566 = pneg %p128
      %p567 = pneg %p125
      %p568 = pneg %p149
      %p569 = pneg %p146
      %p570 = pneg %p170
      %p571 = pneg %p167
      %p572 = pneg %p191
      %p573 = pneg %p188
      %p574 = pneg %p212
      %p575 = pneg %p209
      %p576 = scmp.lt.s32.totalorder %s29, 1
      %s577 = scalar_select %p576, %s29, 1
      %s578 = smul.addr %s577, 8
      %s579 = scalar_lea.vmem %s8, %s578
      %p580 = pneg %p238
      %p581 = pneg %p235
      %p582 = scmp.lt.s32.totalorder %s29, 1
      %s583 = scalar_select %p582, %s29, 1
      %s584 = smul.addr %s583, 8
      %s585 = scalar_lea.vmem %s9, %s584
      %p586 = pneg %p264
      %p587 = pneg %p261
      %p588 = pneg %p285
      %p589 = pneg %p282
      %p590 = pneg %p306
      %p591 = pneg %p303
      %p592 = pneg %p327
      %p593 = pneg %p324
      %p594 = pneg %p348
      %p595 = pneg %p345
      %p596 = pneg %p369
      %p597 = pneg %p366
      %p598 = pneg %p390
      %p599 = pneg %p387
      %p600 = pneg %p416
      %p601 = pneg %p413
      %p602 = scmp.lt.s32.totalorder %s29, 1
      %s603 = scalar_select %p602, %s29, 1
      %s604 = smul.addr %s603, 8
      %s605 = scalar_lea.vmem %s16, %s604
      %p606 = pneg %p442
      %p607 = pneg %p439
      %p608 = scmp.lt.s32.totalorder %s29, 1
      %s609 = scalar_select %p608, %s29, 1
      %s610 = smul.addr %s609, 8
      %s611 = scalar_lea.vmem %s17, %s610
      %p612 = scmp.lt.s32.totalorder %s29, 1
      %s613 = scalar_select %p612, %s29, 1
      %s614 = smul.addr %s613, 8
      %s615 = scalar_lea.vmem %s0, %s614
      %p616 = scmp.lt.s32.totalorder %s29, 1
      %s617 = scalar_select %p616, %s29, 1
      %s618 = smul.addr %s617, 8
      %s619 = scalar_lea.vmem %s1, %s618
      %p620 = scmp.lt.s32.totalorder %s29, 1
      %s621 = scalar_select %p620, %s29, 1
      %s622 = smul.addr %s621, 4
      %s623 = smul.addr %s622, 8
      %s624 = scalar_lea.vmem %s2, %s623
      %p625 = scmp.lt.s32.totalorder %s29, 1
      %s626 = scalar_select %p625, %s29, 1
      %s627 = smul.addr %s626, 4
      %s628 = smul.addr %s627, 8
      %s629 = scalar_lea.vmem %s3, %s628
      %p630 = scmp.lt.s32.totalorder %s29, 1
      %s631 = scalar_select %p630, %s29, 1
      %s632 = smul.addr %s631, 8
      %s633 = scalar_lea.vmem %s8, %s632
      %p634 = scmp.lt.s32.totalorder %s29, 1
      %s635 = scalar_select %p634, %s29, 1
      %s636 = smul.addr %s635, 8
      %s637 = scalar_lea.vmem %s9, %s636
      %p638 = scmp.lt.s32.totalorder %s29, 1
      %s639 = scalar_select %p638, %s29, 1
      %s640 = smul.addr %s639, 8
      %s641 = scalar_lea.vmem %s16, %s640
      %p642 = scmp.lt.s32.totalorder %s29, 1
      %s643 = scalar_select %p642, %s29, 1
      %s644 = smul.addr %s643, 8
      %s645 = scalar_lea.vmem %s17, %s644
      %v647 = vld [vmem:[%s615] sm:$0xff]
      %v648 = vld [vmem:[%s624] sm:$0xff]
      %v649 = vld [vmem:[%s624 + $0x8] sm:$0xff]
      %v650 = vld [vmem:[%s624 + $0x10] sm:$0xff]
      %v651 = vld [vmem:[%s624 + $0x18] sm:$0x3f]
      %v652 = vpack.c.bf16 %v649, %v648
      %v653 = vpack.c.bf16 %v651, %v650
      %v654 = vld [vmem:[%s4] sm:$0xff]
      %v655 = vld [vmem:[%s4 + $0x8] sm:$0xff]
      %v656 = vld [vmem:[%s4 + $0x10] sm:$0xff]
      %v657 = vld [vmem:[%s4 + $0x18] sm:$0xff]
      %v658 = vpack.c.bf16 %v655, %v654
      %v659 = vpack.c.bf16 %v657, %v656
      %v660 = vld [vmem:[%s5] sm:$0x1]
      %v662 = vlaneseq
      %v663 = vshrl.u32 %v662, 7
      %v664 = vsub.s32 0, %v663
      %v665 = vrot.slane %v660, %v664
      %vm667 = vcmask 261120
      %v669 = vsel %vm667, %v652, 0
      %v672 = vsel %vm667, %v653, 0
      %674 = vmatprep.subr.bf16.mxu0 0
      %675 = vmatpush1.bf16.msra.mxu0 %v658
      %676 = vmatprep.subr.bf16.mxu0 0
      %677 = vmatpush1.bf16.msra.mxu0 %v659
      %678 = vmatprep.subr.bf16.mxu0 0
      %679 = vmatpush1.bf16.msra.mxu0 0
      %680 = vmatprep.subr.bf16.mxu0 0
      %681 = vmatpush1.bf16.msra.mxu0 0
      %682 = vmatprep.subr.bf16.mxu0 0
      %683 = vmatpush1.bf16.msra.mxu0 0
      %684 = vmatprep.subr.bf16.mxu0 0
      %685 = vmatpush1.bf16.msra.mxu0 0
      %686 = vmatprep.subr.bf16.mxu0 0
      %687 = vmatpush1.bf16.msra.mxu0 0
      %688 = vmatprep.subr.bf16.mxu0 0
      %689 = vmatpush1.bf16.msra.mxu0 0
      %690 = vmatprep.subr.bf16.mxu0 0
      %691 = vmatpush1.bf16.msra.mxu0 0
      %692 = vmatprep.subr.bf16.mxu0 0
      %693 = vmatpush1.bf16.msra.mxu0 0
      %694 = vmatprep.subr.bf16.mxu0 0
      %695 = vmatpush1.bf16.msra.mxu0 0
      %696 = vmatprep.subr.bf16.mxu0 0
      %697 = vmatpush1.bf16.msra.mxu0 0
      %698 = vmatprep.subr.bf16.mxu0 0
      %699 = vmatpush1.bf16.msra.mxu0 0
      %700 = vmatprep.subr.bf16.mxu0 0
      %701 = vmatpush1.bf16.msra.mxu0 0
      %702 = vmatprep.subr.bf16.mxu0 0
      %703 = vmatpush1.bf16.msra.mxu0 0
      %704 = vmatprep.subr.bf16.mxu0 0
      %705 = vmatpush1.bf16.msra.mxu0 0
      %706 = vmatprep.mubr.bf16.mxu0 0
      %707 = vmatmul.mubr.bf16.gmra.mrb[0].mxu0 %v669
      %v708 = vpop.f32.mrb[0].mxu0
      %v709 = vadd.f32 %v665, %v708
      %v710 = vpop.f32.mrb[0].mxu0
      %v711 = vpop.f32.mrb[0].mxu0
      %v712 = vadd.f32 %v665, %v711
      %v713 = vpop.f32.mrb[0].mxu0
      %714 = vmatprep.mubr.bf16.mxu0 0
      %715 = vmatmul.mubr.bf16.gmra.mrb[0].mxu0 %v672
      %v716 = vpop.f32.mrb[0].mxu0
      %v717 = vadd.f32 %v665, %v716
      %v718 = vpop.f32.mrb[0].mxu0
      %v719 = vpop.f32.mrb[0].mxu0
      %v720 = vadd.f32 %v665, %v719
      %v721 = vpop.f32.mrb[0].mxu0
      %722 = vdwg.mxu0
      %v723 = vld [vmem:[%s629] sm:$0xff]
      %v724 = vld [vmem:[%s629 + $0x8] sm:$0xff]
      %v725 = vld [vmem:[%s629 + $0x10] sm:$0xff]
      %v726 = vld [vmem:[%s629 + $0x18] sm:$0x3f]
      %728 = vset.pattern.permute.xlu0 0
      %729 = vperm.xlu0 %728, %v723
      %v730 = vpop.permute.xlu0 %729
      %733 = vset.pattern.permute.xlu0 0
      %734 = vperm.xlu0 %733, %v724
      %v735 = vpop.permute.xlu0 %734
      %738 = vset.pattern.permute.xlu0 0
      %739 = vperm.xlu0 %738, %v725
      %v740 = vpop.permute.xlu0 %739
      %743 = vset.pattern.permute.xlu0 0
      %744 = vperm.xlu0 %743, %v726
      %v745 = vpop.permute.xlu0 %744
      %v747 = vmul.f32 %v709, %v730
      %v748 = vmul.f32 %v712, %v735
      %v749 = vmul.f32 %v717, %v740
      %v750 = vmul.f32 %v720, %v745
      %v751 = vpack.c.bf16 %v748, %v747
      %v752 = vpack.c.bf16 %v750, %v749
      %v753 = vld [vmem:[%s619] sm:$0xff]
      %v754 = vadd.f32 %v647, %v753
      %v755 = vpack.c.bf16 %v754, %v754
      %v756 = vld [vmem:[%s6] sm:$0xff]
      %v757 = vld [vmem:[%s6 + $0x8] sm:$0xff]
      %v758 = vld [vmem:[%s6 + $0x10] sm:$0xff]
      %v759 = vld [vmem:[%s6 + $0x18] sm:$0xff]
      %v760 = vpack.c.bf16 %v757, %v756
      %v761 = vpack.c.bf16 %v759, %v758
      %v762 = vld [vmem:[%s7] sm:$0x1]
      %v764 = vlaneseq
      %v765 = vshrl.u32 %v764, 7
      %v766 = vsub.s32 0, %v765
      %v767 = vrot.slane %v762, %v766
      %v770 = vsel %vm667, %v755, 0
      %772 = vmatprep.subr.bf16.mxu0 0
      %773 = vmatpush1.bf16.msra.mxu0 %v760
      %774 = vmatprep.subr.bf16.mxu0 0
      %775 = vmatpush1.bf16.msra.mxu0 %v761
      %776 = vmatprep.subr.bf16.mxu0 0
      %777 = vmatpush1.bf16.msra.mxu0 0
      %778 = vmatprep.subr.bf16.mxu0 0
      %779 = vmatpush1.bf16.msra.mxu0 0
      %780 = vmatprep.subr.bf16.mxu0 0
      %781 = vmatpush1.bf16.msra.mxu0 0
      %782 = vmatprep.subr.bf16.mxu0 0
      %783 = vmatpush1.bf16.msra.mxu0 0
      %784 = vmatprep.subr.bf16.mxu0 0
      %785 = vmatpush1.bf16.msra.mxu0 0
      %786 = vmatprep.subr.bf16.mxu0 0
      %787 = vmatpush1.bf16.msra.mxu0 0
      %788 = vmatprep.subr.bf16.mxu0 0
      %789 = vmatpush1.bf16.msra.mxu0 0
      %790 = vmatprep.subr.bf16.mxu0 0
      %791 = vmatpush1.bf16.msra.mxu0 0
      %792 = vmatprep.subr.bf16.mxu0 0
      %793 = vmatpush1.bf16.msra.mxu0 0
      %794 = vmatprep.subr.bf16.mxu0 0
      %795 = vmatpush1.bf16.msra.mxu0 0
      %796 = vmatprep.subr.bf16.mxu0 0
      %797 = vmatpush1.bf16.msra.mxu0 0
      %798 = vmatprep.subr.bf16.mxu0 0
      %799 = vmatpush1.bf16.msra.mxu0 0
      %800 = vmatprep.subr.bf16.mxu0 0
      %801 = vmatpush1.bf16.msra.mxu0 0
      %802 = vmatprep.subr.bf16.mxu0 0
      %803 = vmatpush1.bf16.msra.mxu0 0
      %804 = vmatprep.mubr.bf16.mxu0 0
      %805 = vmatmul.mubr.bf16.gmra.mrb[0].mxu0 %v770
      %v806 = vpop.f32.mrb[0].mxu0
      %v807 = vadd.f32 %v767, %v806
      %v808 = vpop.f32.mrb[0].mxu0
      %v809 = vpop.f32.mrb[0].mxu0
      %v810 = vpop.f32.mrb[0].mxu0
      %811 = vdwg.mxu0
      %v812 = vld [vmem:[%s633] sm:$0xff]
      %v813 = vld [vmem:[%s637] sm:$0xff]
      %v814 = vmul.f32 %v807, %v813
      %v815 = vadd.f32 %v812, %v814
      %816 = vst.msk [vmem:[%s645] sm:$0xff] %vm667, %v815
      %v817 = vld [vmem:[%s10] sm:$0x1]
      %v818 = vcvt.s32.f32 %v817
      %v819 = vld [vmem:[%s11] sm:$0x1]
      %v821 = vlaneseq
      %v822 = vshrl.u32 %v821, 7
      %v823 = vsub.s32 0, %v822
      %v824 = vrot.slane %v818, %v823
      %v826 = vmul.f32 %v815, %v824
      %v827 = vsub.f32 %v826, 0.5
      %v828 = vfloor.f32 %v827
      %v829 = vsub.f32 %v827, %v828
      %v830 = vcvt.f32.s32.to.zero.pseudo %v828
      %vm831 = vcmp.ge.s32.totalorder %v830, 0
      %v832 = vlaneseq
      %v833 = vshrl.u32 %v832, 7
      %v834 = vsub.s32 0, %v833
      %v835 = vrot.slane %v817, %v834
      %vm836 = vcmp.lt.s32.totalorder %v830, %v835
      %vm837 = vmand %vm831, %vm836
      %v838 = vadd.s32 %v830, 1
      %vm839 = vcmp.ge.s32.totalorder %v838, 0
      %vm840 = vcmp.lt.s32.totalorder %v838, %v835
      %vm841 = vmand %vm839, %vm840
      %v842 = vsub.s32 %v817, 1
      %vm843 = vcmp.gt.s32.totalorder %v830, 0
      %v844 = vsel %vm843, %v830, 0
      %v845 = vlaneseq
      %v846 = vshrl.u32 %v845, 7
      %v847 = vsub.s32 0, %v846
      %v848 = vrot.slane %v842, %v847
      %vm849 = vcmp.lt.s32.totalorder %v848, %v844
      %v850 = vsel %vm849, %v848, %v844
      %v851 = vlaneseq
      %v852 = vshrl.u32 %v851, 7
      %v853 = vsub.s32 0, %v852
      %v854 = vrot.slane %v819, %v853
      %v855 = vadd.s32 %v854, %v850
      %vm856 = vcmp.gt.s32.totalorder %v838, 0
      %v857 = vsel %vm856, %v838, 0
      %vm858 = vcmp.lt.s32.totalorder %v848, %v857
      %v859 = vsel %vm858, %v848, %v857
      %v860 = vadd.s32 %v854, %v859
      %v861 = vsub.f32 1.0, %v829
      %v862 = vsel %vm837, %v861, 0.0
      %v863 = vsel %vm841, %v829, 0.0
      %v864 = vlaneseq
      %v865 = vand.u32 %v864, 127
      %vm866 = vcmask 392448
      %v867 = vsel %vm866, %v807, -inf
      %868 = vmax.xlane.f32.xlu0 %v867
      %v869 = vpop.xlane.xlu0 %868
      %v870 = vsub.f32 %v807, %v869
      %v871 = vmul.f32 %v870, 1.442695
      %v872 = vpow.pop %v871
      %874 = vrot.lane.b32.xlu0 %v872, 96
      %v875 = vpop.permute.xlu0 %874
      %vm877 = vcmask 130048
      %v878 = vsel %vm877, %v875, 0.0
      %879 = vadd.xlane.f32.xlu0 %v878
      %v880 = vpop.xlane.xlu0 %879
      %v881 = vrcp.pop %v880
      %v882 = vmul.f32 %v872, %v881
      %884 = vrot.lane.b32.xlu0 %v862, 32
      %v885 = vpop.permute.xlu0 %884
      %v887 = vmul.f32 %v882, %v885
      %889 = vrot.lane.b32.xlu0 %v863, 32
      %v890 = vpop.permute.xlu0 %889
      %v892 = vmul.f32 %v882, %v890
      %893 = vset.pattern.permute.xlu0 0
      %894 = vperm.xlu0 %893, %v855
      %v895 = vpop.permute.xlu0 %894
      %vm896 = vcmp.eq.s32.totalorder %v865, %v895
      %898 = vset.pattern.permute.xlu0 32
      %899 = vperm.xlu0 %898, %v887
      %v900 = vpop.permute.xlu0 %899
      %v902 = vsel %vm896, %v900, 0.0
      %v903 = vadd.f32 %v902, 0.0
      %904 = vset.pattern.permute.xlu0 0
      %905 = vperm.xlu0 %904, %v860
      %v906 = vpop.permute.xlu0 %905
      %vm907 = vcmp.eq.s32.totalorder %v865, %v906
      %909 = vset.pattern.permute.xlu0 32
      %910 = vperm.xlu0 %909, %v892
      %v911 = vpop.permute.xlu0 %910
      %v913 = vsel %vm907, %v911, 0.0
      %v914 = vadd.f32 %v903, %v913
      %915 = vset.pattern.permute.xlu0 1
      %916 = vperm.xlu0 %915, %v855
      %v917 = vpop.permute.xlu0 %916
      %vm918 = vcmp.eq.s32.totalorder %v865, %v917
      %919 = vset.pattern.permute.xlu0 33
      %920 = vperm.xlu0 %919, %v887
      %v921 = vpop.permute.xlu0 %920
      %v923 = vsel %vm918, %v921, 0.0
      %v924 = vadd.f32 %v914, %v923
      %925 = vset.pattern.permute.xlu0 1
      %926 = vperm.xlu0 %925, %v860
      %v927 = vpop.permute.xlu0 %926
      %vm928 = vcmp.eq.s32.totalorder %v865, %v927
      %929 = vset.pattern.permute.xlu0 33
      %930 = vperm.xlu0 %929, %v892
      %v931 = vpop.permute.xlu0 %930
      %v933 = vsel %vm928, %v931, 0.0
      %v934 = vadd.f32 %v924, %v933
      %935 = vset.pattern.permute.xlu0 2
      %936 = vperm.xlu0 %935, %v855
      %v937 = vpop.permute.xlu0 %936
      %vm938 = vcmp.eq.s32.totalorder %v865, %v937
      %939 = vset.pattern.permute.xlu0 34
      %940 = vperm.xlu0 %939, %v887
      %v941 = vpop.permute.xlu0 %940
      %v943 = vsel %vm938, %v941, 0.0
      %v944 = vadd.f32 %v934, %v943
      %945 = vset.pattern.permute.xlu0 2
      %946 = vperm.xlu0 %945, %v860
      %v947 = vpop.permute.xlu0 %946
      %vm948 = vcmp.eq.s32.totalorder %v865, %v947
      %949 = vset.pattern.permute.xlu0 34
      %950 = vperm.xlu0 %949, %v892
      %v951 = vpop.permute.xlu0 %950
      %v953 = vsel %vm948, %v951, 0.0
      %v954 = vadd.f32 %v944, %v953
      %955 = vset.pattern.permute.xlu0 3
      %956 = vperm.xlu0 %955, %v855
      %v957 = vpop.permute.xlu0 %956
      %vm958 = vcmp.eq.s32.totalorder %v865, %v957
      %959 = vset.pattern.permute.xlu0 35
      %960 = vperm.xlu0 %959, %v887
      %v961 = vpop.permute.xlu0 %960
      %v963 = vsel %vm958, %v961, 0.0
      %v964 = vadd.f32 %v954, %v963
      %965 = vset.pattern.permute.xlu0 3
      %966 = vperm.xlu0 %965, %v860
      %v967 = vpop.permute.xlu0 %966
      %vm968 = vcmp.eq.s32.totalorder %v865, %v967
      %969 = vset.pattern.permute.xlu0 35
      %970 = vperm.xlu0 %969, %v892
      %v971 = vpop.permute.xlu0 %970
      %v973 = vsel %vm968, %v971, 0.0
      %v974 = vadd.f32 %v964, %v973
      %975 = vset.pattern.permute.xlu0 4
      %976 = vperm.xlu0 %975, %v855
      %v977 = vpop.permute.xlu0 %976
      %vm978 = vcmp.eq.s32.totalorder %v865, %v977
      %979 = vset.pattern.permute.xlu0 36
      %980 = vperm.xlu0 %979, %v887
      %v981 = vpop.permute.xlu0 %980
      %v983 = vsel %vm978, %v981, 0.0
      %v984 = vadd.f32 %v974, %v983
      %985 = vset.pattern.permute.xlu0 4
      %986 = vperm.xlu0 %985, %v860
      %v987 = vpop.permute.xlu0 %986
      %vm988 = vcmp.eq.s32.totalorder %v865, %v987
      %989 = vset.pattern.permute.xlu0 36
      %990 = vperm.xlu0 %989, %v892
      %v991 = vpop.permute.xlu0 %990
      %v993 = vsel %vm988, %v991, 0.0
      %v994 = vadd.f32 %v984, %v993
      %995 = vset.pattern.permute.xlu0 5
      %996 = vperm.xlu0 %995, %v855
      %v997 = vpop.permute.xlu0 %996
      %vm998 = vcmp.eq.s32.totalorder %v865, %v997
      %999 = vset.pattern.permute.xlu0 37
      %1000 = vperm.xlu0 %999, %v887
      %v1001 = vpop.permute.xlu0 %1000
      %v1003 = vsel %vm998, %v1001, 0.0
      %v1004 = vadd.f32 %v994, %v1003
      %1005 = vset.pattern.permute.xlu0 5
      %1006 = vperm.xlu0 %1005, %v860
      %v1007 = vpop.permute.xlu0 %1006
      %vm1008 = vcmp.eq.s32.totalorder %v865, %v1007
      %1009 = vset.pattern.permute.xlu0 37
      %1010 = vperm.xlu0 %1009, %v892
      %v1011 = vpop.permute.xlu0 %1010
      %v1013 = vsel %vm1008, %v1011, 0.0
      %v1014 = vadd.f32 %v1004, %v1013
      %1015 = vset.pattern.permute.xlu0 6
      %1016 = vperm.xlu0 %1015, %v855
      %v1017 = vpop.permute.xlu0 %1016
      %vm1018 = vcmp.eq.s32.totalorder %v865, %v1017
      %1019 = vset.pattern.permute.xlu0 38
      %1020 = vperm.xlu0 %1019, %v887
      %v1021 = vpop.permute.xlu0 %1020
      %v1023 = vsel %vm1018, %v1021, 0.0
      %v1024 = vadd.f32 %v1014, %v1023
      %1025 = vset.pattern.permute.xlu0 6
      %1026 = vperm.xlu0 %1025, %v860
      %v1027 = vpop.permute.xlu0 %1026
      %vm1028 = vcmp.eq.s32.totalorder %v865, %v1027
      %1029 = vset.pattern.permute.xlu0 38
      %1030 = vperm.xlu0 %1029, %v892
      %v1031 = vpop.permute.xlu0 %1030
      %v1033 = vsel %vm1028, %v1031, 0.0
      %v1034 = vadd.f32 %v1024, %v1033
      %1035 = vset.pattern.permute.xlu0 7
      %1036 = vperm.xlu0 %1035, %v855
      %v1037 = vpop.permute.xlu0 %1036
      %vm1038 = vcmp.eq.s32.totalorder %v865, %v1037
      %1039 = vset.pattern.permute.xlu0 39
      %1040 = vperm.xlu0 %1039, %v887
      %v1041 = vpop.permute.xlu0 %1040
      %v1043 = vsel %vm1038, %v1041, 0.0
      %v1044 = vadd.f32 %v1034, %v1043
      %1045 = vset.pattern.permute.xlu0 7
      %1046 = vperm.xlu0 %1045, %v860
      %v1047 = vpop.permute.xlu0 %1046
      %vm1048 = vcmp.eq.s32.totalorder %v865, %v1047
      %1049 = vset.pattern.permute.xlu0 39
      %1050 = vperm.xlu0 %1049, %v892
      %v1051 = vpop.permute.xlu0 %1050
      %v1053 = vsel %vm1048, %v1051, 0.0
      %v1054 = vadd.f32 %v1044, %v1053
      %1055 = vset.pattern.permute.xlu0 8
      %1056 = vperm.xlu0 %1055, %v855
      %v1057 = vpop.permute.xlu0 %1056
      %vm1058 = vcmp.eq.s32.totalorder %v865, %v1057
      %1059 = vset.pattern.permute.xlu0 40
      %1060 = vperm.xlu0 %1059, %v887
      %v1061 = vpop.permute.xlu0 %1060
      %v1063 = vsel %vm1058, %v1061, 0.0
      %v1064 = vadd.f32 %v1054, %v1063
      %1065 = vset.pattern.permute.xlu0 8
      %1066 = vperm.xlu0 %1065, %v860
      %v1067 = vpop.permute.xlu0 %1066
      %vm1068 = vcmp.eq.s32.totalorder %v865, %v1067
      %1069 = vset.pattern.permute.xlu0 40
      %1070 = vperm.xlu0 %1069, %v892
      %v1071 = vpop.permute.xlu0 %1070
      %v1073 = vsel %vm1068, %v1071, 0.0
      %v1074 = vadd.f32 %v1064, %v1073
      %1075 = vset.pattern.permute.xlu0 9
      %1076 = vperm.xlu0 %1075, %v855
      %v1077 = vpop.permute.xlu0 %1076
      %vm1078 = vcmp.eq.s32.totalorder %v865, %v1077
      %1079 = vset.pattern.permute.xlu0 41
      %1080 = vperm.xlu0 %1079, %v887
      %v1081 = vpop.permute.xlu0 %1080
      %v1083 = vsel %vm1078, %v1081, 0.0
      %v1084 = vadd.f32 %v1074, %v1083
      %1085 = vset.pattern.permute.xlu0 9
      %1086 = vperm.xlu0 %1085, %v860
      %v1087 = vpop.permute.xlu0 %1086
      %vm1088 = vcmp.eq.s32.totalorder %v865, %v1087
      %1089 = vset.pattern.permute.xlu0 41
      %1090 = vperm.xlu0 %1089, %v892
      %v1091 = vpop.permute.xlu0 %1090
      %v1093 = vsel %vm1088, %v1091, 0.0
      %v1094 = vadd.f32 %v1084, %v1093
      %1095 = vset.pattern.permute.xlu0 10
      %1096 = vperm.xlu0 %1095, %v855
      %v1097 = vpop.permute.xlu0 %1096
      %vm1098 = vcmp.eq.s32.totalorder %v865, %v1097
      %1099 = vset.pattern.permute.xlu0 42
      %1100 = vperm.xlu0 %1099, %v887
      %v1101 = vpop.permute.xlu0 %1100
      %v1103 = vsel %vm1098, %v1101, 0.0
      %v1104 = vadd.f32 %v1094, %v1103
      %1105 = vset.pattern.permute.xlu0 10
      %1106 = vperm.xlu0 %1105, %v860
      %v1107 = vpop.permute.xlu0 %1106
      %vm1108 = vcmp.eq.s32.totalorder %v865, %v1107
      %1109 = vset.pattern.permute.xlu0 42
      %1110 = vperm.xlu0 %1109, %v892
      %v1111 = vpop.permute.xlu0 %1110
      %v1113 = vsel %vm1108, %v1111, 0.0
      %v1114 = vadd.f32 %v1104, %v1113
      %1115 = vset.pattern.permute.xlu0 11
      %1116 = vperm.xlu0 %1115, %v855
      %v1117 = vpop.permute.xlu0 %1116
      %vm1118 = vcmp.eq.s32.totalorder %v865, %v1117
      %1119 = vset.pattern.permute.xlu0 43
      %1120 = vperm.xlu0 %1119, %v887
      %v1121 = vpop.permute.xlu0 %1120
      %v1123 = vsel %vm1118, %v1121, 0.0
      %v1124 = vadd.f32 %v1114, %v1123
      %1125 = vset.pattern.permute.xlu0 11
      %1126 = vperm.xlu0 %1125, %v860
      %v1127 = vpop.permute.xlu0 %1126
      %vm1128 = vcmp.eq.s32.totalorder %v865, %v1127
      %1129 = vset.pattern.permute.xlu0 43
      %1130 = vperm.xlu0 %1129, %v892
      %v1131 = vpop.permute.xlu0 %1130
      %v1133 = vsel %vm1128, %v1131, 0.0
      %v1134 = vadd.f32 %v1124, %v1133
      %1135 = vset.pattern.permute.xlu0 12
      %1136 = vperm.xlu0 %1135, %v855
      %v1137 = vpop.permute.xlu0 %1136
      %vm1138 = vcmp.eq.s32.totalorder %v865, %v1137
      %1139 = vset.pattern.permute.xlu0 44
      %1140 = vperm.xlu0 %1139, %v887
      %v1141 = vpop.permute.xlu0 %1140
      %v1143 = vsel %vm1138, %v1141, 0.0
      %v1144 = vadd.f32 %v1134, %v1143
      %1145 = vset.pattern.permute.xlu0 12
      %1146 = vperm.xlu0 %1145, %v860
      %v1147 = vpop.permute.xlu0 %1146
      %vm1148 = vcmp.eq.s32.totalorder %v865, %v1147
      %1149 = vset.pattern.permute.xlu0 44
      %1150 = vperm.xlu0 %1149, %v892
      %v1151 = vpop.permute.xlu0 %1150
      %v1153 = vsel %vm1148, %v1151, 0.0
      %v1154 = vadd.f32 %v1144, %v1153
      %1155 = vset.pattern.permute.xlu0 13
      %1156 = vperm.xlu0 %1155, %v855
      %v1157 = vpop.permute.xlu0 %1156
      %vm1158 = vcmp.eq.s32.totalorder %v865, %v1157
      %1159 = vset.pattern.permute.xlu0 45
      %1160 = vperm.xlu0 %1159, %v887
      %v1161 = vpop.permute.xlu0 %1160
      %v1163 = vsel %vm1158, %v1161, 0.0
      %v1164 = vadd.f32 %v1154, %v1163
      %1165 = vset.pattern.permute.xlu0 13
      %1166 = vperm.xlu0 %1165, %v860
      %v1167 = vpop.permute.xlu0 %1166
      %vm1168 = vcmp.eq.s32.totalorder %v865, %v1167
      %1169 = vset.pattern.permute.xlu0 45
      %1170 = vperm.xlu0 %1169, %v892
      %v1171 = vpop.permute.xlu0 %1170
      %v1173 = vsel %vm1168, %v1171, 0.0
      %v1174 = vadd.f32 %v1164, %v1173
      %1175 = vset.pattern.permute.xlu0 14
      %1176 = vperm.xlu0 %1175, %v855
      %v1177 = vpop.permute.xlu0 %1176
      %vm1178 = vcmp.eq.s32.totalorder %v865, %v1177
      %1179 = vset.pattern.permute.xlu0 46
      %1180 = vperm.xlu0 %1179, %v887
      %v1181 = vpop.permute.xlu0 %1180
      %v1183 = vsel %vm1178, %v1181, 0.0
      %v1184 = vadd.f32 %v1174, %v1183
      %1185 = vset.pattern.permute.xlu0 14
      %1186 = vperm.xlu0 %1185, %v860
      %v1187 = vpop.permute.xlu0 %1186
      %vm1188 = vcmp.eq.s32.totalorder %v865, %v1187
      %1189 = vset.pattern.permute.xlu0 46
      %1190 = vperm.xlu0 %1189, %v892
      %v1191 = vpop.permute.xlu0 %1190
      %v1193 = vsel %vm1188, %v1191, 0.0
      %v1194 = vadd.f32 %v1184, %v1193
      %1195 = vset.pattern.permute.xlu0 15
      %1196 = vperm.xlu0 %1195, %v855
      %v1197 = vpop.permute.xlu0 %1196
      %vm1198 = vcmp.eq.s32.totalorder %v865, %v1197
      %1199 = vset.pattern.permute.xlu0 47
      %1200 = vperm.xlu0 %1199, %v887
      %v1201 = vpop.permute.xlu0 %1200
      %v1203 = vsel %vm1198, %v1201, 0.0
      %v1204 = vadd.f32 %v1194, %v1203
      %1205 = vset.pattern.permute.xlu0 15
      %1206 = vperm.xlu0 %1205, %v860
      %v1207 = vpop.permute.xlu0 %1206
      %vm1208 = vcmp.eq.s32.totalorder %v865, %v1207
      %1209 = vset.pattern.permute.xlu0 47
      %1210 = vperm.xlu0 %1209, %v892
      %v1211 = vpop.permute.xlu0 %1210
      %v1213 = vsel %vm1208, %v1211, 0.0
      %v1214 = vadd.f32 %v1204, %v1213
      %v1215 = vpack.c.bf16 %v1214, %v1214
      %vm1216 = vcmask 244736
      %v1218 = vsel %vm1216, %v1215, 0
      %vm1220 = vcmask 1046528
      %v1222 = vsel %vm1220, %v752, 0
      %1224 = vmatprep.subr.bf16.mxu0 0
      %1225 = vmatpush1.bf16.msra.mxu0 %v751
      %1226 = vmatprep.subr.bf16.mxu0 0
      %1227 = vmatpush1.bf16.msra.mxu0 %v1222
      %1228 = vmatprep.subr.bf16.mxu0 0
      %1229 = vmatpush1.bf16.msra.mxu0 0
      %1230 = vmatprep.subr.bf16.mxu0 0
      %1231 = vmatpush1.bf16.msra.mxu0 0
      %1232 = vmatprep.subr.bf16.mxu0 0
      %1233 = vmatpush1.bf16.msra.mxu0 0
      %1234 = vmatprep.subr.bf16.mxu0 0
      %1235 = vmatpush1.bf16.msra.mxu0 0
      %1236 = vmatprep.subr.bf16.mxu0 0
      %1237 = vmatpush1.bf16.msra.mxu0 0
      %1238 = vmatprep.subr.bf16.mxu0 0
      %1239 = vmatpush1.bf16.msra.mxu0 0
      %1240 = vmatprep.subr.bf16.mxu0 0
      %1241 = vmatpush1.bf16.msra.mxu0 0
      %1242 = vmatprep.subr.bf16.mxu0 0
      %1243 = vmatpush1.bf16.msra.mxu0 0
      %1244 = vmatprep.subr.bf16.mxu0 0
      %1245 = vmatpush1.bf16.msra.mxu0 0
      %1246 = vmatprep.subr.bf16.mxu0 0
      %1247 = vmatpush1.bf16.msra.mxu0 0
      %1248 = vmatprep.subr.bf16.mxu0 0
      %1249 = vmatpush1.bf16.msra.mxu0 0
      %1250 = vmatprep.subr.bf16.mxu0 0
      %1251 = vmatpush1.bf16.msra.mxu0 0
      %1252 = vmatprep.subr.bf16.mxu0 0
      %1253 = vmatpush1.bf16.msra.mxu0 0
      %1254 = vmatprep.subr.bf16.mxu0 0
      %1255 = vmatpush1.bf16.msra.mxu0 0
      %1256 = vmatprep.mubr.bf16.mxu0 0
      %1257 = vmatmul.mubr.bf16.gmra.mrb[0].mxu0 %v1218
      %v1258 = vpop.f32.mrb[0].mxu0
      %v1259 = vadd.f32 0.0, %v1258
      %v1260 = vpop.f32.mrb[0].mxu0
      %v1261 = vpop.f32.mrb[0].mxu0
      %v1262 = vpop.f32.mrb[0].mxu0
      %1263 = vdwg.mxu0
      %vm1264 = vcmask 523648
      %v1265 = vsel %vm1264, %v807, -inf
      %1266 = vmax.xlane.f32.xlu0 %v1265
      %v1267 = vpop.xlane.xlu0 %1266
      %v1268 = vsub.f32 %v807, %v1267
      %v1269 = vmul.f32 %v1268, 1.442695
      %v1270 = vpow.pop %v1269
      %1272 = vrot.lane.b32.xlu0 %v1270, 80
      %v1273 = vpop.permute.xlu0 %1272
      %v1275 = vsel %vm877, %v1273, 0.0
      %1276 = vadd.xlane.f32.xlu0 %v1275
      %v1277 = vpop.xlane.xlu0 %1276
      %v1278 = vrcp.pop %v1277
      %v1279 = vmul.f32 %v1270, %v1278
      %v1280 = vmul.f32 %v1279, %v885
      %v1281 = vmul.f32 %v1279, %v890
      %1282 = vset.pattern.permute.xlu0 16
      %1283 = vperm.xlu0 %1282, %v855
      %v1284 = vpop.permute.xlu0 %1283
      %vm1285 = vcmp.eq.s32.totalorder %v865, %v1284
      %1287 = vset.pattern.permute.xlu0 48
      %1288 = vperm.xlu0 %1287, %v1280
      %v1289 = vpop.permute.xlu0 %1288
      %v1291 = vsel %vm1285, %v1289, 0.0
      %v1292 = vadd.f32 %v1291, 0.0
      %1293 = vset.pattern.permute.xlu0 16
      %1294 = vperm.xlu0 %1293, %v860
      %v1295 = vpop.permute.xlu0 %1294
      %vm1296 = vcmp.eq.s32.totalorder %v865, %v1295
      %1298 = vset.pattern.permute.xlu0 48
      %1299 = vperm.xlu0 %1298, %v1281
      %v1300 = vpop.permute.xlu0 %1299
      %v1302 = vsel %vm1296, %v1300, 0.0
      %v1303 = vadd.f32 %v1292, %v1302
      %1304 = vset.pattern.permute.xlu0 17
      %1305 = vperm.xlu0 %1304, %v855
      %v1306 = vpop.permute.xlu0 %1305
      %vm1307 = vcmp.eq.s32.totalorder %v865, %v1306
      %1308 = vset.pattern.permute.xlu0 49
      %1309 = vperm.xlu0 %1308, %v1280
      %v1310 = vpop.permute.xlu0 %1309
      %v1312 = vsel %vm1307, %v1310, 0.0
      %v1313 = vadd.f32 %v1303, %v1312
      %1314 = vset.pattern.permute.xlu0 17
      %1315 = vperm.xlu0 %1314, %v860
      %v1316 = vpop.permute.xlu0 %1315
      %vm1317 = vcmp.eq.s32.totalorder %v865, %v1316
      %1318 = vset.pattern.permute.xlu0 49
      %1319 = vperm.xlu0 %1318, %v1281
      %v1320 = vpop.permute.xlu0 %1319
      %v1322 = vsel %vm1317, %v1320, 0.0
      %v1323 = vadd.f32 %v1313, %v1322
      %1324 = vset.pattern.permute.xlu0 18
      %1325 = vperm.xlu0 %1324, %v855
      %v1326 = vpop.permute.xlu0 %1325
      %vm1327 = vcmp.eq.s32.totalorder %v865, %v1326
      %1328 = vset.pattern.permute.xlu0 50
      %1329 = vperm.xlu0 %1328, %v1280
      %v1330 = vpop.permute.xlu0 %1329
      %v1332 = vsel %vm1327, %v1330, 0.0
      %v1333 = vadd.f32 %v1323, %v1332
      %1334 = vset.pattern.permute.xlu0 18
      %1335 = vperm.xlu0 %1334, %v860
      %v1336 = vpop.permute.xlu0 %1335
      %vm1337 = vcmp.eq.s32.totalorder %v865, %v1336
      %1338 = vset.pattern.permute.xlu0 50
      %1339 = vperm.xlu0 %1338, %v1281
      %v1340 = vpop.permute.xlu0 %1339
      %v1342 = vsel %vm1337, %v1340, 0.0
      %v1343 = vadd.f32 %v1333, %v1342
      %1344 = vset.pattern.permute.xlu0 19
      %1345 = vperm.xlu0 %1344, %v855
      %v1346 = vpop.permute.xlu0 %1345
      %vm1347 = vcmp.eq.s32.totalorder %v865, %v1346
      %1348 = vset.pattern.permute.xlu0 51
      %1349 = vperm.xlu0 %1348, %v1280
      %v1350 = vpop.permute.xlu0 %1349
      %v1352 = vsel %vm1347, %v1350, 0.0
      %v1353 = vadd.f32 %v1343, %v1352
      %1354 = vset.pattern.permute.xlu0 19
      %1355 = vperm.xlu0 %1354, %v860
      %v1356 = vpop.permute.xlu0 %1355
      %vm1357 = vcmp.eq.s32.totalorder %v865, %v1356
      %1358 = vset.pattern.permute.xlu0 51
      %1359 = vperm.xlu0 %1358, %v1281
      %v1360 = vpop.permute.xlu0 %1359
      %v1362 = vsel %vm1357, %v1360, 0.0
      %v1363 = vadd.f32 %v1353, %v1362
      %1364 = vset.pattern.permute.xlu0 20
      %1365 = vperm.xlu0 %1364, %v855
      %v1366 = vpop.permute.xlu0 %1365
      %vm1367 = vcmp.eq.s32.totalorder %v865, %v1366
      %1368 = vset.pattern.permute.xlu0 52
      %1369 = vperm.xlu0 %1368, %v1280
      %v1370 = vpop.permute.xlu0 %1369
      %v1372 = vsel %vm1367, %v1370, 0.0
      %v1373 = vadd.f32 %v1363, %v1372
      %1374 = vset.pattern.permute.xlu0 20
      %1375 = vperm.xlu0 %1374, %v860
      %v1376 = vpop.permute.xlu0 %1375
      %vm1377 = vcmp.eq.s32.totalorder %v865, %v1376
      %1378 = vset.pattern.permute.xlu0 52
      %1379 = vperm.xlu0 %1378, %v1281
      %v1380 = vpop.permute.xlu0 %1379
      %v1382 = vsel %vm1377, %v1380, 0.0
      %v1383 = vadd.f32 %v1373, %v1382
      %1384 = vset.pattern.permute.xlu0 21
      %1385 = vperm.xlu0 %1384, %v855
      %v1386 = vpop.permute.xlu0 %1385
      %vm1387 = vcmp.eq.s32.totalorder %v865, %v1386
      %1388 = vset.pattern.permute.xlu0 53
      %1389 = vperm.xlu0 %1388, %v1280
      %v1390 = vpop.permute.xlu0 %1389
      %v1392 = vsel %vm1387, %v1390, 0.0
      %v1393 = vadd.f32 %v1383, %v1392
      %1394 = vset.pattern.permute.xlu0 21
      %1395 = vperm.xlu0 %1394, %v860
      %v1396 = vpop.permute.xlu0 %1395
      %vm1397 = vcmp.eq.s32.totalorder %v865, %v1396
      %1398 = vset.pattern.permute.xlu0 53
      %1399 = vperm.xlu0 %1398, %v1281
      %v1400 = vpop.permute.xlu0 %1399
      %v1402 = vsel %vm1397, %v1400, 0.0
      %v1403 = vadd.f32 %v1393, %v1402
      %1404 = vset.pattern.permute.xlu0 22
      %1405 = vperm.xlu0 %1404, %v855
      %v1406 = vpop.permute.xlu0 %1405
      %vm1407 = vcmp.eq.s32.totalorder %v865, %v1406
      %1408 = vset.pattern.permute.xlu0 54
      %1409 = vperm.xlu0 %1408, %v1280
      %v1410 = vpop.permute.xlu0 %1409
      %v1412 = vsel %vm1407, %v1410, 0.0
      %v1413 = vadd.f32 %v1403, %v1412
      %1414 = vset.pattern.permute.xlu0 22
      %1415 = vperm.xlu0 %1414, %v860
      %v1416 = vpop.permute.xlu0 %1415
      %vm1417 = vcmp.eq.s32.totalorder %v865, %v1416
      %1418 = vset.pattern.permute.xlu0 54
      %1419 = vperm.xlu0 %1418, %v1281
      %v1420 = vpop.permute.xlu0 %1419
      %v1422 = vsel %vm1417, %v1420, 0.0
      %v1423 = vadd.f32 %v1413, %v1422
      %1424 = vset.pattern.permute.xlu0 23
      %1425 = vperm.xlu0 %1424, %v855
      %v1426 = vpop.permute.xlu0 %1425
      %vm1427 = vcmp.eq.s32.totalorder %v865, %v1426
      %1428 = vset.pattern.permute.xlu0 55
      %1429 = vperm.xlu0 %1428, %v1280
      %v1430 = vpop.permute.xlu0 %1429
      %v1432 = vsel %vm1427, %v1430, 0.0
      %v1433 = vadd.f32 %v1423, %v1432
      %1434 = vset.pattern.permute.xlu0 23
      %1435 = vperm.xlu0 %1434, %v860
      %v1436 = vpop.permute.xlu0 %1435
      %vm1437 = vcmp.eq.s32.totalorder %v865, %v1436
      %1438 = vset.pattern.permute.xlu0 55
      %1439 = vperm.xlu0 %1438, %v1281
      %v1440 = vpop.permute.xlu0 %1439
      %v1442 = vsel %vm1437, %v1440, 0.0
      %v1443 = vadd.f32 %v1433, %v1442
      %1444 = vset.pattern.permute.xlu0 24
      %1445 = vperm.xlu0 %1444, %v855
      %v1446 = vpop.permute.xlu0 %1445
      %vm1447 = vcmp.eq.s32.totalorder %v865, %v1446
      %1448 = vset.pattern.permute.xlu0 56
      %1449 = vperm.xlu0 %1448, %v1280
      %v1450 = vpop.permute.xlu0 %1449
      %v1452 = vsel %vm1447, %v1450, 0.0
      %v1453 = vadd.f32 %v1443, %v1452
      %1454 = vset.pattern.permute.xlu0 24
      %1455 = vperm.xlu0 %1454, %v860
      %v1456 = vpop.permute.xlu0 %1455
      %vm1457 = vcmp.eq.s32.totalorder %v865, %v1456
      %1458 = vset.pattern.permute.xlu0 56
      %1459 = vperm.xlu0 %1458, %v1281
      %v1460 = vpop.permute.xlu0 %1459
      %v1462 = vsel %vm1457, %v1460, 0.0
      %v1463 = vadd.f32 %v1453, %v1462
      %1464 = vset.pattern.permute.xlu0 25
      %1465 = vperm.xlu0 %1464, %v855
      %v1466 = vpop.permute.xlu0 %1465
      %vm1467 = vcmp.eq.s32.totalorder %v865, %v1466
      %1468 = vset.pattern.permute.xlu0 57
      %1469 = vperm.xlu0 %1468, %v1280
      %v1470 = vpop.permute.xlu0 %1469
      %v1472 = vsel %vm1467, %v1470, 0.0
      %v1473 = vadd.f32 %v1463, %v1472
      %1474 = vset.pattern.permute.xlu0 25
      %1475 = vperm.xlu0 %1474, %v860
      %v1476 = vpop.permute.xlu0 %1475
      %vm1477 = vcmp.eq.s32.totalorder %v865, %v1476
      %1478 = vset.pattern.permute.xlu0 57
      %1479 = vperm.xlu0 %1478, %v1281
      %v1480 = vpop.permute.xlu0 %1479
      %v1482 = vsel %vm1477, %v1480, 0.0
      %v1483 = vadd.f32 %v1473, %v1482
      %1484 = vset.pattern.permute.xlu0 26
      %1485 = vperm.xlu0 %1484, %v855
      %v1486 = vpop.permute.xlu0 %1485
      %vm1487 = vcmp.eq.s32.totalorder %v865, %v1486
      %1488 = vset.pattern.permute.xlu0 58
      %1489 = vperm.xlu0 %1488, %v1280
      %v1490 = vpop.permute.xlu0 %1489
      %v1492 = vsel %vm1487, %v1490, 0.0
      %v1493 = vadd.f32 %v1483, %v1492
      %1494 = vset.pattern.permute.xlu0 26
      %1495 = vperm.xlu0 %1494, %v860
      %v1496 = vpop.permute.xlu0 %1495
      %vm1497 = vcmp.eq.s32.totalorder %v865, %v1496
      %1498 = vset.pattern.permute.xlu0 58
      %1499 = vperm.xlu0 %1498, %v1281
      %v1500 = vpop.permute.xlu0 %1499
      %v1502 = vsel %vm1497, %v1500, 0.0
      %v1503 = vadd.f32 %v1493, %v1502
      %1504 = vset.pattern.permute.xlu0 27
      %1505 = vperm.xlu0 %1504, %v855
      %v1506 = vpop.permute.xlu0 %1505
      %vm1507 = vcmp.eq.s32.totalorder %v865, %v1506
      %1508 = vset.pattern.permute.xlu0 59
      %1509 = vperm.xlu0 %1508, %v1280
      %v1510 = vpop.permute.xlu0 %1509
      %v1512 = vsel %vm1507, %v1510, 0.0
      %v1513 = vadd.f32 %v1503, %v1512
      %1514 = vset.pattern.permute.xlu0 27
      %1515 = vperm.xlu0 %1514, %v860
      %v1516 = vpop.permute.xlu0 %1515
      %vm1517 = vcmp.eq.s32.totalorder %v865, %v1516
      %1518 = vset.pattern.permute.xlu0 59
      %1519 = vperm.xlu0 %1518, %v1281
      %v1520 = vpop.permute.xlu0 %1519
      %v1522 = vsel %vm1517, %v1520, 0.0
      %v1523 = vadd.f32 %v1513, %v1522
      %1524 = vset.pattern.permute.xlu0 28
      %1525 = vperm.xlu0 %1524, %v855
      %v1526 = vpop.permute.xlu0 %1525
      %vm1527 = vcmp.eq.s32.totalorder %v865, %v1526
      %1528 = vset.pattern.permute.xlu0 60
      %1529 = vperm.xlu0 %1528, %v1280
      %v1530 = vpop.permute.xlu0 %1529
      %v1532 = vsel %vm1527, %v1530, 0.0
      %v1533 = vadd.f32 %v1523, %v1532
      %1534 = vset.pattern.permute.xlu0 28
      %1535 = vperm.xlu0 %1534, %v860
      %v1536 = vpop.permute.xlu0 %1535
      %vm1537 = vcmp.eq.s32.totalorder %v865, %v1536
      %1538 = vset.pattern.permute.xlu0 60
      %1539 = vperm.xlu0 %1538, %v1281
      %v1540 = vpop.permute.xlu0 %1539
      %v1542 = vsel %vm1537, %v1540, 0.0
      %v1543 = vadd.f32 %v1533, %v1542
      %1544 = vset.pattern.permute.xlu0 29
      %1545 = vperm.xlu0 %1544, %v855
      %v1546 = vpop.permute.xlu0 %1545
      %vm1547 = vcmp.eq.s32.totalorder %v865, %v1546
      %1548 = vset.pattern.permute.xlu0 61
      %1549 = vperm.xlu0 %1548, %v1280
      %v1550 = vpop.permute.xlu0 %1549
      %v1552 = vsel %vm1547, %v1550, 0.0
      %v1553 = vadd.f32 %v1543, %v1552
      %1554 = vset.pattern.permute.xlu0 29
      %1555 = vperm.xlu0 %1554, %v860
      %v1556 = vpop.permute.xlu0 %1555
      %vm1557 = vcmp.eq.s32.totalorder %v865, %v1556
      %1558 = vset.pattern.permute.xlu0 61
      %1559 = vperm.xlu0 %1558, %v1281
      %v1560 = vpop.permute.xlu0 %1559
      %v1562 = vsel %vm1557, %v1560, 0.0
      %v1563 = vadd.f32 %v1553, %v1562
      %1564 = vset.pattern.permute.xlu0 30
      %1565 = vperm.xlu0 %1564, %v855
      %v1566 = vpop.permute.xlu0 %1565
      %vm1567 = vcmp.eq.s32.totalorder %v865, %v1566
      %1568 = vset.pattern.permute.xlu0 62
      %1569 = vperm.xlu0 %1568, %v1280
      %v1570 = vpop.permute.xlu0 %1569
      %v1572 = vsel %vm1567, %v1570, 0.0
      %v1573 = vadd.f32 %v1563, %v1572
      %1574 = vset.pattern.permute.xlu0 30
      %1575 = vperm.xlu0 %1574, %v860
      %v1576 = vpop.permute.xlu0 %1575
      %vm1577 = vcmp.eq.s32.totalorder %v865, %v1576
      %1578 = vset.pattern.permute.xlu0 62
      %1579 = vperm.xlu0 %1578, %v1281
      %v1580 = vpop.permute.xlu0 %1579
      %v1582 = vsel %vm1577, %v1580, 0.0
      %v1583 = vadd.f32 %v1573, %v1582
      %1584 = vset.pattern.permute.xlu0 31
      %1585 = vperm.xlu0 %1584, %v855
      %v1586 = vpop.permute.xlu0 %1585
      %vm1587 = vcmp.eq.s32.totalorder %v865, %v1586
      %1588 = vset.pattern.permute.xlu0 63
      %1589 = vperm.xlu0 %1588, %v1280
      %v1590 = vpop.permute.xlu0 %1589
      %v1592 = vsel %vm1587, %v1590, 0.0
      %v1593 = vadd.f32 %v1583, %v1592
      %1594 = vset.pattern.permute.xlu0 31
      %1595 = vperm.xlu0 %1594, %v860
      %v1596 = vpop.permute.xlu0 %1595
      %vm1597 = vcmp.eq.s32.totalorder %v865, %v1596
      %1598 = vset.pattern.permute.xlu0 63
      %1599 = vperm.xlu0 %1598, %v1281
      %v1600 = vpop.permute.xlu0 %1599
      %v1602 = vsel %vm1597, %v1600, 0.0
      %v1603 = vadd.f32 %v1593, %v1602
      %v1604 = vpack.c.bf16 %v1603, %v1603
      %1607 = vrot.lane.b32.xlu0 %v751, 112
      %v1608 = vpop.permute.xlu0 %1607
      %1609 = vrot.lane.b32.xlu0 %v752, 112
      %v1610 = vpop.permute.xlu0 %1609
      %v1613 = vsel %vm1216, %v1604, 0
      %v1616 = vsel %vm1220, %v1610, 0
      %1618 = vmatprep.subr.bf16.mxu0 0
      %1619 = vmatpush1.bf16.msra.mxu0 %v1608
      %1620 = vmatprep.subr.bf16.mxu0 0
      %1621 = vmatpush1.bf16.msra.mxu0 %v1616
      %1622 = vmatprep.subr.bf16.mxu0 0
      %1623 = vmatpush1.bf16.msra.mxu0 0
      %1624 = vmatprep.subr.bf16.mxu0 0
      %1625 = vmatpush1.bf16.msra.mxu0 0
      %1626 = vmatprep.subr.bf16.mxu0 0
      %1627 = vmatpush1.bf16.msra.mxu0 0
      %1628 = vmatprep.subr.bf16.mxu0 0
      %1629 = vmatpush1.bf16.msra.mxu0 0
      %1630 = vmatprep.subr.bf16.mxu0 0
      %1631 = vmatpush1.bf16.msra.mxu0 0
      %1632 = vmatprep.subr.bf16.mxu0 0
      %1633 = vmatpush1.bf16.msra.mxu0 0
      %1634 = vmatprep.subr.bf16.mxu0 0
      %1635 = vmatpush1.bf16.msra.mxu0 0
      %1636 = vmatprep.subr.bf16.mxu0 0
      %1637 = vmatpush1.bf16.msra.mxu0 0
      %1638 = vmatprep.subr.bf16.mxu0 0
      %1639 = vmatpush1.bf16.msra.mxu0 0
      %1640 = vmatprep.subr.bf16.mxu0 0
      %1641 = vmatpush1.bf16.msra.mxu0 0
      %1642 = vmatprep.subr.bf16.mxu0 0
      %1643 = vmatpush1.bf16.msra.mxu0 0
      %1644 = vmatprep.subr.bf16.mxu0 0
      %1645 = vmatpush1.bf16.msra.mxu0 0
      %1646 = vmatprep.subr.bf16.mxu0 0
      %1647 = vmatpush1.bf16.msra.mxu0 0
      %1648 = vmatprep.subr.bf16.mxu0 0
      %1649 = vmatpush1.bf16.msra.mxu0 0
      %1650 = vmatprep.mubr.bf16.mxu0 0
      %1651 = vmatmul.mubr.bf16.gmra.mrb[0].mxu0 %v1613
      %v1652 = vpop.f32.mrb[0].mxu0
      %v1653 = vadd.f32 0.0, %v1652
      %v1654 = vpop.f32.mrb[0].mxu0
      %v1655 = vpop.f32.mrb[0].mxu0
      %v1656 = vpop.f32.mrb[0].mxu0
      %1657 = vdwg.mxu0
      %1659 = vrot.lane.b32.xlu0 %v1653, 16
      %v1660 = vpop.permute.xlu0 %1659
      %v1662 = vsel %vm877, %v1259, %v1660
      %v1663 = vpack.c.bf16 %v1662, %v1662
      %v1664 = vld [vmem:[%s12] sm:$0xff]
      %v1665 = vld [vmem:[%s12 + $0x8] sm:$0xff]
      %v1666 = vld [vmem:[%s12 + $0x10] sm:$0xff]
      %v1667 = vld [vmem:[%s12 + $0x18] sm:$0xff]
      %v1668 = vpack.c.bf16 %v1665, %v1664
      %v1669 = vpack.c.bf16 %v1667, %v1666
      %v1670 = vld [vmem:[%s13] sm:$0x1]
      %v1672 = vlaneseq
      %v1673 = vshrl.u32 %v1672, 7
      %v1674 = vsub.s32 0, %v1673
      %v1675 = vrot.slane %v1670, %v1674
      %v1678 = vsel %vm667, %v1663, 0
      %1680 = vmatprep.subr.bf16.mxu0 0
      %1681 = vmatpush1.bf16.msra.mxu0 %v1668
      %1682 = vmatprep.subr.bf16.mxu0 0
      %1683 = vmatpush1.bf16.msra.mxu0 %v1669
      %1684 = vmatprep.subr.bf16.mxu0 0
      %1685 = vmatpush1.bf16.msra.mxu0 0
      %1686 = vmatprep.subr.bf16.mxu0 0
      %1687 = vmatpush1.bf16.msra.mxu0 0
      %1688 = vmatprep.subr.bf16.mxu0 0
      %1689 = vmatpush1.bf16.msra.mxu0 0
      %1690 = vmatprep.subr.bf16.mxu0 0
      %1691 = vmatpush1.bf16.msra.mxu0 0
      %1692 = vmatprep.subr.bf16.mxu0 0
      %1693 = vmatpush1.bf16.msra.mxu0 0
      %1694 = vmatprep.subr.bf16.mxu0 0
      %1695 = vmatpush1.bf16.msra.mxu0 0
      %1696 = vmatprep.subr.bf16.mxu0 0
      %1697 = vmatpush1.bf16.msra.mxu0 0
      %1698 = vmatprep.subr.bf16.mxu0 0
      %1699 = vmatpush1.bf16.msra.mxu0 0
      %1700 = vmatprep.subr.bf16.mxu0 0
      %1701 = vmatpush1.bf16.msra.mxu0 0
      %1702 = vmatprep.subr.bf16.mxu0 0
      %1703 = vmatpush1.bf16.msra.mxu0 0
      %1704 = vmatprep.subr.bf16.mxu0 0
      %1705 = vmatpush1.bf16.msra.mxu0 0
      %1706 = vmatprep.subr.bf16.mxu0 0
      %1707 = vmatpush1.bf16.msra.mxu0 0
      %1708 = vmatprep.subr.bf16.mxu0 0
      %1709 = vmatpush1.bf16.msra.mxu0 0
      %1710 = vmatprep.subr.bf16.mxu0 0
      %1711 = vmatpush1.bf16.msra.mxu0 0
      %1712 = vmatprep.mubr.bf16.mxu0 0
      %1713 = vmatmul.mubr.bf16.gmra.mrb[0].mxu0 %v1678
      %v1714 = vpop.f32.mrb[0].mxu0
      %v1715 = vadd.f32 %v1675, %v1714
      %v1716 = vpop.f32.mrb[0].mxu0
      %v1717 = vpop.f32.mrb[0].mxu0
      %v1718 = vpop.f32.mrb[0].mxu0
      %1719 = vdwg.mxu0
      %v1720 = vadd.f32 %v647, %v1715
      %v1721 = vsel %vm667, %v1720, 0.0
      %1722 = vadd.xlane.f32.xlu0 %v1721
      %v1723 = vpop.xlane.xlu0 %1722
      %v1724 = vrcp.pop 32.0
      %v1725 = vmul.f32 %v1723, %v1724
      %v1726 = vsub.f32 %v1720, %v1725
      %v1727 = vmul.f32 %v1726, %v1726
      %v1728 = vsel %vm667, %v1727, 0.0
      %1729 = vadd.xlane.f32.xlu0 %v1728
      %v1730 = vpop.xlane.xlu0 %1729
      %v1731 = vmul.f32 %v1730, %v1724
      %v1732 = vadd.f32 %v1731, 1e-05
      %v1733 = vrsqrt.pop %v1732
      %v1734 = vmul.f32 %v1726, %v1733
      %v1735 = vld [vmem:[%s14] sm:$0x1]
      %v1737 = vlaneseq
      %v1738 = vshrl.u32 %v1737, 7
      %v1739 = vsub.s32 0, %v1738
      %v1740 = vrot.slane %v1735, %v1739
      %v1742 = vmul.f32 %v1734, %v1740
      %v1743 = vld [vmem:[%s15] sm:$0x1]
      %v1745 = vlaneseq
      %v1746 = vshrl.u32 %v1745, 7
      %v1747 = vsub.s32 0, %v1746
      %v1748 = vrot.slane %v1743, %v1747
      %v1750 = vadd.f32 %v1742, %v1748
      %1751 = vst.msk [vmem:[%s641] sm:$0xff] %vm667, %v1750
      %p1752 = scmp.lt.s32.totalorder %s29, 1
      %s1753 = scalar_select %p1752, %s29, 1
      %s1754 = smul.addr %s1753, 8
      %s1755 = scalar_lea.vmem %s16, %s1754
      %p1756 = scmp.lt.s32.totalorder %s29, 1
      %s1757 = scalar_select %p1756, %s29, 1
      %s1758 = smul.addr %s1757, 8
      %s1759 = scalar_lea.vmem %s17, %s1758
      // Predicated region
      $region85: #{decoder_forward.12} parent=83 // pred_check
        %p1760 = pneg %p413
      $region86: #{decoder_forward.12} parent=83 // pred_check_branch
        %1762 = sbr.rel (%p1760) target = $region88
      $region87: #{decoder_forward.12} parent=83 // pred_region
        _
      $region88: #{decoder_forward.12} parent=83 // pred_fallthru
        _
      // Predicated region
      $region89: #{decoder_forward.12} parent=83 // pred_check
        %p1763 = pneg %p439
      $region90: #{decoder_forward.12} parent=83 // pred_check_branch
        %1765 = sbr.rel (%p1763) target = $region92
      $region91: #{decoder_forward.12} parent=83 // pred_region
        _
      $region92: #{decoder_forward.12} parent=83 // pred_fallthru
        _
    $region84: #{decoder_forward.12} parent=5 // pred_fallthru
      _
    %p1766 = scmp.le.s32.totalorder 2, %s24
    // Predicated region
    $region93: #{decoder_forward.12} parent=5 // pred_check
      %p1767 = pneg %p1766
    $region94: #{decoder_forward.12} parent=5 // pred_check_branch
      %1769 = sbr.rel (%p1767) target = $region96
    $region95: #{decoder_forward.12} parent=5 // pred_region
      %s1770 = ssub.s32 %s24, 2
      // Predicated region
      $region97: #{decoder_forward.12} parent=95 // pred_check
        %p1771 = pneg %p419
      $region98: #{decoder_forward.12} parent=95 // pred_check_branch
        %1773 = sbr.rel (%p1771) target = $region100
      $region99: #{decoder_forward.12} parent=95 // pred_region
        %p1774 = scmp.lt.s32.totalorder %s30, 1
        %s1775 = scalar_select %p1774, %s30, 1
        %s1776 = smul.addr %s1775, 8
        %s1777 = scalar_lea.vmem %s16, %s1776
      $region100: #{decoder_forward.12} parent=95 // pred_fallthru
        _
      // Predicated region
      $region101: #{decoder_forward.12} parent=95 // pred_check
        %p1778 = pneg %p445
      $region102: #{decoder_forward.12} parent=95 // pred_check_branch
        %1780 = sbr.rel (%p1778) target = $region104
      $region103: #{decoder_forward.12} parent=95 // pred_region
        %p1781 = scmp.lt.s32.totalorder %s30, 1
        %s1782 = scalar_select %p1781, %s30, 1
        %s1783 = smul.addr %s1782, 8
        %s1784 = scalar_lea.vmem %s17, %s1783
      $region104: #{decoder_forward.12} parent=95 // pred_fallthru
        _
    $region96: #{decoder_forward.12} parent=5 // pred_fallthru
      _
  $region6: #{decoder_forward.12} parent=0 // loop_footer
    %s28 = sadd.s32 1, %s24
  $region7: #{decoder_forward.12} parent=0 // loop_footer_branch
    %23 = sbr.rel target = $region3
  $region8: #{decoder_forward.12} parent=0 // loop_exit
    _

</llo_original>
